<compile_context>
chip_gen: v7x
topology: tpu7x:2x2x1
jax: 0.10.0
libtpu: 0.0.40
codegen_flags: <defaults>
</compile_context>

<pallas_src>
import functools

import jax
import jax.numpy as jnp
from jax.experimental import pallas as pl
from jax.experimental.pallas import tpu as pltpu


def _round_up(x, m):
    return ((x + m - 1) // m) * m


# ----------------------------------------------------------------------------
# Fused LSTM layer kernel: per (batch-block, time-block) grid step
#   1) one big MXU matmul for the block's input projection (stays in VMEM),
#   2) an unrolled recurrence over t_blk timesteps with h/c carried in VMEM.
# Gate order matches PyTorch: [i, f, g, o], each gate occupying Hp lanes.
# ----------------------------------------------------------------------------
def _lstm_fused_kernel(x_ref, wih_ref, whh_ref, b_ref,
                       out_ref, hN_ref, cN_ref,
                       h_sc, c_sc, xp_sc,
                       *, t_real, apply_mask):
    t_idx = pl.program_id(1)

    @pl.when(t_idx == 0)
    def _():
        h_sc[...] = jnp.zeros_like(h_sc)
        c_sc[...] = jnp.zeros_like(c_sc)

    t_blk, b_blk, fp = x_ref.shape
    hp = h_sc.shape[-1]

    # ---- fused input projection for the whole time block (M = t_blk * b_blk) ----
    x2 = x_ref[...].reshape(t_blk * b_blk, fp)                  # bf16
    xp = jnp.dot(x2, wih_ref[...], preferred_element_type=jnp.float32) + b_ref[...]
    xp_sc[...] = xp.reshape(t_blk, b_blk, 4 * hp)               # stays in VMEM

    def _sigmoid(v):
        # EUP exp + approx reciprocal: shorter latency chain than jax.nn.sigmoid.
        return pl.reciprocal(1.0 + jnp.exp(-v), approx=True)

    def step(i, carry):
        h, c = carry
        # Recurrent matmul streams W_hh^T straight from VMEM (no vreg hoist).
        g = xp_sc[i] + jnp.dot(h.astype(jnp.bfloat16), whh_ref[...],
                               preferred_element_type=jnp.float32)
        i_g = _sigmoid(g[:, 0 * hp:1 * hp])
        f_g = _sigmoid(g[:, 1 * hp:2 * hp])
        g_g = jnp.tanh(g[:, 2 * hp:3 * hp])
        o_g = _sigmoid(g[:, 3 * hp:4 * hp])
        c_new = f_g * c + i_g * g_g
        h_new = o_g * jnp.tanh(c_new)
        if apply_mask:
            # Freeze the carry on zero-padded tail timesteps so h_n/c_n equal the
            # state after the REAL last timestep (padded outputs are sliced off).
            valid = (t_idx * t_blk + i) < t_real
            h_new = jnp.where(valid, h_new, h)
            c_new = jnp.where(valid, c_new, c)
        out_ref[i] = h_new.astype(out_ref.dtype)
        return h_new, c_new

    h, c = jax.lax.fori_loop(0, t_blk, step, (h_sc[...], c_sc[...]), unroll=True)
    h_sc[...] = h
    c_sc[...] = c

    @pl.when(t_idx == pl.num_programs(1) - 1)
    def _():
        hN_ref[...] = h
        cN_ref[...] = c


# ----------------------------------------------------------------------------
# One LSTM layer on a time-major, batch/feature-padded activation.
# ----------------------------------------------------------------------------
def lstm_layer_tm(x_tm, w_ih, w_hh, b_ih, b_hh, *, t_real, out_dtype=jnp.bfloat16):
    """x_tm: (T_in, Bp, Fx), Bp multiple of 8, feature columns >= real F are 0,
    timesteps >= t_real (if any) are padding.  Returns
    (out_tm (T_pad, Bp, Hp) out_dtype, h_n (Bp, Hp) f32, c_n (Bp, Hp) f32)
    where Hp = round_up(H, 128) and output lanes >= H are exactly 0."""
    T_in, Bp, Fx = x_tm.shape
    F = w_ih.shape[1]
    H = w_hh.shape[1]
    Hp = _round_up(H, 128)
    Fp = max(_round_up(F, 128), Fx)

    # ---- padded / transposed / bf16 weights (pad H -> Hp per gate) ----
    wih_t = jnp.transpose(w_ih).reshape(F, 4, H)
    wih_t = jnp.pad(wih_t, ((0, Fp - F), (0, 0), (0, Hp - H)))
    wih_t = wih_t.reshape(Fp, 4 * Hp).astype(jnp.bfloat16)

    # TODO(synk): for strict long-sequence PyTorch parity keep W_hh in f32 (slower MXU
    # path); bf16 is the throughput path and passes the tolerance check here.
    whh_t = jnp.transpose(w_hh).reshape(H, 4, H)
    whh_t = jnp.pad(whh_t, ((0, Hp - H), (0, 0), (0, Hp - H)))
    whh_t = whh_t.reshape(Hp, 4 * Hp).astype(jnp.bfloat16)

    bias = (b_ih + b_hh).reshape(4, H)
    bias = jnp.pad(bias, ((0, 0), (0, Hp - H))).reshape(1, 4 * Hp).astype(jnp.float32)

    if Fp != Fx:                               # zero-pad features (matching zero W rows)
        x_tm = jnp.pad(x_tm, ((0, 0), (0, 0), (0, Fp - Fx)))
    x_tm = x_tm.astype(jnp.bfloat16)

    # ---- block sizes ----
    # Cap the unrolled time block as Hp grows (per-step gates are (Bp, 4Hp) f32 in vregs).
    max_t_blk = 32 if Hp <= 256 else (16 if Hp <= 512 else 8)
    t_blk = min(max_t_blk, T_in)
    T_pad = _round_up(T_in, t_blk)             # pad T UP instead of shrinking t_blk to 1
    if T_pad != T_in:
        x_tm = jnp.pad(x_tm, ((0, T_pad - T_in), (0, 0), (0, 0)))
    apply_mask = (T_pad != t_real)

    # Batch blocks: shard the recurrence across v7x's two TensorCores when Bp >= 16.
    b_blk = Bp // 2 if (Bp >= 16 and Bp % 16 == 0) else Bp
    n_b = Bp // b_blk
    n_t = T_pad // t_blk

    kernel = functools.partial(_lstm_fused_kernel, t_real=t_real, apply_mask=apply_mask)

    # ---- VMEM budget derived from actual block sizes (not hard-coded) ----
    out_isz = jnp.dtype(out_dtype).itemsize
    vmem_need = (
        2 * t_blk * b_blk * Fp * 2                 # x block (bf16, double-buffered)
        + 2 * (Fp + Hp) * 4 * Hp * 2               # W_ih^T + W_hh^T (worst case 2 bufs)
        + 2 * 4 * Hp * 4                           # bias
        + 2 * t_blk * b_blk * Hp * out_isz         # out block
        + 2 * 2 * b_blk * Hp * 4                   # hN / cN
        + 2 * b_blk * Hp * 4                       # h/c carries
        + t_blk * b_blk * 4 * Hp * 4               # gate-preactivation scratch
    )
    vmem_limit = int(min(max(vmem_need * 5 // 4 + (4 << 20), 32 << 20), 96 << 20))

    def _run(single_buffer_weights):
        if single_buffer_weights:
            def res_spec(shape, imap):
                # Constant-index resident blocks: single buffering frees VMEM.
                return pl.BlockSpec(shape, imap, pipeline_mode=pl.Buffered(1))
        else:
            def res_spec(shape, imap):
                return pl.BlockSpec(shape, imap)

        return pl.pallas_call(
            kernel,
            out_shape=(
                jax.ShapeDtypeStruct((T_pad, Bp, Hp), out_dtype),
                jax.ShapeDtypeStruct((Bp, Hp), jnp.float32),
                jax.ShapeDtypeStruct((Bp, Hp), jnp.float32),
            ),
            grid_spec=pltpu.PrefetchScalarGridSpec(
                num_scalar_prefetch=0,
                grid=(n_b, n_t),
                in_specs=[
                    pl.BlockSpec((t_blk, b_blk, Fp), lambda b, t: (t, b, 0)),  # x block
                    res_spec((Fp, 4 * Hp), lambda b, t: (0, 0)),   # W_ih^T (resident)
                    res_spec((Hp, 4 * Hp), lambda b, t: (0, 0)),   # W_hh^T (resident)
                    res_spec((1, 4 * Hp), lambda b, t: (0, 0)),    # fused bias
                ],
                out_specs=[
                    pl.BlockSpec((t_blk, b_blk, Hp), lambda b, t: (t, b, 0)),  # outputs
                    pl.BlockSpec((b_blk, Hp), lambda b, t: (b, 0)),            # h_n
                    pl.BlockSpec((b_blk, Hp), lambda b, t: (b, 0)),            # c_n
                ],
                scratch_shapes=[
                    pltpu.VMEM((b_blk, Hp), jnp.float32),                 # h carry
                    pltpu.VMEM((b_blk, Hp), jnp.float32),                 # c carry
                    pltpu.VMEM((t_blk, b_blk, 4 * Hp), jnp.float32),      # gate preacts
                ],
            ),
            compiler_params=pltpu.CompilerParams(
                dimension_semantics=("parallel", "arbitrary"),   # batch parallel, time serial
                vmem_limit_bytes=vmem_limit),
        )(x_tm, wih_t, whh_t, bias)

    try:
        return _run(True)
    except Exception:   # pipeline_mode / Buffered(1) unsupported on this JAX build
        return _run(False)


# ----------------------------------------------------------------------------
# Parameters + forward (matches PyTorch Encoder semantics)
# ----------------------------------------------------------------------------
def init_encoder_params(key, vocab_size, embed_dim, hidden_dim, num_layers, pad_idx):
    keys = jax.random.split(key, 1 + 4 * num_layers)
    emb = jax.random.normal(keys[0], (vocab_size, embed_dim), jnp.float32)
    emb = emb.at[pad_idx].set(0.0)                 # padding_idx row is zero
    emb = emb.astype(jnp.bfloat16)                 # bf16 table -> bf16 layer-0 activations

    k = 1.0 / jnp.sqrt(jnp.float32(hidden_dim))
    lstm = []
    for layer in range(num_layers):
        in_dim = embed_dim if layer == 0 else hidden_dim
        kw = keys[1 + 4 * layer: 1 + 4 * (layer + 1)]
        lstm.append(dict(
            w_ih=jax.random.uniform(kw[0], (4 * hidden_dim, in_dim), jnp.float32, -k, k),
            w_hh=jax.random.uniform(kw[1], (4 * hidden_dim, hidden_dim), jnp.float32, -k, k),
            b_ih=jax.random.uniform(kw[2], (4 * hidden_dim,), jnp.float32, -k, k),
            b_hh=jax.random.uniform(kw[3], (4 * hidden_dim,), jnp.float32, -k, k),
        ))
    return dict(embedding=emb, lstm=lstm)


def encoder_forward(params, src):
    """src: (B, T) int32 token ids. Returns (outputs (B,T,H) f32, (h_n, c_n)) with
    h_n, c_n of shape (num_layers, B, H) — matching PyTorch nn.LSTM batch_first."""
    B, T = src.shape
    H = params["lstm"][0]["w_hh"].shape[1]
    Bp = _round_up(B, 8)
    num_layers = len(params["lstm"])

    # Embedding gather directly into time-major layout: transpose the tiny (B,T)
    # index matrix, never the (B,T,E) activation tensor.
    x_tm = jnp.take(params["embedding"], src.T, axis=0)        # (T, B, E) bf16
    if Bp != B:
        x_tm = jnp.pad(x_tm, ((0, 0), (0, Bp - B), (0, 0)))
    # NOTE: padded batch rows are NOT kept at zero inside the layers (gates = bias);
    # they are row-independent and sliced off below.

    h_list, c_list = [], []
    for li, lp in enumerate(params["lstm"]):
        last = (li == num_layers - 1)
        x_tm, h_n, c_n = lstm_layer_tm(
            x_tm, lp["w_ih"], lp["w_hh"], lp["b_ih"], lp["b_hh"],
            t_real=T, out_dtype=jnp.float32 if last else jnp.bfloat16)
        h_list.append(h_n[:B, :H])
        c_list.append(c_n[:B, :H])

    outputs = jnp.transpose(x_tm, (1, 0, 2))[:B, :T, :H]       # (B, T, H) f32
    hidden = (jnp.stack(h_list, axis=0), jnp.stack(c_list, axis=0))
    return outputs, hidden


# ----------------------------------------------------------------------------
# Pure-JAX f32 reference (numerical sanity check)
# ----------------------------------------------------------------------------
def _encoder_reference(params, src):
    x = jnp.take(params["embedding"].astype(jnp.float32), src, axis=0)
    h_all, c_all = [], []
    for lp in params["lstm"]:
        w_ih, w_hh = lp["w_ih"], lp["w_hh"]
        b = lp["b_ih"] + lp["b_hh"]
        H = w_hh.shape[1]
        B = x.shape[0]

        def step(carry, x_t, w_ih=w_ih, w_hh=w_hh, b=b, H=H):
            h, c = carry
            g = x_t @ w_ih.T + h @ w_hh.T + b
            i_g = jax.nn.sigmoid(g[:, 0 * H:1 * H])
            f_g = jax.nn.sigmoid(g[:, 1 * H:2 * H])
            g_g = jnp.tanh(g[:, 2 * H:3 * H])
            o_g = jax.nn.sigmoid(g[:, 3 * H:4 * H])
            c = f_g * c + i_g * g_g
            h = o_g * jnp.tanh(c)
            return (h, c), h

        init = (jnp.zeros((B, H), jnp.float32), jnp.zeros((B, H), jnp.float32))
        (h_n, c_n), ys = jax.lax.scan(step, init, jnp.transpose(x, (1, 0, 2)))
        x = jnp.transpose(ys, (1, 0, 2))
        h_all.append(h_n)
        c_all.append(c_n)
    return x, (jnp.stack(h_all), jnp.stack(c_all))


if __name__ == "__main__":
    VOCAB, EMBED, HIDDEN, LAYERS, PAD = 50, 32, 32, 2, 0
    B, T = 2, 8

    key = jax.random.PRNGKey(0)
    pkey, skey = jax.random.split(key)
    params = init_encoder_params(pkey, VOCAB, EMBED, HIDDEN, LAYERS, PAD)
    src = jax.random.randint(skey, (B, T), 0, VOCAB, dtype=jnp.int32)

    outputs, (h_n, c_n) = encoder_forward(params, src)
    jax.block_until_ready((outputs, h_n, c_n))

    assert outputs.shape == (B, T, HIDDEN)
    assert h_n.shape == (LAYERS, B, HIDDEN)
    assert c_n.shape == (LAYERS, B, HIDDEN)

    # numerical sanity check vs pure-JAX f32 reference (bf16-MXU / approx-recip tolerance)
    ref_out, (ref_h, ref_c) = _encoder_reference(params, src)
    assert float(jnp.max(jnp.abs(outputs - ref_out))) < 5e-2
    assert float(jnp.max(jnp.abs(h_n - ref_h))) < 5e-2
    assert float(jnp.max(jnp.abs(c_n - ref_c))) < 5e-2

    print("KERNEL_OK")
</pallas_src>

<mosaic_0001>
module attributes {stable_mosaic.version = 11 : i64} {
  func.func @_lstm_fused_kernel(%arg0: i32, %arg1: i32, %arg2: memref<8x8x128xbf16, #tpu.memory_space<vmem>>, %arg3: memref<128x512xbf16, #tpu.memory_space<vmem>>, %arg4: memref<128x512xbf16, #tpu.memory_space<vmem>>, %arg5: memref<1x512xf32, #tpu.memory_space<vmem>>, %arg6: memref<8x8x128xbf16, #tpu.memory_space<vmem>>, %arg7: memref<8x128xf32, #tpu.memory_space<vmem>>, %arg8: memref<8x128xf32, #tpu.memory_space<vmem>>, %arg9: memref<8x128xf32, #tpu.memory_space<vmem>>, %arg10: memref<8x128xf32, #tpu.memory_space<vmem>>, %arg11: memref<8x8x512xf32, #tpu.memory_space<vmem>>) attributes {dimension_semantics = [#tpu.dimension_semantics<parallel>, #tpu.dimension_semantics<arbitrary>], iteration_bounds = array<i64: 1, 1>, scalar_prefetch = 0 : i64, scratch_operands = 3 : i64, tpu.core_type = #tpu.core_type<tc>, window_params = [{transform_indices = @transform_0, window_bounds = array<i64: 8, 8, 128>}, {pipeline_mode = #tpu.pipeline_mode<synchronous>, transform_indices = @transform_1, window_bounds = array<i64: 128, 512>}, {pipeline_mode = #tpu.pipeline_mode<synchronous>, transform_indices = @transform_2, window_bounds = array<i64: 128, 512>}, {pipeline_mode = #tpu.pipeline_mode<synchronous>, transform_indices = @transform_3, window_bounds = array<i64: 1, 512>}, {transform_indices = @transform_4, window_bounds = array<i64: 8, 8, 128>}, {transform_indices = @transform_5, window_bounds = array<i64: 8, 128>}, {transform_indices = @transform_6, window_bounds = array<i64: 8, 128>}]} {
    %c0_i32 = arith.constant 0 : i32
    %0 = arith.cmpi eq, %arg1, %c0_i32 : i32
    %1 = arith.extui %0 : i1 to i32
    %c0_i32_0 = arith.constant 0 : i32
    %2 = arith.cmpi ne, %1, %c0_i32_0 : i32
    scf.if %2 {
      %cst_125 = arith.constant 0.000000e+00 : f32
      %339 = vector.broadcast %cst_125 : f32 to vector<8x128xf32>
      %c0_126 = arith.constant 0 : index
      %c0_127 = arith.constant 0 : index
      %340 = vector.load %arg9[%c0_126, %c0_127] : memref<8x128xf32, #tpu.memory_space<vmem>>, vector<8x128xf32>
      tpu.vector_store %arg9[%c0_126, %c0_127], %339 {strides = array<i32>} : memref<8x128xf32, #tpu.memory_space<vmem>>, vector<8x128xf32>,
      %cst_128 = arith.constant 0.000000e+00 : f32
      %341 = vector.broadcast %cst_128 : f32 to vector<8x128xf32>
      %c0_129 = arith.constant 0 : index
      %c0_130 = arith.constant 0 : index
      %342 = vector.load %arg10[%c0_129, %c0_130] : memref<8x128xf32, #tpu.memory_space<vmem>>, vector<8x128xf32>
      tpu.vector_store %arg10[%c0_129, %c0_130], %341 {strides = array<i32>} : memref<8x128xf32, #tpu.memory_space<vmem>>, vector<8x128xf32>,
    } else {
    }
    %c0 = arith.constant 0 : index
    %c0_1 = arith.constant 0 : index
    %c0_2 = arith.constant 0 : index
    %3 = vector.load %arg2[%c0, %c0_1, %c0_2] : memref<8x8x128xbf16, #tpu.memory_space<vmem>>, vector<8x8x128xbf16>
    %4 = vector.shape_cast %3 : vector<8x8x128xbf16> to vector<64x128xbf16>
    %c0_3 = arith.constant 0 : index
    %c0_4 = arith.constant 0 : index
    %5 = vector.load %arg3[%c0_3, %c0_4] : memref<128x512xbf16, #tpu.memory_space<vmem>>, vector<128x512xbf16>
    %cst = arith.constant dense<0.000000e+00> : vector<64x512xf32>
    %6 = tpu.matmul %4, %5, %cst {dimension_numbers = #tpu.dot_dimension_numbers<[1], [0], [0], [1], [0, 0, 1, 1], [], []>} : vector<64x128xbf16>, vector<128x512xbf16>, vector<64x512xf32> -> vector<64x512xf32>
    %c0_5 = arith.constant 0 : index
    %c0_6 = arith.constant 0 : index
    %7 = vector.load %arg5[%c0_5, %c0_6] : memref<1x512xf32, #tpu.memory_space<vmem>>, vector<1x512xf32>
    %8 = vector.broadcast %7 : vector<1x512xf32> to vector<64x512xf32>
    %9 = arith.addf %6, %8 : vector<64x512xf32>
    %10 = vector.shape_cast %9 : vector<64x512xf32> to vector<8x8x512xf32>
    %c0_7 = arith.constant 0 : index
    %c0_8 = arith.constant 0 : index
    %c0_9 = arith.constant 0 : index
    %11 = vector.load %arg11[%c0_7, %c0_8, %c0_9] : memref<8x8x512xf32, #tpu.memory_space<vmem>>, vector<8x8x512xf32>
    tpu.vector_store %arg11[%c0_7, %c0_8, %c0_9], %10 {strides = array<i32>} : memref<8x8x512xf32, #tpu.memory_space<vmem>>, vector<8x8x512xf32>,
    %c0_10 = arith.constant 0 : index
    %c0_11 = arith.constant 0 : index
    %12 = vector.load %arg9[%c0_10, %c0_11] : memref<8x128xf32, #tpu.memory_space<vmem>>, vector<8x128xf32>
    %c0_12 = arith.constant 0 : index
    %c0_13 = arith.constant 0 : index
    %13 = vector.load %arg10[%c0_12, %c0_13] : memref<8x128xf32, #tpu.memory_space<vmem>>, vector<8x128xf32>
    %c0_i32_14 = arith.constant 0 : i32
    %14 = arith.index_cast %c0_i32_14 : i32 to index
    %c0_15 = arith.constant 0 : index
    %c0_16 = arith.constant 0 : index
    %15 = vector.load %arg11[%14, %c0_15, %c0_16] : memref<8x8x512xf32, #tpu.memory_space<vmem>>, vector<1x8x512xf32>
    %16 = vector.shape_cast %15 : vector<1x8x512xf32> to vector<8x512xf32>
    %17 = arith.truncf %12 : vector<8x128xf32> to vector<8x128xbf16>
    %c0_17 = arith.constant 0 : index
    %c0_18 = arith.constant 0 : index
    %18 = vector.load %arg4[%c0_17, %c0_18] : memref<128x512xbf16, #tpu.memory_space<vmem>>, vector<128x512xbf16>
    %cst_19 = arith.constant dense<0.000000e+00> : vector<8x512xf32>
    %19 = tpu.matmul %17, %18, %cst_19 {dimension_numbers = #tpu.dot_dimension_numbers<[1], [0], [0], [1], [0, 0, 1, 1], [], []>} : vector<8x128xbf16>, vector<128x512xbf16>, vector<8x512xf32> -> vector<8x512xf32>
    %20 = arith.addf %16, %19 : vector<8x512xf32>
    %21 = vector.extract_strided_slice %20 {offsets = [0, 0], sizes = [8, 128], strides = [1, 1]} : vector<8x512xf32> to vector<8x128xf32>
    %cst_20 = arith.constant 0.000000e+00 : f32
    %22 = vector.broadcast %cst_20 : f32 to vector<8x128xf32>
    %23 = arith.subf %22, %21 : vector<8x128xf32>
    %24 = math.exp %23 : vector<8x128xf32>
    %cst_21 = arith.constant 1.000000e+00 : f32
    %25 = vector.broadcast %cst_21 : f32 to vector<8x128xf32>
    %26 = arith.addf %25, %24 : vector<8x128xf32>
    %27 = tpu.reciprocal %26 {approx = true} : vector<8x128xf32> -> vector<8x128xf32>
    %28 = vector.extract_strided_slice %20 {offsets = [0, 128], sizes = [8, 128], strides = [1, 1]} : vector<8x512xf32> to vector<8x128xf32>
    %cst_22 = arith.constant 0.000000e+00 : f32
    %29 = vector.broadcast %cst_22 : f32 to vector<8x128xf32>
    %30 = arith.subf %29, %28 : vector<8x128xf32>
    %31 = math.exp %30 : vector<8x128xf32>
    %cst_23 = arith.constant 1.000000e+00 : f32
    %32 = vector.broadcast %cst_23 : f32 to vector<8x128xf32>
    %33 = arith.addf %32, %31 : vector<8x128xf32>
    %34 = tpu.reciprocal %33 {approx = true} : vector<8x128xf32> -> vector<8x128xf32>
    %35 = vector.extract_strided_slice %20 {offsets = [0, 256], sizes = [8, 128], strides = [1, 1]} : vector<8x512xf32> to vector<8x128xf32>
    %36 = math.tanh %35 : vector<8x128xf32>
    %37 = vector.extract_strided_slice %20 {offsets = [0, 384], sizes = [8, 128], strides = [1, 1]} : vector<8x512xf32> to vector<8x128xf32>
    %cst_24 = arith.constant 0.000000e+00 : f32
    %38 = vector.broadcast %cst_24 : f32 to vector<8x128xf32>
    %39 = arith.subf %38, %37 : vector<8x128xf32>
    %40 = math.exp %39 : vector<8x128xf32>
    %cst_25 = arith.constant 1.000000e+00 : f32
    %41 = vector.broadcast %cst_25 : f32 to vector<8x128xf32>
    %42 = arith.addf %41, %40 : vector<8x128xf32>
    %43 = tpu.reciprocal %42 {approx = true} : vector<8x128xf32> -> vector<8x128xf32>
    %44 = arith.mulf %34, %13 : vector<8x128xf32>
    %45 = arith.mulf %27, %36 : vector<8x128xf32>
    %46 = arith.addf %44, %45 : vector<8x128xf32>
    %47 = math.tanh %46 : vector<8x128xf32>
    %48 = arith.mulf %43, %47 : vector<8x128xf32>
    %49 = arith.truncf %48 : vector<8x128xf32> to vector<8x128xbf16>
    %50 = arith.index_cast %c0_i32_14 : i32 to index
    %c0_26 = arith.constant 0 : index
    %c0_27 = arith.constant 0 : index
    %51 = vector.load %arg6[%50, %c0_26, %c0_27] : memref<8x8x128xbf16, #tpu.memory_space<vmem>>, vector<1x8x128xbf16>
    %52 = vector.shape_cast %51 : vector<1x8x128xbf16> to vector<8x128xbf16>
    %53 = vector.shape_cast %49 : vector<8x128xbf16> to vector<1x8x128xbf16>
    tpu.vector_store %arg6[%50, %c0_26, %c0_27], %53 {strides = array<i32>} : memref<8x8x128xbf16, #tpu.memory_space<vmem>>, vector<1x8x128xbf16>,
    %c1_i32 = arith.constant 1 : i32
    %54 = arith.index_cast %c1_i32 : i32 to index
    %c0_28 = arith.constant 0 : index
    %c0_29 = arith.constant 0 : index
    %55 = vector.load %arg11[%54, %c0_28, %c0_29] : memref<8x8x512xf32, #tpu.memory_space<vmem>>, vector<1x8x512xf32>
    %56 = vector.shape_cast %55 : vector<1x8x512xf32> to vector<8x512xf32>
    %57 = arith.truncf %48 : vector<8x128xf32> to vector<8x128xbf16>
    %c0_30 = arith.constant 0 : index
    %c0_31 = arith.constant 0 : index
    %58 = vector.load %arg4[%c0_30, %c0_31] : memref<128x512xbf16, #tpu.memory_space<vmem>>, vector<128x512xbf16>
    %cst_32 = arith.constant dense<0.000000e+00> : vector<8x512xf32>
    %59 = tpu.matmul %57, %58, %cst_32 {dimension_numbers = #tpu.dot_dimension_numbers<[1], [0], [0], [1], [0, 0, 1, 1], [], []>} : vector<8x128xbf16>, vector<128x512xbf16>, vector<8x512xf32> -> vector<8x512xf32>
    %60 = arith.addf %56, %59 : vector<8x512xf32>
    %61 = vector.extract_strided_slice %60 {offsets = [0, 0], sizes = [8, 128], strides = [1, 1]} : vector<8x512xf32> to vector<8x128xf32>
    %cst_33 = arith.constant 0.000000e+00 : f32
    %62 = vector.broadcast %cst_33 : f32 to vector<8x128xf32>
    %63 = arith.subf %62, %61 : vector<8x128xf32>
    %64 = math.exp %63 : vector<8x128xf32>
    %cst_34 = arith.constant 1.000000e+00 : f32
    %65 = vector.broadcast %cst_34 : f32 to vector<8x128xf32>
    %66 = arith.addf %65, %64 : vector<8x128xf32>
    %67 = tpu.reciprocal %66 {approx = true} : vector<8x128xf32> -> vector<8x128xf32>
    %68 = vector.extract_strided_slice %60 {offsets = [0, 128], sizes = [8, 128], strides = [1, 1]} : vector<8x512xf32> to vector<8x128xf32>
    %cst_35 = arith.constant 0.000000e+00 : f32
    %69 = vector.broadcast %cst_35 : f32 to vector<8x128xf32>
    %70 = arith.subf %69, %68 : vector<8x128xf32>
    %71 = math.exp %70 : vector<8x128xf32>
    %cst_36 = arith.constant 1.000000e+00 : f32
    %72 = vector.broadcast %cst_36 : f32 to vector<8x128xf32>
    %73 = arith.addf %72, %71 : vector<8x128xf32>
    %74 = tpu.reciprocal %73 {approx = true} : vector<8x128xf32> -> vector<8x128xf32>
    %75 = vector.extract_strided_slice %60 {offsets = [0, 256], sizes = [8, 128], strides = [1, 1]} : vector<8x512xf32> to vector<8x128xf32>
    %76 = math.tanh %75 : vector<8x128xf32>
    %77 = vector.extract_strided_slice %60 {offsets = [0, 384], sizes = [8, 128], strides = [1, 1]} : vector<8x512xf32> to vector<8x128xf32>
    %cst_37 = arith.constant 0.000000e+00 : f32
    %78 = vector.broadcast %cst_37 : f32 to vector<8x128xf32>
    %79 = arith.subf %78, %77 : vector<8x128xf32>
    %80 = math.exp %79 : vector<8x128xf32>
    %cst_38 = arith.constant 1.000000e+00 : f32
    %81 = vector.broadcast %cst_38 : f32 to vector<8x128xf32>
    %82 = arith.addf %81, %80 : vector<8x128xf32>
    %83 = tpu.reciprocal %82 {approx = true} : vector<8x128xf32> -> vector<8x128xf32>
    %84 = arith.mulf %74, %46 : vector<8x128xf32>
    %85 = arith.mulf %67, %76 : vector<8x128xf32>
    %86 = arith.addf %84, %85 : vector<8x128xf32>
    %87 = math.tanh %86 : vector<8x128xf32>
    %88 = arith.mulf %83, %87 : vector<8x128xf32>
    %89 = arith.truncf %88 : vector<8x128xf32> to vector<8x128xbf16>
    %90 = arith.index_cast %c1_i32 : i32 to index
    %c0_39 = arith.constant 0 : index
    %c0_40 = arith.constant 0 : index
    %91 = vector.load %arg6[%90, %c0_39, %c0_40] : memref<8x8x128xbf16, #tpu.memory_space<vmem>>, vector<1x8x128xbf16>
    %92 = vector.shape_cast %91 : vector<1x8x128xbf16> to vector<8x128xbf16>
    %93 = vector.shape_cast %89 : vector<8x128xbf16> to vector<1x8x128xbf16>
    tpu.vector_store %arg6[%90, %c0_39, %c0_40], %93 {strides = array<i32>} : memref<8x8x128xbf16, #tpu.memory_space<vmem>>, vector<1x8x128xbf16>,
    %c2_i32 = arith.constant 2 : i32
    %94 = arith.index_cast %c2_i32 : i32 to index
    %c0_41 = arith.constant 0 : index
    %c0_42 = arith.constant 0 : index
    %95 = vector.load %arg11[%94, %c0_41, %c0_42] : memref<8x8x512xf32, #tpu.memory_space<vmem>>, vector<1x8x512xf32>
    %96 = vector.shape_cast %95 : vector<1x8x512xf32> to vector<8x512xf32>
    %97 = arith.truncf %88 : vector<8x128xf32> to vector<8x128xbf16>
    %c0_43 = arith.constant 0 : index
    %c0_44 = arith.constant 0 : index
    %98 = vector.load %arg4[%c0_43, %c0_44] : memref<128x512xbf16, #tpu.memory_space<vmem>>, vector<128x512xbf16>
    %cst_45 = arith.constant dense<0.000000e+00> : vector<8x512xf32>
    %99 = tpu.matmul %97, %98, %cst_45 {dimension_numbers = #tpu.dot_dimension_numbers<[1], [0], [0], [1], [0, 0, 1, 1], [], []>} : vector<8x128xbf16>, vector<128x512xbf16>, vector<8x512xf32> -> vector<8x512xf32>
    %100 = arith.addf %96, %99 : vector<8x512xf32>
    %101 = vector.extract_strided_slice %100 {offsets = [0, 0], sizes = [8, 128], strides = [1, 1]} : vector<8x512xf32> to vector<8x128xf32>
    %cst_46 = arith.constant 0.000000e+00 : f32
    %102 = vector.broadcast %cst_46 : f32 to vector<8x128xf32>
    %103 = arith.subf %102, %101 : vector<8x128xf32>
    %104 = math.exp %103 : vector<8x128xf32>
    %cst_47 = arith.constant 1.000000e+00 : f32
    %105 = vector.broadcast %cst_47 : f32 to vector<8x128xf32>
    %106 = arith.addf %105, %104 : vector<8x128xf32>
    %107 = tpu.reciprocal %106 {approx = true} : vector<8x128xf32> -> vector<8x128xf32>
    %108 = vector.extract_strided_slice %100 {offsets = [0, 128], sizes = [8, 128], strides = [1, 1]} : vector<8x512xf32> to vector<8x128xf32>
    %cst_48 = arith.constant 0.000000e+00 : f32
    %109 = vector.broadcast %cst_48 : f32 to vector<8x128xf32>
    %110 = arith.subf %109, %108 : vector<8x128xf32>
    %111 = math.exp %110 : vector<8x128xf32>
    %cst_49 = arith.constant 1.000000e+00 : f32
    %112 = vector.broadcast %cst_49 : f32 to vector<8x128xf32>
    %113 = arith.addf %112, %111 : vector<8x128xf32>
    %114 = tpu.reciprocal %113 {approx = true} : vector<8x128xf32> -> vector<8x128xf32>
    %115 = vector.extract_strided_slice %100 {offsets = [0, 256], sizes = [8, 128], strides = [1, 1]} : vector<8x512xf32> to vector<8x128xf32>
    %116 = math.tanh %115 : vector<8x128xf32>
    %117 = vector.extract_strided_slice %100 {offsets = [0, 384], sizes = [8, 128], strides = [1, 1]} : vector<8x512xf32> to vector<8x128xf32>
    %cst_50 = arith.constant 0.000000e+00 : f32
    %118 = vector.broadcast %cst_50 : f32 to vector<8x128xf32>
    %119 = arith.subf %118, %117 : vector<8x128xf32>
    %120 = math.exp %119 : vector<8x128xf32>
    %cst_51 = arith.constant 1.000000e+00 : f32
    %121 = vector.broadcast %cst_51 : f32 to vector<8x128xf32>
    %122 = arith.addf %121, %120 : vector<8x128xf32>
    %123 = tpu.reciprocal %122 {approx = true} : vector<8x128xf32> -> vector<8x128xf32>
    %124 = arith.mulf %114, %86 : vector<8x128xf32>
    %125 = arith.mulf %107, %116 : vector<8x128xf32>
    %126 = arith.addf %124, %125 : vector<8x128xf32>
    %127 = math.tanh %126 : vector<8x128xf32>
    %128 = arith.mulf %123, %127 : vector<8x128xf32>
    %129 = arith.truncf %128 : vector<8x128xf32> to vector<8x128xbf16>
    %130 = arith.index_cast %c2_i32 : i32 to index
    %c0_52 = arith.constant 0 : index
    %c0_53 = arith.constant 0 : index
    %131 = vector.load %arg6[%130, %c0_52, %c0_53] : memref<8x8x128xbf16, #tpu.memory_space<vmem>>, vector<1x8x128xbf16>
    %132 = vector.shape_cast %131 : vector<1x8x128xbf16> to vector<8x128xbf16>
    %133 = vector.shape_cast %129 : vector<8x128xbf16> to vector<1x8x128xbf16>
    tpu.vector_store %arg6[%130, %c0_52, %c0_53], %133 {strides = array<i32>} : memref<8x8x128xbf16, #tpu.memory_space<vmem>>, vector<1x8x128xbf16>,
    %c3_i32 = arith.constant 3 : i32
    %134 = arith.index_cast %c3_i32 : i32 to index
    %c0_54 = arith.constant 0 : index
    %c0_55 = arith.constant 0 : index
    %135 = vector.load %arg11[%134, %c0_54, %c0_55] : memref<8x8x512xf32, #tpu.memory_space<vmem>>, vector<1x8x512xf32>
    %136 = vector.shape_cast %135 : vector<1x8x512xf32> to vector<8x512xf32>
    %137 = arith.truncf %128 : vector<8x128xf32> to vector<8x128xbf16>
    %c0_56 = arith.constant 0 : index
    %c0_57 = arith.constant 0 : index
    %138 = vector.load %arg4[%c0_56, %c0_57] : memref<128x512xbf16, #tpu.memory_space<vmem>>, vector<128x512xbf16>
    %cst_58 = arith.constant dense<0.000000e+00> : vector<8x512xf32>
    %139 = tpu.matmul %137, %138, %cst_58 {dimension_numbers = #tpu.dot_dimension_numbers<[1], [0], [0], [1], [0, 0, 1, 1], [], []>} : vector<8x128xbf16>, vector<128x512xbf16>, vector<8x512xf32> -> vector<8x512xf32>
    %140 = arith.addf %136, %139 : vector<8x512xf32>
    %141 = vector.extract_strided_slice %140 {offsets = [0, 0], sizes = [8, 128], strides = [1, 1]} : vector<8x512xf32> to vector<8x128xf32>
    %cst_59 = arith.constant 0.000000e+00 : f32
    %142 = vector.broadcast %cst_59 : f32 to vector<8x128xf32>
    %143 = arith.subf %142, %141 : vector<8x128xf32>
    %144 = math.exp %143 : vector<8x128xf32>
    %cst_60 = arith.constant 1.000000e+00 : f32
    %145 = vector.broadcast %cst_60 : f32 to vector<8x128xf32>
    %146 = arith.addf %145, %144 : vector<8x128xf32>
    %147 = tpu.reciprocal %146 {approx = true} : vector<8x128xf32> -> vector<8x128xf32>
    %148 = vector.extract_strided_slice %140 {offsets = [0, 128], sizes = [8, 128], strides = [1, 1]} : vector<8x512xf32> to vector<8x128xf32>
    %cst_61 = arith.constant 0.000000e+00 : f32
    %149 = vector.broadcast %cst_61 : f32 to vector<8x128xf32>
    %150 = arith.subf %149, %148 : vector<8x128xf32>
    %151 = math.exp %150 : vector<8x128xf32>
    %cst_62 = arith.constant 1.000000e+00 : f32
    %152 = vector.broadcast %cst_62 : f32 to vector<8x128xf32>
    %153 = arith.addf %152, %151 : vector<8x128xf32>
    %154 = tpu.reciprocal %153 {approx = true} : vector<8x128xf32> -> vector<8x128xf32>
    %155 = vector.extract_strided_slice %140 {offsets = [0, 256], sizes = [8, 128], strides = [1, 1]} : vector<8x512xf32> to vector<8x128xf32>
    %156 = math.tanh %155 : vector<8x128xf32>
    %157 = vector.extract_strided_slice %140 {offsets = [0, 384], sizes = [8, 128], strides = [1, 1]} : vector<8x512xf32> to vector<8x128xf32>
    %cst_63 = arith.constant 0.000000e+00 : f32
    %158 = vector.broadcast %cst_63 : f32 to vector<8x128xf32>
    %159 = arith.subf %158, %157 : vector<8x128xf32>
    %160 = math.exp %159 : vector<8x128xf32>
    %cst_64 = arith.constant 1.000000e+00 : f32
    %161 = vector.broadcast %cst_64 : f32 to vector<8x128xf32>
    %162 = arith.addf %161, %160 : vector<8x128xf32>
    %163 = tpu.reciprocal %162 {approx = true} : vector<8x128xf32> -> vector<8x128xf32>
    %164 = arith.mulf %154, %126 : vector<8x128xf32>
    %165 = arith.mulf %147, %156 : vector<8x128xf32>
    %166 = arith.addf %164, %165 : vector<8x128xf32>
    %167 = math.tanh %166 : vector<8x128xf32>
    %168 = arith.mulf %163, %167 : vector<8x128xf32>
    %169 = arith.truncf %168 : vector<8x128xf32> to vector<8x128xbf16>
    %170 = arith.index_cast %c3_i32 : i32 to index
    %c0_65 = arith.constant 0 : index
    %c0_66 = arith.constant 0 : index
    %171 = vector.load %arg6[%170, %c0_65, %c0_66] : memref<8x8x128xbf16, #tpu.memory_space<vmem>>, vector<1x8x128xbf16>
    %172 = vector.shape_cast %171 : vector<1x8x128xbf16> to vector<8x128xbf16>
    %173 = vector.shape_cast %169 : vector<8x128xbf16> to vector<1x8x128xbf16>
    tpu.vector_store %arg6[%170, %c0_65, %c0_66], %173 {strides = array<i32>} : memref<8x8x128xbf16, #tpu.memory_space<vmem>>, vector<1x8x128xbf16>,
    %c4_i32 = arith.constant 4 : i32
    %174 = arith.index_cast %c4_i32 : i32 to index
    %c0_67 = arith.constant 0 : index
    %c0_68 = arith.constant 0 : index
    %175 = vector.load %arg11[%174, %c0_67, %c0_68] : memref<8x8x512xf32, #tpu.memory_space<vmem>>, vector<1x8x512xf32>
    %176 = vector.shape_cast %175 : vector<1x8x512xf32> to vector<8x512xf32>
    %177 = arith.truncf %168 : vector<8x128xf32> to vector<8x128xbf16>
    %c0_69 = arith.constant 0 : index
    %c0_70 = arith.constant 0 : index
    %178 = vector.load %arg4[%c0_69, %c0_70] : memref<128x512xbf16, #tpu.memory_space<vmem>>, vector<128x512xbf16>
    %cst_71 = arith.constant dense<0.000000e+00> : vector<8x512xf32>
    %179 = tpu.matmul %177, %178, %cst_71 {dimension_numbers = #tpu.dot_dimension_numbers<[1], [0], [0], [1], [0, 0, 1, 1], [], []>} : vector<8x128xbf16>, vector<128x512xbf16>, vector<8x512xf32> -> vector<8x512xf32>
    %180 = arith.addf %176, %179 : vector<8x512xf32>
    %181 = vector.extract_strided_slice %180 {offsets = [0, 0], sizes = [8, 128], strides = [1, 1]} : vector<8x512xf32> to vector<8x128xf32>
    %cst_72 = arith.constant 0.000000e+00 : f32
    %182 = vector.broadcast %cst_72 : f32 to vector<8x128xf32>
    %183 = arith.subf %182, %181 : vector<8x128xf32>
    %184 = math.exp %183 : vector<8x128xf32>
    %cst_73 = arith.constant 1.000000e+00 : f32
    %185 = vector.broadcast %cst_73 : f32 to vector<8x128xf32>
    %186 = arith.addf %185, %184 : vector<8x128xf32>
    %187 = tpu.reciprocal %186 {approx = true} : vector<8x128xf32> -> vector<8x128xf32>
    %188 = vector.extract_strided_slice %180 {offsets = [0, 128], sizes = [8, 128], strides = [1, 1]} : vector<8x512xf32> to vector<8x128xf32>
    %cst_74 = arith.constant 0.000000e+00 : f32
    %189 = vector.broadcast %cst_74 : f32 to vector<8x128xf32>
    %190 = arith.subf %189, %188 : vector<8x128xf32>
    %191 = math.exp %190 : vector<8x128xf32>
    %cst_75 = arith.constant 1.000000e+00 : f32
    %192 = vector.broadcast %cst_75 : f32 to vector<8x128xf32>
    %193 = arith.addf %192, %191 : vector<8x128xf32>
    %194 = tpu.reciprocal %193 {approx = true} : vector<8x128xf32> -> vector<8x128xf32>
    %195 = vector.extract_strided_slice %180 {offsets = [0, 256], sizes = [8, 128], strides = [1, 1]} : vector<8x512xf32> to vector<8x128xf32>
    %196 = math.tanh %195 : vector<8x128xf32>
    %197 = vector.extract_strided_slice %180 {offsets = [0, 384], sizes = [8, 128], strides = [1, 1]} : vector<8x512xf32> to vector<8x128xf32>
    %cst_76 = arith.constant 0.000000e+00 : f32
    %198 = vector.broadcast %cst_76 : f32 to vector<8x128xf32>
    %199 = arith.subf %198, %197 : vector<8x128xf32>
    %200 = math.exp %199 : vector<8x128xf32>
    %cst_77 = arith.constant 1.000000e+00 : f32
    %201 = vector.broadcast %cst_77 : f32 to vector<8x128xf32>
    %202 = arith.addf %201, %200 : vector<8x128xf32>
    %203 = tpu.reciprocal %202 {approx = true} : vector<8x128xf32> -> vector<8x128xf32>
    %204 = arith.mulf %194, %166 : vector<8x128xf32>
    %205 = arith.mulf %187, %196 : vector<8x128xf32>
    %206 = arith.addf %204, %205 : vector<8x128xf32>
    %207 = math.tanh %206 : vector<8x128xf32>
    %208 = arith.mulf %203, %207 : vector<8x128xf32>
    %209 = arith.truncf %208 : vector<8x128xf32> to vector<8x128xbf16>
    %210 = arith.index_cast %c4_i32 : i32 to index
    %c0_78 = arith.constant 0 : index
    %c0_79 = arith.constant 0 : index
    %211 = vector.load %arg6[%210, %c0_78, %c0_79] : memref<8x8x128xbf16, #tpu.memory_space<vmem>>, vector<1x8x128xbf16>
    %212 = vector.shape_cast %211 : vector<1x8x128xbf16> to vector<8x128xbf16>
    %213 = vector.shape_cast %209 : vector<8x128xbf16> to vector<1x8x128xbf16>
    tpu.vector_store %arg6[%210, %c0_78, %c0_79], %213 {strides = array<i32>} : memref<8x8x128xbf16, #tpu.memory_space<vmem>>, vector<1x8x128xbf16>,
    %c5_i32 = arith.constant 5 : i32
    %214 = arith.index_cast %c5_i32 : i32 to index
    %c0_80 = arith.constant 0 : index
    %c0_81 = arith.constant 0 : index
    %215 = vector.load %arg11[%214, %c0_80, %c0_81] : memref<8x8x512xf32, #tpu.memory_space<vmem>>, vector<1x8x512xf32>
    %216 = vector.shape_cast %215 : vector<1x8x512xf32> to vector<8x512xf32>
    %217 = arith.truncf %208 : vector<8x128xf32> to vector<8x128xbf16>
    %c0_82 = arith.constant 0 : index
    %c0_83 = arith.constant 0 : index
    %218 = vector.load %arg4[%c0_82, %c0_83] : memref<128x512xbf16, #tpu.memory_space<vmem>>, vector<128x512xbf16>
    %cst_84 = arith.constant dense<0.000000e+00> : vector<8x512xf32>
    %219 = tpu.matmul %217, %218, %cst_84 {dimension_numbers = #tpu.dot_dimension_numbers<[1], [0], [0], [1], [0, 0, 1, 1], [], []>} : vector<8x128xbf16>, vector<128x512xbf16>, vector<8x512xf32> -> vector<8x512xf32>
    %220 = arith.addf %216, %219 : vector<8x512xf32>
    %221 = vector.extract_strided_slice %220 {offsets = [0, 0], sizes = [8, 128], strides = [1, 1]} : vector<8x512xf32> to vector<8x128xf32>
    %cst_85 = arith.constant 0.000000e+00 : f32
    %222 = vector.broadcast %cst_85 : f32 to vector<8x128xf32>
    %223 = arith.subf %222, %221 : vector<8x128xf32>
    %224 = math.exp %223 : vector<8x128xf32>
    %cst_86 = arith.constant 1.000000e+00 : f32
    %225 = vector.broadcast %cst_86 : f32 to vector<8x128xf32>
    %226 = arith.addf %225, %224 : vector<8x128xf32>
    %227 = tpu.reciprocal %226 {approx = true} : vector<8x128xf32> -> vector<8x128xf32>
    %228 = vector.extract_strided_slice %220 {offsets = [0, 128], sizes = [8, 128], strides = [1, 1]} : vector<8x512xf32> to vector<8x128xf32>
    %cst_87 = arith.constant 0.000000e+00 : f32
    %229 = vector.broadcast %cst_87 : f32 to vector<8x128xf32>
    %230 = arith.subf %229, %228 : vector<8x128xf32>
    %231 = math.exp %230 : vector<8x128xf32>
    %cst_88 = arith.constant 1.000000e+00 : f32
    %232 = vector.broadcast %cst_88 : f32 to vector<8x128xf32>
    %233 = arith.addf %232, %231 : vector<8x128xf32>
    %234 = tpu.reciprocal %233 {approx = true} : vector<8x128xf32> -> vector<8x128xf32>
    %235 = vector.extract_strided_slice %220 {offsets = [0, 256], sizes = [8, 128], strides = [1, 1]} : vector<8x512xf32> to vector<8x128xf32>
    %236 = math.tanh %235 : vector<8x128xf32>
    %237 = vector.extract_strided_slice %220 {offsets = [0, 384], sizes = [8, 128], strides = [1, 1]} : vector<8x512xf32> to vector<8x128xf32>
    %cst_89 = arith.constant 0.000000e+00 : f32
    %238 = vector.broadcast %cst_89 : f32 to vector<8x128xf32>
    %239 = arith.subf %238, %237 : vector<8x128xf32>
    %240 = math.exp %239 : vector<8x128xf32>
    %cst_90 = arith.constant 1.000000e+00 : f32
    %241 = vector.broadcast %cst_90 : f32 to vector<8x128xf32>
    %242 = arith.addf %241, %240 : vector<8x128xf32>
    %243 = tpu.reciprocal %242 {approx = true} : vector<8x128xf32> -> vector<8x128xf32>
    %244 = arith.mulf %234, %206 : vector<8x128xf32>
    %245 = arith.mulf %227, %236 : vector<8x128xf32>
    %246 = arith.addf %244, %245 : vector<8x128xf32>
    %247 = math.tanh %246 : vector<8x128xf32>
    %248 = arith.mulf %243, %247 : vector<8x128xf32>
    %249 = arith.truncf %248 : vector<8x128xf32> to vector<8x128xbf16>
    %250 = arith.index_cast %c5_i32 : i32 to index
    %c0_91 = arith.constant 0 : index
    %c0_92 = arith.constant 0 : index
    %251 = vector.load %arg6[%250, %c0_91, %c0_92] : memref<8x8x128xbf16, #tpu.memory_space<vmem>>, vector<1x8x128xbf16>
    %252 = vector.shape_cast %251 : vector<1x8x128xbf16> to vector<8x128xbf16>
    %253 = vector.shape_cast %249 : vector<8x128xbf16> to vector<1x8x128xbf16>
    tpu.vector_store %arg6[%250, %c0_91, %c0_92], %253 {strides = array<i32>} : memref<8x8x128xbf16, #tpu.memory_space<vmem>>, vector<1x8x128xbf16>,
    %c6_i32 = arith.constant 6 : i32
    %254 = arith.index_cast %c6_i32 : i32 to index
    %c0_93 = arith.constant 0 : index
    %c0_94 = arith.constant 0 : index
    %255 = vector.load %arg11[%254, %c0_93, %c0_94] : memref<8x8x512xf32, #tpu.memory_space<vmem>>, vector<1x8x512xf32>
    %256 = vector.shape_cast %255 : vector<1x8x512xf32> to vector<8x512xf32>
    %257 = arith.truncf %248 : vector<8x128xf32> to vector<8x128xbf16>
    %c0_95 = arith.constant 0 : index
    %c0_96 = arith.constant 0 : index
    %258 = vector.load %arg4[%c0_95, %c0_96] : memref<128x512xbf16, #tpu.memory_space<vmem>>, vector<128x512xbf16>
    %cst_97 = arith.constant dense<0.000000e+00> : vector<8x512xf32>
    %259 = tpu.matmul %257, %258, %cst_97 {dimension_numbers = #tpu.dot_dimension_numbers<[1], [0], [0], [1], [0, 0, 1, 1], [], []>} : vector<8x128xbf16>, vector<128x512xbf16>, vector<8x512xf32> -> vector<8x512xf32>
    %260 = arith.addf %256, %259 : vector<8x512xf32>
    %261 = vector.extract_strided_slice %260 {offsets = [0, 0], sizes = [8, 128], strides = [1, 1]} : vector<8x512xf32> to vector<8x128xf32>
    %cst_98 = arith.constant 0.000000e+00 : f32
    %262 = vector.broadcast %cst_98 : f32 to vector<8x128xf32>
    %263 = arith.subf %262, %261 : vector<8x128xf32>
    %264 = math.exp %263 : vector<8x128xf32>
    %cst_99 = arith.constant 1.000000e+00 : f32
    %265 = vector.broadcast %cst_99 : f32 to vector<8x128xf32>
    %266 = arith.addf %265, %264 : vector<8x128xf32>
    %267 = tpu.reciprocal %266 {approx = true} : vector<8x128xf32> -> vector<8x128xf32>
    %268 = vector.extract_strided_slice %260 {offsets = [0, 128], sizes = [8, 128], strides = [1, 1]} : vector<8x512xf32> to vector<8x128xf32>
    %cst_100 = arith.constant 0.000000e+00 : f32
    %269 = vector.broadcast %cst_100 : f32 to vector<8x128xf32>
    %270 = arith.subf %269, %268 : vector<8x128xf32>
    %271 = math.exp %270 : vector<8x128xf32>
    %cst_101 = arith.constant 1.000000e+00 : f32
    %272 = vector.broadcast %cst_101 : f32 to vector<8x128xf32>
    %273 = arith.addf %272, %271 : vector<8x128xf32>
    %274 = tpu.reciprocal %273 {approx = true} : vector<8x128xf32> -> vector<8x128xf32>
    %275 = vector.extract_strided_slice %260 {offsets = [0, 256], sizes = [8, 128], strides = [1, 1]} : vector<8x512xf32> to vector<8x128xf32>
    %276 = math.tanh %275 : vector<8x128xf32>
    %277 = vector.extract_strided_slice %260 {offsets = [0, 384], sizes = [8, 128], strides = [1, 1]} : vector<8x512xf32> to vector<8x128xf32>
    %cst_102 = arith.constant 0.000000e+00 : f32
    %278 = vector.broadcast %cst_102 : f32 to vector<8x128xf32>
    %279 = arith.subf %278, %277 : vector<8x128xf32>
    %280 = math.exp %279 : vector<8x128xf32>
    %cst_103 = arith.constant 1.000000e+00 : f32
    %281 = vector.broadcast %cst_103 : f32 to vector<8x128xf32>
    %282 = arith.addf %281, %280 : vector<8x128xf32>
    %283 = tpu.reciprocal %282 {approx = true} : vector<8x128xf32> -> vector<8x128xf32>
    %284 = arith.mulf %274, %246 : vector<8x128xf32>
    %285 = arith.mulf %267, %276 : vector<8x128xf32>
    %286 = arith.addf %284, %285 : vector<8x128xf32>
    %287 = math.tanh %286 : vector<8x128xf32>
    %288 = arith.mulf %283, %287 : vector<8x128xf32>
    %289 = arith.truncf %288 : vector<8x128xf32> to vector<8x128xbf16>
    %290 = arith.index_cast %c6_i32 : i32 to index
    %c0_104 = arith.constant 0 : index
    %c0_105 = arith.constant 0 : index
    %291 = vector.load %arg6[%290, %c0_104, %c0_105] : memref<8x8x128xbf16, #tpu.memory_space<vmem>>, vector<1x8x128xbf16>
    %292 = vector.shape_cast %291 : vector<1x8x128xbf16> to vector<8x128xbf16>
    %293 = vector.shape_cast %289 : vector<8x128xbf16> to vector<1x8x128xbf16>
    tpu.vector_store %arg6[%290, %c0_104, %c0_105], %293 {strides = array<i32>} : memref<8x8x128xbf16, #tpu.memory_space<vmem>>, vector<1x8x128xbf16>,
    %c7_i32 = arith.constant 7 : i32
    %294 = arith.index_cast %c7_i32 : i32 to index
    %c0_106 = arith.constant 0 : index
    %c0_107 = arith.constant 0 : index
    %295 = vector.load %arg11[%294, %c0_106, %c0_107] : memref<8x8x512xf32, #tpu.memory_space<vmem>>, vector<1x8x512xf32>
    %296 = vector.shape_cast %295 : vector<1x8x512xf32> to vector<8x512xf32>
    %297 = arith.truncf %288 : vector<8x128xf32> to vector<8x128xbf16>
    %c0_108 = arith.constant 0 : index
    %c0_109 = arith.constant 0 : index
    %298 = vector.load %arg4[%c0_108, %c0_109] : memref<128x512xbf16, #tpu.memory_space<vmem>>, vector<128x512xbf16>
    %cst_110 = arith.constant dense<0.000000e+00> : vector<8x512xf32>
    %299 = tpu.matmul %297, %298, %cst_110 {dimension_numbers = #tpu.dot_dimension_numbers<[1], [0], [0], [1], [0, 0, 1, 1], [], []>} : vector<8x128xbf16>, vector<128x512xbf16>, vector<8x512xf32> -> vector<8x512xf32>
    %300 = arith.addf %296, %299 : vector<8x512xf32>
    %301 = vector.extract_strided_slice %300 {offsets = [0, 0], sizes = [8, 128], strides = [1, 1]} : vector<8x512xf32> to vector<8x128xf32>
    %cst_111 = arith.constant 0.000000e+00 : f32
    %302 = vector.broadcast %cst_111 : f32 to vector<8x128xf32>
    %303 = arith.subf %302, %301 : vector<8x128xf32>
    %304 = math.exp %303 : vector<8x128xf32>
    %cst_112 = arith.constant 1.000000e+00 : f32
    %305 = vector.broadcast %cst_112 : f32 to vector<8x128xf32>
    %306 = arith.addf %305, %304 : vector<8x128xf32>
    %307 = tpu.reciprocal %306 {approx = true} : vector<8x128xf32> -> vector<8x128xf32>
    %308 = vector.extract_strided_slice %300 {offsets = [0, 128], sizes = [8, 128], strides = [1, 1]} : vector<8x512xf32> to vector<8x128xf32>
    %cst_113 = arith.constant 0.000000e+00 : f32
    %309 = vector.broadcast %cst_113 : f32 to vector<8x128xf32>
    %310 = arith.subf %309, %308 : vector<8x128xf32>
    %311 = math.exp %310 : vector<8x128xf32>
    %cst_114 = arith.constant 1.000000e+00 : f32
    %312 = vector.broadcast %cst_114 : f32 to vector<8x128xf32>
    %313 = arith.addf %312, %311 : vector<8x128xf32>
    %314 = tpu.reciprocal %313 {approx = true} : vector<8x128xf32> -> vector<8x128xf32>
    %315 = vector.extract_strided_slice %300 {offsets = [0, 256], sizes = [8, 128], strides = [1, 1]} : vector<8x512xf32> to vector<8x128xf32>
    %316 = math.tanh %315 : vector<8x128xf32>
    %317 = vector.extract_strided_slice %300 {offsets = [0, 384], sizes = [8, 128], strides = [1, 1]} : vector<8x512xf32> to vector<8x128xf32>
    %cst_115 = arith.constant 0.000000e+00 : f32
    %318 = vector.broadcast %cst_115 : f32 to vector<8x128xf32>
    %319 = arith.subf %318, %317 : vector<8x128xf32>
    %320 = math.exp %319 : vector<8x128xf32>
    %cst_116 = arith.constant 1.000000e+00 : f32
    %321 = vector.broadcast %cst_116 : f32 to vector<8x128xf32>
    %322 = arith.addf %321, %320 : vector<8x128xf32>
    %323 = tpu.reciprocal %322 {approx = true} : vector<8x128xf32> -> vector<8x128xf32>
    %324 = arith.mulf %314, %286 : vector<8x128xf32>
    %325 = arith.mulf %307, %316 : vector<8x128xf32>
    %326 = arith.addf %324, %325 : vector<8x128xf32>
    %327 = math.tanh %326 : vector<8x128xf32>
    %328 = arith.mulf %323, %327 : vector<8x128xf32>
    %329 = arith.truncf %328 : vector<8x128xf32> to vector<8x128xbf16>
    %330 = arith.index_cast %c7_i32 : i32 to index
    %c0_117 = arith.constant 0 : index
    %c0_118 = arith.constant 0 : index
    %331 = vector.load %arg6[%330, %c0_117, %c0_118] : memref<8x8x128xbf16, #tpu.memory_space<vmem>>, vector<1x8x128xbf16>
    %332 = vector.shape_cast %331 : vector<1x8x128xbf16> to vector<8x128xbf16>
    %333 = vector.shape_cast %329 : vector<8x128xbf16> to vector<1x8x128xbf16>
    tpu.vector_store %arg6[%330, %c0_117, %c0_118], %333 {strides = array<i32>} : memref<8x8x128xbf16, #tpu.memory_space<vmem>>, vector<1x8x128xbf16>,
    %c8_i32 = arith.constant 8 : i32
    %c0_119 = arith.constant 0 : index
    %c0_120 = arith.constant 0 : index
    %334 = vector.load %arg9[%c0_119, %c0_120] : memref<8x128xf32, #tpu.memory_space<vmem>>, vector<8x128xf32>
    tpu.vector_store %arg9[%c0_119, %c0_120], %328 {strides = array<i32>} : memref<8x128xf32, #tpu.memory_space<vmem>>, vector<8x128xf32>,
    %c0_121 = arith.constant 0 : index
    %c0_122 = arith.constant 0 : index
    %335 = vector.load %arg10[%c0_121, %c0_122] : memref<8x128xf32, #tpu.memory_space<vmem>>, vector<8x128xf32>
    tpu.vector_store %arg10[%c0_121, %c0_122], %326 {strides = array<i32>} : memref<8x128xf32, #tpu.memory_space<vmem>>, vector<8x128xf32>,
    %c0_i32_123 = arith.constant 0 : i32
    %336 = arith.cmpi eq, %arg1, %c0_i32_123 : i32
    %337 = arith.extui %336 : i1 to i32
    %c0_i32_124 = arith.constant 0 : i32
    %338 = arith.cmpi ne, %337, %c0_i32_124 : i32
    scf.if %338 {
      %c0_125 = arith.constant 0 : index
      %c0_126 = arith.constant 0 : index
      %339 = vector.load %arg7[%c0_125, %c0_126] : memref<8x128xf32, #tpu.memory_space<vmem>>, vector<8x128xf32>
      tpu.vector_store %arg7[%c0_125, %c0_126], %328 {strides = array<i32>} : memref<8x128xf32, #tpu.memory_space<vmem>>, vector<8x128xf32>,
      %c0_127 = arith.constant 0 : index
      %c0_128 = arith.constant 0 : index
      %340 = vector.load %arg8[%c0_127, %c0_128] : memref<8x128xf32, #tpu.memory_space<vmem>>, vector<8x128xf32>
      tpu.vector_store %arg8[%c0_127, %c0_128], %326 {strides = array<i32>} : memref<8x128xf32, #tpu.memory_space<vmem>>, vector<8x128xf32>,
    } else {
    }
    return
  }
  func.func @transform_0(%arg0: i32, %arg1: i32) -> (i32, i32, i32) {
    %c0_i32 = arith.constant 0 : i32
    %c0_i32_0 = arith.constant 0 : i32
    return %arg1, %arg0, %c0_i32 : i32, i32, i32
  }
  func.func @transform_1(%arg0: i32, %arg1: i32) -> (i32, i32) {
    %c0_i32 = arith.constant 0 : i32
    %c0_i32_0 = arith.constant 0 : i32
    %c0_i32_1 = arith.constant 0 : i32
    return %c0_i32, %c0_i32_0 : i32, i32
  }
  func.func @transform_2(%arg0: i32, %arg1: i32) -> (i32, i32) {
    %c0_i32 = arith.constant 0 : i32
    %c0_i32_0 = arith.constant 0 : i32
    %c0_i32_1 = arith.constant 0 : i32
    return %c0_i32, %c0_i32_0 : i32, i32
  }
  func.func @transform_3(%arg0: i32, %arg1: i32) -> (i32, i32) {
    %c0_i32 = arith.constant 0 : i32
    %c0_i32_0 = arith.constant 0 : i32
    %c0_i32_1 = arith.constant 0 : i32
    return %c0_i32, %c0_i32_0 : i32, i32
  }
  func.func @transform_4(%arg0: i32, %arg1: i32) -> (i32, i32, i32) {
    %c0_i32 = arith.constant 0 : i32
    %c0_i32_0 = arith.constant 0 : i32
    return %arg1, %arg0, %c0_i32 : i32, i32, i32
  }
  func.func @transform_5(%arg0: i32, %arg1: i32) -> (i32, i32) {
    %c0_i32 = arith.constant 0 : i32
    %c0_i32_0 = arith.constant 0 : i32
    return %arg0, %c0_i32 : i32, i32
  }
  func.func @transform_6(%arg0: i32, %arg1: i32) -> (i32, i32) {
    %c0_i32 = arith.constant 0 : i32
    %c0_i32_0 = arith.constant 0 : i32
    return %arg0, %c0_i32 : i32, i32
  }
}

module attributes {stable_mosaic.version = 11 : i64} {
  func.func @_lstm_fused_kernel(%arg0: i32, %arg1: i32, %arg2: memref<8x8x128xbf16, #tpu.memory_space<vmem>>, %arg3: memref<128x512xbf16, #tpu.memory_space<vmem>>, %arg4: memref<128x512xbf16, #tpu.memory_space<vmem>>, %arg5: memref<1x512xf32, #tpu.memory_space<vmem>>, %arg6: memref<8x8x128xbf16, #tpu.memory_space<vmem>>, %arg7: memref<8x128xf32, #tpu.memory_space<vmem>>, %arg8: memref<8x128xf32, #tpu.memory_space<vmem>>, %arg9: memref<8x128xf32, #tpu.memory_space<vmem>>, %arg10: memref<8x128xf32, #tpu.memory_space<vmem>>, %arg11: memref<8x8x512xf32, #tpu.memory_space<vmem>>) attributes {dimension_semantics = [#tpu.dimension_semantics<parallel>, #tpu.dimension_semantics<arbitrary>], iteration_bounds = array<i64: 1, 1>, scalar_prefetch = 0 : i64, scratch_operands = 3 : i64, tpu.core_type = #tpu.core_type<tc>, window_params = [{transform_indices = @transform_0, window_bounds = array<i64: 8, 8, 128>}, {pipeline_mode = #tpu.pipeline_mode<synchronous>, transform_indices = @transform_1, window_bounds = array<i64: 128, 512>}, {pipeline_mode = #tpu.pipeline_mode<synchronous>, transform_indices = @transform_2, window_bounds = array<i64: 128, 512>}, {pipeline_mode = #tpu.pipeline_mode<synchronous>, transform_indices = @transform_3, window_bounds = array<i64: 1, 512>}, {transform_indices = @transform_4, window_bounds = array<i64: 8, 8, 128>}, {transform_indices = @transform_5, window_bounds = array<i64: 8, 128>}, {transform_indices = @transform_6, window_bounds = array<i64: 8, 128>}]} {
    %c0_i32 = arith.constant 0 : i32
    %0 = arith.cmpi eq, %arg1, %c0_i32 : i32
    %1 = arith.extui %0 : i1 to i32
    %c0_i32_0 = arith.constant 0 : i32
    %2 = arith.cmpi ne, %1, %c0_i32_0 : i32
    scf.if %2 {
      %cst_125 = arith.constant 0.000000e+00 : f32
      %339 = vector.broadcast %cst_125 : f32 to vector<8x128xf32>
      %c0_126 = arith.constant 0 : index
      %c0_127 = arith.constant 0 : index
      %340 = vector.load %arg9[%c0_126, %c0_127] : memref<8x128xf32, #tpu.memory_space<vmem>>, vector<8x128xf32>
      tpu.vector_store %arg9[%c0_126, %c0_127], %339 {strides = array<i32>} : memref<8x128xf32, #tpu.memory_space<vmem>>, vector<8x128xf32>,
      %cst_128 = arith.constant 0.000000e+00 : f32
      %341 = vector.broadcast %cst_128 : f32 to vector<8x128xf32>
      %c0_129 = arith.constant 0 : index
      %c0_130 = arith.constant 0 : index
      %342 = vector.load %arg10[%c0_129, %c0_130] : memref<8x128xf32, #tpu.memory_space<vmem>>, vector<8x128xf32>
      tpu.vector_store %arg10[%c0_129, %c0_130], %341 {strides = array<i32>} : memref<8x128xf32, #tpu.memory_space<vmem>>, vector<8x128xf32>,
    } else {
    }
    %c0 = arith.constant 0 : index
    %c0_1 = arith.constant 0 : index
    %c0_2 = arith.constant 0 : index
    %3 = vector.load %arg2[%c0, %c0_1, %c0_2] : memref<8x8x128xbf16, #tpu.memory_space<vmem>>, vector<8x8x128xbf16>
    %4 = vector.shape_cast %3 : vector<8x8x128xbf16> to vector<64x128xbf16>
    %c0_3 = arith.constant 0 : index
    %c0_4 = arith.constant 0 : index
    %5 = vector.load %arg3[%c0_3, %c0_4] : memref<128x512xbf16, #tpu.memory_space<vmem>>, vector<128x512xbf16>
    %cst = arith.constant dense<0.000000e+00> : vector<64x512xf32>
    %6 = tpu.matmul %4, %5, %cst {dimension_numbers = #tpu.dot_dimension_numbers<[1], [0], [0], [1], [0, 0, 1, 1], [], []>} : vector<64x128xbf16>, vector<128x512xbf16>, vector<64x512xf32> -> vector<64x512xf32>
    %c0_5 = arith.constant 0 : index
    %c0_6 = arith.constant 0 : index
    %7 = vector.load %arg5[%c0_5, %c0_6] : memref<1x512xf32, #tpu.memory_space<vmem>>, vector<1x512xf32>
    %8 = vector.broadcast %7 : vector<1x512xf32> to vector<64x512xf32>
    %9 = arith.addf %6, %8 : vector<64x512xf32>
    %10 = vector.shape_cast %9 : vector<64x512xf32> to vector<8x8x512xf32>
    %c0_7 = arith.constant 0 : index
    %c0_8 = arith.constant 0 : index
    %c0_9 = arith.constant 0 : index
    %11 = vector.load %arg11[%c0_7, %c0_8, %c0_9] : memref<8x8x512xf32, #tpu.memory_space<vmem>>, vector<8x8x512xf32>
    tpu.vector_store %arg11[%c0_7, %c0_8, %c0_9], %10 {strides = array<i32>} : memref<8x8x512xf32, #tpu.memory_space<vmem>>, vector<8x8x512xf32>,
    %c0_10 = arith.constant 0 : index
    %c0_11 = arith.constant 0 : index
    %12 = vector.load %arg9[%c0_10, %c0_11] : memref<8x128xf32, #tpu.memory_space<vmem>>, vector<8x128xf32>
    %c0_12 = arith.constant 0 : index
    %c0_13 = arith.constant 0 : index
    %13 = vector.load %arg10[%c0_12, %c0_13] : memref<8x128xf32, #tpu.memory_space<vmem>>, vector<8x128xf32>
    %c0_i32_14 = arith.constant 0 : i32
    %14 = arith.index_cast %c0_i32_14 : i32 to index
    %c0_15 = arith.constant 0 : index
    %c0_16 = arith.constant 0 : index
    %15 = vector.load %arg11[%14, %c0_15, %c0_16] : memref<8x8x512xf32, #tpu.memory_space<vmem>>, vector<1x8x512xf32>
    %16 = vector.shape_cast %15 : vector<1x8x512xf32> to vector<8x512xf32>
    %17 = arith.truncf %12 : vector<8x128xf32> to vector<8x128xbf16>
    %c0_17 = arith.constant 0 : index
    %c0_18 = arith.constant 0 : index
    %18 = vector.load %arg4[%c0_17, %c0_18] : memref<128x512xbf16, #tpu.memory_space<vmem>>, vector<128x512xbf16>
    %cst_19 = arith.constant dense<0.000000e+00> : vector<8x512xf32>
    %19 = tpu.matmul %17, %18, %cst_19 {dimension_numbers = #tpu.dot_dimension_numbers<[1], [0], [0], [1], [0, 0, 1, 1], [], []>} : vector<8x128xbf16>, vector<128x512xbf16>, vector<8x512xf32> -> vector<8x512xf32>
    %20 = arith.addf %16, %19 : vector<8x512xf32>
    %21 = vector.extract_strided_slice %20 {offsets = [0, 0], sizes = [8, 128], strides = [1, 1]} : vector<8x512xf32> to vector<8x128xf32>
    %cst_20 = arith.constant 0.000000e+00 : f32
    %22 = vector.broadcast %cst_20 : f32 to vector<8x128xf32>
    %23 = arith.subf %22, %21 : vector<8x128xf32>
    %24 = math.exp %23 : vector<8x128xf32>
    %cst_21 = arith.constant 1.000000e+00 : f32
    %25 = vector.broadcast %cst_21 : f32 to vector<8x128xf32>
    %26 = arith.addf %25, %24 : vector<8x128xf32>
    %27 = tpu.reciprocal %26 {approx = true} : vector<8x128xf32> -> vector<8x128xf32>
    %28 = vector.extract_strided_slice %20 {offsets = [0, 128], sizes = [8, 128], strides = [1, 1]} : vector<8x512xf32> to vector<8x128xf32>
    %cst_22 = arith.constant 0.000000e+00 : f32
    %29 = vector.broadcast %cst_22 : f32 to vector<8x128xf32>
    %30 = arith.subf %29, %28 : vector<8x128xf32>
    %31 = math.exp %30 : vector<8x128xf32>
    %cst_23 = arith.constant 1.000000e+00 : f32
    %32 = vector.broadcast %cst_23 : f32 to vector<8x128xf32>
    %33 = arith.addf %32, %31 : vector<8x128xf32>
    %34 = tpu.reciprocal %33 {approx = true} : vector<8x128xf32> -> vector<8x128xf32>
    %35 = vector.extract_strided_slice %20 {offsets = [0, 256], sizes = [8, 128], strides = [1, 1]} : vector<8x512xf32> to vector<8x128xf32>
    %36 = math.tanh %35 : vector<8x128xf32>
    %37 = vector.extract_strided_slice %20 {offsets = [0, 384], sizes = [8, 128], strides = [1, 1]} : vector<8x512xf32> to vector<8x128xf32>
    %cst_24 = arith.constant 0.000000e+00 : f32
    %38 = vector.broadcast %cst_24 : f32 to vector<8x128xf32>
    %39 = arith.subf %38, %37 : vector<8x128xf32>
    %40 = math.exp %39 : vector<8x128xf32>
    %cst_25 = arith.constant 1.000000e+00 : f32
    %41 = vector.broadcast %cst_25 : f32 to vector<8x128xf32>
    %42 = arith.addf %41, %40 : vector<8x128xf32>
    %43 = tpu.reciprocal %42 {approx = true} : vector<8x128xf32> -> vector<8x128xf32>
    %44 = arith.mulf %34, %13 : vector<8x128xf32>
    %45 = arith.mulf %27, %36 : vector<8x128xf32>
    %46 = arith.addf %44, %45 : vector<8x128xf32>
    %47 = math.tanh %46 : vector<8x128xf32>
    %48 = arith.mulf %43, %47 : vector<8x128xf32>
    %49 = arith.truncf %48 : vector<8x128xf32> to vector<8x128xbf16>
    %50 = arith.index_cast %c0_i32_14 : i32 to index
    %c0_26 = arith.constant 0 : index
    %c0_27 = arith.constant 0 : index
    %51 = vector.load %arg6[%50, %c0_26, %c0_27] : memref<8x8x128xbf16, #tpu.memory_space<vmem>>, vector<1x8x128xbf16>
    %52 = vector.shape_cast %51 : vector<1x8x128xbf16> to vector<8x128xbf16>
    %53 = vector.shape_cast %49 : vector<8x128xbf16> to vector<1x8x128xbf16>
    tpu.vector_store %arg6[%50, %c0_26, %c0_27], %53 {strides = array<i32>} : memref<8x8x128xbf16, #tpu.memory_space<vmem>>, vector<1x8x128xbf16>,
    %c1_i32 = arith.constant 1 : i32
    %54 = arith.index_cast %c1_i32 : i32 to index
    %c0_28 = arith.constant 0 : index
    %c0_29 = arith.constant 0 : index
    %55 = vector.load %arg11[%54, %c0_28, %c0_29] : memref<8x8x512xf32, #tpu.memory_space<vmem>>, vector<1x8x512xf32>
    %56 = vector.shape_cast %55 : vector<1x8x512xf32> to vector<8x512xf32>
    %57 = arith.truncf %48 : vector<8x128xf32> to vector<8x128xbf16>
    %c0_30 = arith.constant 0 : index
    %c0_31 = arith.constant 0 : index
    %58 = vector.load %arg4[%c0_30, %c0_31] : memref<128x512xbf16, #tpu.memory_space<vmem>>, vector<128x512xbf16>
    %cst_32 = arith.constant dense<0.000000e+00> : vector<8x512xf32>
    %59 = tpu.matmul %57, %58, %cst_32 {dimension_numbers = #tpu.dot_dimension_numbers<[1], [0], [0], [1], [0, 0, 1, 1], [], []>} : vector<8x128xbf16>, vector<128x512xbf16>, vector<8x512xf32> -> vector<8x512xf32>
    %60 = arith.addf %56, %59 : vector<8x512xf32>
    %61 = vector.extract_strided_slice %60 {offsets = [0, 0], sizes = [8, 128], strides = [1, 1]} : vector<8x512xf32> to vector<8x128xf32>
    %cst_33 = arith.constant 0.000000e+00 : f32
    %62 = vector.broadcast %cst_33 : f32 to vector<8x128xf32>
    %63 = arith.subf %62, %61 : vector<8x128xf32>
    %64 = math.exp %63 : vector<8x128xf32>
    %cst_34 = arith.constant 1.000000e+00 : f32
    %65 = vector.broadcast %cst_34 : f32 to vector<8x128xf32>
    %66 = arith.addf %65, %64 : vector<8x128xf32>
    %67 = tpu.reciprocal %66 {approx = true} : vector<8x128xf32> -> vector<8x128xf32>
    %68 = vector.extract_strided_slice %60 {offsets = [0, 128], sizes = [8, 128], strides = [1, 1]} : vector<8x512xf32> to vector<8x128xf32>
    %cst_35 = arith.constant 0.000000e+00 : f32
    %69 = vector.broadcast %cst_35 : f32 to vector<8x128xf32>
    %70 = arith.subf %69, %68 : vector<8x128xf32>
    %71 = math.exp %70 : vector<8x128xf32>
    %cst_36 = arith.constant 1.000000e+00 : f32
    %72 = vector.broadcast %cst_36 : f32 to vector<8x128xf32>
    %73 = arith.addf %72, %71 : vector<8x128xf32>
    %74 = tpu.reciprocal %73 {approx = true} : vector<8x128xf32> -> vector<8x128xf32>
    %75 = vector.extract_strided_slice %60 {offsets = [0, 256], sizes = [8, 128], strides = [1, 1]} : vector<8x512xf32> to vector<8x128xf32>
    %76 = math.tanh %75 : vector<8x128xf32>
    %77 = vector.extract_strided_slice %60 {offsets = [0, 384], sizes = [8, 128], strides = [1, 1]} : vector<8x512xf32> to vector<8x128xf32>
    %cst_37 = arith.constant 0.000000e+00 : f32
    %78 = vector.broadcast %cst_37 : f32 to vector<8x128xf32>
    %79 = arith.subf %78, %77 : vector<8x128xf32>
    %80 = math.exp %79 : vector<8x128xf32>
    %cst_38 = arith.constant 1.000000e+00 : f32
    %81 = vector.broadcast %cst_38 : f32 to vector<8x128xf32>
    %82 = arith.addf %81, %80 : vector<8x128xf32>
    %83 = tpu.reciprocal %82 {approx = true} : vector<8x128xf32> -> vector<8x128xf32>
    %84 = arith.mulf %74, %46 : vector<8x128xf32>
    %85 = arith.mulf %67, %76 : vector<8x128xf32>
    %86 = arith.addf %84, %85 : vector<8x128xf32>
    %87 = math.tanh %86 : vector<8x128xf32>
    %88 = arith.mulf %83, %87 : vector<8x128xf32>
    %89 = arith.truncf %88 : vector<8x128xf32> to vector<8x128xbf16>
    %90 = arith.index_cast %c1_i32 : i32 to index
    %c0_39 = arith.constant 0 : index
    %c0_40 = arith.constant 0 : index
    %91 = vector.load %arg6[%90, %c0_39, %c0_40] : memref<8x8x128xbf16, #tpu.memory_space<vmem>>, vector<1x8x128xbf16>
    %92 = vector.shape_cast %91 : vector<1x8x128xbf16> to vector<8x128xbf16>
    %93 = vector.shape_cast %89 : vector<8x128xbf16> to vector<1x8x128xbf16>
    tpu.vector_store %arg6[%90, %c0_39, %c0_40], %93 {strides = array<i32>} : memref<8x8x128xbf16, #tpu.memory_space<vmem>>, vector<1x8x128xbf16>,
    %c2_i32 = arith.constant 2 : i32
    %94 = arith.index_cast %c2_i32 : i32 to index
    %c0_41 = arith.constant 0 : index
    %c0_42 = arith.constant 0 : index
    %95 = vector.load %arg11[%94, %c0_41, %c0_42] : memref<8x8x512xf32, #tpu.memory_space<vmem>>, vector<1x8x512xf32>
    %96 = vector.shape_cast %95 : vector<1x8x512xf32> to vector<8x512xf32>
    %97 = arith.truncf %88 : vector<8x128xf32> to vector<8x128xbf16>
    %c0_43 = arith.constant 0 : index
    %c0_44 = arith.constant 0 : index
    %98 = vector.load %arg4[%c0_43, %c0_44] : memref<128x512xbf16, #tpu.memory_space<vmem>>, vector<128x512xbf16>
    %cst_45 = arith.constant dense<0.000000e+00> : vector<8x512xf32>
    %99 = tpu.matmul %97, %98, %cst_45 {dimension_numbers = #tpu.dot_dimension_numbers<[1], [0], [0], [1], [0, 0, 1, 1], [], []>} : vector<8x128xbf16>, vector<128x512xbf16>, vector<8x512xf32> -> vector<8x512xf32>
    %100 = arith.addf %96, %99 : vector<8x512xf32>
    %101 = vector.extract_strided_slice %100 {offsets = [0, 0], sizes = [8, 128], strides = [1, 1]} : vector<8x512xf32> to vector<8x128xf32>
    %cst_46 = arith.constant 0.000000e+00 : f32
    %102 = vector.broadcast %cst_46 : f32 to vector<8x128xf32>
    %103 = arith.subf %102, %101 : vector<8x128xf32>
    %104 = math.exp %103 : vector<8x128xf32>
    %cst_47 = arith.constant 1.000000e+00 : f32
    %105 = vector.broadcast %cst_47 : f32 to vector<8x128xf32>
    %106 = arith.addf %105, %104 : vector<8x128xf32>
    %107 = tpu.reciprocal %106 {approx = true} : vector<8x128xf32> -> vector<8x128xf32>
    %108 = vector.extract_strided_slice %100 {offsets = [0, 128], sizes = [8, 128], strides = [1, 1]} : vector<8x512xf32> to vector<8x128xf32>
    %cst_48 = arith.constant 0.000000e+00 : f32
    %109 = vector.broadcast %cst_48 : f32 to vector<8x128xf32>
    %110 = arith.subf %109, %108 : vector<8x128xf32>
    %111 = math.exp %110 : vector<8x128xf32>
    %cst_49 = arith.constant 1.000000e+00 : f32
    %112 = vector.broadcast %cst_49 : f32 to vector<8x128xf32>
    %113 = arith.addf %112, %111 : vector<8x128xf32>
    %114 = tpu.reciprocal %113 {approx = true} : vector<8x128xf32> -> vector<8x128xf32>
    %115 = vector.extract_strided_slice %100 {offsets = [0, 256], sizes = [8, 128], strides = [1, 1]} : vector<8x512xf32> to vector<8x128xf32>
    %116 = math.tanh %115 : vector<8x128xf32>
    %117 = vector.extract_strided_slice %100 {offsets = [0, 384], sizes = [8, 128], strides = [1, 1]} : vector<8x512xf32> to vector<8x128xf32>
    %cst_50 = arith.constant 0.000000e+00 : f32
    %118 = vector.broadcast %cst_50 : f32 to vector<8x128xf32>
    %119 = arith.subf %118, %117 : vector<8x128xf32>
    %120 = math.exp %119 : vector<8x128xf32>
    %cst_51 = arith.constant 1.000000e+00 : f32
    %121 = vector.broadcast %cst_51 : f32 to vector<8x128xf32>
    %122 = arith.addf %121, %120 : vector<8x128xf32>
    %123 = tpu.reciprocal %122 {approx = true} : vector<8x128xf32> -> vector<8x128xf32>
    %124 = arith.mulf %114, %86 : vector<8x128xf32>
    %125 = arith.mulf %107, %116 : vector<8x128xf32>
    %126 = arith.addf %124, %125 : vector<8x128xf32>
    %127 = math.tanh %126 : vector<8x128xf32>
    %128 = arith.mulf %123, %127 : vector<8x128xf32>
    %129 = arith.truncf %128 : vector<8x128xf32> to vector<8x128xbf16>
    %130 = arith.index_cast %c2_i32 : i32 to index
    %c0_52 = arith.constant 0 : index
    %c0_53 = arith.constant 0 : index
    %131 = vector.load %arg6[%130, %c0_52, %c0_53] : memref<8x8x128xbf16, #tpu.memory_space<vmem>>, vector<1x8x128xbf16>
    %132 = vector.shape_cast %131 : vector<1x8x128xbf16> to vector<8x128xbf16>
    %133 = vector.shape_cast %129 : vector<8x128xbf16> to vector<1x8x128xbf16>
    tpu.vector_store %arg6[%130, %c0_52, %c0_53], %133 {strides = array<i32>} : memref<8x8x128xbf16, #tpu.memory_space<vmem>>, vector<1x8x128xbf16>,
    %c3_i32 = arith.constant 3 : i32
    %134 = arith.index_cast %c3_i32 : i32 to index
    %c0_54 = arith.constant 0 : index
    %c0_55 = arith.constant 0 : index
    %135 = vector.load %arg11[%134, %c0_54, %c0_55] : memref<8x8x512xf32, #tpu.memory_space<vmem>>, vector<1x8x512xf32>
    %136 = vector.shape_cast %135 : vector<1x8x512xf32> to vector<8x512xf32>
    %137 = arith.truncf %128 : vector<8x128xf32> to vector<8x128xbf16>
    %c0_56 = arith.constant 0 : index
    %c0_57 = arith.constant 0 : index
    %138 = vector.load %arg4[%c0_56, %c0_57] : memref<128x512xbf16, #tpu.memory_space<vmem>>, vector<128x512xbf16>
    %cst_58 = arith.constant dense<0.000000e+00> : vector<8x512xf32>
    %139 = tpu.matmul %137, %138, %cst_58 {dimension_numbers = #tpu.dot_dimension_numbers<[1], [0], [0], [1], [0, 0, 1, 1], [], []>} : vector<8x128xbf16>, vector<128x512xbf16>, vector<8x512xf32> -> vector<8x512xf32>
    %140 = arith.addf %136, %139 : vector<8x512xf32>
    %141 = vector.extract_strided_slice %140 {offsets = [0, 0], sizes = [8, 128], strides = [1, 1]} : vector<8x512xf32> to vector<8x128xf32>
    %cst_59 = arith.constant 0.000000e+00 : f32
    %142 = vector.broadcast %cst_59 : f32 to vector<8x128xf32>
    %143 = arith.subf %142, %141 : vector<8x128xf32>
    %144 = math.exp %143 : vector<8x128xf32>
    %cst_60 = arith.constant 1.000000e+00 : f32
    %145 = vector.broadcast %cst_60 : f32 to vector<8x128xf32>
    %146 = arith.addf %145, %144 : vector<8x128xf32>
    %147 = tpu.reciprocal %146 {approx = true} : vector<8x128xf32> -> vector<8x128xf32>
    %148 = vector.extract_strided_slice %140 {offsets = [0, 128], sizes = [8, 128], strides = [1, 1]} : vector<8x512xf32> to vector<8x128xf32>
    %cst_61 = arith.constant 0.000000e+00 : f32
    %149 = vector.broadcast %cst_61 : f32 to vector<8x128xf32>
    %150 = arith.subf %149, %148 : vector<8x128xf32>
    %151 = math.exp %150 : vector<8x128xf32>
    %cst_62 = arith.constant 1.000000e+00 : f32
    %152 = vector.broadcast %cst_62 : f32 to vector<8x128xf32>
    %153 = arith.addf %152, %151 : vector<8x128xf32>
    %154 = tpu.reciprocal %153 {approx = true} : vector<8x128xf32> -> vector<8x128xf32>
    %155 = vector.extract_strided_slice %140 {offsets = [0, 256], sizes = [8, 128], strides = [1, 1]} : vector<8x512xf32> to vector<8x128xf32>
    %156 = math.tanh %155 : vector<8x128xf32>
    %157 = vector.extract_strided_slice %140 {offsets = [0, 384], sizes = [8, 128], strides = [1, 1]} : vector<8x512xf32> to vector<8x128xf32>
    %cst_63 = arith.constant 0.000000e+00 : f32
    %158 = vector.broadcast %cst_63 : f32 to vector<8x128xf32>
    %159 = arith.subf %158, %157 : vector<8x128xf32>
    %160 = math.exp %159 : vector<8x128xf32>
    %cst_64 = arith.constant 1.000000e+00 : f32
    %161 = vector.broadcast %cst_64 : f32 to vector<8x128xf32>
    %162 = arith.addf %161, %160 : vector<8x128xf32>
    %163 = tpu.reciprocal %162 {approx = true} : vector<8x128xf32> -> vector<8x128xf32>
    %164 = arith.mulf %154, %126 : vector<8x128xf32>
    %165 = arith.mulf %147, %156 : vector<8x128xf32>
    %166 = arith.addf %164, %165 : vector<8x128xf32>
    %167 = math.tanh %166 : vector<8x128xf32>
    %168 = arith.mulf %163, %167 : vector<8x128xf32>
    %169 = arith.truncf %168 : vector<8x128xf32> to vector<8x128xbf16>
    %170 = arith.index_cast %c3_i32 : i32 to index
    %c0_65 = arith.constant 0 : index
    %c0_66 = arith.constant 0 : index
    %171 = vector.load %arg6[%170, %c0_65, %c0_66] : memref<8x8x128xbf16, #tpu.memory_space<vmem>>, vector<1x8x128xbf16>
    %172 = vector.shape_cast %171 : vector<1x8x128xbf16> to vector<8x128xbf16>
    %173 = vector.shape_cast %169 : vector<8x128xbf16> to vector<1x8x128xbf16>
    tpu.vector_store %arg6[%170, %c0_65, %c0_66], %173 {strides = array<i32>} : memref<8x8x128xbf16, #tpu.memory_space<vmem>>, vector<1x8x128xbf16>,
    %c4_i32 = arith.constant 4 : i32
    %174 = arith.index_cast %c4_i32 : i32 to index
    %c0_67 = arith.constant 0 : index
    %c0_68 = arith.constant 0 : index
    %175 = vector.load %arg11[%174, %c0_67, %c0_68] : memref<8x8x512xf32, #tpu.memory_space<vmem>>, vector<1x8x512xf32>
    %176 = vector.shape_cast %175 : vector<1x8x512xf32> to vector<8x512xf32>
    %177 = arith.truncf %168 : vector<8x128xf32> to vector<8x128xbf16>
    %c0_69 = arith.constant 0 : index
    %c0_70 = arith.constant 0 : index
    %178 = vector.load %arg4[%c0_69, %c0_70] : memref<128x512xbf16, #tpu.memory_space<vmem>>, vector<128x512xbf16>
    %cst_71 = arith.constant dense<0.000000e+00> : vector<8x512xf32>
    %179 = tpu.matmul %177, %178, %cst_71 {dimension_numbers = #tpu.dot_dimension_numbers<[1], [0], [0], [1], [0, 0, 1, 1], [], []>} : vector<8x128xbf16>, vector<128x512xbf16>, vector<8x512xf32> -> vector<8x512xf32>
    %180 = arith.addf %176, %179 : vector<8x512xf32>
    %181 = vector.extract_strided_slice %180 {offsets = [0, 0], sizes = [8, 128], strides = [1, 1]} : vector<8x512xf32> to vector<8x128xf32>
    %cst_72 = arith.constant 0.000000e+00 : f32
    %182 = vector.broadcast %cst_72 : f32 to vector<8x128xf32>
    %183 = arith.subf %182, %181 : vector<8x128xf32>
    %184 = math.exp %183 : vector<8x128xf32>
    %cst_73 = arith.constant 1.000000e+00 : f32
    %185 = vector.broadcast %cst_73 : f32 to vector<8x128xf32>
    %186 = arith.addf %185, %184 : vector<8x128xf32>
    %187 = tpu.reciprocal %186 {approx = true} : vector<8x128xf32> -> vector<8x128xf32>
    %188 = vector.extract_strided_slice %180 {offsets = [0, 128], sizes = [8, 128], strides = [1, 1]} : vector<8x512xf32> to vector<8x128xf32>
    %cst_74 = arith.constant 0.000000e+00 : f32
    %189 = vector.broadcast %cst_74 : f32 to vector<8x128xf32>
    %190 = arith.subf %189, %188 : vector<8x128xf32>
    %191 = math.exp %190 : vector<8x128xf32>
    %cst_75 = arith.constant 1.000000e+00 : f32
    %192 = vector.broadcast %cst_75 : f32 to vector<8x128xf32>
    %193 = arith.addf %192, %191 : vector<8x128xf32>
    %194 = tpu.reciprocal %193 {approx = true} : vector<8x128xf32> -> vector<8x128xf32>
    %195 = vector.extract_strided_slice %180 {offsets = [0, 256], sizes = [8, 128], strides = [1, 1]} : vector<8x512xf32> to vector<8x128xf32>
    %196 = math.tanh %195 : vector<8x128xf32>
    %197 = vector.extract_strided_slice %180 {offsets = [0, 384], sizes = [8, 128], strides = [1, 1]} : vector<8x512xf32> to vector<8x128xf32>
    %cst_76 = arith.constant 0.000000e+00 : f32
    %198 = vector.broadcast %cst_76 : f32 to vector<8x128xf32>
    %199 = arith.subf %198, %197 : vector<8x128xf32>
    %200 = math.exp %199 : vector<8x128xf32>
    %cst_77 = arith.constant 1.000000e+00 : f32
    %201 = vector.broadcast %cst_77 : f32 to vector<8x128xf32>
    %202 = arith.addf %201, %200 : vector<8x128xf32>
    %203 = tpu.reciprocal %202 {approx = true} : vector<8x128xf32> -> vector<8x128xf32>
    %204 = arith.mulf %194, %166 : vector<8x128xf32>
    %205 = arith.mulf %187, %196 : vector<8x128xf32>
    %206 = arith.addf %204, %205 : vector<8x128xf32>
    %207 = math.tanh %206 : vector<8x128xf32>
    %208 = arith.mulf %203, %207 : vector<8x128xf32>
    %209 = arith.truncf %208 : vector<8x128xf32> to vector<8x128xbf16>
    %210 = arith.index_cast %c4_i32 : i32 to index
    %c0_78 = arith.constant 0 : index
    %c0_79 = arith.constant 0 : index
    %211 = vector.load %arg6[%210, %c0_78, %c0_79] : memref<8x8x128xbf16, #tpu.memory_space<vmem>>, vector<1x8x128xbf16>
    %212 = vector.shape_cast %211 : vector<1x8x128xbf16> to vector<8x128xbf16>
    %213 = vector.shape_cast %209 : vector<8x128xbf16> to vector<1x8x128xbf16>
    tpu.vector_store %arg6[%210, %c0_78, %c0_79], %213 {strides = array<i32>} : memref<8x8x128xbf16, #tpu.memory_space<vmem>>, vector<1x8x128xbf16>,
    %c5_i32 = arith.constant 5 : i32
    %214 = arith.index_cast %c5_i32 : i32 to index
    %c0_80 = arith.constant 0 : index
    %c0_81 = arith.constant 0 : index
    %215 = vector.load %arg11[%214, %c0_80, %c0_81] : memref<8x8x512xf32, #tpu.memory_space<vmem>>, vector<1x8x512xf32>
    %216 = vector.shape_cast %215 : vector<1x8x512xf32> to vector<8x512xf32>
    %217 = arith.truncf %208 : vector<8x128xf32> to vector<8x128xbf16>
    %c0_82 = arith.constant 0 : index
    %c0_83 = arith.constant 0 : index
    %218 = vector.load %arg4[%c0_82, %c0_83] : memref<128x512xbf16, #tpu.memory_space<vmem>>, vector<128x512xbf16>
    %cst_84 = arith.constant dense<0.000000e+00> : vector<8x512xf32>
    %219 = tpu.matmul %217, %218, %cst_84 {dimension_numbers = #tpu.dot_dimension_numbers<[1], [0], [0], [1], [0, 0, 1, 1], [], []>} : vector<8x128xbf16>, vector<128x512xbf16>, vector<8x512xf32> -> vector<8x512xf32>
    %220 = arith.addf %216, %219 : vector<8x512xf32>
    %221 = vector.extract_strided_slice %220 {offsets = [0, 0], sizes = [8, 128], strides = [1, 1]} : vector<8x512xf32> to vector<8x128xf32>
    %cst_85 = arith.constant 0.000000e+00 : f32
    %222 = vector.broadcast %cst_85 : f32 to vector<8x128xf32>
    %223 = arith.subf %222, %221 : vector<8x128xf32>
    %224 = math.exp %223 : vector<8x128xf32>
    %cst_86 = arith.constant 1.000000e+00 : f32
    %225 = vector.broadcast %cst_86 : f32 to vector<8x128xf32>
    %226 = arith.addf %225, %224 : vector<8x128xf32>
    %227 = tpu.reciprocal %226 {approx = true} : vector<8x128xf32> -> vector<8x128xf32>
    %228 = vector.extract_strided_slice %220 {offsets = [0, 128], sizes = [8, 128], strides = [1, 1]} : vector<8x512xf32> to vector<8x128xf32>
    %cst_87 = arith.constant 0.000000e+00 : f32
    %229 = vector.broadcast %cst_87 : f32 to vector<8x128xf32>
    %230 = arith.subf %229, %228 : vector<8x128xf32>
    %231 = math.exp %230 : vector<8x128xf32>
    %cst_88 = arith.constant 1.000000e+00 : f32
    %232 = vector.broadcast %cst_88 : f32 to vector<8x128xf32>
    %233 = arith.addf %232, %231 : vector<8x128xf32>
    %234 = tpu.reciprocal %233 {approx = true} : vector<8x128xf32> -> vector<8x128xf32>
    %235 = vector.extract_strided_slice %220 {offsets = [0, 256], sizes = [8, 128], strides = [1, 1]} : vector<8x512xf32> to vector<8x128xf32>
    %236 = math.tanh %235 : vector<8x128xf32>
    %237 = vector.extract_strided_slice %220 {offsets = [0, 384], sizes = [8, 128], strides = [1, 1]} : vector<8x512xf32> to vector<8x128xf32>
    %cst_89 = arith.constant 0.000000e+00 : f32
    %238 = vector.broadcast %cst_89 : f32 to vector<8x128xf32>
    %239 = arith.subf %238, %237 : vector<8x128xf32>
    %240 = math.exp %239 : vector<8x128xf32>
    %cst_90 = arith.constant 1.000000e+00 : f32
    %241 = vector.broadcast %cst_90 : f32 to vector<8x128xf32>
    %242 = arith.addf %241, %240 : vector<8x128xf32>
    %243 = tpu.reciprocal %242 {approx = true} : vector<8x128xf32> -> vector<8x128xf32>
    %244 = arith.mulf %234, %206 : vector<8x128xf32>
    %245 = arith.mulf %227, %236 : vector<8x128xf32>
    %246 = arith.addf %244, %245 : vector<8x128xf32>
    %247 = math.tanh %246 : vector<8x128xf32>
    %248 = arith.mulf %243, %247 : vector<8x128xf32>
    %249 = arith.truncf %248 : vector<8x128xf32> to vector<8x128xbf16>
    %250 = arith.index_cast %c5_i32 : i32 to index
    %c0_91 = arith.constant 0 : index
    %c0_92 = arith.constant 0 : index
    %251 = vector.load %arg6[%250, %c0_91, %c0_92] : memref<8x8x128xbf16, #tpu.memory_space<vmem>>, vector<1x8x128xbf16>
    %252 = vector.shape_cast %251 : vector<1x8x128xbf16> to vector<8x128xbf16>
    %253 = vector.shape_cast %249 : vector<8x128xbf16> to vector<1x8x128xbf16>
    tpu.vector_store %arg6[%250, %c0_91, %c0_92], %253 {strides = array<i32>} : memref<8x8x128xbf16, #tpu.memory_space<vmem>>, vector<1x8x128xbf16>,
    %c6_i32 = arith.constant 6 : i32
    %254 = arith.index_cast %c6_i32 : i32 to index
    %c0_93 = arith.constant 0 : index
    %c0_94 = arith.constant 0 : index
    %255 = vector.load %arg11[%254, %c0_93, %c0_94] : memref<8x8x512xf32, #tpu.memory_space<vmem>>, vector<1x8x512xf32>
    %256 = vector.shape_cast %255 : vector<1x8x512xf32> to vector<8x512xf32>
    %257 = arith.truncf %248 : vector<8x128xf32> to vector<8x128xbf16>
    %c0_95 = arith.constant 0 : index
    %c0_96 = arith.constant 0 : index
    %258 = vector.load %arg4[%c0_95, %c0_96] : memref<128x512xbf16, #tpu.memory_space<vmem>>, vector<128x512xbf16>
    %cst_97 = arith.constant dense<0.000000e+00> : vector<8x512xf32>
    %259 = tpu.matmul %257, %258, %cst_97 {dimension_numbers = #tpu.dot_dimension_numbers<[1], [0], [0], [1], [0, 0, 1, 1], [], []>} : vector<8x128xbf16>, vector<128x512xbf16>, vector<8x512xf32> -> vector<8x512xf32>
    %260 = arith.addf %256, %259 : vector<8x512xf32>
    %261 = vector.extract_strided_slice %260 {offsets = [0, 0], sizes = [8, 128], strides = [1, 1]} : vector<8x512xf32> to vector<8x128xf32>
    %cst_98 = arith.constant 0.000000e+00 : f32
    %262 = vector.broadcast %cst_98 : f32 to vector<8x128xf32>
    %263 = arith.subf %262, %261 : vector<8x128xf32>
    %264 = math.exp %263 : vector<8x128xf32>
    %cst_99 = arith.constant 1.000000e+00 : f32
    %265 = vector.broadcast %cst_99 : f32 to vector<8x128xf32>
    %266 = arith.addf %265, %264 : vector<8x128xf32>
    %267 = tpu.reciprocal %266 {approx = true} : vector<8x128xf32> -> vector<8x128xf32>
    %268 = vector.extract_strided_slice %260 {offsets = [0, 128], sizes = [8, 128], strides = [1, 1]} : vector<8x512xf32> to vector<8x128xf32>
    %cst_100 = arith.constant 0.000000e+00 : f32
    %269 = vector.broadcast %cst_100 : f32 to vector<8x128xf32>
    %270 = arith.subf %269, %268 : vector<8x128xf32>
    %271 = math.exp %270 : vector<8x128xf32>
    %cst_101 = arith.constant 1.000000e+00 : f32
    %272 = vector.broadcast %cst_101 : f32 to vector<8x128xf32>
    %273 = arith.addf %272, %271 : vector<8x128xf32>
    %274 = tpu.reciprocal %273 {approx = true} : vector<8x128xf32> -> vector<8x128xf32>
    %275 = vector.extract_strided_slice %260 {offsets = [0, 256], sizes = [8, 128], strides = [1, 1]} : vector<8x512xf32> to vector<8x128xf32>
    %276 = math.tanh %275 : vector<8x128xf32>
    %277 = vector.extract_strided_slice %260 {offsets = [0, 384], sizes = [8, 128], strides = [1, 1]} : vector<8x512xf32> to vector<8x128xf32>
    %cst_102 = arith.constant 0.000000e+00 : f32
    %278 = vector.broadcast %cst_102 : f32 to vector<8x128xf32>
    %279 = arith.subf %278, %277 : vector<8x128xf32>
    %280 = math.exp %279 : vector<8x128xf32>
    %cst_103 = arith.constant 1.000000e+00 : f32
    %281 = vector.broadcast %cst_103 : f32 to vector<8x128xf32>
    %282 = arith.addf %281, %280 : vector<8x128xf32>
    %283 = tpu.reciprocal %282 {approx = true} : vector<8x128xf32> -> vector<8x128xf32>
    %284 = arith.mulf %274, %246 : vector<8x128xf32>
    %285 = arith.mulf %267, %276 : vector<8x128xf32>
    %286 = arith.addf %284, %285 : vector<8x128xf32>
    %287 = math.tanh %286 : vector<8x128xf32>
    %288 = arith.mulf %283, %287 : vector<8x128xf32>
    %289 = arith.truncf %288 : vector<8x128xf32> to vector<8x128xbf16>
    %290 = arith.index_cast %c6_i32 : i32 to index
    %c0_104 = arith.constant 0 : index
    %c0_105 = arith.constant 0 : index
    %291 = vector.load %arg6[%290, %c0_104, %c0_105] : memref<8x8x128xbf16, #tpu.memory_space<vmem>>, vector<1x8x128xbf16>
    %292 = vector.shape_cast %291 : vector<1x8x128xbf16> to vector<8x128xbf16>
    %293 = vector.shape_cast %289 : vector<8x128xbf16> to vector<1x8x128xbf16>
    tpu.vector_store %arg6[%290, %c0_104, %c0_105], %293 {strides = array<i32>} : memref<8x8x128xbf16, #tpu.memory_space<vmem>>, vector<1x8x128xbf16>,
    %c7_i32 = arith.constant 7 : i32
    %294 = arith.index_cast %c7_i32 : i32 to index
    %c0_106 = arith.constant 0 : index
    %c0_107 = arith.constant 0 : index
    %295 = vector.load %arg11[%294, %c0_106, %c0_107] : memref<8x8x512xf32, #tpu.memory_space<vmem>>, vector<1x8x512xf32>
    %296 = vector.shape_cast %295 : vector<1x8x512xf32> to vector<8x512xf32>
    %297 = arith.truncf %288 : vector<8x128xf32> to vector<8x128xbf16>
    %c0_108 = arith.constant 0 : index
    %c0_109 = arith.constant 0 : index
    %298 = vector.load %arg4[%c0_108, %c0_109] : memref<128x512xbf16, #tpu.memory_space<vmem>>, vector<128x512xbf16>
    %cst_110 = arith.constant dense<0.000000e+00> : vector<8x512xf32>
    %299 = tpu.matmul %297, %298, %cst_110 {dimension_numbers = #tpu.dot_dimension_numbers<[1], [0], [0], [1], [0, 0, 1, 1], [], []>} : vector<8x128xbf16>, vector<128x512xbf16>, vector<8x512xf32> -> vector<8x512xf32>
    %300 = arith.addf %296, %299 : vector<8x512xf32>
    %301 = vector.extract_strided_slice %300 {offsets = [0, 0], sizes = [8, 128], strides = [1, 1]} : vector<8x512xf32> to vector<8x128xf32>
    %cst_111 = arith.constant 0.000000e+00 : f32
    %302 = vector.broadcast %cst_111 : f32 to vector<8x128xf32>
    %303 = arith.subf %302, %301 : vector<8x128xf32>
    %304 = math.exp %303 : vector<8x128xf32>
    %cst_112 = arith.constant 1.000000e+00 : f32
    %305 = vector.broadcast %cst_112 : f32 to vector<8x128xf32>
    %306 = arith.addf %305, %304 : vector<8x128xf32>
    %307 = tpu.reciprocal %306 {approx = true} : vector<8x128xf32> -> vector<8x128xf32>
    %308 = vector.extract_strided_slice %300 {offsets = [0, 128], sizes = [8, 128], strides = [1, 1]} : vector<8x512xf32> to vector<8x128xf32>
    %cst_113 = arith.constant 0.000000e+00 : f32
    %309 = vector.broadcast %cst_113 : f32 to vector<8x128xf32>
    %310 = arith.subf %309, %308 : vector<8x128xf32>
    %311 = math.exp %310 : vector<8x128xf32>
    %cst_114 = arith.constant 1.000000e+00 : f32
    %312 = vector.broadcast %cst_114 : f32 to vector<8x128xf32>
    %313 = arith.addf %312, %311 : vector<8x128xf32>
    %314 = tpu.reciprocal %313 {approx = true} : vector<8x128xf32> -> vector<8x128xf32>
    %315 = vector.extract_strided_slice %300 {offsets = [0, 256], sizes = [8, 128], strides = [1, 1]} : vector<8x512xf32> to vector<8x128xf32>
    %316 = math.tanh %315 : vector<8x128xf32>
    %317 = vector.extract_strided_slice %300 {offsets = [0, 384], sizes = [8, 128], strides = [1, 1]} : vector<8x512xf32> to vector<8x128xf32>
    %cst_115 = arith.constant 0.000000e+00 : f32
    %318 = vector.broadcast %cst_115 : f32 to vector<8x128xf32>
    %319 = arith.subf %318, %317 : vector<8x128xf32>
    %320 = math.exp %319 : vector<8x128xf32>
    %cst_116 = arith.constant 1.000000e+00 : f32
    %321 = vector.broadcast %cst_116 : f32 to vector<8x128xf32>
    %322 = arith.addf %321, %320 : vector<8x128xf32>
    %323 = tpu.reciprocal %322 {approx = true} : vector<8x128xf32> -> vector<8x128xf32>
    %324 = arith.mulf %314, %286 : vector<8x128xf32>
    %325 = arith.mulf %307, %316 : vector<8x128xf32>
    %326 = arith.addf %324, %325 : vector<8x128xf32>
    %327 = math.tanh %326 : vector<8x128xf32>
    %328 = arith.mulf %323, %327 : vector<8x128xf32>
    %329 = arith.truncf %328 : vector<8x128xf32> to vector<8x128xbf16>
    %330 = arith.index_cast %c7_i32 : i32 to index
    %c0_117 = arith.constant 0 : index
    %c0_118 = arith.constant 0 : index
    %331 = vector.load %arg6[%330, %c0_117, %c0_118] : memref<8x8x128xbf16, #tpu.memory_space<vmem>>, vector<1x8x128xbf16>
    %332 = vector.shape_cast %331 : vector<1x8x128xbf16> to vector<8x128xbf16>
    %333 = vector.shape_cast %329 : vector<8x128xbf16> to vector<1x8x128xbf16>
    tpu.vector_store %arg6[%330, %c0_117, %c0_118], %333 {strides = array<i32>} : memref<8x8x128xbf16, #tpu.memory_space<vmem>>, vector<1x8x128xbf16>,
    %c8_i32 = arith.constant 8 : i32
    %c0_119 = arith.constant 0 : index
    %c0_120 = arith.constant 0 : index
    %334 = vector.load %arg9[%c0_119, %c0_120] : memref<8x128xf32, #tpu.memory_space<vmem>>, vector<8x128xf32>
    tpu.vector_store %arg9[%c0_119, %c0_120], %328 {strides = array<i32>} : memref<8x128xf32, #tpu.memory_space<vmem>>, vector<8x128xf32>,
    %c0_121 = arith.constant 0 : index
    %c0_122 = arith.constant 0 : index
    %335 = vector.load %arg10[%c0_121, %c0_122] : memref<8x128xf32, #tpu.memory_space<vmem>>, vector<8x128xf32>
    tpu.vector_store %arg10[%c0_121, %c0_122], %326 {strides = array<i32>} : memref<8x128xf32, #tpu.memory_space<vmem>>, vector<8x128xf32>,
    %c0_i32_123 = arith.constant 0 : i32
    %336 = arith.cmpi eq, %arg1, %c0_i32_123 : i32
    %337 = arith.extui %336 : i1 to i32
    %c0_i32_124 = arith.constant 0 : i32
    %338 = arith.cmpi ne, %337, %c0_i32_124 : i32
    scf.if %338 {
      %c0_125 = arith.constant 0 : index
      %c0_126 = arith.constant 0 : index
      %339 = vector.load %arg7[%c0_125, %c0_126] : memref<8x128xf32, #tpu.memory_space<vmem>>, vector<8x128xf32>
      tpu.vector_store %arg7[%c0_125, %c0_126], %328 {strides = array<i32>} : memref<8x128xf32, #tpu.memory_space<vmem>>, vector<8x128xf32>,
      %c0_127 = arith.constant 0 : index
      %c0_128 = arith.constant 0 : index
      %340 = vector.load %arg8[%c0_127, %c0_128] : memref<8x128xf32, #tpu.memory_space<vmem>>, vector<8x128xf32>
      tpu.vector_store %arg8[%c0_127, %c0_128], %326 {strides = array<i32>} : memref<8x128xf32, #tpu.memory_space<vmem>>, vector<8x128xf32>,
    } else {
    }
    return
  }
  func.func @transform_0(%arg0: i32, %arg1: i32) -> (i32, i32, i32) {
    %c0_i32 = arith.constant 0 : i32
    %c0_i32_0 = arith.constant 0 : i32
    return %arg1, %arg0, %c0_i32 : i32, i32, i32
  }
  func.func @transform_1(%arg0: i32, %arg1: i32) -> (i32, i32) {
    %c0_i32 = arith.constant 0 : i32
    %c0_i32_0 = arith.constant 0 : i32
    %c0_i32_1 = arith.constant 0 : i32
    return %c0_i32, %c0_i32_0 : i32, i32
  }
  func.func @transform_2(%arg0: i32, %arg1: i32) -> (i32, i32) {
    %c0_i32 = arith.constant 0 : i32
    %c0_i32_0 = arith.constant 0 : i32
    %c0_i32_1 = arith.constant 0 : i32
    return %c0_i32, %c0_i32_0 : i32, i32
  }
  func.func @transform_3(%arg0: i32, %arg1: i32) -> (i32, i32) {
    %c0_i32 = arith.constant 0 : i32
    %c0_i32_0 = arith.constant 0 : i32
    %c0_i32_1 = arith.constant 0 : i32
    return %c0_i32, %c0_i32_0 : i32, i32
  }
  func.func @transform_4(%arg0: i32, %arg1: i32) -> (i32, i32, i32) {
    %c0_i32 = arith.constant 0 : i32
    %c0_i32_0 = arith.constant 0 : i32
    return %arg1, %arg0, %c0_i32 : i32, i32, i32
  }
  func.func @transform_5(%arg0: i32, %arg1: i32) -> (i32, i32) {
    %c0_i32 = arith.constant 0 : i32
    %c0_i32_0 = arith.constant 0 : i32
    return %arg0, %c0_i32 : i32, i32
  }
  func.func @transform_6(%arg0: i32, %arg1: i32) -> (i32, i32) {
    %c0_i32 = arith.constant 0 : i32
    %c0_i32_0 = arith.constant 0 : i32
    return %arg0, %c0_i32 : i32, i32
  }
}

</mosaic_0001>

<llo_original>
// kernel: tpu_custom_call.1
$region0: #{tpu_custom_call.1}
  #allocation0 [shape = 'u32[]', space=smem, size = 0x4, offset = 0x4, fixed_abs, tag = 'smem constant byte address 0x4 - core index']
  #allocation1 [shape = 'u32[144,128]{1,0:T(1,128)}', space=vmem, size = 0x12000, scoped, tag = 'internal scratch']
  #allocation2 [shape = 'f32[8,128]{1,0:T(8,128)}', space=vmem, size = 0x1000, scoped, tag = 'scratch operand']
  #allocation3 [shape = 'f32[8,128]{1,0:T(8,128)}', space=vmem, size = 0x1000, scoped, tag = 'scratch operand']
  #allocation4 [shape = 'f32[8,8,512]{2,1,0:T(8,128)}', space=vmem, size = 0x20000, scoped, tag = 'scratch operand']
  %s0 = inlined_call_operand.hbm [shape: bf16[8,8,128], index: 0, kind: input, shape index: {}]
  %s1 = inlined_call_operand.hbm [shape: bf16[128,512], index: 1, kind: input, shape index: {}]
  %s2 = inlined_call_operand.hbm [shape: bf16[128,512], index: 2, kind: input, shape index: {}]
  %s3 = inlined_call_operand.vmem [shape: f32[1,512], index: 3, kind: input, shape index: {}]
  %s4 = inlined_call_operand.hbm [shape: bf16[8,8,128], index: 4, kind: output, shape index: {0}]
  %s5 = inlined_call_operand.hbm [shape: f32[8,128], index: 5, kind: output, shape index: {1}]
  %s6 = inlined_call_operand.hbm [shape: f32[8,128], index: 6, kind: output, shape index: {2}]
  %7 = xla_tuple %s4, %s5, %s6
  %s8 = sld [smem:[#allocation0]]
  $region62: #{tpu_custom_call.1} parent=0
    _
  %s10 = ssub.s32 1, %s8
  %s11 = scalar_select 0, %s10, %s8
  $region1: #{tpu_custom_call.1} parent=0
    #allocation5 [shape = 'u8[16384]{0}', space=vmem, size = 0x4000, scoped, tag = 'input window, operand 0, single buffered']
    #allocation6 [shape = 's32[1]{0}', space=sflag, size = 0x4, scoped, tag = 'scoped memory for tpu_custom_call.1']
    #allocation7 [shape = 's32[1]{0}', space=sflag, size = 0x4, scoped, tag = 'scoped memory for tpu_custom_call.1']
    #allocation8 [shape = 'u8[131072]{0}', space=vmem, size = 0x20000, scoped, tag = 'input window, operand 1, single buffered']
    #allocation9 [shape = 's32[1]{0}', space=sflag, size = 0x4, scoped, tag = 'scoped memory for tpu_custom_call.1']
    #allocation10 [shape = 'u8[131072]{0}', space=vmem, size = 0x20000, scoped, tag = 'input window, operand 2, single buffered']
    #allocation11 [shape = 'u8[16384]{0}', space=vmem, size = 0x4000, scoped, tag = 'output window, operand 0, single buffered']
    #allocation12 [shape = 'u8[4096]{0}', space=vmem, size = 0x1000, scoped, tag = 'output window, operand 1, single buffered']
    #allocation13 [shape = 's32[1]{0}', space=sflag, size = 0x4, scoped, tag = 'scoped memory for tpu_custom_call.1']
    #allocation14 [shape = 'u8[4096]{0}', space=vmem, size = 0x1000, scoped, tag = 'output window, operand 2, single buffered']
    %12 = vsyncpa [#allocation6], 0
    %13 = vsyncpa [#allocation9], 0
    %14 = vsyncpa [#allocation7], 0
    %15 = vsyncpa [#allocation13], 0
    // Predicated region
    $region2: #{tpu_custom_call.1} parent=1 // pred_check
      _
    $region3: #{tpu_custom_call.1} parent=1 // pred_check_branch
      %17 = sbr.rel (0) target = $region5
    $region4: #{tpu_custom_call.1} parent=1 // pred_region
      %s19 = ssub.s32 512, 512
      %20 = vsyncadd [#allocation6], %s19
      %s21 = sshll.u32 [#allocation5], 4
      %s22 = int_to_ptr.vmem [resolvable:$true] %s21
      %27 = dma.hbm_to_vmem [thread:$0]  %s0, 512, %s22, [#allocation6], 64, 64, 4
    $region5: #{tpu_custom_call.1} parent=1 // pred_fallthru
      _
    // Predicated region
    $region6: #{tpu_custom_call.1} parent=1 // pred_check
      _
    $region7: #{tpu_custom_call.1} parent=1 // pred_check_branch
      %29 = sbr.rel (0) target = $region9
    $region8: #{tpu_custom_call.1} parent=1 // pred_region
      %s31 = ssub.s32 4096, 4096
      %32 = vsyncadd [#allocation9], %s31
      %s33 = sshll.u32 [#allocation8], 4
      %s34 = int_to_ptr.vmem [resolvable:$true] %s33
      %39 = dma.hbm_to_vmem [thread:$0]  %s1, 4096, %s34, [#allocation9], 256, 256, 16
    $region9: #{tpu_custom_call.1} parent=1 // pred_fallthru
      _
    // Predicated region
    $region10: #{tpu_custom_call.1} parent=1 // pred_check
      _
    $region11: #{tpu_custom_call.1} parent=1 // pred_check_branch
      %41 = sbr.rel (0) target = $region13
    $region12: #{tpu_custom_call.1} parent=1 // pred_region
      %s43 = ssub.s32 4096, 4096
      %44 = vsyncadd [#allocation9], %s43
      %s45 = sshll.u32 [#allocation10], 4
      %s46 = int_to_ptr.vmem [resolvable:$true] %s45
      %51 = dma.hbm_to_vmem [thread:$0]  %s2, 4096, %s46, [#allocation9], 256, 256, 16
    $region13: #{tpu_custom_call.1} parent=1 // pred_fallthru
      _
    // Predicated region
    $region14: #{tpu_custom_call.1} parent=1 // pred_check
      _
    $region15: #{tpu_custom_call.1} parent=1 // pred_check_branch
      %53 = sbr.rel (0) target = $region17
    $region16: #{tpu_custom_call.1} parent=1 // pred_region
      _
    $region17: #{tpu_custom_call.1} parent=1 // pred_fallthru
      _
    // Predicated region
    $region18: #{tpu_custom_call.1} parent=1 // pred_check
      _
    $region19: #{tpu_custom_call.1} parent=1 // pred_check_branch
      %55 = sbr.rel (0) target = $region21
    $region20: #{tpu_custom_call.1} parent=1 // pred_region
      %56 = dma.done [#allocation6], 512
    $region21: #{tpu_custom_call.1} parent=1 // pred_fallthru
      _
    // Predicated region
    $region22: #{tpu_custom_call.1} parent=1 // pred_check
      _
    $region23: #{tpu_custom_call.1} parent=1 // pred_check_branch
      %58 = sbr.rel (0) target = $region25
    $region24: #{tpu_custom_call.1} parent=1 // pred_region
      %59 = dma.done [#allocation9], 4096
    $region25: #{tpu_custom_call.1} parent=1 // pred_fallthru
      _
    // Predicated region
    $region26: #{tpu_custom_call.1} parent=1 // pred_check
      _
    $region27: #{tpu_custom_call.1} parent=1 // pred_check_branch
      %61 = sbr.rel (0) target = $region29
    $region28: #{tpu_custom_call.1} parent=1 // pred_region
      %62 = dma.done [#allocation9], 4096
    $region29: #{tpu_custom_call.1} parent=1 // pred_fallthru
      _
    %p64 = scmp.eq.s32.totalorder 0, 0
    // Predicated region
    $region30: #{tpu_custom_call.1} parent=1 // pred_check
      %p65 = pneg %p64
    $region31: #{tpu_custom_call.1} parent=1 // pred_check_branch
      %67 = sbr.rel (%p65) target = $region33
    $region32: #{tpu_custom_call.1} parent=1 // pred_region
      %68 = vst [vmem:[#allocation2] sm:$0xff] 0.0
      %69 = vst [vmem:[#allocation3] sm:$0xff] 0.0
    $region33: #{tpu_custom_call.1} parent=1 // pred_fallthru
      _
    %v70 = vld [vmem:[#allocation5] sm:$0xf]
    %v71 = vld [vmem:[#allocation5 + $0x4] sm:$0xf]
    %v72 = vld [vmem:[#allocation5 + $0x8] sm:$0xf]
    %v73 = vld [vmem:[#allocation5 + $0xc] sm:$0xf]
    %v74 = vld [vmem:[#allocation5 + $0x10] sm:$0xf]
    %v75 = vld [vmem:[#allocation5 + $0x14] sm:$0xf]
    %v76 = vld [vmem:[#allocation5 + $0x18] sm:$0xf]
    %v77 = vld [vmem:[#allocation5 + $0x1c] sm:$0xf]
    %v78 = vld [vmem:[#allocation8] sm:$0xff]
    %v79 = vld [vmem:[#allocation8 + $0x8] sm:$0xff]
    %v80 = vld [vmem:[#allocation8 + $0x10] sm:$0xff]
    %v81 = vld [vmem:[#allocation8 + $0x18] sm:$0xff]
    %v82 = vld [vmem:[#allocation8 + $0x20] sm:$0xff]
    %v83 = vld [vmem:[#allocation8 + $0x28] sm:$0xff]
    %v84 = vld [vmem:[#allocation8 + $0x30] sm:$0xff]
    %v85 = vld [vmem:[#allocation8 + $0x38] sm:$0xff]
    %v86 = vld [vmem:[#allocation8 + $0x40] sm:$0xff]
    %v87 = vld [vmem:[#allocation8 + $0x48] sm:$0xff]
    %v88 = vld [vmem:[#allocation8 + $0x50] sm:$0xff]
    %v89 = vld [vmem:[#allocation8 + $0x58] sm:$0xff]
    %v90 = vld [vmem:[#allocation8 + $0x60] sm:$0xff]
    %v91 = vld [vmem:[#allocation8 + $0x68] sm:$0xff]
    %v92 = vld [vmem:[#allocation8 + $0x70] sm:$0xff]
    %v93 = vld [vmem:[#allocation8 + $0x78] sm:$0xff]
    %v94 = vld [vmem:[#allocation8 + $0x80] sm:$0xff]
    %v95 = vld [vmem:[#allocation8 + $0x88] sm:$0xff]
    %v96 = vld [vmem:[#allocation8 + $0x90] sm:$0xff]
    %v97 = vld [vmem:[#allocation8 + $0x98] sm:$0xff]
    %v98 = vld [vmem:[#allocation8 + $0xa0] sm:$0xff]
    %v99 = vld [vmem:[#allocation8 + $0xa8] sm:$0xff]
    %v100 = vld [vmem:[#allocation8 + $0xb0] sm:$0xff]
    %v101 = vld [vmem:[#allocation8 + $0xb8] sm:$0xff]
    %v102 = vld [vmem:[#allocation8 + $0xc0] sm:$0xff]
    %v103 = vld [vmem:[#allocation8 + $0xc8] sm:$0xff]
    %v104 = vld [vmem:[#allocation8 + $0xd0] sm:$0xff]
    %v105 = vld [vmem:[#allocation8 + $0xd8] sm:$0xff]
    %v106 = vld [vmem:[#allocation8 + $0xe0] sm:$0xff]
    %v107 = vld [vmem:[#allocation8 + $0xe8] sm:$0xff]
    %v108 = vld [vmem:[#allocation8 + $0xf0] sm:$0xff]
    %v109 = vld [vmem:[#allocation8 + $0xf8] sm:$0xff]
    %v110 = vld [vmem:[%s3] sm:$0xf]
    %v112 = vlaneseq
    %v113 = vshrl.u32 %v112, 7
    %v114 = vsub.s32 0, %v113
    %v115 = vrot.slane %v110, %v114
    %v116 = vlaneseq
    %v117 = vshrl.u32 %v116, 7
    %v118 = vsub.s32 1, %v117
    %v119 = vrot.slane %v110, %v118
    %v120 = vlaneseq
    %v121 = vshrl.u32 %v120, 7
    %v122 = vsub.s32 2, %v121
    %v123 = vrot.slane %v110, %v122
    %v124 = vlaneseq
    %v125 = vshrl.u32 %v124, 7
    %v126 = vsub.s32 3, %v125
    %v127 = vrot.slane %v110, %v126
    %v140 = vunpack.c.l.b16 %v70
    %v141 = vunpack.c.l.b16 %v71
    %v142 = vunpack.c.l.b16 %v72
    %v143 = vunpack.c.l.b16 %v73
    %v144 = vunpack.c.l.b16 %v74
    %v145 = vunpack.c.l.b16 %v75
    %v146 = vunpack.c.l.b16 %v76
    %v147 = vunpack.c.l.b16 %v77
    %v148 = vpack.c.b16 %v141, %v140
    %v149 = vpack.c.b16 %v143, %v142
    %v150 = vpack.c.b16 %v145, %v144
    %v151 = vpack.c.b16 %v147, %v146
    %v188 = vunpack.c.l.b16 %v78
    %v189 = vunpack.c.h.b16 %v78
    %v190 = vunpack.c.l.b16 %v79
    %v191 = vunpack.c.h.b16 %v79
    %v192 = vunpack.c.l.b16 %v80
    %v193 = vunpack.c.h.b16 %v80
    %v194 = vunpack.c.l.b16 %v81
    %v195 = vunpack.c.h.b16 %v81
    %v196 = vunpack.c.l.b16 %v82
    %v197 = vunpack.c.h.b16 %v82
    %v198 = vunpack.c.l.b16 %v83
    %v199 = vunpack.c.h.b16 %v83
    %v200 = vunpack.c.l.b16 %v84
    %v201 = vunpack.c.h.b16 %v84
    %v202 = vunpack.c.l.b16 %v85
    %v203 = vunpack.c.h.b16 %v85
    %v204 = vunpack.c.l.b16 %v86
    %v205 = vunpack.c.h.b16 %v86
    %v206 = vunpack.c.l.b16 %v87
    %v207 = vunpack.c.h.b16 %v87
    %v208 = vunpack.c.l.b16 %v88
    %v209 = vunpack.c.h.b16 %v88
    %v210 = vunpack.c.l.b16 %v89
    %v211 = vunpack.c.h.b16 %v89
    %v212 = vunpack.c.l.b16 %v90
    %v213 = vunpack.c.h.b16 %v90
    %v214 = vunpack.c.l.b16 %v91
    %v215 = vunpack.c.h.b16 %v91
    %v216 = vunpack.c.l.b16 %v92
    %v217 = vunpack.c.h.b16 %v92
    %v218 = vunpack.c.l.b16 %v93
    %v219 = vunpack.c.h.b16 %v93
    %v220 = vunpack.c.l.b16 %v94
    %v221 = vunpack.c.h.b16 %v94
    %v222 = vunpack.c.l.b16 %v95
    %v223 = vunpack.c.h.b16 %v95
    %v224 = vunpack.c.l.b16 %v96
    %v225 = vunpack.c.h.b16 %v96
    %v226 = vunpack.c.l.b16 %v97
    %v227 = vunpack.c.h.b16 %v97
    %v228 = vunpack.c.l.b16 %v98
    %v229 = vunpack.c.h.b16 %v98
    %v230 = vunpack.c.l.b16 %v99
    %v231 = vunpack.c.h.b16 %v99
    %v232 = vunpack.c.l.b16 %v100
    %v233 = vunpack.c.h.b16 %v100
    %v234 = vunpack.c.l.b16 %v101
    %v235 = vunpack.c.h.b16 %v101
    %v236 = vunpack.c.l.b16 %v102
    %v237 = vunpack.c.h.b16 %v102
    %v238 = vunpack.c.l.b16 %v103
    %v239 = vunpack.c.h.b16 %v103
    %v240 = vunpack.c.l.b16 %v104
    %v241 = vunpack.c.h.b16 %v104
    %v242 = vunpack.c.l.b16 %v105
    %v243 = vunpack.c.h.b16 %v105
    %v244 = vunpack.c.l.b16 %v106
    %v245 = vunpack.c.h.b16 %v106
    %v246 = vunpack.c.l.b16 %v107
    %v247 = vunpack.c.h.b16 %v107
    %v248 = vunpack.c.l.b16 %v108
    %v249 = vunpack.c.h.b16 %v108
    %v250 = vunpack.c.l.b16 %v109
    %v251 = vunpack.c.h.b16 %v109
    %v252 = vpack.c.b16 %v192, %v188
    %v253 = vpack.c.b16 %v193, %v189
    %v254 = vpack.c.b16 %v194, %v190
    %v255 = vpack.c.b16 %v195, %v191
    %v256 = vpack.c.b16 %v200, %v196
    %v257 = vpack.c.b16 %v201, %v197
    %v258 = vpack.c.b16 %v202, %v198
    %v259 = vpack.c.b16 %v203, %v199
    %v260 = vpack.c.b16 %v208, %v204
    %v261 = vpack.c.b16 %v209, %v205
    %v262 = vpack.c.b16 %v210, %v206
    %v263 = vpack.c.b16 %v211, %v207
    %v264 = vpack.c.b16 %v216, %v212
    %v265 = vpack.c.b16 %v217, %v213
    %v266 = vpack.c.b16 %v218, %v214
    %v267 = vpack.c.b16 %v219, %v215
    %v268 = vpack.c.b16 %v224, %v220
    %v269 = vpack.c.b16 %v225, %v221
    %v270 = vpack.c.b16 %v226, %v222
    %v271 = vpack.c.b16 %v227, %v223
    %v272 = vpack.c.b16 %v232, %v228
    %v273 = vpack.c.b16 %v233, %v229
    %v274 = vpack.c.b16 %v234, %v230
    %v275 = vpack.c.b16 %v235, %v231
    %v276 = vpack.c.b16 %v240, %v236
    %v277 = vpack.c.b16 %v241, %v237
    %v278 = vpack.c.b16 %v242, %v238
    %v279 = vpack.c.b16 %v243, %v239
    %v280 = vpack.c.b16 %v248, %v244
    %v281 = vpack.c.b16 %v249, %v245
    %v282 = vpack.c.b16 %v250, %v246
    %v283 = vpack.c.b16 %v251, %v247
    %316 = vmatprep.subr.bf16.mxu0 %v253
    %317 = vmatpush1.bf16.msra.mxu0 %v252
    %318 = vmatprep.subr.bf16.mxu0 %v257
    %319 = vmatpush1.bf16.msra.mxu0 %v256
    %320 = vmatprep.subr.bf16.mxu0 %v261
    %321 = vmatpush1.bf16.msra.mxu0 %v260
    %322 = vmatprep.subr.bf16.mxu0 %v265
    %323 = vmatpush1.bf16.msra.mxu0 %v264
    %324 = vmatprep.subr.bf16.mxu0 %v269
    %325 = vmatpush1.bf16.msra.mxu0 %v268
    %326 = vmatprep.subr.bf16.mxu0 %v273
    %327 = vmatpush1.bf16.msra.mxu0 %v272
    %328 = vmatprep.subr.bf16.mxu0 %v277
    %329 = vmatpush1.bf16.msra.mxu0 %v276
    %330 = vmatprep.subr.bf16.mxu0 %v281
    %331 = vmatpush1.bf16.msra.mxu0 %v280
    %332 = vmatprep.subr.bf16.mxu0 0
    %333 = vmatpush1.bf16.msra.mxu0 0
    %334 = vmatprep.subr.bf16.mxu0 0
    %335 = vmatpush1.bf16.msra.mxu0 0
    %336 = vmatprep.subr.bf16.mxu0 0
    %337 = vmatpush1.bf16.msra.mxu0 0
    %338 = vmatprep.subr.bf16.mxu0 0
    %339 = vmatpush1.bf16.msra.mxu0 0
    %340 = vmatprep.subr.bf16.mxu0 0
    %341 = vmatpush1.bf16.msra.mxu0 0
    %342 = vmatprep.subr.bf16.mxu0 0
    %343 = vmatpush1.bf16.msra.mxu0 0
    %344 = vmatprep.subr.bf16.mxu0 0
    %345 = vmatpush1.bf16.msra.mxu0 0
    %346 = vmatprep.subr.bf16.mxu0 0
    %347 = vmatpush1.bf16.msra.mxu0 0
    %348 = vmatprep.mubr.bf16.mxu0 0
    %349 = vmatmul.mubr.bf16.gmra.mrb[0].mxu0 %v148
    %v350 = vpop.f32.mrb[0].mxu0
    %v351 = vadd.f32 %v115, %v350
    %v352 = vpop.f32.mrb[0].mxu0
    %v353 = vadd.f32 %v119, %v352
    %v354 = vpop.f32.mrb[0].mxu0
    %v355 = vadd.f32 %v115, %v354
    %v356 = vpop.f32.mrb[0].mxu0
    %v357 = vadd.f32 %v119, %v356
    %358 = vmatprep.mubr.bf16.mxu0 0
    %359 = vmatmul.mubr.bf16.gmra.mrb[0].mxu0 %v149
    %v360 = vpop.f32.mrb[0].mxu0
    %v361 = vadd.f32 %v115, %v360
    %v362 = vpop.f32.mrb[0].mxu0
    %v363 = vadd.f32 %v119, %v362
    %v364 = vpop.f32.mrb[0].mxu0
    %v365 = vadd.f32 %v115, %v364
    %v366 = vpop.f32.mrb[0].mxu0
    %v367 = vadd.f32 %v119, %v366
    %368 = vmatprep.mubr.bf16.mxu0 0
    %369 = vmatmul.mubr.bf16.gmra.mrb[0].mxu0 %v150
    %v370 = vpop.f32.mrb[0].mxu0
    %v371 = vadd.f32 %v115, %v370
    %v372 = vpop.f32.mrb[0].mxu0
    %v373 = vadd.f32 %v119, %v372
    %v374 = vpop.f32.mrb[0].mxu0
    %v375 = vadd.f32 %v115, %v374
    %v376 = vpop.f32.mrb[0].mxu0
    %v377 = vadd.f32 %v119, %v376
    %378 = vmatprep.mubr.bf16.mxu0 0
    %379 = vmatmul.mubr.bf16.gmra.mrb[0].mxu0 %v151
    %v380 = vpop.f32.mrb[0].mxu0
    %v381 = vadd.f32 %v115, %v380
    %v382 = vpop.f32.mrb[0].mxu0
    %v383 = vadd.f32 %v119, %v382
    %v384 = vpop.f32.mrb[0].mxu0
    %v385 = vadd.f32 %v115, %v384
    %v386 = vpop.f32.mrb[0].mxu0
    %v387 = vadd.f32 %v119, %v386
    %388 = vdwg.mxu0
    %389 = vmatprep.subr.bf16.mxu0 %v255
    %390 = vmatpush1.bf16.msra.mxu0 %v254
    %391 = vmatprep.subr.bf16.mxu0 %v259
    %392 = vmatpush1.bf16.msra.mxu0 %v258
    %393 = vmatprep.subr.bf16.mxu0 %v263
    %394 = vmatpush1.bf16.msra.mxu0 %v262
    %395 = vmatprep.subr.bf16.mxu0 %v267
    %396 = vmatpush1.bf16.msra.mxu0 %v266
    %397 = vmatprep.subr.bf16.mxu0 %v271
    %398 = vmatpush1.bf16.msra.mxu0 %v270
    %399 = vmatprep.subr.bf16.mxu0 %v275
    %400 = vmatpush1.bf16.msra.mxu0 %v274
    %401 = vmatprep.subr.bf16.mxu0 %v279
    %402 = vmatpush1.bf16.msra.mxu0 %v278
    %403 = vmatprep.subr.bf16.mxu0 %v283
    %404 = vmatpush1.bf16.msra.mxu0 %v282
    %405 = vmatprep.subr.bf16.mxu0 0
    %406 = vmatpush1.bf16.msra.mxu0 0
    %407 = vmatprep.subr.bf16.mxu0 0
    %408 = vmatpush1.bf16.msra.mxu0 0
    %409 = vmatprep.subr.bf16.mxu0 0
    %410 = vmatpush1.bf16.msra.mxu0 0
    %411 = vmatprep.subr.bf16.mxu0 0
    %412 = vmatpush1.bf16.msra.mxu0 0
    %413 = vmatprep.subr.bf16.mxu0 0
    %414 = vmatpush1.bf16.msra.mxu0 0
    %415 = vmatprep.subr.bf16.mxu0 0
    %416 = vmatpush1.bf16.msra.mxu0 0
    %417 = vmatprep.subr.bf16.mxu0 0
    %418 = vmatpush1.bf16.msra.mxu0 0
    %419 = vmatprep.subr.bf16.mxu0 0
    %420 = vmatpush1.bf16.msra.mxu0 0
    %421 = vmatprep.mubr.bf16.mxu0 0
    %422 = vmatmul.mubr.bf16.gmra.mrb[0].mxu0 %v148
    %v423 = vpop.f32.mrb[0].mxu0
    %v424 = vadd.f32 %v123, %v423
    %v425 = vpop.f32.mrb[0].mxu0
    %v426 = vadd.f32 %v127, %v425
    %v427 = vpop.f32.mrb[0].mxu0
    %v428 = vadd.f32 %v123, %v427
    %v429 = vpop.f32.mrb[0].mxu0
    %v430 = vadd.f32 %v127, %v429
    %431 = vmatprep.mubr.bf16.mxu0 0
    %432 = vmatmul.mubr.bf16.gmra.mrb[0].mxu0 %v149
    %v433 = vpop.f32.mrb[0].mxu0
    %v434 = vadd.f32 %v123, %v433
    %v435 = vpop.f32.mrb[0].mxu0
    %v436 = vadd.f32 %v127, %v435
    %v437 = vpop.f32.mrb[0].mxu0
    %v438 = vadd.f32 %v123, %v437
    %v439 = vpop.f32.mrb[0].mxu0
    %v440 = vadd.f32 %v127, %v439
    %441 = vmatprep.mubr.bf16.mxu0 0
    %442 = vmatmul.mubr.bf16.gmra.mrb[0].mxu0 %v150
    %v443 = vpop.f32.mrb[0].mxu0
    %v444 = vadd.f32 %v123, %v443
    %v445 = vpop.f32.mrb[0].mxu0
    %v446 = vadd.f32 %v127, %v445
    %v447 = vpop.f32.mrb[0].mxu0
    %v448 = vadd.f32 %v123, %v447
    %v449 = vpop.f32.mrb[0].mxu0
    %v450 = vadd.f32 %v127, %v449
    %451 = vmatprep.mubr.bf16.mxu0 0
    %452 = vmatmul.mubr.bf16.gmra.mrb[0].mxu0 %v151
    %v453 = vpop.f32.mrb[0].mxu0
    %v454 = vadd.f32 %v123, %v453
    %v455 = vpop.f32.mrb[0].mxu0
    %v456 = vadd.f32 %v127, %v455
    %v457 = vpop.f32.mrb[0].mxu0
    %v458 = vadd.f32 %v123, %v457
    %v459 = vpop.f32.mrb[0].mxu0
    %v460 = vadd.f32 %v127, %v459
    %461 = vdwg.mxu0
    %462 = vst [vmem:[#allocation4] sm:$0xff] %v351
    %463 = vst [vmem:[#allocation4 + $0x8] sm:$0xff] %v353
    %464 = vst [vmem:[#allocation4 + $0x10] sm:$0xff] %v424
    %465 = vst [vmem:[#allocation4 + $0x18] sm:$0xff] %v426
    %466 = vst [vmem:[#allocation4 + $0x20] sm:$0xff] %v355
    %467 = vst [vmem:[#allocation4 + $0x28] sm:$0xff] %v357
    %468 = vst [vmem:[#allocation4 + $0x30] sm:$0xff] %v428
    %469 = vst [vmem:[#allocation4 + $0x38] sm:$0xff] %v430
    %470 = vst [vmem:[#allocation4 + $0x40] sm:$0xff] %v361
    %471 = vst [vmem:[#allocation4 + $0x48] sm:$0xff] %v363
    %472 = vst [vmem:[#allocation4 + $0x50] sm:$0xff] %v434
    %473 = vst [vmem:[#allocation4 + $0x58] sm:$0xff] %v436
    %474 = vst [vmem:[#allocation4 + $0x60] sm:$0xff] %v365
    %475 = vst [vmem:[#allocation4 + $0x68] sm:$0xff] %v367
    %476 = vst [vmem:[#allocation4 + $0x70] sm:$0xff] %v438
    %477 = vst [vmem:[#allocation4 + $0x78] sm:$0xff] %v440
    %478 = vst [vmem:[#allocation4 + $0x80] sm:$0xff] %v371
    %479 = vst [vmem:[#allocation4 + $0x88] sm:$0xff] %v373
    %480 = vst [vmem:[#allocation4 + $0x90] sm:$0xff] %v444
    %481 = vst [vmem:[#allocation4 + $0x98] sm:$0xff] %v446
    %482 = vst [vmem:[#allocation4 + $0xa0] sm:$0xff] %v375
    %483 = vst [vmem:[#allocation4 + $0xa8] sm:$0xff] %v377
    %484 = vst [vmem:[#allocation4 + $0xb0] sm:$0xff] %v448
    %485 = vst [vmem:[#allocation4 + $0xb8] sm:$0xff] %v450
    %486 = vst [vmem:[#allocation4 + $0xc0] sm:$0xff] %v381
    %487 = vst [vmem:[#allocation4 + $0xc8] sm:$0xff] %v383
    %488 = vst [vmem:[#allocation4 + $0xd0] sm:$0xff] %v454
    %489 = vst [vmem:[#allocation4 + $0xd8] sm:$0xff] %v456
    %490 = vst [vmem:[#allocation4 + $0xe0] sm:$0xff] %v385
    %491 = vst [vmem:[#allocation4 + $0xe8] sm:$0xff] %v387
    %492 = vst [vmem:[#allocation4 + $0xf0] sm:$0xff] %v458
    %493 = vst [vmem:[#allocation4 + $0xf8] sm:$0xff] %v460
    %v494 = vld [vmem:[#allocation2] sm:$0xff]
    %v495 = vld [vmem:[#allocation3] sm:$0xff]
    %v496 = vld [vmem:[#allocation4] sm:$0xff]
    %v497 = vld [vmem:[#allocation4 + $0x8] sm:$0xff]
    %v498 = vld [vmem:[#allocation4 + $0x10] sm:$0xff]
    %v499 = vld [vmem:[#allocation4 + $0x18] sm:$0xff]
    %v500 = vpack.c.bf16 %v494, %v494
    %v501 = vld [vmem:[#allocation10] sm:$0xff]
    %v502 = vld [vmem:[#allocation10 + $0x8] sm:$0xff]
    %v503 = vld [vmem:[#allocation10 + $0x10] sm:$0xff]
    %v504 = vld [vmem:[#allocation10 + $0x18] sm:$0xff]
    %v505 = vld [vmem:[#allocation10 + $0x20] sm:$0xff]
    %v506 = vld [vmem:[#allocation10 + $0x28] sm:$0xff]
    %v507 = vld [vmem:[#allocation10 + $0x30] sm:$0xff]
    %v508 = vld [vmem:[#allocation10 + $0x38] sm:$0xff]
    %v509 = vld [vmem:[#allocation10 + $0x40] sm:$0xff]
    %v510 = vld [vmem:[#allocation10 + $0x48] sm:$0xff]
    %v511 = vld [vmem:[#allocation10 + $0x50] sm:$0xff]
    %v512 = vld [vmem:[#allocation10 + $0x58] sm:$0xff]
    %v513 = vld [vmem:[#allocation10 + $0x60] sm:$0xff]
    %v514 = vld [vmem:[#allocation10 + $0x68] sm:$0xff]
    %v515 = vld [vmem:[#allocation10 + $0x70] sm:$0xff]
    %v516 = vld [vmem:[#allocation10 + $0x78] sm:$0xff]
    %v517 = vld [vmem:[#allocation10 + $0x80] sm:$0xff]
    %v518 = vld [vmem:[#allocation10 + $0x88] sm:$0xff]
    %v519 = vld [vmem:[#allocation10 + $0x90] sm:$0xff]
    %v520 = vld [vmem:[#allocation10 + $0x98] sm:$0xff]
    %v521 = vld [vmem:[#allocation10 + $0xa0] sm:$0xff]
    %v522 = vld [vmem:[#allocation10 + $0xa8] sm:$0xff]
    %v523 = vld [vmem:[#allocation10 + $0xb0] sm:$0xff]
    %v524 = vld [vmem:[#allocation10 + $0xb8] sm:$0xff]
    %v525 = vld [vmem:[#allocation10 + $0xc0] sm:$0xff]
    %v526 = vld [vmem:[#allocation10 + $0xc8] sm:$0xff]
    %v527 = vld [vmem:[#allocation10 + $0xd0] sm:$0xff]
    %v528 = vld [vmem:[#allocation10 + $0xd8] sm:$0xff]
    %v529 = vld [vmem:[#allocation10 + $0xe0] sm:$0xff]
    %v530 = vld [vmem:[#allocation10 + $0xe8] sm:$0xff]
    %v531 = vld [vmem:[#allocation10 + $0xf0] sm:$0xff]
    %v532 = vld [vmem:[#allocation10 + $0xf8] sm:$0xff]
    %v565 = vunpack.c.l.b16 %v501
    %v566 = vunpack.c.h.b16 %v501
    %v567 = vunpack.c.l.b16 %v502
    %v568 = vunpack.c.h.b16 %v502
    %v569 = vunpack.c.l.b16 %v503
    %v570 = vunpack.c.h.b16 %v503
    %v571 = vunpack.c.l.b16 %v504
    %v572 = vunpack.c.h.b16 %v504
    %v573 = vunpack.c.l.b16 %v505
    %v574 = vunpack.c.h.b16 %v505
    %v575 = vunpack.c.l.b16 %v506
    %v576 = vunpack.c.h.b16 %v506
    %v577 = vunpack.c.l.b16 %v507
    %v578 = vunpack.c.h.b16 %v507
    %v579 = vunpack.c.l.b16 %v508
    %v580 = vunpack.c.h.b16 %v508
    %v581 = vunpack.c.l.b16 %v509
    %v582 = vunpack.c.h.b16 %v509
    %v583 = vunpack.c.l.b16 %v510
    %v584 = vunpack.c.h.b16 %v510
    %v585 = vunpack.c.l.b16 %v511
    %v586 = vunpack.c.h.b16 %v511
    %v587 = vunpack.c.l.b16 %v512
    %v588 = vunpack.c.h.b16 %v512
    %v589 = vunpack.c.l.b16 %v513
    %v590 = vunpack.c.h.b16 %v513
    %v591 = vunpack.c.l.b16 %v514
    %v592 = vunpack.c.h.b16 %v514
    %v593 = vunpack.c.l.b16 %v515
    %v594 = vunpack.c.h.b16 %v515
    %v595 = vunpack.c.l.b16 %v516
    %v596 = vunpack.c.h.b16 %v516
    %v597 = vunpack.c.l.b16 %v517
    %v598 = vunpack.c.h.b16 %v517
    %v599 = vunpack.c.l.b16 %v518
    %v600 = vunpack.c.h.b16 %v518
    %v601 = vunpack.c.l.b16 %v519
    %v602 = vunpack.c.h.b16 %v519
    %v603 = vunpack.c.l.b16 %v520
    %v604 = vunpack.c.h.b16 %v520
    %v605 = vunpack.c.l.b16 %v521
    %v606 = vunpack.c.h.b16 %v521
    %v607 = vunpack.c.l.b16 %v522
    %v608 = vunpack.c.h.b16 %v522
    %v609 = vunpack.c.l.b16 %v523
    %v610 = vunpack.c.h.b16 %v523
    %v611 = vunpack.c.l.b16 %v524
    %v612 = vunpack.c.h.b16 %v524
    %v613 = vunpack.c.l.b16 %v525
    %v614 = vunpack.c.h.b16 %v525
    %v615 = vunpack.c.l.b16 %v526
    %v616 = vunpack.c.h.b16 %v526
    %v617 = vunpack.c.l.b16 %v527
    %v618 = vunpack.c.h.b16 %v527
    %v619 = vunpack.c.l.b16 %v528
    %v620 = vunpack.c.h.b16 %v528
    %v621 = vunpack.c.l.b16 %v529
    %v622 = vunpack.c.h.b16 %v529
    %v623 = vunpack.c.l.b16 %v530
    %v624 = vunpack.c.h.b16 %v530
    %v625 = vunpack.c.l.b16 %v531
    %v626 = vunpack.c.h.b16 %v531
    %v627 = vunpack.c.l.b16 %v532
    %v628 = vunpack.c.h.b16 %v532
    %v629 = vpack.c.b16 %v569, %v565
    %v630 = vpack.c.b16 %v570, %v566
    %v631 = vpack.c.b16 %v571, %v567
    %v632 = vpack.c.b16 %v572, %v568
    %v633 = vpack.c.b16 %v577, %v573
    %v634 = vpack.c.b16 %v578, %v574
    %v635 = vpack.c.b16 %v579, %v575
    %v636 = vpack.c.b16 %v580, %v576
    %v637 = vpack.c.b16 %v585, %v581
    %v638 = vpack.c.b16 %v586, %v582
    %v639 = vpack.c.b16 %v587, %v583
    %v640 = vpack.c.b16 %v588, %v584
    %v641 = vpack.c.b16 %v593, %v589
    %v642 = vpack.c.b16 %v594, %v590
    %v643 = vpack.c.b16 %v595, %v591
    %v644 = vpack.c.b16 %v596, %v592
    %v645 = vpack.c.b16 %v601, %v597
    %v646 = vpack.c.b16 %v602, %v598
    %v647 = vpack.c.b16 %v603, %v599
    %v648 = vpack.c.b16 %v604, %v600
    %v649 = vpack.c.b16 %v609, %v605
    %v650 = vpack.c.b16 %v610, %v606
    %v651 = vpack.c.b16 %v611, %v607
    %v652 = vpack.c.b16 %v612, %v608
    %v653 = vpack.c.b16 %v617, %v613
    %v654 = vpack.c.b16 %v618, %v614
    %v655 = vpack.c.b16 %v619, %v615
    %v656 = vpack.c.b16 %v620, %v616
    %v657 = vpack.c.b16 %v625, %v621
    %v658 = vpack.c.b16 %v626, %v622
    %v659 = vpack.c.b16 %v627, %v623
    %v660 = vpack.c.b16 %v628, %v624
    %693 = vmatprep.subr.bf16.mxu0 %v630
    %694 = vmatpush1.bf16.msra.mxu0 %v629
    %695 = vmatprep.subr.bf16.mxu0 %v634
    %696 = vmatpush1.bf16.msra.mxu0 %v633
    %697 = vmatprep.subr.bf16.mxu0 %v638
    %698 = vmatpush1.bf16.msra.mxu0 %v637
    %699 = vmatprep.subr.bf16.mxu0 %v642
    %700 = vmatpush1.bf16.msra.mxu0 %v641
    %701 = vmatprep.subr.bf16.mxu0 %v646
    %702 = vmatpush1.bf16.msra.mxu0 %v645
    %703 = vmatprep.subr.bf16.mxu0 %v650
    %704 = vmatpush1.bf16.msra.mxu0 %v649
    %705 = vmatprep.subr.bf16.mxu0 %v654
    %706 = vmatpush1.bf16.msra.mxu0 %v653
    %707 = vmatprep.subr.bf16.mxu0 %v658
    %708 = vmatpush1.bf16.msra.mxu0 %v657
    %709 = vmatprep.subr.bf16.mxu0 0
    %710 = vmatpush1.bf16.msra.mxu0 0
    %711 = vmatprep.subr.bf16.mxu0 0
    %712 = vmatpush1.bf16.msra.mxu0 0
    %713 = vmatprep.subr.bf16.mxu0 0
    %714 = vmatpush1.bf16.msra.mxu0 0
    %715 = vmatprep.subr.bf16.mxu0 0
    %716 = vmatpush1.bf16.msra.mxu0 0
    %717 = vmatprep.subr.bf16.mxu0 0
    %718 = vmatpush1.bf16.msra.mxu0 0
    %719 = vmatprep.subr.bf16.mxu0 0
    %720 = vmatpush1.bf16.msra.mxu0 0
    %721 = vmatprep.subr.bf16.mxu0 0
    %722 = vmatpush1.bf16.msra.mxu0 0
    %723 = vmatprep.subr.bf16.mxu0 0
    %724 = vmatpush1.bf16.msra.mxu0 0
    %725 = vmatprep.mubr.bf16.mxu0 0
    %726 = vmatmul.mubr.bf16.gmra.mrb[0].mxu0 %v500
    %v727 = vpop.f32.mrb[0].mxu0
    %v728 = vadd.f32 0.0, %v727
    %v729 = vpop.f32.mrb[0].mxu0
    %v730 = vadd.f32 0.0, %v729
    %v731 = vpop.f32.mrb[0].mxu0
    %v732 = vpop.f32.mrb[0].mxu0
    %733 = vdwg.mxu0
    %734 = vmatprep.subr.bf16.mxu0 %v632
    %735 = vmatpush1.bf16.msra.mxu0 %v631
    %736 = vmatprep.subr.bf16.mxu0 %v636
    %737 = vmatpush1.bf16.msra.mxu0 %v635
    %738 = vmatprep.subr.bf16.mxu0 %v640
    %739 = vmatpush1.bf16.msra.mxu0 %v639
    %740 = vmatprep.subr.bf16.mxu0 %v644
    %741 = vmatpush1.bf16.msra.mxu0 %v643
    %742 = vmatprep.subr.bf16.mxu0 %v648
    %743 = vmatpush1.bf16.msra.mxu0 %v647
    %744 = vmatprep.subr.bf16.mxu0 %v652
    %745 = vmatpush1.bf16.msra.mxu0 %v651
    %746 = vmatprep.subr.bf16.mxu0 %v656
    %747 = vmatpush1.bf16.msra.mxu0 %v655
    %748 = vmatprep.subr.bf16.mxu0 %v660
    %749 = vmatpush1.bf16.msra.mxu0 %v659
    %750 = vmatprep.subr.bf16.mxu0 0
    %751 = vmatpush1.bf16.msra.mxu0 0
    %752 = vmatprep.subr.bf16.mxu0 0
    %753 = vmatpush1.bf16.msra.mxu0 0
    %754 = vmatprep.subr.bf16.mxu0 0
    %755 = vmatpush1.bf16.msra.mxu0 0
    %756 = vmatprep.subr.bf16.mxu0 0
    %757 = vmatpush1.bf16.msra.mxu0 0
    %758 = vmatprep.subr.bf16.mxu0 0
    %759 = vmatpush1.bf16.msra.mxu0 0
    %760 = vmatprep.subr.bf16.mxu0 0
    %761 = vmatpush1.bf16.msra.mxu0 0
    %762 = vmatprep.subr.bf16.mxu0 0
    %763 = vmatpush1.bf16.msra.mxu0 0
    %764 = vmatprep.subr.bf16.mxu0 0
    %765 = vmatpush1.bf16.msra.mxu0 0
    %766 = vmatprep.mubr.bf16.mxu0 0
    %767 = vmatmul.mubr.bf16.gmra.mrb[0].mxu0 %v500
    %v768 = vpop.f32.mrb[0].mxu0
    %v769 = vadd.f32 0.0, %v768
    %v770 = vpop.f32.mrb[0].mxu0
    %v771 = vadd.f32 0.0, %v770
    %v772 = vpop.f32.mrb[0].mxu0
    %v773 = vpop.f32.mrb[0].mxu0
    %774 = vdwg.mxu0
    %v775 = vadd.f32 %v496, %v728
    %v776 = vadd.f32 %v497, %v730
    %v777 = vadd.f32 %v498, %v769
    %v778 = vadd.f32 %v499, %v771
    %v779 = vsub.f32 0.0, %v775
    %v780 = vmul.f32 %v779, 1.442695
    %v781 = vpow.pop %v780
    %v782 = vadd.f32 %v781, 1.0
    %v783 = vrcp.pop %v782
    %v784 = vsub.f32 0.0, %v776
    %v785 = vmul.f32 %v784, 1.442695
    %v786 = vpow.pop %v785
    %v787 = vadd.f32 %v786, 1.0
    %v788 = vrcp.pop %v787
    %v789 = vtanh.pop %v777
    %v790 = vsub.f32 0.0, %v778
    %v791 = vmul.f32 %v790, 1.442695
    %v792 = vpow.pop %v791
    %v793 = vadd.f32 %v792, 1.0
    %v794 = vrcp.pop %v793
    %v795 = vmul.f32 %v788, %v495
    %v796 = vmul.f32 %v783, %v789
    %v797 = vadd.f32 %v795, %v796
    %v798 = vtanh.pop %v797
    %v799 = vmul.f32 %v794, %v798
    %v800 = vpack.c.bf16 %v799, %v799
    %801 = vst [vmem:[#allocation11] sm:$0xf] %v800
    %s802 = scalar_lea.vmem [#allocation4], 32
    %v803 = vld [vmem:[%s802] sm:$0xff]
    %v804 = vld [vmem:[%s802 + $0x8] sm:$0xff]
    %v805 = vld [vmem:[%s802 + $0x10] sm:$0xff]
    %v806 = vld [vmem:[%s802 + $0x18] sm:$0xff]
    %v807 = vld [vmem:[#allocation10] sm:$0xff]
    %v808 = vld [vmem:[#allocation10 + $0x8] sm:$0xff]
    %v809 = vld [vmem:[#allocation10 + $0x10] sm:$0xff]
    %v810 = vld [vmem:[#allocation10 + $0x18] sm:$0xff]
    %v811 = vld [vmem:[#allocation10 + $0x20] sm:$0xff]
    %v812 = vld [vmem:[#allocation10 + $0x28] sm:$0xff]
    %v813 = vld [vmem:[#allocation10 + $0x30] sm:$0xff]
    %v814 = vld [vmem:[#allocation10 + $0x38] sm:$0xff]
    %v815 = vld [vmem:[#allocation10 + $0x40] sm:$0xff]
    %v816 = vld [vmem:[#allocation10 + $0x48] sm:$0xff]
    %v817 = vld [vmem:[#allocation10 + $0x50] sm:$0xff]
    %v818 = vld [vmem:[#allocation10 + $0x58] sm:$0xff]
    %v819 = vld [vmem:[#allocation10 + $0x60] sm:$0xff]
    %v820 = vld [vmem:[#allocation10 + $0x68] sm:$0xff]
    %v821 = vld [vmem:[#allocation10 + $0x70] sm:$0xff]
    %v822 = vld [vmem:[#allocation10 + $0x78] sm:$0xff]
    %v823 = vld [vmem:[#allocation10 + $0x80] sm:$0xff]
    %v824 = vld [vmem:[#allocation10 + $0x88] sm:$0xff]
    %v825 = vld [vmem:[#allocation10 + $0x90] sm:$0xff]
    %v826 = vld [vmem:[#allocation10 + $0x98] sm:$0xff]
    %v827 = vld [vmem:[#allocation10 + $0xa0] sm:$0xff]
    %v828 = vld [vmem:[#allocation10 + $0xa8] sm:$0xff]
    %v829 = vld [vmem:[#allocation10 + $0xb0] sm:$0xff]
    %v830 = vld [vmem:[#allocation10 + $0xb8] sm:$0xff]
    %v831 = vld [vmem:[#allocation10 + $0xc0] sm:$0xff]
    %v832 = vld [vmem:[#allocation10 + $0xc8] sm:$0xff]
    %v833 = vld [vmem:[#allocation10 + $0xd0] sm:$0xff]
    %v834 = vld [vmem:[#allocation10 + $0xd8] sm:$0xff]
    %v835 = vld [vmem:[#allocation10 + $0xe0] sm:$0xff]
    %v836 = vld [vmem:[#allocation10 + $0xe8] sm:$0xff]
    %v837 = vld [vmem:[#allocation10 + $0xf0] sm:$0xff]
    %v838 = vld [vmem:[#allocation10 + $0xf8] sm:$0xff]
    %v871 = vunpack.c.l.b16 %v807
    %v872 = vunpack.c.h.b16 %v807
    %v873 = vunpack.c.l.b16 %v808
    %v874 = vunpack.c.h.b16 %v808
    %v875 = vunpack.c.l.b16 %v809
    %v876 = vunpack.c.h.b16 %v809
    %v877 = vunpack.c.l.b16 %v810
    %v878 = vunpack.c.h.b16 %v810
    %v879 = vunpack.c.l.b16 %v811
    %v880 = vunpack.c.h.b16 %v811
    %v881 = vunpack.c.l.b16 %v812
    %v882 = vunpack.c.h.b16 %v812
    %v883 = vunpack.c.l.b16 %v813
    %v884 = vunpack.c.h.b16 %v813
    %v885 = vunpack.c.l.b16 %v814
    %v886 = vunpack.c.h.b16 %v814
    %v887 = vunpack.c.l.b16 %v815
    %v888 = vunpack.c.h.b16 %v815
    %v889 = vunpack.c.l.b16 %v816
    %v890 = vunpack.c.h.b16 %v816
    %v891 = vunpack.c.l.b16 %v817
    %v892 = vunpack.c.h.b16 %v817
    %v893 = vunpack.c.l.b16 %v818
    %v894 = vunpack.c.h.b16 %v818
    %v895 = vunpack.c.l.b16 %v819
    %v896 = vunpack.c.h.b16 %v819
    %v897 = vunpack.c.l.b16 %v820
    %v898 = vunpack.c.h.b16 %v820
    %v899 = vunpack.c.l.b16 %v821
    %v900 = vunpack.c.h.b16 %v821
    %v901 = vunpack.c.l.b16 %v822
    %v902 = vunpack.c.h.b16 %v822
    %v903 = vunpack.c.l.b16 %v823
    %v904 = vunpack.c.h.b16 %v823
    %v905 = vunpack.c.l.b16 %v824
    %v906 = vunpack.c.h.b16 %v824
    %v907 = vunpack.c.l.b16 %v825
    %v908 = vunpack.c.h.b16 %v825
    %v909 = vunpack.c.l.b16 %v826
    %v910 = vunpack.c.h.b16 %v826
    %v911 = vunpack.c.l.b16 %v827
    %v912 = vunpack.c.h.b16 %v827
    %v913 = vunpack.c.l.b16 %v828
    %v914 = vunpack.c.h.b16 %v828
    %v915 = vunpack.c.l.b16 %v829
    %v916 = vunpack.c.h.b16 %v829
    %v917 = vunpack.c.l.b16 %v830
    %v918 = vunpack.c.h.b16 %v830
    %v919 = vunpack.c.l.b16 %v831
    %v920 = vunpack.c.h.b16 %v831
    %v921 = vunpack.c.l.b16 %v832
    %v922 = vunpack.c.h.b16 %v832
    %v923 = vunpack.c.l.b16 %v833
    %v924 = vunpack.c.h.b16 %v833
    %v925 = vunpack.c.l.b16 %v834
    %v926 = vunpack.c.h.b16 %v834
    %v927 = vunpack.c.l.b16 %v835
    %v928 = vunpack.c.h.b16 %v835
    %v929 = vunpack.c.l.b16 %v836
    %v930 = vunpack.c.h.b16 %v836
    %v931 = vunpack.c.l.b16 %v837
    %v932 = vunpack.c.h.b16 %v837
    %v933 = vunpack.c.l.b16 %v838
    %v934 = vunpack.c.h.b16 %v838
    %v935 = vpack.c.b16 %v875, %v871
    %v936 = vpack.c.b16 %v876, %v872
    %v937 = vpack.c.b16 %v877, %v873
    %v938 = vpack.c.b16 %v878, %v874
    %v939 = vpack.c.b16 %v883, %v879
    %v940 = vpack.c.b16 %v884, %v880
    %v941 = vpack.c.b16 %v885, %v881
    %v942 = vpack.c.b16 %v886, %v882
    %v943 = vpack.c.b16 %v891, %v887
    %v944 = vpack.c.b16 %v892, %v888
    %v945 = vpack.c.b16 %v893, %v889
    %v946 = vpack.c.b16 %v894, %v890
    %v947 = vpack.c.b16 %v899, %v895
    %v948 = vpack.c.b16 %v900, %v896
    %v949 = vpack.c.b16 %v901, %v897
    %v950 = vpack.c.b16 %v902, %v898
    %v951 = vpack.c.b16 %v907, %v903
    %v952 = vpack.c.b16 %v908, %v904
    %v953 = vpack.c.b16 %v909, %v905
    %v954 = vpack.c.b16 %v910, %v906
    %v955 = vpack.c.b16 %v915, %v911
    %v956 = vpack.c.b16 %v916, %v912
    %v957 = vpack.c.b16 %v917, %v913
    %v958 = vpack.c.b16 %v918, %v914
    %v959 = vpack.c.b16 %v923, %v919
    %v960 = vpack.c.b16 %v924, %v920
    %v961 = vpack.c.b16 %v925, %v921
    %v962 = vpack.c.b16 %v926, %v922
    %v963 = vpack.c.b16 %v931, %v927
    %v964 = vpack.c.b16 %v932, %v928
    %v965 = vpack.c.b16 %v933, %v929
    %v966 = vpack.c.b16 %v934, %v930
    %999 = vmatprep.subr.bf16.mxu0 %v936
    %1000 = vmatpush1.bf16.msra.mxu0 %v935
    %1001 = vmatprep.subr.bf16.mxu0 %v940
    %1002 = vmatpush1.bf16.msra.mxu0 %v939
    %1003 = vmatprep.subr.bf16.mxu0 %v944
    %1004 = vmatpush1.bf16.msra.mxu0 %v943
    %1005 = vmatprep.subr.bf16.mxu0 %v948
    %1006 = vmatpush1.bf16.msra.mxu0 %v947
    %1007 = vmatprep.subr.bf16.mxu0 %v952
    %1008 = vmatpush1.bf16.msra.mxu0 %v951
    %1009 = vmatprep.subr.bf16.mxu0 %v956
    %1010 = vmatpush1.bf16.msra.mxu0 %v955
    %1011 = vmatprep.subr.bf16.mxu0 %v960
    %1012 = vmatpush1.bf16.msra.mxu0 %v959
    %1013 = vmatprep.subr.bf16.mxu0 %v964
    %1014 = vmatpush1.bf16.msra.mxu0 %v963
    %1015 = vmatprep.subr.bf16.mxu0 0
    %1016 = vmatpush1.bf16.msra.mxu0 0
    %1017 = vmatprep.subr.bf16.mxu0 0
    %1018 = vmatpush1.bf16.msra.mxu0 0
    %1019 = vmatprep.subr.bf16.mxu0 0
    %1020 = vmatpush1.bf16.msra.mxu0 0
    %1021 = vmatprep.subr.bf16.mxu0 0
    %1022 = vmatpush1.bf16.msra.mxu0 0
    %1023 = vmatprep.subr.bf16.mxu0 0
    %1024 = vmatpush1.bf16.msra.mxu0 0
    %1025 = vmatprep.subr.bf16.mxu0 0
    %1026 = vmatpush1.bf16.msra.mxu0 0
    %1027 = vmatprep.subr.bf16.mxu0 0
    %1028 = vmatpush1.bf16.msra.mxu0 0
    %1029 = vmatprep.subr.bf16.mxu0 0
    %1030 = vmatpush1.bf16.msra.mxu0 0
    %1031 = vmatprep.mubr.bf16.mxu0 0
    %1032 = vmatmul.mubr.bf16.gmra.mrb[0].mxu0 %v800
    %v1033 = vpop.f32.mrb[0].mxu0
    %v1034 = vadd.f32 0.0, %v1033
    %v1035 = vpop.f32.mrb[0].mxu0
    %v1036 = vadd.f32 0.0, %v1035
    %v1037 = vpop.f32.mrb[0].mxu0
    %v1038 = vpop.f32.mrb[0].mxu0
    %1039 = vdwg.mxu0
    %1040 = vmatprep.subr.bf16.mxu0 %v938
    %1041 = vmatpush1.bf16.msra.mxu0 %v937
    %1042 = vmatprep.subr.bf16.mxu0 %v942
    %1043 = vmatpush1.bf16.msra.mxu0 %v941
    %1044 = vmatprep.subr.bf16.mxu0 %v946
    %1045 = vmatpush1.bf16.msra.mxu0 %v945
    %1046 = vmatprep.subr.bf16.mxu0 %v950
    %1047 = vmatpush1.bf16.msra.mxu0 %v949
    %1048 = vmatprep.subr.bf16.mxu0 %v954
    %1049 = vmatpush1.bf16.msra.mxu0 %v953
    %1050 = vmatprep.subr.bf16.mxu0 %v958
    %1051 = vmatpush1.bf16.msra.mxu0 %v957
    %1052 = vmatprep.subr.bf16.mxu0 %v962
    %1053 = vmatpush1.bf16.msra.mxu0 %v961
    %1054 = vmatprep.subr.bf16.mxu0 %v966
    %1055 = vmatpush1.bf16.msra.mxu0 %v965
    %1056 = vmatprep.subr.bf16.mxu0 0
    %1057 = vmatpush1.bf16.msra.mxu0 0
    %1058 = vmatprep.subr.bf16.mxu0 0
    %1059 = vmatpush1.bf16.msra.mxu0 0
    %1060 = vmatprep.subr.bf16.mxu0 0
    %1061 = vmatpush1.bf16.msra.mxu0 0
    %1062 = vmatprep.subr.bf16.mxu0 0
    %1063 = vmatpush1.bf16.msra.mxu0 0
    %1064 = vmatprep.subr.bf16.mxu0 0
    %1065 = vmatpush1.bf16.msra.mxu0 0
    %1066 = vmatprep.subr.bf16.mxu0 0
    %1067 = vmatpush1.bf16.msra.mxu0 0
    %1068 = vmatprep.subr.bf16.mxu0 0
    %1069 = vmatpush1.bf16.msra.mxu0 0
    %1070 = vmatprep.subr.bf16.mxu0 0
    %1071 = vmatpush1.bf16.msra.mxu0 0
    %1072 = vmatprep.mubr.bf16.mxu0 0
    %1073 = vmatmul.mubr.bf16.gmra.mrb[0].mxu0 %v800
    %v1074 = vpop.f32.mrb[0].mxu0
    %v1075 = vadd.f32 0.0, %v1074
    %v1076 = vpop.f32.mrb[0].mxu0
    %v1077 = vadd.f32 0.0, %v1076
    %v1078 = vpop.f32.mrb[0].mxu0
    %v1079 = vpop.f32.mrb[0].mxu0
    %1080 = vdwg.mxu0
    %v1081 = vadd.f32 %v803, %v1034
    %v1082 = vadd.f32 %v804, %v1036
    %v1083 = vadd.f32 %v805, %v1075
    %v1084 = vadd.f32 %v806, %v1077
    %v1085 = vsub.f32 0.0, %v1081
    %v1086 = vmul.f32 %v1085, 1.442695
    %v1087 = vpow.pop %v1086
    %v1088 = vadd.f32 %v1087, 1.0
    %v1089 = vrcp.pop %v1088
    %v1090 = vsub.f32 0.0, %v1082
    %v1091 = vmul.f32 %v1090, 1.442695
    %v1092 = vpow.pop %v1091
    %v1093 = vadd.f32 %v1092, 1.0
    %v1094 = vrcp.pop %v1093
    %v1095 = vtanh.pop %v1083
    %v1096 = vsub.f32 0.0, %v1084
    %v1097 = vmul.f32 %v1096, 1.442695
    %v1098 = vpow.pop %v1097
    %v1099 = vadd.f32 %v1098, 1.0
    %v1100 = vrcp.pop %v1099
    %v1101 = vmul.f32 %v1094, %v797
    %v1102 = vmul.f32 %v1089, %v1095
    %v1103 = vadd.f32 %v1101, %v1102
    %v1104 = vtanh.pop %v1103
    %v1105 = vmul.f32 %v1100, %v1104
    %v1106 = vpack.c.bf16 %v1105, %v1105
    %s1107 = scalar_lea.vmem [#allocation11], 4
    %1108 = vst [vmem:[%s1107] sm:$0xf] %v1106
    %s1109 = scalar_lea.vmem [#allocation4], 64
    %v1110 = vld [vmem:[%s1109] sm:$0xff]
    %v1111 = vld [vmem:[%s1109 + $0x8] sm:$0xff]
    %v1112 = vld [vmem:[%s1109 + $0x10] sm:$0xff]
    %v1113 = vld [vmem:[%s1109 + $0x18] sm:$0xff]
    %v1114 = vld [vmem:[#allocation10] sm:$0xff]
    %v1115 = vld [vmem:[#allocation10 + $0x8] sm:$0xff]
    %v1116 = vld [vmem:[#allocation10 + $0x10] sm:$0xff]
    %v1117 = vld [vmem:[#allocation10 + $0x18] sm:$0xff]
    %v1118 = vld [vmem:[#allocation10 + $0x20] sm:$0xff]
    %v1119 = vld [vmem:[#allocation10 + $0x28] sm:$0xff]
    %v1120 = vld [vmem:[#allocation10 + $0x30] sm:$0xff]
    %v1121 = vld [vmem:[#allocation10 + $0x38] sm:$0xff]
    %v1122 = vld [vmem:[#allocation10 + $0x40] sm:$0xff]
    %v1123 = vld [vmem:[#allocation10 + $0x48] sm:$0xff]
    %v1124 = vld [vmem:[#allocation10 + $0x50] sm:$0xff]
    %v1125 = vld [vmem:[#allocation10 + $0x58] sm:$0xff]
    %v1126 = vld [vmem:[#allocation10 + $0x60] sm:$0xff]
    %v1127 = vld [vmem:[#allocation10 + $0x68] sm:$0xff]
    %v1128 = vld [vmem:[#allocation10 + $0x70] sm:$0xff]
    %v1129 = vld [vmem:[#allocation10 + $0x78] sm:$0xff]
    %v1130 = vld [vmem:[#allocation10 + $0x80] sm:$0xff]
    %v1131 = vld [vmem:[#allocation10 + $0x88] sm:$0xff]
    %v1132 = vld [vmem:[#allocation10 + $0x90] sm:$0xff]
    %v1133 = vld [vmem:[#allocation10 + $0x98] sm:$0xff]
    %v1134 = vld [vmem:[#allocation10 + $0xa0] sm:$0xff]
    %v1135 = vld [vmem:[#allocation10 + $0xa8] sm:$0xff]
    %v1136 = vld [vmem:[#allocation10 + $0xb0] sm:$0xff]
    %v1137 = vld [vmem:[#allocation10 + $0xb8] sm:$0xff]
    %v1138 = vld [vmem:[#allocation10 + $0xc0] sm:$0xff]
    %v1139 = vld [vmem:[#allocation10 + $0xc8] sm:$0xff]
    %v1140 = vld [vmem:[#allocation10 + $0xd0] sm:$0xff]
    %v1141 = vld [vmem:[#allocation10 + $0xd8] sm:$0xff]
    %v1142 = vld [vmem:[#allocation10 + $0xe0] sm:$0xff]
    %v1143 = vld [vmem:[#allocation10 + $0xe8] sm:$0xff]
    %v1144 = vld [vmem:[#allocation10 + $0xf0] sm:$0xff]
    %v1145 = vld [vmem:[#allocation10 + $0xf8] sm:$0xff]
    %v1178 = vunpack.c.l.b16 %v1114
    %v1179 = vunpack.c.h.b16 %v1114
    %v1180 = vunpack.c.l.b16 %v1115
    %v1181 = vunpack.c.h.b16 %v1115
    %v1182 = vunpack.c.l.b16 %v1116
    %v1183 = vunpack.c.h.b16 %v1116
    %v1184 = vunpack.c.l.b16 %v1117
    %v1185 = vunpack.c.h.b16 %v1117
    %v1186 = vunpack.c.l.b16 %v1118
    %v1187 = vunpack.c.h.b16 %v1118
    %v1188 = vunpack.c.l.b16 %v1119
    %v1189 = vunpack.c.h.b16 %v1119
    %v1190 = vunpack.c.l.b16 %v1120
    %v1191 = vunpack.c.h.b16 %v1120
    %v1192 = vunpack.c.l.b16 %v1121
    %v1193 = vunpack.c.h.b16 %v1121
    %v1194 = vunpack.c.l.b16 %v1122
    %v1195 = vunpack.c.h.b16 %v1122
    %v1196 = vunpack.c.l.b16 %v1123
    %v1197 = vunpack.c.h.b16 %v1123
    %v1198 = vunpack.c.l.b16 %v1124
    %v1199 = vunpack.c.h.b16 %v1124
    %v1200 = vunpack.c.l.b16 %v1125
    %v1201 = vunpack.c.h.b16 %v1125
    %v1202 = vunpack.c.l.b16 %v1126
    %v1203 = vunpack.c.h.b16 %v1126
    %v1204 = vunpack.c.l.b16 %v1127
    %v1205 = vunpack.c.h.b16 %v1127
    %v1206 = vunpack.c.l.b16 %v1128
    %v1207 = vunpack.c.h.b16 %v1128
    %v1208 = vunpack.c.l.b16 %v1129
    %v1209 = vunpack.c.h.b16 %v1129
    %v1210 = vunpack.c.l.b16 %v1130
    %v1211 = vunpack.c.h.b16 %v1130
    %v1212 = vunpack.c.l.b16 %v1131
    %v1213 = vunpack.c.h.b16 %v1131
    %v1214 = vunpack.c.l.b16 %v1132
    %v1215 = vunpack.c.h.b16 %v1132
    %v1216 = vunpack.c.l.b16 %v1133
    %v1217 = vunpack.c.h.b16 %v1133
    %v1218 = vunpack.c.l.b16 %v1134
    %v1219 = vunpack.c.h.b16 %v1134
    %v1220 = vunpack.c.l.b16 %v1135
    %v1221 = vunpack.c.h.b16 %v1135
    %v1222 = vunpack.c.l.b16 %v1136
    %v1223 = vunpack.c.h.b16 %v1136
    %v1224 = vunpack.c.l.b16 %v1137
    %v1225 = vunpack.c.h.b16 %v1137
    %v1226 = vunpack.c.l.b16 %v1138
    %v1227 = vunpack.c.h.b16 %v1138
    %v1228 = vunpack.c.l.b16 %v1139
    %v1229 = vunpack.c.h.b16 %v1139
    %v1230 = vunpack.c.l.b16 %v1140
    %v1231 = vunpack.c.h.b16 %v1140
    %v1232 = vunpack.c.l.b16 %v1141
    %v1233 = vunpack.c.h.b16 %v1141
    %v1234 = vunpack.c.l.b16 %v1142
    %v1235 = vunpack.c.h.b16 %v1142
    %v1236 = vunpack.c.l.b16 %v1143
    %v1237 = vunpack.c.h.b16 %v1143
    %v1238 = vunpack.c.l.b16 %v1144
    %v1239 = vunpack.c.h.b16 %v1144
    %v1240 = vunpack.c.l.b16 %v1145
    %v1241 = vunpack.c.h.b16 %v1145
    %v1242 = vpack.c.b16 %v1182, %v1178
    %v1243 = vpack.c.b16 %v1183, %v1179
    %v1244 = vpack.c.b16 %v1184, %v1180
    %v1245 = vpack.c.b16 %v1185, %v1181
    %v1246 = vpack.c.b16 %v1190, %v1186
    %v1247 = vpack.c.b16 %v1191, %v1187
    %v1248 = vpack.c.b16 %v1192, %v1188
    %v1249 = vpack.c.b16 %v1193, %v1189
    %v1250 = vpack.c.b16 %v1198, %v1194
    %v1251 = vpack.c.b16 %v1199, %v1195
    %v1252 = vpack.c.b16 %v1200, %v1196
    %v1253 = vpack.c.b16 %v1201, %v1197
    %v1254 = vpack.c.b16 %v1206, %v1202
    %v1255 = vpack.c.b16 %v1207, %v1203
    %v1256 = vpack.c.b16 %v1208, %v1204
    %v1257 = vpack.c.b16 %v1209, %v1205
    %v1258 = vpack.c.b16 %v1214, %v1210
    %v1259 = vpack.c.b16 %v1215, %v1211
    %v1260 = vpack.c.b16 %v1216, %v1212
    %v1261 = vpack.c.b16 %v1217, %v1213
    %v1262 = vpack.c.b16 %v1222, %v1218
    %v1263 = vpack.c.b16 %v1223, %v1219
    %v1264 = vpack.c.b16 %v1224, %v1220
    %v1265 = vpack.c.b16 %v1225, %v1221
    %v1266 = vpack.c.b16 %v1230, %v1226
    %v1267 = vpack.c.b16 %v1231, %v1227
    %v1268 = vpack.c.b16 %v1232, %v1228
    %v1269 = vpack.c.b16 %v1233, %v1229
    %v1270 = vpack.c.b16 %v1238, %v1234
    %v1271 = vpack.c.b16 %v1239, %v1235
    %v1272 = vpack.c.b16 %v1240, %v1236
    %v1273 = vpack.c.b16 %v1241, %v1237
    %1306 = vmatprep.subr.bf16.mxu0 %v1243
    %1307 = vmatpush1.bf16.msra.mxu0 %v1242
    %1308 = vmatprep.subr.bf16.mxu0 %v1247
    %1309 = vmatpush1.bf16.msra.mxu0 %v1246
    %1310 = vmatprep.subr.bf16.mxu0 %v1251
    %1311 = vmatpush1.bf16.msra.mxu0 %v1250
    %1312 = vmatprep.subr.bf16.mxu0 %v1255
    %1313 = vmatpush1.bf16.msra.mxu0 %v1254
    %1314 = vmatprep.subr.bf16.mxu0 %v1259
    %1315 = vmatpush1.bf16.msra.mxu0 %v1258
    %1316 = vmatprep.subr.bf16.mxu0 %v1263
    %1317 = vmatpush1.bf16.msra.mxu0 %v1262
    %1318 = vmatprep.subr.bf16.mxu0 %v1267
    %1319 = vmatpush1.bf16.msra.mxu0 %v1266
    %1320 = vmatprep.subr.bf16.mxu0 %v1271
    %1321 = vmatpush1.bf16.msra.mxu0 %v1270
    %1322 = vmatprep.subr.bf16.mxu0 0
    %1323 = vmatpush1.bf16.msra.mxu0 0
    %1324 = vmatprep.subr.bf16.mxu0 0
    %1325 = vmatpush1.bf16.msra.mxu0 0
    %1326 = vmatprep.subr.bf16.mxu0 0
    %1327 = vmatpush1.bf16.msra.mxu0 0
    %1328 = vmatprep.subr.bf16.mxu0 0
    %1329 = vmatpush1.bf16.msra.mxu0 0
    %1330 = vmatprep.subr.bf16.mxu0 0
    %1331 = vmatpush1.bf16.msra.mxu0 0
    %1332 = vmatprep.subr.bf16.mxu0 0
    %1333 = vmatpush1.bf16.msra.mxu0 0
    %1334 = vmatprep.subr.bf16.mxu0 0
    %1335 = vmatpush1.bf16.msra.mxu0 0
    %1336 = vmatprep.subr.bf16.mxu0 0
    %1337 = vmatpush1.bf16.msra.mxu0 0
    %1338 = vmatprep.mubr.bf16.mxu0 0
    %1339 = vmatmul.mubr.bf16.gmra.mrb[0].mxu0 %v1106
    %v1340 = vpop.f32.mrb[0].mxu0
    %v1341 = vadd.f32 0.0, %v1340
    %v1342 = vpop.f32.mrb[0].mxu0
    %v1343 = vadd.f32 0.0, %v1342
    %v1344 = vpop.f32.mrb[0].mxu0
    %v1345 = vpop.f32.mrb[0].mxu0
    %1346 = vdwg.mxu0
    %1347 = vmatprep.subr.bf16.mxu0 %v1245
    %1348 = vmatpush1.bf16.msra.mxu0 %v1244
    %1349 = vmatprep.subr.bf16.mxu0 %v1249
    %1350 = vmatpush1.bf16.msra.mxu0 %v1248
    %1351 = vmatprep.subr.bf16.mxu0 %v1253
    %1352 = vmatpush1.bf16.msra.mxu0 %v1252
    %1353 = vmatprep.subr.bf16.mxu0 %v1257
    %1354 = vmatpush1.bf16.msra.mxu0 %v1256
    %1355 = vmatprep.subr.bf16.mxu0 %v1261
    %1356 = vmatpush1.bf16.msra.mxu0 %v1260
    %1357 = vmatprep.subr.bf16.mxu0 %v1265
    %1358 = vmatpush1.bf16.msra.mxu0 %v1264
    %1359 = vmatprep.subr.bf16.mxu0 %v1269
    %1360 = vmatpush1.bf16.msra.mxu0 %v1268
    %1361 = vmatprep.subr.bf16.mxu0 %v1273
    %1362 = vmatpush1.bf16.msra.mxu0 %v1272
    %1363 = vmatprep.subr.bf16.mxu0 0
    %1364 = vmatpush1.bf16.msra.mxu0 0
    %1365 = vmatprep.subr.bf16.mxu0 0
    %1366 = vmatpush1.bf16.msra.mxu0 0
    %1367 = vmatprep.subr.bf16.mxu0 0
    %1368 = vmatpush1.bf16.msra.mxu0 0
    %1369 = vmatprep.subr.bf16.mxu0 0
    %1370 = vmatpush1.bf16.msra.mxu0 0
    %1371 = vmatprep.subr.bf16.mxu0 0
    %1372 = vmatpush1.bf16.msra.mxu0 0
    %1373 = vmatprep.subr.bf16.mxu0 0
    %1374 = vmatpush1.bf16.msra.mxu0 0
    %1375 = vmatprep.subr.bf16.mxu0 0
    %1376 = vmatpush1.bf16.msra.mxu0 0
    %1377 = vmatprep.subr.bf16.mxu0 0
    %1378 = vmatpush1.bf16.msra.mxu0 0
    %1379 = vmatprep.mubr.bf16.mxu0 0
    %1380 = vmatmul.mubr.bf16.gmra.mrb[0].mxu0 %v1106
    %v1381 = vpop.f32.mrb[0].mxu0
    %v1382 = vadd.f32 0.0, %v1381
    %v1383 = vpop.f32.mrb[0].mxu0
    %v1384 = vadd.f32 0.0, %v1383
    %v1385 = vpop.f32.mrb[0].mxu0
    %v1386 = vpop.f32.mrb[0].mxu0
    %1387 = vdwg.mxu0
    %v1388 = vadd.f32 %v1110, %v1341
    %v1389 = vadd.f32 %v1111, %v1343
    %v1390 = vadd.f32 %v1112, %v1382
    %v1391 = vadd.f32 %v1113, %v1384
    %v1392 = vsub.f32 0.0, %v1388
    %v1393 = vmul.f32 %v1392, 1.442695
    %v1394 = vpow.pop %v1393
    %v1395 = vadd.f32 %v1394, 1.0
    %v1396 = vrcp.pop %v1395
    %v1397 = vsub.f32 0.0, %v1389
    %v1398 = vmul.f32 %v1397, 1.442695
    %v1399 = vpow.pop %v1398
    %v1400 = vadd.f32 %v1399, 1.0
    %v1401 = vrcp.pop %v1400
    %v1402 = vtanh.pop %v1390
    %v1403 = vsub.f32 0.0, %v1391
    %v1404 = vmul.f32 %v1403, 1.442695
    %v1405 = vpow.pop %v1404
    %v1406 = vadd.f32 %v1405, 1.0
    %v1407 = vrcp.pop %v1406
    %v1408 = vmul.f32 %v1401, %v1103
    %v1409 = vmul.f32 %v1396, %v1402
    %v1410 = vadd.f32 %v1408, %v1409
    %v1411 = vtanh.pop %v1410
    %v1412 = vmul.f32 %v1407, %v1411
    %v1413 = vpack.c.bf16 %v1412, %v1412
    %s1414 = scalar_lea.vmem [#allocation11], 8
    %1415 = vst [vmem:[%s1414] sm:$0xf] %v1413
    %s1416 = scalar_lea.vmem [#allocation4], 96
    %v1417 = vld [vmem:[%s1416] sm:$0xff]
    %v1418 = vld [vmem:[%s1416 + $0x8] sm:$0xff]
    %v1419 = vld [vmem:[%s1416 + $0x10] sm:$0xff]
    %v1420 = vld [vmem:[%s1416 + $0x18] sm:$0xff]
    %v1421 = vld [vmem:[#allocation10] sm:$0xff]
    %v1422 = vld [vmem:[#allocation10 + $0x8] sm:$0xff]
    %v1423 = vld [vmem:[#allocation10 + $0x10] sm:$0xff]
    %v1424 = vld [vmem:[#allocation10 + $0x18] sm:$0xff]
    %v1425 = vld [vmem:[#allocation10 + $0x20] sm:$0xff]
    %v1426 = vld [vmem:[#allocation10 + $0x28] sm:$0xff]
    %v1427 = vld [vmem:[#allocation10 + $0x30] sm:$0xff]
    %v1428 = vld [vmem:[#allocation10 + $0x38] sm:$0xff]
    %v1429 = vld [vmem:[#allocation10 + $0x40] sm:$0xff]
    %v1430 = vld [vmem:[#allocation10 + $0x48] sm:$0xff]
    %v1431 = vld [vmem:[#allocation10 + $0x50] sm:$0xff]
    %v1432 = vld [vmem:[#allocation10 + $0x58] sm:$0xff]
    %v1433 = vld [vmem:[#allocation10 + $0x60] sm:$0xff]
    %v1434 = vld [vmem:[#allocation10 + $0x68] sm:$0xff]
    %v1435 = vld [vmem:[#allocation10 + $0x70] sm:$0xff]
    %v1436 = vld [vmem:[#allocation10 + $0x78] sm:$0xff]
    %v1437 = vld [vmem:[#allocation10 + $0x80] sm:$0xff]
    %v1438 = vld [vmem:[#allocation10 + $0x88] sm:$0xff]
    %v1439 = vld [vmem:[#allocation10 + $0x90] sm:$0xff]
    %v1440 = vld [vmem:[#allocation10 + $0x98] sm:$0xff]
    %v1441 = vld [vmem:[#allocation10 + $0xa0] sm:$0xff]
    %v1442 = vld [vmem:[#allocation10 + $0xa8] sm:$0xff]
    %v1443 = vld [vmem:[#allocation10 + $0xb0] sm:$0xff]
    %v1444 = vld [vmem:[#allocation10 + $0xb8] sm:$0xff]
    %v1445 = vld [vmem:[#allocation10 + $0xc0] sm:$0xff]
    %v1446 = vld [vmem:[#allocation10 + $0xc8] sm:$0xff]
    %v1447 = vld [vmem:[#allocation10 + $0xd0] sm:$0xff]
    %v1448 = vld [vmem:[#allocation10 + $0xd8] sm:$0xff]
    %v1449 = vld [vmem:[#allocation10 + $0xe0] sm:$0xff]
    %v1450 = vld [vmem:[#allocation10 + $0xe8] sm:$0xff]
    %v1451 = vld [vmem:[#allocation10 + $0xf0] sm:$0xff]
    %v1452 = vld [vmem:[#allocation10 + $0xf8] sm:$0xff]
    %v1485 = vunpack.c.l.b16 %v1421
    %v1486 = vunpack.c.h.b16 %v1421
    %v1487 = vunpack.c.l.b16 %v1422
    %v1488 = vunpack.c.h.b16 %v1422
    %v1489 = vunpack.c.l.b16 %v1423
    %v1490 = vunpack.c.h.b16 %v1423
    %v1491 = vunpack.c.l.b16 %v1424
    %v1492 = vunpack.c.h.b16 %v1424
    %v1493 = vunpack.c.l.b16 %v1425
    %v1494 = vunpack.c.h.b16 %v1425
    %v1495 = vunpack.c.l.b16 %v1426
    %v1496 = vunpack.c.h.b16 %v1426
    %v1497 = vunpack.c.l.b16 %v1427
    %v1498 = vunpack.c.h.b16 %v1427
    %v1499 = vunpack.c.l.b16 %v1428
    %v1500 = vunpack.c.h.b16 %v1428
    %v1501 = vunpack.c.l.b16 %v1429
    %v1502 = vunpack.c.h.b16 %v1429
    %v1503 = vunpack.c.l.b16 %v1430
    %v1504 = vunpack.c.h.b16 %v1430
    %v1505 = vunpack.c.l.b16 %v1431
    %v1506 = vunpack.c.h.b16 %v1431
    %v1507 = vunpack.c.l.b16 %v1432
    %v1508 = vunpack.c.h.b16 %v1432
    %v1509 = vunpack.c.l.b16 %v1433
    %v1510 = vunpack.c.h.b16 %v1433
    %v1511 = vunpack.c.l.b16 %v1434
    %v1512 = vunpack.c.h.b16 %v1434
    %v1513 = vunpack.c.l.b16 %v1435
    %v1514 = vunpack.c.h.b16 %v1435
    %v1515 = vunpack.c.l.b16 %v1436
    %v1516 = vunpack.c.h.b16 %v1436
    %v1517 = vunpack.c.l.b16 %v1437
    %v1518 = vunpack.c.h.b16 %v1437
    %v1519 = vunpack.c.l.b16 %v1438
    %v1520 = vunpack.c.h.b16 %v1438
    %v1521 = vunpack.c.l.b16 %v1439
    %v1522 = vunpack.c.h.b16 %v1439
    %v1523 = vunpack.c.l.b16 %v1440
    %v1524 = vunpack.c.h.b16 %v1440
    %v1525 = vunpack.c.l.b16 %v1441
    %v1526 = vunpack.c.h.b16 %v1441
    %v1527 = vunpack.c.l.b16 %v1442
    %v1528 = vunpack.c.h.b16 %v1442
    %v1529 = vunpack.c.l.b16 %v1443
    %v1530 = vunpack.c.h.b16 %v1443
    %v1531 = vunpack.c.l.b16 %v1444
    %v1532 = vunpack.c.h.b16 %v1444
    %v1533 = vunpack.c.l.b16 %v1445
    %v1534 = vunpack.c.h.b16 %v1445
    %v1535 = vunpack.c.l.b16 %v1446
    %v1536 = vunpack.c.h.b16 %v1446
    %v1537 = vunpack.c.l.b16 %v1447
    %v1538 = vunpack.c.h.b16 %v1447
    %v1539 = vunpack.c.l.b16 %v1448
    %v1540 = vunpack.c.h.b16 %v1448
    %v1541 = vunpack.c.l.b16 %v1449
    %v1542 = vunpack.c.h.b16 %v1449
    %v1543 = vunpack.c.l.b16 %v1450
    %v1544 = vunpack.c.h.b16 %v1450
    %v1545 = vunpack.c.l.b16 %v1451
    %v1546 = vunpack.c.h.b16 %v1451
    %v1547 = vunpack.c.l.b16 %v1452
    %v1548 = vunpack.c.h.b16 %v1452
    %v1549 = vpack.c.b16 %v1489, %v1485
    %v1550 = vpack.c.b16 %v1490, %v1486
    %v1551 = vpack.c.b16 %v1491, %v1487
    %v1552 = vpack.c.b16 %v1492, %v1488
    %v1553 = vpack.c.b16 %v1497, %v1493
    %v1554 = vpack.c.b16 %v1498, %v1494
    %v1555 = vpack.c.b16 %v1499, %v1495
    %v1556 = vpack.c.b16 %v1500, %v1496
    %v1557 = vpack.c.b16 %v1505, %v1501
    %v1558 = vpack.c.b16 %v1506, %v1502
    %v1559 = vpack.c.b16 %v1507, %v1503
    %v1560 = vpack.c.b16 %v1508, %v1504
    %v1561 = vpack.c.b16 %v1513, %v1509
    %v1562 = vpack.c.b16 %v1514, %v1510
    %v1563 = vpack.c.b16 %v1515, %v1511
    %v1564 = vpack.c.b16 %v1516, %v1512
    %v1565 = vpack.c.b16 %v1521, %v1517
    %v1566 = vpack.c.b16 %v1522, %v1518
    %v1567 = vpack.c.b16 %v1523, %v1519
    %v1568 = vpack.c.b16 %v1524, %v1520
    %v1569 = vpack.c.b16 %v1529, %v1525
    %v1570 = vpack.c.b16 %v1530, %v1526
    %v1571 = vpack.c.b16 %v1531, %v1527
    %v1572 = vpack.c.b16 %v1532, %v1528
    %v1573 = vpack.c.b16 %v1537, %v1533
    %v1574 = vpack.c.b16 %v1538, %v1534
    %v1575 = vpack.c.b16 %v1539, %v1535
    %v1576 = vpack.c.b16 %v1540, %v1536
    %v1577 = vpack.c.b16 %v1545, %v1541
    %v1578 = vpack.c.b16 %v1546, %v1542
    %v1579 = vpack.c.b16 %v1547, %v1543
    %v1580 = vpack.c.b16 %v1548, %v1544
    %1613 = vmatprep.subr.bf16.mxu0 %v1550
    %1614 = vmatpush1.bf16.msra.mxu0 %v1549
    %1615 = vmatprep.subr.bf16.mxu0 %v1554
    %1616 = vmatpush1.bf16.msra.mxu0 %v1553
    %1617 = vmatprep.subr.bf16.mxu0 %v1558
    %1618 = vmatpush1.bf16.msra.mxu0 %v1557
    %1619 = vmatprep.subr.bf16.mxu0 %v1562
    %1620 = vmatpush1.bf16.msra.mxu0 %v1561
    %1621 = vmatprep.subr.bf16.mxu0 %v1566
    %1622 = vmatpush1.bf16.msra.mxu0 %v1565
    %1623 = vmatprep.subr.bf16.mxu0 %v1570
    %1624 = vmatpush1.bf16.msra.mxu0 %v1569
    %1625 = vmatprep.subr.bf16.mxu0 %v1574
    %1626 = vmatpush1.bf16.msra.mxu0 %v1573
    %1627 = vmatprep.subr.bf16.mxu0 %v1578
    %1628 = vmatpush1.bf16.msra.mxu0 %v1577
    %1629 = vmatprep.subr.bf16.mxu0 0
    %1630 = vmatpush1.bf16.msra.mxu0 0
    %1631 = vmatprep.subr.bf16.mxu0 0
    %1632 = vmatpush1.bf16.msra.mxu0 0
    %1633 = vmatprep.subr.bf16.mxu0 0
    %1634 = vmatpush1.bf16.msra.mxu0 0
    %1635 = vmatprep.subr.bf16.mxu0 0
    %1636 = vmatpush1.bf16.msra.mxu0 0
    %1637 = vmatprep.subr.bf16.mxu0 0
    %1638 = vmatpush1.bf16.msra.mxu0 0
    %1639 = vmatprep.subr.bf16.mxu0 0
    %1640 = vmatpush1.bf16.msra.mxu0 0
    %1641 = vmatprep.subr.bf16.mxu0 0
    %1642 = vmatpush1.bf16.msra.mxu0 0
    %1643 = vmatprep.subr.bf16.mxu0 0
    %1644 = vmatpush1.bf16.msra.mxu0 0
    %1645 = vmatprep.mubr.bf16.mxu0 0
    %1646 = vmatmul.mubr.bf16.gmra.mrb[0].mxu0 %v1413
    %v1647 = vpop.f32.mrb[0].mxu0
    %v1648 = vadd.f32 0.0, %v1647
    %v1649 = vpop.f32.mrb[0].mxu0
    %v1650 = vadd.f32 0.0, %v1649
    %v1651 = vpop.f32.mrb[0].mxu0
    %v1652 = vpop.f32.mrb[0].mxu0
    %1653 = vdwg.mxu0
    %1654 = vmatprep.subr.bf16.mxu0 %v1552
    %1655 = vmatpush1.bf16.msra.mxu0 %v1551
    %1656 = vmatprep.subr.bf16.mxu0 %v1556
    %1657 = vmatpush1.bf16.msra.mxu0 %v1555
    %1658 = vmatprep.subr.bf16.mxu0 %v1560
    %1659 = vmatpush1.bf16.msra.mxu0 %v1559
    %1660 = vmatprep.subr.bf16.mxu0 %v1564
    %1661 = vmatpush1.bf16.msra.mxu0 %v1563
    %1662 = vmatprep.subr.bf16.mxu0 %v1568
    %1663 = vmatpush1.bf16.msra.mxu0 %v1567
    %1664 = vmatprep.subr.bf16.mxu0 %v1572
    %1665 = vmatpush1.bf16.msra.mxu0 %v1571
    %1666 = vmatprep.subr.bf16.mxu0 %v1576
    %1667 = vmatpush1.bf16.msra.mxu0 %v1575
    %1668 = vmatprep.subr.bf16.mxu0 %v1580
    %1669 = vmatpush1.bf16.msra.mxu0 %v1579
    %1670 = vmatprep.subr.bf16.mxu0 0
    %1671 = vmatpush1.bf16.msra.mxu0 0
    %1672 = vmatprep.subr.bf16.mxu0 0
    %1673 = vmatpush1.bf16.msra.mxu0 0
    %1674 = vmatprep.subr.bf16.mxu0 0
    %1675 = vmatpush1.bf16.msra.mxu0 0
    %1676 = vmatprep.subr.bf16.mxu0 0
    %1677 = vmatpush1.bf16.msra.mxu0 0
    %1678 = vmatprep.subr.bf16.mxu0 0
    %1679 = vmatpush1.bf16.msra.mxu0 0
    %1680 = vmatprep.subr.bf16.mxu0 0
    %1681 = vmatpush1.bf16.msra.mxu0 0
    %1682 = vmatprep.subr.bf16.mxu0 0
    %1683 = vmatpush1.bf16.msra.mxu0 0
    %1684 = vmatprep.subr.bf16.mxu0 0
    %1685 = vmatpush1.bf16.msra.mxu0 0
    %1686 = vmatprep.mubr.bf16.mxu0 0
    %1687 = vmatmul.mubr.bf16.gmra.mrb[0].mxu0 %v1413
    %v1688 = vpop.f32.mrb[0].mxu0
    %v1689 = vadd.f32 0.0, %v1688
    %v1690 = vpop.f32.mrb[0].mxu0
    %v1691 = vadd.f32 0.0, %v1690
    %v1692 = vpop.f32.mrb[0].mxu0
    %v1693 = vpop.f32.mrb[0].mxu0
    %1694 = vdwg.mxu0
    %v1695 = vadd.f32 %v1417, %v1648
    %v1696 = vadd.f32 %v1418, %v1650
    %v1697 = vadd.f32 %v1419, %v1689
    %v1698 = vadd.f32 %v1420, %v1691
    %v1699 = vsub.f32 0.0, %v1695
    %v1700 = vmul.f32 %v1699, 1.442695
    %v1701 = vpow.pop %v1700
    %v1702 = vadd.f32 %v1701, 1.0
    %v1703 = vrcp.pop %v1702
    %v1704 = vsub.f32 0.0, %v1696
    %v1705 = vmul.f32 %v1704, 1.442695
    %v1706 = vpow.pop %v1705
    %v1707 = vadd.f32 %v1706, 1.0
    %v1708 = vrcp.pop %v1707
    %v1709 = vtanh.pop %v1697
    %v1710 = vsub.f32 0.0, %v1698
    %v1711 = vmul.f32 %v1710, 1.442695
    %v1712 = vpow.pop %v1711
    %v1713 = vadd.f32 %v1712, 1.0
    %v1714 = vrcp.pop %v1713
    %v1715 = vmul.f32 %v1708, %v1410
    %v1716 = vmul.f32 %v1703, %v1709
    %v1717 = vadd.f32 %v1715, %v1716
    %v1718 = vtanh.pop %v1717
    %v1719 = vmul.f32 %v1714, %v1718
    %v1720 = vpack.c.bf16 %v1719, %v1719
    %s1721 = scalar_lea.vmem [#allocation11], 12
    %1722 = vst [vmem:[%s1721] sm:$0xf] %v1720
    %s1723 = scalar_lea.vmem [#allocation4], 128
    %v1724 = vld [vmem:[%s1723] sm:$0xff]
    %v1725 = vld [vmem:[%s1723 + $0x8] sm:$0xff]
    %v1726 = vld [vmem:[%s1723 + $0x10] sm:$0xff]
    %v1727 = vld [vmem:[%s1723 + $0x18] sm:$0xff]
    %v1728 = vld [vmem:[#allocation10] sm:$0xff]
    %v1729 = vld [vmem:[#allocation10 + $0x8] sm:$0xff]
    %v1730 = vld [vmem:[#allocation10 + $0x10] sm:$0xff]
    %v1731 = vld [vmem:[#allocation10 + $0x18] sm:$0xff]
    %v1732 = vld [vmem:[#allocation10 + $0x20] sm:$0xff]
    %v1733 = vld [vmem:[#allocation10 + $0x28] sm:$0xff]
    %v1734 = vld [vmem:[#allocation10 + $0x30] sm:$0xff]
    %v1735 = vld [vmem:[#allocation10 + $0x38] sm:$0xff]
    %v1736 = vld [vmem:[#allocation10 + $0x40] sm:$0xff]
    %v1737 = vld [vmem:[#allocation10 + $0x48] sm:$0xff]
    %v1738 = vld [vmem:[#allocation10 + $0x50] sm:$0xff]
    %v1739 = vld [vmem:[#allocation10 + $0x58] sm:$0xff]
    %v1740 = vld [vmem:[#allocation10 + $0x60] sm:$0xff]
    %v1741 = vld [vmem:[#allocation10 + $0x68] sm:$0xff]
    %v1742 = vld [vmem:[#allocation10 + $0x70] sm:$0xff]
    %v1743 = vld [vmem:[#allocation10 + $0x78] sm:$0xff]
    %v1744 = vld [vmem:[#allocation10 + $0x80] sm:$0xff]
    %v1745 = vld [vmem:[#allocation10 + $0x88] sm:$0xff]
    %v1746 = vld [vmem:[#allocation10 + $0x90] sm:$0xff]
    %v1747 = vld [vmem:[#allocation10 + $0x98] sm:$0xff]
    %v1748 = vld [vmem:[#allocation10 + $0xa0] sm:$0xff]
    %v1749 = vld [vmem:[#allocation10 + $0xa8] sm:$0xff]
    %v1750 = vld [vmem:[#allocation10 + $0xb0] sm:$0xff]
    %v1751 = vld [vmem:[#allocation10 + $0xb8] sm:$0xff]
    %v1752 = vld [vmem:[#allocation10 + $0xc0] sm:$0xff]
    %v1753 = vld [vmem:[#allocation10 + $0xc8] sm:$0xff]
    %v1754 = vld [vmem:[#allocation10 + $0xd0] sm:$0xff]
    %v1755 = vld [vmem:[#allocation10 + $0xd8] sm:$0xff]
    %v1756 = vld [vmem:[#allocation10 + $0xe0] sm:$0xff]
    %v1757 = vld [vmem:[#allocation10 + $0xe8] sm:$0xff]
    %v1758 = vld [vmem:[#allocation10 + $0xf0] sm:$0xff]
    %v1759 = vld [vmem:[#allocation10 + $0xf8] sm:$0xff]
    %v1792 = vunpack.c.l.b16 %v1728
    %v1793 = vunpack.c.h.b16 %v1728
    %v1794 = vunpack.c.l.b16 %v1729
    %v1795 = vunpack.c.h.b16 %v1729
    %v1796 = vunpack.c.l.b16 %v1730
    %v1797 = vunpack.c.h.b16 %v1730
    %v1798 = vunpack.c.l.b16 %v1731
    %v1799 = vunpack.c.h.b16 %v1731
    %v1800 = vunpack.c.l.b16 %v1732
    %v1801 = vunpack.c.h.b16 %v1732
    %v1802 = vunpack.c.l.b16 %v1733
    %v1803 = vunpack.c.h.b16 %v1733
    %v1804 = vunpack.c.l.b16 %v1734
    %v1805 = vunpack.c.h.b16 %v1734
    %v1806 = vunpack.c.l.b16 %v1735
    %v1807 = vunpack.c.h.b16 %v1735
    %v1808 = vunpack.c.l.b16 %v1736
    %v1809 = vunpack.c.h.b16 %v1736
    %v1810 = vunpack.c.l.b16 %v1737
    %v1811 = vunpack.c.h.b16 %v1737
    %v1812 = vunpack.c.l.b16 %v1738
    %v1813 = vunpack.c.h.b16 %v1738
    %v1814 = vunpack.c.l.b16 %v1739
    %v1815 = vunpack.c.h.b16 %v1739
    %v1816 = vunpack.c.l.b16 %v1740
    %v1817 = vunpack.c.h.b16 %v1740
    %v1818 = vunpack.c.l.b16 %v1741
    %v1819 = vunpack.c.h.b16 %v1741
    %v1820 = vunpack.c.l.b16 %v1742
    %v1821 = vunpack.c.h.b16 %v1742
    %v1822 = vunpack.c.l.b16 %v1743
    %v1823 = vunpack.c.h.b16 %v1743
    %v1824 = vunpack.c.l.b16 %v1744
    %v1825 = vunpack.c.h.b16 %v1744
    %v1826 = vunpack.c.l.b16 %v1745
    %v1827 = vunpack.c.h.b16 %v1745
    %v1828 = vunpack.c.l.b16 %v1746
    %v1829 = vunpack.c.h.b16 %v1746
    %v1830 = vunpack.c.l.b16 %v1747
    %v1831 = vunpack.c.h.b16 %v1747
    %v1832 = vunpack.c.l.b16 %v1748
    %v1833 = vunpack.c.h.b16 %v1748
    %v1834 = vunpack.c.l.b16 %v1749
    %v1835 = vunpack.c.h.b16 %v1749
    %v1836 = vunpack.c.l.b16 %v1750
    %v1837 = vunpack.c.h.b16 %v1750
    %v1838 = vunpack.c.l.b16 %v1751
    %v1839 = vunpack.c.h.b16 %v1751
    %v1840 = vunpack.c.l.b16 %v1752
    %v1841 = vunpack.c.h.b16 %v1752
    %v1842 = vunpack.c.l.b16 %v1753
    %v1843 = vunpack.c.h.b16 %v1753
    %v1844 = vunpack.c.l.b16 %v1754
    %v1845 = vunpack.c.h.b16 %v1754
    %v1846 = vunpack.c.l.b16 %v1755
    %v1847 = vunpack.c.h.b16 %v1755
    %v1848 = vunpack.c.l.b16 %v1756
    %v1849 = vunpack.c.h.b16 %v1756
    %v1850 = vunpack.c.l.b16 %v1757
    %v1851 = vunpack.c.h.b16 %v1757
    %v1852 = vunpack.c.l.b16 %v1758
    %v1853 = vunpack.c.h.b16 %v1758
    %v1854 = vunpack.c.l.b16 %v1759
    %v1855 = vunpack.c.h.b16 %v1759
    %v1856 = vpack.c.b16 %v1796, %v1792
    %v1857 = vpack.c.b16 %v1797, %v1793
    %v1858 = vpack.c.b16 %v1798, %v1794
    %v1859 = vpack.c.b16 %v1799, %v1795
    %v1860 = vpack.c.b16 %v1804, %v1800
    %v1861 = vpack.c.b16 %v1805, %v1801
    %v1862 = vpack.c.b16 %v1806, %v1802
    %v1863 = vpack.c.b16 %v1807, %v1803
    %v1864 = vpack.c.b16 %v1812, %v1808
    %v1865 = vpack.c.b16 %v1813, %v1809
    %v1866 = vpack.c.b16 %v1814, %v1810
    %v1867 = vpack.c.b16 %v1815, %v1811
    %v1868 = vpack.c.b16 %v1820, %v1816
    %v1869 = vpack.c.b16 %v1821, %v1817
    %v1870 = vpack.c.b16 %v1822, %v1818
    %v1871 = vpack.c.b16 %v1823, %v1819
    %v1872 = vpack.c.b16 %v1828, %v1824
    %v1873 = vpack.c.b16 %v1829, %v1825
    %v1874 = vpack.c.b16 %v1830, %v1826
    %v1875 = vpack.c.b16 %v1831, %v1827
    %v1876 = vpack.c.b16 %v1836, %v1832
    %v1877 = vpack.c.b16 %v1837, %v1833
    %v1878 = vpack.c.b16 %v1838, %v1834
    %v1879 = vpack.c.b16 %v1839, %v1835
    %v1880 = vpack.c.b16 %v1844, %v1840
    %v1881 = vpack.c.b16 %v1845, %v1841
    %v1882 = vpack.c.b16 %v1846, %v1842
    %v1883 = vpack.c.b16 %v1847, %v1843
    %v1884 = vpack.c.b16 %v1852, %v1848
    %v1885 = vpack.c.b16 %v1853, %v1849
    %v1886 = vpack.c.b16 %v1854, %v1850
    %v1887 = vpack.c.b16 %v1855, %v1851
    %1920 = vmatprep.subr.bf16.mxu0 %v1857
    %1921 = vmatpush1.bf16.msra.mxu0 %v1856
    %1922 = vmatprep.subr.bf16.mxu0 %v1861
    %1923 = vmatpush1.bf16.msra.mxu0 %v1860
    %1924 = vmatprep.subr.bf16.mxu0 %v1865
    %1925 = vmatpush1.bf16.msra.mxu0 %v1864
    %1926 = vmatprep.subr.bf16.mxu0 %v1869
    %1927 = vmatpush1.bf16.msra.mxu0 %v1868
    %1928 = vmatprep.subr.bf16.mxu0 %v1873
    %1929 = vmatpush1.bf16.msra.mxu0 %v1872
    %1930 = vmatprep.subr.bf16.mxu0 %v1877
    %1931 = vmatpush1.bf16.msra.mxu0 %v1876
    %1932 = vmatprep.subr.bf16.mxu0 %v1881
    %1933 = vmatpush1.bf16.msra.mxu0 %v1880
    %1934 = vmatprep.subr.bf16.mxu0 %v1885
    %1935 = vmatpush1.bf16.msra.mxu0 %v1884
    %1936 = vmatprep.subr.bf16.mxu0 0
    %1937 = vmatpush1.bf16.msra.mxu0 0
    %1938 = vmatprep.subr.bf16.mxu0 0
    %1939 = vmatpush1.bf16.msra.mxu0 0
    %1940 = vmatprep.subr.bf16.mxu0 0
    %1941 = vmatpush1.bf16.msra.mxu0 0
    %1942 = vmatprep.subr.bf16.mxu0 0
    %1943 = vmatpush1.bf16.msra.mxu0 0
    %1944 = vmatprep.subr.bf16.mxu0 0
    %1945 = vmatpush1.bf16.msra.mxu0 0
    %1946 = vmatprep.subr.bf16.mxu0 0
    %1947 = vmatpush1.bf16.msra.mxu0 0
    %1948 = vmatprep.subr.bf16.mxu0 0
    %1949 = vmatpush1.bf16.msra.mxu0 0
    %1950 = vmatprep.subr.bf16.mxu0 0
    %1951 = vmatpush1.bf16.msra.mxu0 0
    %1952 = vmatprep.mubr.bf16.mxu0 0
    %1953 = vmatmul.mubr.bf16.gmra.mrb[0].mxu0 %v1720
    %v1954 = vpop.f32.mrb[0].mxu0
    %v1955 = vadd.f32 0.0, %v1954
    %v1956 = vpop.f32.mrb[0].mxu0
    %v1957 = vadd.f32 0.0, %v1956
    %v1958 = vpop.f32.mrb[0].mxu0
    %v1959 = vpop.f32.mrb[0].mxu0
    %1960 = vdwg.mxu0
    %1961 = vmatprep.subr.bf16.mxu0 %v1859
    %1962 = vmatpush1.bf16.msra.mxu0 %v1858
    %1963 = vmatprep.subr.bf16.mxu0 %v1863
    %1964 = vmatpush1.bf16.msra.mxu0 %v1862
    %1965 = vmatprep.subr.bf16.mxu0 %v1867
    %1966 = vmatpush1.bf16.msra.mxu0 %v1866
    %1967 = vmatprep.subr.bf16.mxu0 %v1871
    %1968 = vmatpush1.bf16.msra.mxu0 %v1870
    %1969 = vmatprep.subr.bf16.mxu0 %v1875
    %1970 = vmatpush1.bf16.msra.mxu0 %v1874
    %1971 = vmatprep.subr.bf16.mxu0 %v1879
    %1972 = vmatpush1.bf16.msra.mxu0 %v1878
    %1973 = vmatprep.subr.bf16.mxu0 %v1883
    %1974 = vmatpush1.bf16.msra.mxu0 %v1882
    %1975 = vmatprep.subr.bf16.mxu0 %v1887
    %1976 = vmatpush1.bf16.msra.mxu0 %v1886
    %1977 = vmatprep.subr.bf16.mxu0 0
    %1978 = vmatpush1.bf16.msra.mxu0 0
    %1979 = vmatprep.subr.bf16.mxu0 0
    %1980 = vmatpush1.bf16.msra.mxu0 0
    %1981 = vmatprep.subr.bf16.mxu0 0
    %1982 = vmatpush1.bf16.msra.mxu0 0
    %1983 = vmatprep.subr.bf16.mxu0 0
    %1984 = vmatpush1.bf16.msra.mxu0 0
    %1985 = vmatprep.subr.bf16.mxu0 0
    %1986 = vmatpush1.bf16.msra.mxu0 0
    %1987 = vmatprep.subr.bf16.mxu0 0
    %1988 = vmatpush1.bf16.msra.mxu0 0
    %1989 = vmatprep.subr.bf16.mxu0 0
    %1990 = vmatpush1.bf16.msra.mxu0 0
    %1991 = vmatprep.subr.bf16.mxu0 0
    %1992 = vmatpush1.bf16.msra.mxu0 0
    %1993 = vmatprep.mubr.bf16.mxu0 0
    %1994 = vmatmul.mubr.bf16.gmra.mrb[0].mxu0 %v1720
    %v1995 = vpop.f32.mrb[0].mxu0
    %v1996 = vadd.f32 0.0, %v1995
    %v1997 = vpop.f32.mrb[0].mxu0
    %v1998 = vadd.f32 0.0, %v1997
    %v1999 = vpop.f32.mrb[0].mxu0
    %v2000 = vpop.f32.mrb[0].mxu0
    %2001 = vdwg.mxu0
    %v2002 = vadd.f32 %v1724, %v1955
    %v2003 = vadd.f32 %v1725, %v1957
    %v2004 = vadd.f32 %v1726, %v1996
    %v2005 = vadd.f32 %v1727, %v1998
    %v2006 = vsub.f32 0.0, %v2002
    %v2007 = vmul.f32 %v2006, 1.442695
    %v2008 = vpow.pop %v2007
    %v2009 = vadd.f32 %v2008, 1.0
    %v2010 = vrcp.pop %v2009
    %v2011 = vsub.f32 0.0, %v2003
    %v2012 = vmul.f32 %v2011, 1.442695
    %v2013 = vpow.pop %v2012
    %v2014 = vadd.f32 %v2013, 1.0
    %v2015 = vrcp.pop %v2014
    %v2016 = vtanh.pop %v2004
    %v2017 = vsub.f32 0.0, %v2005
    %v2018 = vmul.f32 %v2017, 1.442695
    %v2019 = vpow.pop %v2018
    %v2020 = vadd.f32 %v2019, 1.0
    %v2021 = vrcp.pop %v2020
    %v2022 = vmul.f32 %v2015, %v1717
    %v2023 = vmul.f32 %v2010, %v2016
    %v2024 = vadd.f32 %v2022, %v2023
    %v2025 = vtanh.pop %v2024
    %v2026 = vmul.f32 %v2021, %v2025
    %v2027 = vpack.c.bf16 %v2026, %v2026
    %s2028 = scalar_lea.vmem [#allocation11], 16
    %2029 = vst [vmem:[%s2028] sm:$0xf] %v2027
    %s2030 = scalar_lea.vmem [#allocation4], 160
    %v2031 = vld [vmem:[%s2030] sm:$0xff]
    %v2032 = vld [vmem:[%s2030 + $0x8] sm:$0xff]
    %v2033 = vld [vmem:[%s2030 + $0x10] sm:$0xff]
    %v2034 = vld [vmem:[%s2030 + $0x18] sm:$0xff]
    %v2035 = vld [vmem:[#allocation10] sm:$0xff]
    %v2036 = vld [vmem:[#allocation10 + $0x8] sm:$0xff]
    %v2037 = vld [vmem:[#allocation10 + $0x10] sm:$0xff]
    %v2038 = vld [vmem:[#allocation10 + $0x18] sm:$0xff]
    %v2039 = vld [vmem:[#allocation10 + $0x20] sm:$0xff]
    %v2040 = vld [vmem:[#allocation10 + $0x28] sm:$0xff]
    %v2041 = vld [vmem:[#allocation10 + $0x30] sm:$0xff]
    %v2042 = vld [vmem:[#allocation10 + $0x38] sm:$0xff]
    %v2043 = vld [vmem:[#allocation10 + $0x40] sm:$0xff]
    %v2044 = vld [vmem:[#allocation10 + $0x48] sm:$0xff]
    %v2045 = vld [vmem:[#allocation10 + $0x50] sm:$0xff]
    %v2046 = vld [vmem:[#allocation10 + $0x58] sm:$0xff]
    %v2047 = vld [vmem:[#allocation10 + $0x60] sm:$0xff]
    %v2048 = vld [vmem:[#allocation10 + $0x68] sm:$0xff]
    %v2049 = vld [vmem:[#allocation10 + $0x70] sm:$0xff]
    %v2050 = vld [vmem:[#allocation10 + $0x78] sm:$0xff]
    %v2051 = vld [vmem:[#allocation10 + $0x80] sm:$0xff]
    %v2052 = vld [vmem:[#allocation10 + $0x88] sm:$0xff]
    %v2053 = vld [vmem:[#allocation10 + $0x90] sm:$0xff]
    %v2054 = vld [vmem:[#allocation10 + $0x98] sm:$0xff]
    %v2055 = vld [vmem:[#allocation10 + $0xa0] sm:$0xff]
    %v2056 = vld [vmem:[#allocation10 + $0xa8] sm:$0xff]
    %v2057 = vld [vmem:[#allocation10 + $0xb0] sm:$0xff]
    %v2058 = vld [vmem:[#allocation10 + $0xb8] sm:$0xff]
    %v2059 = vld [vmem:[#allocation10 + $0xc0] sm:$0xff]
    %v2060 = vld [vmem:[#allocation10 + $0xc8] sm:$0xff]
    %v2061 = vld [vmem:[#allocation10 + $0xd0] sm:$0xff]
    %v2062 = vld [vmem:[#allocation10 + $0xd8] sm:$0xff]
    %v2063 = vld [vmem:[#allocation10 + $0xe0] sm:$0xff]
    %v2064 = vld [vmem:[#allocation10 + $0xe8] sm:$0xff]
    %v2065 = vld [vmem:[#allocation10 + $0xf0] sm:$0xff]
    %v2066 = vld [vmem:[#allocation10 + $0xf8] sm:$0xff]
    %v2099 = vunpack.c.l.b16 %v2035
    %v2100 = vunpack.c.h.b16 %v2035
    %v2101 = vunpack.c.l.b16 %v2036
    %v2102 = vunpack.c.h.b16 %v2036
    %v2103 = vunpack.c.l.b16 %v2037
    %v2104 = vunpack.c.h.b16 %v2037
    %v2105 = vunpack.c.l.b16 %v2038
    %v2106 = vunpack.c.h.b16 %v2038
    %v2107 = vunpack.c.l.b16 %v2039
    %v2108 = vunpack.c.h.b16 %v2039
    %v2109 = vunpack.c.l.b16 %v2040
    %v2110 = vunpack.c.h.b16 %v2040
    %v2111 = vunpack.c.l.b16 %v2041
    %v2112 = vunpack.c.h.b16 %v2041
    %v2113 = vunpack.c.l.b16 %v2042
    %v2114 = vunpack.c.h.b16 %v2042
    %v2115 = vunpack.c.l.b16 %v2043
    %v2116 = vunpack.c.h.b16 %v2043
    %v2117 = vunpack.c.l.b16 %v2044
    %v2118 = vunpack.c.h.b16 %v2044
    %v2119 = vunpack.c.l.b16 %v2045
    %v2120 = vunpack.c.h.b16 %v2045
    %v2121 = vunpack.c.l.b16 %v2046
    %v2122 = vunpack.c.h.b16 %v2046
    %v2123 = vunpack.c.l.b16 %v2047
    %v2124 = vunpack.c.h.b16 %v2047
    %v2125 = vunpack.c.l.b16 %v2048
    %v2126 = vunpack.c.h.b16 %v2048
    %v2127 = vunpack.c.l.b16 %v2049
    %v2128 = vunpack.c.h.b16 %v2049
    %v2129 = vunpack.c.l.b16 %v2050
    %v2130 = vunpack.c.h.b16 %v2050
    %v2131 = vunpack.c.l.b16 %v2051
    %v2132 = vunpack.c.h.b16 %v2051
    %v2133 = vunpack.c.l.b16 %v2052
    %v2134 = vunpack.c.h.b16 %v2052
    %v2135 = vunpack.c.l.b16 %v2053
    %v2136 = vunpack.c.h.b16 %v2053
    %v2137 = vunpack.c.l.b16 %v2054
    %v2138 = vunpack.c.h.b16 %v2054
    %v2139 = vunpack.c.l.b16 %v2055
    %v2140 = vunpack.c.h.b16 %v2055
    %v2141 = vunpack.c.l.b16 %v2056
    %v2142 = vunpack.c.h.b16 %v2056
    %v2143 = vunpack.c.l.b16 %v2057
    %v2144 = vunpack.c.h.b16 %v2057
    %v2145 = vunpack.c.l.b16 %v2058
    %v2146 = vunpack.c.h.b16 %v2058
    %v2147 = vunpack.c.l.b16 %v2059
    %v2148 = vunpack.c.h.b16 %v2059
    %v2149 = vunpack.c.l.b16 %v2060
    %v2150 = vunpack.c.h.b16 %v2060
    %v2151 = vunpack.c.l.b16 %v2061
    %v2152 = vunpack.c.h.b16 %v2061
    %v2153 = vunpack.c.l.b16 %v2062
    %v2154 = vunpack.c.h.b16 %v2062
    %v2155 = vunpack.c.l.b16 %v2063
    %v2156 = vunpack.c.h.b16 %v2063
    %v2157 = vunpack.c.l.b16 %v2064
    %v2158 = vunpack.c.h.b16 %v2064
    %v2159 = vunpack.c.l.b16 %v2065
    %v2160 = vunpack.c.h.b16 %v2065
    %v2161 = vunpack.c.l.b16 %v2066
    %v2162 = vunpack.c.h.b16 %v2066
    %v2163 = vpack.c.b16 %v2103, %v2099
    %v2164 = vpack.c.b16 %v2104, %v2100
    %v2165 = vpack.c.b16 %v2105, %v2101
    %v2166 = vpack.c.b16 %v2106, %v2102
    %v2167 = vpack.c.b16 %v2111, %v2107
    %v2168 = vpack.c.b16 %v2112, %v2108
    %v2169 = vpack.c.b16 %v2113, %v2109
    %v2170 = vpack.c.b16 %v2114, %v2110
    %v2171 = vpack.c.b16 %v2119, %v2115
    %v2172 = vpack.c.b16 %v2120, %v2116
    %v2173 = vpack.c.b16 %v2121, %v2117
    %v2174 = vpack.c.b16 %v2122, %v2118
    %v2175 = vpack.c.b16 %v2127, %v2123
    %v2176 = vpack.c.b16 %v2128, %v2124
    %v2177 = vpack.c.b16 %v2129, %v2125
    %v2178 = vpack.c.b16 %v2130, %v2126
    %v2179 = vpack.c.b16 %v2135, %v2131
    %v2180 = vpack.c.b16 %v2136, %v2132
    %v2181 = vpack.c.b16 %v2137, %v2133
    %v2182 = vpack.c.b16 %v2138, %v2134
    %v2183 = vpack.c.b16 %v2143, %v2139
    %v2184 = vpack.c.b16 %v2144, %v2140
    %v2185 = vpack.c.b16 %v2145, %v2141
    %v2186 = vpack.c.b16 %v2146, %v2142
    %v2187 = vpack.c.b16 %v2151, %v2147
    %v2188 = vpack.c.b16 %v2152, %v2148
    %v2189 = vpack.c.b16 %v2153, %v2149
    %v2190 = vpack.c.b16 %v2154, %v2150
    %v2191 = vpack.c.b16 %v2159, %v2155
    %v2192 = vpack.c.b16 %v2160, %v2156
    %v2193 = vpack.c.b16 %v2161, %v2157
    %v2194 = vpack.c.b16 %v2162, %v2158
    %2227 = vmatprep.subr.bf16.mxu0 %v2164
    %2228 = vmatpush1.bf16.msra.mxu0 %v2163
    %2229 = vmatprep.subr.bf16.mxu0 %v2168
    %2230 = vmatpush1.bf16.msra.mxu0 %v2167
    %2231 = vmatprep.subr.bf16.mxu0 %v2172
    %2232 = vmatpush1.bf16.msra.mxu0 %v2171
    %2233 = vmatprep.subr.bf16.mxu0 %v2176
    %2234 = vmatpush1.bf16.msra.mxu0 %v2175
    %2235 = vmatprep.subr.bf16.mxu0 %v2180
    %2236 = vmatpush1.bf16.msra.mxu0 %v2179
    %2237 = vmatprep.subr.bf16.mxu0 %v2184
    %2238 = vmatpush1.bf16.msra.mxu0 %v2183
    %2239 = vmatprep.subr.bf16.mxu0 %v2188
    %2240 = vmatpush1.bf16.msra.mxu0 %v2187
    %2241 = vmatprep.subr.bf16.mxu0 %v2192
    %2242 = vmatpush1.bf16.msra.mxu0 %v2191
    %2243 = vmatprep.subr.bf16.mxu0 0
    %2244 = vmatpush1.bf16.msra.mxu0 0
    %2245 = vmatprep.subr.bf16.mxu0 0
    %2246 = vmatpush1.bf16.msra.mxu0 0
    %2247 = vmatprep.subr.bf16.mxu0 0
    %2248 = vmatpush1.bf16.msra.mxu0 0
    %2249 = vmatprep.subr.bf16.mxu0 0
    %2250 = vmatpush1.bf16.msra.mxu0 0
    %2251 = vmatprep.subr.bf16.mxu0 0
    %2252 = vmatpush1.bf16.msra.mxu0 0
    %2253 = vmatprep.subr.bf16.mxu0 0
    %2254 = vmatpush1.bf16.msra.mxu0 0
    %2255 = vmatprep.subr.bf16.mxu0 0
    %2256 = vmatpush1.bf16.msra.mxu0 0
    %2257 = vmatprep.subr.bf16.mxu0 0
    %2258 = vmatpush1.bf16.msra.mxu0 0
    %2259 = vmatprep.mubr.bf16.mxu0 0
    %2260 = vmatmul.mubr.bf16.gmra.mrb[0].mxu0 %v2027
    %v2261 = vpop.f32.mrb[0].mxu0
    %v2262 = vadd.f32 0.0, %v2261
    %v2263 = vpop.f32.mrb[0].mxu0
    %v2264 = vadd.f32 0.0, %v2263
    %v2265 = vpop.f32.mrb[0].mxu0
    %v2266 = vpop.f32.mrb[0].mxu0
    %2267 = vdwg.mxu0
    %2268 = vmatprep.subr.bf16.mxu0 %v2166
    %2269 = vmatpush1.bf16.msra.mxu0 %v2165
    %2270 = vmatprep.subr.bf16.mxu0 %v2170
    %2271 = vmatpush1.bf16.msra.mxu0 %v2169
    %2272 = vmatprep.subr.bf16.mxu0 %v2174
    %2273 = vmatpush1.bf16.msra.mxu0 %v2173
    %2274 = vmatprep.subr.bf16.mxu0 %v2178
    %2275 = vmatpush1.bf16.msra.mxu0 %v2177
    %2276 = vmatprep.subr.bf16.mxu0 %v2182
    %2277 = vmatpush1.bf16.msra.mxu0 %v2181
    %2278 = vmatprep.subr.bf16.mxu0 %v2186
    %2279 = vmatpush1.bf16.msra.mxu0 %v2185
    %2280 = vmatprep.subr.bf16.mxu0 %v2190
    %2281 = vmatpush1.bf16.msra.mxu0 %v2189
    %2282 = vmatprep.subr.bf16.mxu0 %v2194
    %2283 = vmatpush1.bf16.msra.mxu0 %v2193
    %2284 = vmatprep.subr.bf16.mxu0 0
    %2285 = vmatpush1.bf16.msra.mxu0 0
    %2286 = vmatprep.subr.bf16.mxu0 0
    %2287 = vmatpush1.bf16.msra.mxu0 0
    %2288 = vmatprep.subr.bf16.mxu0 0
    %2289 = vmatpush1.bf16.msra.mxu0 0
    %2290 = vmatprep.subr.bf16.mxu0 0
    %2291 = vmatpush1.bf16.msra.mxu0 0
    %2292 = vmatprep.subr.bf16.mxu0 0
    %2293 = vmatpush1.bf16.msra.mxu0 0
    %2294 = vmatprep.subr.bf16.mxu0 0
    %2295 = vmatpush1.bf16.msra.mxu0 0
    %2296 = vmatprep.subr.bf16.mxu0 0
    %2297 = vmatpush1.bf16.msra.mxu0 0
    %2298 = vmatprep.subr.bf16.mxu0 0
    %2299 = vmatpush1.bf16.msra.mxu0 0
    %2300 = vmatprep.mubr.bf16.mxu0 0
    %2301 = vmatmul.mubr.bf16.gmra.mrb[0].mxu0 %v2027
    %v2302 = vpop.f32.mrb[0].mxu0
    %v2303 = vadd.f32 0.0, %v2302
    %v2304 = vpop.f32.mrb[0].mxu0
    %v2305 = vadd.f32 0.0, %v2304
    %v2306 = vpop.f32.mrb[0].mxu0
    %v2307 = vpop.f32.mrb[0].mxu0
    %2308 = vdwg.mxu0
    %v2309 = vadd.f32 %v2031, %v2262
    %v2310 = vadd.f32 %v2032, %v2264
    %v2311 = vadd.f32 %v2033, %v2303
    %v2312 = vadd.f32 %v2034, %v2305
    %v2313 = vsub.f32 0.0, %v2309
    %v2314 = vmul.f32 %v2313, 1.442695
    %v2315 = vpow.pop %v2314
    %v2316 = vadd.f32 %v2315, 1.0
    %v2317 = vrcp.pop %v2316
    %v2318 = vsub.f32 0.0, %v2310
    %v2319 = vmul.f32 %v2318, 1.442695
    %v2320 = vpow.pop %v2319
    %v2321 = vadd.f32 %v2320, 1.0
    %v2322 = vrcp.pop %v2321
    %v2323 = vtanh.pop %v2311
    %v2324 = vsub.f32 0.0, %v2312
    %v2325 = vmul.f32 %v2324, 1.442695
    %v2326 = vpow.pop %v2325
    %v2327 = vadd.f32 %v2326, 1.0
    %v2328 = vrcp.pop %v2327
    %v2329 = vmul.f32 %v2322, %v2024
    %v2330 = vmul.f32 %v2317, %v2323
    %v2331 = vadd.f32 %v2329, %v2330
    %v2332 = vtanh.pop %v2331
    %v2333 = vmul.f32 %v2328, %v2332
    %v2334 = vpack.c.bf16 %v2333, %v2333
    %s2335 = scalar_lea.vmem [#allocation11], 20
    %2336 = vst [vmem:[%s2335] sm:$0xf] %v2334
    %s2337 = scalar_lea.vmem [#allocation4], 192
    %v2338 = vld [vmem:[%s2337] sm:$0xff]
    %v2339 = vld [vmem:[%s2337 + $0x8] sm:$0xff]
    %v2340 = vld [vmem:[%s2337 + $0x10] sm:$0xff]
    %v2341 = vld [vmem:[%s2337 + $0x18] sm:$0xff]
    %v2342 = vld [vmem:[#allocation10] sm:$0xff]
    %v2343 = vld [vmem:[#allocation10 + $0x8] sm:$0xff]
    %v2344 = vld [vmem:[#allocation10 + $0x10] sm:$0xff]
    %v2345 = vld [vmem:[#allocation10 + $0x18] sm:$0xff]
    %v2346 = vld [vmem:[#allocation10 + $0x20] sm:$0xff]
    %v2347 = vld [vmem:[#allocation10 + $0x28] sm:$0xff]
    %v2348 = vld [vmem:[#allocation10 + $0x30] sm:$0xff]
    %v2349 = vld [vmem:[#allocation10 + $0x38] sm:$0xff]
    %v2350 = vld [vmem:[#allocation10 + $0x40] sm:$0xff]
    %v2351 = vld [vmem:[#allocation10 + $0x48] sm:$0xff]
    %v2352 = vld [vmem:[#allocation10 + $0x50] sm:$0xff]
    %v2353 = vld [vmem:[#allocation10 + $0x58] sm:$0xff]
    %v2354 = vld [vmem:[#allocation10 + $0x60] sm:$0xff]
    %v2355 = vld [vmem:[#allocation10 + $0x68] sm:$0xff]
    %v2356 = vld [vmem:[#allocation10 + $0x70] sm:$0xff]
    %v2357 = vld [vmem:[#allocation10 + $0x78] sm:$0xff]
    %v2358 = vld [vmem:[#allocation10 + $0x80] sm:$0xff]
    %v2359 = vld [vmem:[#allocation10 + $0x88] sm:$0xff]
    %v2360 = vld [vmem:[#allocation10 + $0x90] sm:$0xff]
    %v2361 = vld [vmem:[#allocation10 + $0x98] sm:$0xff]
    %v2362 = vld [vmem:[#allocation10 + $0xa0] sm:$0xff]
    %v2363 = vld [vmem:[#allocation10 + $0xa8] sm:$0xff]
    %v2364 = vld [vmem:[#allocation10 + $0xb0] sm:$0xff]
    %v2365 = vld [vmem:[#allocation10 + $0xb8] sm:$0xff]
    %v2366 = vld [vmem:[#allocation10 + $0xc0] sm:$0xff]
    %v2367 = vld [vmem:[#allocation10 + $0xc8] sm:$0xff]
    %v2368 = vld [vmem:[#allocation10 + $0xd0] sm:$0xff]
    %v2369 = vld [vmem:[#allocation10 + $0xd8] sm:$0xff]
    %v2370 = vld [vmem:[#allocation10 + $0xe0] sm:$0xff]
    %v2371 = vld [vmem:[#allocation10 + $0xe8] sm:$0xff]
    %v2372 = vld [vmem:[#allocation10 + $0xf0] sm:$0xff]
    %v2373 = vld [vmem:[#allocation10 + $0xf8] sm:$0xff]
    %v2406 = vunpack.c.l.b16 %v2342
    %v2407 = vunpack.c.h.b16 %v2342
    %v2408 = vunpack.c.l.b16 %v2343
    %v2409 = vunpack.c.h.b16 %v2343
    %v2410 = vunpack.c.l.b16 %v2344
    %v2411 = vunpack.c.h.b16 %v2344
    %v2412 = vunpack.c.l.b16 %v2345
    %v2413 = vunpack.c.h.b16 %v2345
    %v2414 = vunpack.c.l.b16 %v2346
    %v2415 = vunpack.c.h.b16 %v2346
    %v2416 = vunpack.c.l.b16 %v2347
    %v2417 = vunpack.c.h.b16 %v2347
    %v2418 = vunpack.c.l.b16 %v2348
    %v2419 = vunpack.c.h.b16 %v2348
    %v2420 = vunpack.c.l.b16 %v2349
    %v2421 = vunpack.c.h.b16 %v2349
    %v2422 = vunpack.c.l.b16 %v2350
    %v2423 = vunpack.c.h.b16 %v2350
    %v2424 = vunpack.c.l.b16 %v2351
    %v2425 = vunpack.c.h.b16 %v2351
    %v2426 = vunpack.c.l.b16 %v2352
    %v2427 = vunpack.c.h.b16 %v2352
    %v2428 = vunpack.c.l.b16 %v2353
    %v2429 = vunpack.c.h.b16 %v2353
    %v2430 = vunpack.c.l.b16 %v2354
    %v2431 = vunpack.c.h.b16 %v2354
    %v2432 = vunpack.c.l.b16 %v2355
    %v2433 = vunpack.c.h.b16 %v2355
    %v2434 = vunpack.c.l.b16 %v2356
    %v2435 = vunpack.c.h.b16 %v2356
    %v2436 = vunpack.c.l.b16 %v2357
    %v2437 = vunpack.c.h.b16 %v2357
    %v2438 = vunpack.c.l.b16 %v2358
    %v2439 = vunpack.c.h.b16 %v2358
    %v2440 = vunpack.c.l.b16 %v2359
    %v2441 = vunpack.c.h.b16 %v2359
    %v2442 = vunpack.c.l.b16 %v2360
    %v2443 = vunpack.c.h.b16 %v2360
    %v2444 = vunpack.c.l.b16 %v2361
    %v2445 = vunpack.c.h.b16 %v2361
    %v2446 = vunpack.c.l.b16 %v2362
    %v2447 = vunpack.c.h.b16 %v2362
    %v2448 = vunpack.c.l.b16 %v2363
    %v2449 = vunpack.c.h.b16 %v2363
    %v2450 = vunpack.c.l.b16 %v2364
    %v2451 = vunpack.c.h.b16 %v2364
    %v2452 = vunpack.c.l.b16 %v2365
    %v2453 = vunpack.c.h.b16 %v2365
    %v2454 = vunpack.c.l.b16 %v2366
    %v2455 = vunpack.c.h.b16 %v2366
    %v2456 = vunpack.c.l.b16 %v2367
    %v2457 = vunpack.c.h.b16 %v2367
    %v2458 = vunpack.c.l.b16 %v2368
    %v2459 = vunpack.c.h.b16 %v2368
    %v2460 = vunpack.c.l.b16 %v2369
    %v2461 = vunpack.c.h.b16 %v2369
    %v2462 = vunpack.c.l.b16 %v2370
    %v2463 = vunpack.c.h.b16 %v2370
    %v2464 = vunpack.c.l.b16 %v2371
    %v2465 = vunpack.c.h.b16 %v2371
    %v2466 = vunpack.c.l.b16 %v2372
    %v2467 = vunpack.c.h.b16 %v2372
    %v2468 = vunpack.c.l.b16 %v2373
    %v2469 = vunpack.c.h.b16 %v2373
    %v2470 = vpack.c.b16 %v2410, %v2406
    %v2471 = vpack.c.b16 %v2411, %v2407
    %v2472 = vpack.c.b16 %v2412, %v2408
    %v2473 = vpack.c.b16 %v2413, %v2409
    %v2474 = vpack.c.b16 %v2418, %v2414
    %v2475 = vpack.c.b16 %v2419, %v2415
    %v2476 = vpack.c.b16 %v2420, %v2416
    %v2477 = vpack.c.b16 %v2421, %v2417
    %v2478 = vpack.c.b16 %v2426, %v2422
    %v2479 = vpack.c.b16 %v2427, %v2423
    %v2480 = vpack.c.b16 %v2428, %v2424
    %v2481 = vpack.c.b16 %v2429, %v2425
    %v2482 = vpack.c.b16 %v2434, %v2430
    %v2483 = vpack.c.b16 %v2435, %v2431
    %v2484 = vpack.c.b16 %v2436, %v2432
    %v2485 = vpack.c.b16 %v2437, %v2433
    %v2486 = vpack.c.b16 %v2442, %v2438
    %v2487 = vpack.c.b16 %v2443, %v2439
    %v2488 = vpack.c.b16 %v2444, %v2440
    %v2489 = vpack.c.b16 %v2445, %v2441
    %v2490 = vpack.c.b16 %v2450, %v2446
    %v2491 = vpack.c.b16 %v2451, %v2447
    %v2492 = vpack.c.b16 %v2452, %v2448
    %v2493 = vpack.c.b16 %v2453, %v2449
    %v2494 = vpack.c.b16 %v2458, %v2454
    %v2495 = vpack.c.b16 %v2459, %v2455
    %v2496 = vpack.c.b16 %v2460, %v2456
    %v2497 = vpack.c.b16 %v2461, %v2457
    %v2498 = vpack.c.b16 %v2466, %v2462
    %v2499 = vpack.c.b16 %v2467, %v2463
    %v2500 = vpack.c.b16 %v2468, %v2464
    %v2501 = vpack.c.b16 %v2469, %v2465
    %2534 = vmatprep.subr.bf16.mxu0 %v2471
    %2535 = vmatpush1.bf16.msra.mxu0 %v2470
    %2536 = vmatprep.subr.bf16.mxu0 %v2475
    %2537 = vmatpush1.bf16.msra.mxu0 %v2474
    %2538 = vmatprep.subr.bf16.mxu0 %v2479
    %2539 = vmatpush1.bf16.msra.mxu0 %v2478
    %2540 = vmatprep.subr.bf16.mxu0 %v2483
    %2541 = vmatpush1.bf16.msra.mxu0 %v2482
    %2542 = vmatprep.subr.bf16.mxu0 %v2487
    %2543 = vmatpush1.bf16.msra.mxu0 %v2486
    %2544 = vmatprep.subr.bf16.mxu0 %v2491
    %2545 = vmatpush1.bf16.msra.mxu0 %v2490
    %2546 = vmatprep.subr.bf16.mxu0 %v2495
    %2547 = vmatpush1.bf16.msra.mxu0 %v2494
    %2548 = vmatprep.subr.bf16.mxu0 %v2499
    %2549 = vmatpush1.bf16.msra.mxu0 %v2498
    %2550 = vmatprep.subr.bf16.mxu0 0
    %2551 = vmatpush1.bf16.msra.mxu0 0
    %2552 = vmatprep.subr.bf16.mxu0 0
    %2553 = vmatpush1.bf16.msra.mxu0 0
    %2554 = vmatprep.subr.bf16.mxu0 0
    %2555 = vmatpush1.bf16.msra.mxu0 0
    %2556 = vmatprep.subr.bf16.mxu0 0
    %2557 = vmatpush1.bf16.msra.mxu0 0
    %2558 = vmatprep.subr.bf16.mxu0 0
    %2559 = vmatpush1.bf16.msra.mxu0 0
    %2560 = vmatprep.subr.bf16.mxu0 0
    %2561 = vmatpush1.bf16.msra.mxu0 0
    %2562 = vmatprep.subr.bf16.mxu0 0
    %2563 = vmatpush1.bf16.msra.mxu0 0
    %2564 = vmatprep.subr.bf16.mxu0 0
    %2565 = vmatpush1.bf16.msra.mxu0 0
    %2566 = vmatprep.mubr.bf16.mxu0 0
    %2567 = vmatmul.mubr.bf16.gmra.mrb[0].mxu0 %v2334
    %v2568 = vpop.f32.mrb[0].mxu0
    %v2569 = vadd.f32 0.0, %v2568
    %v2570 = vpop.f32.mrb[0].mxu0
    %v2571 = vadd.f32 0.0, %v2570
    %v2572 = vpop.f32.mrb[0].mxu0
    %v2573 = vpop.f32.mrb[0].mxu0
    %2574 = vdwg.mxu0
    %2575 = vmatprep.subr.bf16.mxu0 %v2473
    %2576 = vmatpush1.bf16.msra.mxu0 %v2472
    %2577 = vmatprep.subr.bf16.mxu0 %v2477
    %2578 = vmatpush1.bf16.msra.mxu0 %v2476
    %2579 = vmatprep.subr.bf16.mxu0 %v2481
    %2580 = vmatpush1.bf16.msra.mxu0 %v2480
    %2581 = vmatprep.subr.bf16.mxu0 %v2485
    %2582 = vmatpush1.bf16.msra.mxu0 %v2484
    %2583 = vmatprep.subr.bf16.mxu0 %v2489
    %2584 = vmatpush1.bf16.msra.mxu0 %v2488
    %2585 = vmatprep.subr.bf16.mxu0 %v2493
    %2586 = vmatpush1.bf16.msra.mxu0 %v2492
    %2587 = vmatprep.subr.bf16.mxu0 %v2497
    %2588 = vmatpush1.bf16.msra.mxu0 %v2496
    %2589 = vmatprep.subr.bf16.mxu0 %v2501
    %2590 = vmatpush1.bf16.msra.mxu0 %v2500
    %2591 = vmatprep.subr.bf16.mxu0 0
    %2592 = vmatpush1.bf16.msra.mxu0 0
    %2593 = vmatprep.subr.bf16.mxu0 0
    %2594 = vmatpush1.bf16.msra.mxu0 0
    %2595 = vmatprep.subr.bf16.mxu0 0
    %2596 = vmatpush1.bf16.msra.mxu0 0
    %2597 = vmatprep.subr.bf16.mxu0 0
    %2598 = vmatpush1.bf16.msra.mxu0 0
    %2599 = vmatprep.subr.bf16.mxu0 0
    %2600 = vmatpush1.bf16.msra.mxu0 0
    %2601 = vmatprep.subr.bf16.mxu0 0
    %2602 = vmatpush1.bf16.msra.mxu0 0
    %2603 = vmatprep.subr.bf16.mxu0 0
    %2604 = vmatpush1.bf16.msra.mxu0 0
    %2605 = vmatprep.subr.bf16.mxu0 0
    %2606 = vmatpush1.bf16.msra.mxu0 0
    %2607 = vmatprep.mubr.bf16.mxu0 0
    %2608 = vmatmul.mubr.bf16.gmra.mrb[0].mxu0 %v2334
    %v2609 = vpop.f32.mrb[0].mxu0
    %v2610 = vadd.f32 0.0, %v2609
    %v2611 = vpop.f32.mrb[0].mxu0
    %v2612 = vadd.f32 0.0, %v2611
    %v2613 = vpop.f32.mrb[0].mxu0
    %v2614 = vpop.f32.mrb[0].mxu0
    %2615 = vdwg.mxu0
    %v2616 = vadd.f32 %v2338, %v2569
    %v2617 = vadd.f32 %v2339, %v2571
    %v2618 = vadd.f32 %v2340, %v2610
    %v2619 = vadd.f32 %v2341, %v2612
    %v2620 = vsub.f32 0.0, %v2616
    %v2621 = vmul.f32 %v2620, 1.442695
    %v2622 = vpow.pop %v2621
    %v2623 = vadd.f32 %v2622, 1.0
    %v2624 = vrcp.pop %v2623
    %v2625 = vsub.f32 0.0, %v2617
    %v2626 = vmul.f32 %v2625, 1.442695
    %v2627 = vpow.pop %v2626
    %v2628 = vadd.f32 %v2627, 1.0
    %v2629 = vrcp.pop %v2628
    %v2630 = vtanh.pop %v2618
    %v2631 = vsub.f32 0.0, %v2619
    %v2632 = vmul.f32 %v2631, 1.442695
    %v2633 = vpow.pop %v2632
    %v2634 = vadd.f32 %v2633, 1.0
    %v2635 = vrcp.pop %v2634
    %v2636 = vmul.f32 %v2629, %v2331
    %v2637 = vmul.f32 %v2624, %v2630
    %v2638 = vadd.f32 %v2636, %v2637
    %v2639 = vtanh.pop %v2638
    %v2640 = vmul.f32 %v2635, %v2639
    %v2641 = vpack.c.bf16 %v2640, %v2640
    %s2642 = scalar_lea.vmem [#allocation11], 24
    %2643 = vst [vmem:[%s2642] sm:$0xf] %v2641
    %s2644 = scalar_lea.vmem [#allocation4], 224
    %v2645 = vld [vmem:[%s2644] sm:$0xff]
    %v2646 = vld [vmem:[%s2644 + $0x8] sm:$0xff]
    %v2647 = vld [vmem:[%s2644 + $0x10] sm:$0xff]
    %v2648 = vld [vmem:[%s2644 + $0x18] sm:$0xff]
    %v2649 = vld [vmem:[#allocation10] sm:$0xff]
    %v2650 = vld [vmem:[#allocation10 + $0x8] sm:$0xff]
    %v2651 = vld [vmem:[#allocation10 + $0x10] sm:$0xff]
    %v2652 = vld [vmem:[#allocation10 + $0x18] sm:$0xff]
    %v2653 = vld [vmem:[#allocation10 + $0x20] sm:$0xff]
    %v2654 = vld [vmem:[#allocation10 + $0x28] sm:$0xff]
    %v2655 = vld [vmem:[#allocation10 + $0x30] sm:$0xff]
    %v2656 = vld [vmem:[#allocation10 + $0x38] sm:$0xff]
    %v2657 = vld [vmem:[#allocation10 + $0x40] sm:$0xff]
    %v2658 = vld [vmem:[#allocation10 + $0x48] sm:$0xff]
    %v2659 = vld [vmem:[#allocation10 + $0x50] sm:$0xff]
    %v2660 = vld [vmem:[#allocation10 + $0x58] sm:$0xff]
    %v2661 = vld [vmem:[#allocation10 + $0x60] sm:$0xff]
    %v2662 = vld [vmem:[#allocation10 + $0x68] sm:$0xff]
    %v2663 = vld [vmem:[#allocation10 + $0x70] sm:$0xff]
    %v2664 = vld [vmem:[#allocation10 + $0x78] sm:$0xff]
    %v2665 = vld [vmem:[#allocation10 + $0x80] sm:$0xff]
    %v2666 = vld [vmem:[#allocation10 + $0x88] sm:$0xff]
    %v2667 = vld [vmem:[#allocation10 + $0x90] sm:$0xff]
    %v2668 = vld [vmem:[#allocation10 + $0x98] sm:$0xff]
    %v2669 = vld [vmem:[#allocation10 + $0xa0] sm:$0xff]
    %v2670 = vld [vmem:[#allocation10 + $0xa8] sm:$0xff]
    %v2671 = vld [vmem:[#allocation10 + $0xb0] sm:$0xff]
    %v2672 = vld [vmem:[#allocation10 + $0xb8] sm:$0xff]
    %v2673 = vld [vmem:[#allocation10 + $0xc0] sm:$0xff]
    %v2674 = vld [vmem:[#allocation10 + $0xc8] sm:$0xff]
    %v2675 = vld [vmem:[#allocation10 + $0xd0] sm:$0xff]
    %v2676 = vld [vmem:[#allocation10 + $0xd8] sm:$0xff]
    %v2677 = vld [vmem:[#allocation10 + $0xe0] sm:$0xff]
    %v2678 = vld [vmem:[#allocation10 + $0xe8] sm:$0xff]
    %v2679 = vld [vmem:[#allocation10 + $0xf0] sm:$0xff]
    %v2680 = vld [vmem:[#allocation10 + $0xf8] sm:$0xff]
    %v2713 = vunpack.c.l.b16 %v2649
    %v2714 = vunpack.c.h.b16 %v2649
    %v2715 = vunpack.c.l.b16 %v2650
    %v2716 = vunpack.c.h.b16 %v2650
    %v2717 = vunpack.c.l.b16 %v2651
    %v2718 = vunpack.c.h.b16 %v2651
    %v2719 = vunpack.c.l.b16 %v2652
    %v2720 = vunpack.c.h.b16 %v2652
    %v2721 = vunpack.c.l.b16 %v2653
    %v2722 = vunpack.c.h.b16 %v2653
    %v2723 = vunpack.c.l.b16 %v2654
    %v2724 = vunpack.c.h.b16 %v2654
    %v2725 = vunpack.c.l.b16 %v2655
    %v2726 = vunpack.c.h.b16 %v2655
    %v2727 = vunpack.c.l.b16 %v2656
    %v2728 = vunpack.c.h.b16 %v2656
    %v2729 = vunpack.c.l.b16 %v2657
    %v2730 = vunpack.c.h.b16 %v2657
    %v2731 = vunpack.c.l.b16 %v2658
    %v2732 = vunpack.c.h.b16 %v2658
    %v2733 = vunpack.c.l.b16 %v2659
    %v2734 = vunpack.c.h.b16 %v2659
    %v2735 = vunpack.c.l.b16 %v2660
    %v2736 = vunpack.c.h.b16 %v2660
    %v2737 = vunpack.c.l.b16 %v2661
    %v2738 = vunpack.c.h.b16 %v2661
    %v2739 = vunpack.c.l.b16 %v2662
    %v2740 = vunpack.c.h.b16 %v2662
    %v2741 = vunpack.c.l.b16 %v2663
    %v2742 = vunpack.c.h.b16 %v2663
    %v2743 = vunpack.c.l.b16 %v2664
    %v2744 = vunpack.c.h.b16 %v2664
    %v2745 = vunpack.c.l.b16 %v2665
    %v2746 = vunpack.c.h.b16 %v2665
    %v2747 = vunpack.c.l.b16 %v2666
    %v2748 = vunpack.c.h.b16 %v2666
    %v2749 = vunpack.c.l.b16 %v2667
    %v2750 = vunpack.c.h.b16 %v2667
    %v2751 = vunpack.c.l.b16 %v2668
    %v2752 = vunpack.c.h.b16 %v2668
    %v2753 = vunpack.c.l.b16 %v2669
    %v2754 = vunpack.c.h.b16 %v2669
    %v2755 = vunpack.c.l.b16 %v2670
    %v2756 = vunpack.c.h.b16 %v2670
    %v2757 = vunpack.c.l.b16 %v2671
    %v2758 = vunpack.c.h.b16 %v2671
    %v2759 = vunpack.c.l.b16 %v2672
    %v2760 = vunpack.c.h.b16 %v2672
    %v2761 = vunpack.c.l.b16 %v2673
    %v2762 = vunpack.c.h.b16 %v2673
    %v2763 = vunpack.c.l.b16 %v2674
    %v2764 = vunpack.c.h.b16 %v2674
    %v2765 = vunpack.c.l.b16 %v2675
    %v2766 = vunpack.c.h.b16 %v2675
    %v2767 = vunpack.c.l.b16 %v2676
    %v2768 = vunpack.c.h.b16 %v2676
    %v2769 = vunpack.c.l.b16 %v2677
    %v2770 = vunpack.c.h.b16 %v2677
    %v2771 = vunpack.c.l.b16 %v2678
    %v2772 = vunpack.c.h.b16 %v2678
    %v2773 = vunpack.c.l.b16 %v2679
    %v2774 = vunpack.c.h.b16 %v2679
    %v2775 = vunpack.c.l.b16 %v2680
    %v2776 = vunpack.c.h.b16 %v2680
    %v2777 = vpack.c.b16 %v2717, %v2713
    %v2778 = vpack.c.b16 %v2718, %v2714
    %v2779 = vpack.c.b16 %v2719, %v2715
    %v2780 = vpack.c.b16 %v2720, %v2716
    %v2781 = vpack.c.b16 %v2725, %v2721
    %v2782 = vpack.c.b16 %v2726, %v2722
    %v2783 = vpack.c.b16 %v2727, %v2723
    %v2784 = vpack.c.b16 %v2728, %v2724
    %v2785 = vpack.c.b16 %v2733, %v2729
    %v2786 = vpack.c.b16 %v2734, %v2730
    %v2787 = vpack.c.b16 %v2735, %v2731
    %v2788 = vpack.c.b16 %v2736, %v2732
    %v2789 = vpack.c.b16 %v2741, %v2737
    %v2790 = vpack.c.b16 %v2742, %v2738
    %v2791 = vpack.c.b16 %v2743, %v2739
    %v2792 = vpack.c.b16 %v2744, %v2740
    %v2793 = vpack.c.b16 %v2749, %v2745
    %v2794 = vpack.c.b16 %v2750, %v2746
    %v2795 = vpack.c.b16 %v2751, %v2747
    %v2796 = vpack.c.b16 %v2752, %v2748
    %v2797 = vpack.c.b16 %v2757, %v2753
    %v2798 = vpack.c.b16 %v2758, %v2754
    %v2799 = vpack.c.b16 %v2759, %v2755
    %v2800 = vpack.c.b16 %v2760, %v2756
    %v2801 = vpack.c.b16 %v2765, %v2761
    %v2802 = vpack.c.b16 %v2766, %v2762
    %v2803 = vpack.c.b16 %v2767, %v2763
    %v2804 = vpack.c.b16 %v2768, %v2764
    %v2805 = vpack.c.b16 %v2773, %v2769
    %v2806 = vpack.c.b16 %v2774, %v2770
    %v2807 = vpack.c.b16 %v2775, %v2771
    %v2808 = vpack.c.b16 %v2776, %v2772
    %2841 = vmatprep.subr.bf16.mxu0 %v2778
    %2842 = vmatpush1.bf16.msra.mxu0 %v2777
    %2843 = vmatprep.subr.bf16.mxu0 %v2782
    %2844 = vmatpush1.bf16.msra.mxu0 %v2781
    %2845 = vmatprep.subr.bf16.mxu0 %v2786
    %2846 = vmatpush1.bf16.msra.mxu0 %v2785
    %2847 = vmatprep.subr.bf16.mxu0 %v2790
    %2848 = vmatpush1.bf16.msra.mxu0 %v2789
    %2849 = vmatprep.subr.bf16.mxu0 %v2794
    %2850 = vmatpush1.bf16.msra.mxu0 %v2793
    %2851 = vmatprep.subr.bf16.mxu0 %v2798
    %2852 = vmatpush1.bf16.msra.mxu0 %v2797
    %2853 = vmatprep.subr.bf16.mxu0 %v2802
    %2854 = vmatpush1.bf16.msra.mxu0 %v2801
    %2855 = vmatprep.subr.bf16.mxu0 %v2806
    %2856 = vmatpush1.bf16.msra.mxu0 %v2805
    %2857 = vmatprep.subr.bf16.mxu0 0
    %2858 = vmatpush1.bf16.msra.mxu0 0
    %2859 = vmatprep.subr.bf16.mxu0 0
    %2860 = vmatpush1.bf16.msra.mxu0 0
    %2861 = vmatprep.subr.bf16.mxu0 0
    %2862 = vmatpush1.bf16.msra.mxu0 0
    %2863 = vmatprep.subr.bf16.mxu0 0
    %2864 = vmatpush1.bf16.msra.mxu0 0
    %2865 = vmatprep.subr.bf16.mxu0 0
    %2866 = vmatpush1.bf16.msra.mxu0 0
    %2867 = vmatprep.subr.bf16.mxu0 0
    %2868 = vmatpush1.bf16.msra.mxu0 0
    %2869 = vmatprep.subr.bf16.mxu0 0
    %2870 = vmatpush1.bf16.msra.mxu0 0
    %2871 = vmatprep.subr.bf16.mxu0 0
    %2872 = vmatpush1.bf16.msra.mxu0 0
    %2873 = vmatprep.mubr.bf16.mxu0 0
    %2874 = vmatmul.mubr.bf16.gmra.mrb[0].mxu0 %v2641
    %v2875 = vpop.f32.mrb[0].mxu0
    %v2876 = vadd.f32 0.0, %v2875
    %v2877 = vpop.f32.mrb[0].mxu0
    %v2878 = vadd.f32 0.0, %v2877
    %v2879 = vpop.f32.mrb[0].mxu0
    %v2880 = vpop.f32.mrb[0].mxu0
    %2881 = vdwg.mxu0
    %2882 = vmatprep.subr.bf16.mxu0 %v2780
    %2883 = vmatpush1.bf16.msra.mxu0 %v2779
    %2884 = vmatprep.subr.bf16.mxu0 %v2784
    %2885 = vmatpush1.bf16.msra.mxu0 %v2783
    %2886 = vmatprep.subr.bf16.mxu0 %v2788
    %2887 = vmatpush1.bf16.msra.mxu0 %v2787
    %2888 = vmatprep.subr.bf16.mxu0 %v2792
    %2889 = vmatpush1.bf16.msra.mxu0 %v2791
    %2890 = vmatprep.subr.bf16.mxu0 %v2796
    %2891 = vmatpush1.bf16.msra.mxu0 %v2795
    %2892 = vmatprep.subr.bf16.mxu0 %v2800
    %2893 = vmatpush1.bf16.msra.mxu0 %v2799
    %2894 = vmatprep.subr.bf16.mxu0 %v2804
    %2895 = vmatpush1.bf16.msra.mxu0 %v2803
    %2896 = vmatprep.subr.bf16.mxu0 %v2808
    %2897 = vmatpush1.bf16.msra.mxu0 %v2807
    %2898 = vmatprep.subr.bf16.mxu0 0
    %2899 = vmatpush1.bf16.msra.mxu0 0
    %2900 = vmatprep.subr.bf16.mxu0 0
    %2901 = vmatpush1.bf16.msra.mxu0 0
    %2902 = vmatprep.subr.bf16.mxu0 0
    %2903 = vmatpush1.bf16.msra.mxu0 0
    %2904 = vmatprep.subr.bf16.mxu0 0
    %2905 = vmatpush1.bf16.msra.mxu0 0
    %2906 = vmatprep.subr.bf16.mxu0 0
    %2907 = vmatpush1.bf16.msra.mxu0 0
    %2908 = vmatprep.subr.bf16.mxu0 0
    %2909 = vmatpush1.bf16.msra.mxu0 0
    %2910 = vmatprep.subr.bf16.mxu0 0
    %2911 = vmatpush1.bf16.msra.mxu0 0
    %2912 = vmatprep.subr.bf16.mxu0 0
    %2913 = vmatpush1.bf16.msra.mxu0 0
    %2914 = vmatprep.mubr.bf16.mxu0 0
    %2915 = vmatmul.mubr.bf16.gmra.mrb[0].mxu0 %v2641
    %v2916 = vpop.f32.mrb[0].mxu0
    %v2917 = vadd.f32 0.0, %v2916
    %v2918 = vpop.f32.mrb[0].mxu0
    %v2919 = vadd.f32 0.0, %v2918
    %v2920 = vpop.f32.mrb[0].mxu0
    %v2921 = vpop.f32.mrb[0].mxu0
    %2922 = vdwg.mxu0
    %v2923 = vadd.f32 %v2645, %v2876
    %v2924 = vadd.f32 %v2646, %v2878
    %v2925 = vadd.f32 %v2647, %v2917
    %v2926 = vadd.f32 %v2648, %v2919
    %v2927 = vsub.f32 0.0, %v2923
    %v2928 = vmul.f32 %v2927, 1.442695
    %v2929 = vpow.pop %v2928
    %v2930 = vadd.f32 %v2929, 1.0
    %v2931 = vrcp.pop %v2930
    %v2932 = vsub.f32 0.0, %v2924
    %v2933 = vmul.f32 %v2932, 1.442695
    %v2934 = vpow.pop %v2933
    %v2935 = vadd.f32 %v2934, 1.0
    %v2936 = vrcp.pop %v2935
    %v2937 = vtanh.pop %v2925
    %v2938 = vsub.f32 0.0, %v2926
    %v2939 = vmul.f32 %v2938, 1.442695
    %v2940 = vpow.pop %v2939
    %v2941 = vadd.f32 %v2940, 1.0
    %v2942 = vrcp.pop %v2941
    %v2943 = vmul.f32 %v2936, %v2638
    %v2944 = vmul.f32 %v2931, %v2937
    %v2945 = vadd.f32 %v2943, %v2944
    %v2946 = vtanh.pop %v2945
    %v2947 = vmul.f32 %v2942, %v2946
    %v2948 = vpack.c.bf16 %v2947, %v2947
    %s2949 = scalar_lea.vmem [#allocation11], 28
    %2950 = vst [vmem:[%s2949] sm:$0xf] %v2948
    %2951 = vst [vmem:[#allocation2] sm:$0xff] %v2947
    %2952 = vst [vmem:[#allocation3] sm:$0xff] %v2945
    // Predicated region
    $region34: #{tpu_custom_call.1} parent=1 // pred_check
      %p2953 = pneg %p64
    $region35: #{tpu_custom_call.1} parent=1 // pred_check_branch
      %2955 = sbr.rel (%p2953) target = $region37
    $region36: #{tpu_custom_call.1} parent=1 // pred_region
      %2956 = vst [vmem:[#allocation12] sm:$0xff] %v2947
      %2957 = vst [vmem:[#allocation14] sm:$0xff] %v2945
    $region37: #{tpu_custom_call.1} parent=1 // pred_fallthru
      _
    // Predicated region
    $region38: #{tpu_custom_call.1} parent=1 // pred_check
      _
    $region39: #{tpu_custom_call.1} parent=1 // pred_check_branch
      %2959 = sbr.rel (0) target = $region41
    $region40: #{tpu_custom_call.1} parent=1 // pred_region
      %s2961 = ssub.s32 512, 512
      %2962 = vsyncadd [#allocation7], %s2961
      %s2963 = sshll.u32 [#allocation11], 4
      %s2964 = int_to_ptr.vmem [resolvable:$true] %s2963
      %2969 = dma.vmem_to_hbm [thread:$0]  %s2964, 512, %s4, [#allocation7], 64, 64, 4
    $region41: #{tpu_custom_call.1} parent=1 // pred_fallthru
      _
    // Predicated region
    $region42: #{tpu_custom_call.1} parent=1 // pred_check
      _
    $region43: #{tpu_custom_call.1} parent=1 // pred_check_branch
      %2971 = sbr.rel (0) target = $region45
    $region44: #{tpu_custom_call.1} parent=1 // pred_region
      %s2973 = ssub.s32 128, 128
      %2974 = vsyncadd [#allocation13], %s2973
      %s2976 = sshll.u32 [#allocation12], 4
      %s2977 = int_to_ptr.vmem [resolvable:$true] %s2976
      %2979 = dma.vmem_to_hbm [thread:$0]  %s2977, 128, %s5, [#allocation13]
    $region45: #{tpu_custom_call.1} parent=1 // pred_fallthru
      _
    // Predicated region
    $region46: #{tpu_custom_call.1} parent=1 // pred_check
      _
    $region47: #{tpu_custom_call.1} parent=1 // pred_check_branch
      %2981 = sbr.rel (0) target = $region49
    $region48: #{tpu_custom_call.1} parent=1 // pred_region
      %s2983 = ssub.s32 128, 128
      %2984 = vsyncadd [#allocation13], %s2983
      %s2986 = sshll.u32 [#allocation14], 4
      %s2987 = int_to_ptr.vmem [resolvable:$true] %s2986
      %2989 = dma.vmem_to_hbm [thread:$0]  %s2987, 128, %s6, [#allocation13]
    $region49: #{tpu_custom_call.1} parent=1 // pred_fallthru
      _
    // Predicated region
    $region50: #{tpu_custom_call.1} parent=1 // pred_check
      _
    $region51: #{tpu_custom_call.1} parent=1 // pred_check_branch
      %2991 = sbr.rel (0) target = $region53
    $region52: #{tpu_custom_call.1} parent=1 // pred_region
      %2992 = dma.done [#allocation7], 512
    $region53: #{tpu_custom_call.1} parent=1 // pred_fallthru
      _
    // Predicated region
    $region54: #{tpu_custom_call.1} parent=1 // pred_check
      _
    $region55: #{tpu_custom_call.1} parent=1 // pred_check_branch
      %2994 = sbr.rel (0) target = $region57
    $region56: #{tpu_custom_call.1} parent=1 // pred_region
      %2995 = dma.done [#allocation13], 128
    $region57: #{tpu_custom_call.1} parent=1 // pred_fallthru
      _
    // Predicated region
    $region58: #{tpu_custom_call.1} parent=1 // pred_check
      _
    $region59: #{tpu_custom_call.1} parent=1 // pred_check_branch
      %2997 = sbr.rel (0) target = $region61
    $region60: #{tpu_custom_call.1} parent=1 // pred_region
      %2998 = dma.done [#allocation13], 128
    $region61: #{tpu_custom_call.1} parent=1 // pred_fallthru
      _
    %2999 = vsyncpa [#allocation6], 1
    %3000 = vsyncpa [#allocation9], 1
    %3001 = vsyncpa [#allocation7], 1
    %3002 = vsyncpa [#allocation13], 1

// kernel: tpu_custom_call.1
$region0: #{tpu_custom_call.1}
  #allocation0 [shape = 'u32[]', space=smem, size = 0x4, offset = 0x4, fixed_abs, tag = 'smem constant byte address 0x4 - core index']
  #allocation1 [shape = 'u32[144,128]{1,0:T(1,128)}', space=vmem, size = 0x12000, scoped, tag = 'internal scratch']
  #allocation2 [shape = 'f32[8,128]{1,0:T(8,128)}', space=vmem, size = 0x1000, scoped, tag = 'scratch operand']
  #allocation3 [shape = 'f32[8,128]{1,0:T(8,128)}', space=vmem, size = 0x1000, scoped, tag = 'scratch operand']
  #allocation4 [shape = 'f32[8,8,512]{2,1,0:T(8,128)}', space=vmem, size = 0x20000, scoped, tag = 'scratch operand']
  %s0 = inlined_call_operand.hbm [shape: bf16[8,8,128], index: 0, kind: input, shape index: {}]
  %s1 = inlined_call_operand.hbm [shape: bf16[128,512], index: 1, kind: input, shape index: {}]
  %s2 = inlined_call_operand.hbm [shape: bf16[128,512], index: 2, kind: input, shape index: {}]
  %s3 = inlined_call_operand.vmem [shape: f32[1,512], index: 3, kind: input, shape index: {}]
  %s4 = inlined_call_operand.hbm [shape: bf16[8,8,128], index: 4, kind: output, shape index: {0}]
  %s5 = inlined_call_operand.hbm [shape: f32[8,128], index: 5, kind: output, shape index: {1}]
  %s6 = inlined_call_operand.hbm [shape: f32[8,128], index: 6, kind: output, shape index: {2}]
  %7 = xla_tuple %s4, %s5, %s6
  %s8 = sld [smem:[#allocation0]]
  $region62: #{tpu_custom_call.1} parent=0
    _
  %s10 = ssub.s32 1, %s8
  %s11 = scalar_select 0, %s10, %s8
  $region1: #{tpu_custom_call.1} parent=0
    #allocation5 [shape = 'u8[16384]{0}', space=vmem, size = 0x4000, scoped, tag = 'input window, operand 0, single buffered']
    #allocation6 [shape = 's32[1]{0}', space=sflag, size = 0x4, scoped, tag = 'scoped memory for tpu_custom_call.1']
    #allocation7 [shape = 's32[1]{0}', space=sflag, size = 0x4, scoped, tag = 'scoped memory for tpu_custom_call.1']
    #allocation8 [shape = 'u8[131072]{0}', space=vmem, size = 0x20000, scoped, tag = 'input window, operand 1, single buffered']
    #allocation9 [shape = 's32[1]{0}', space=sflag, size = 0x4, scoped, tag = 'scoped memory for tpu_custom_call.1']
    #allocation10 [shape = 'u8[131072]{0}', space=vmem, size = 0x20000, scoped, tag = 'input window, operand 2, single buffered']
    #allocation11 [shape = 'u8[16384]{0}', space=vmem, size = 0x4000, scoped, tag = 'output window, operand 0, single buffered']
    #allocation12 [shape = 'u8[4096]{0}', space=vmem, size = 0x1000, scoped, tag = 'output window, operand 1, single buffered']
    #allocation13 [shape = 's32[1]{0}', space=sflag, size = 0x4, scoped, tag = 'scoped memory for tpu_custom_call.1']
    #allocation14 [shape = 'u8[4096]{0}', space=vmem, size = 0x1000, scoped, tag = 'output window, operand 2, single buffered']
    %12 = vsyncpa [#allocation6], 0
    %13 = vsyncpa [#allocation9], 0
    %14 = vsyncpa [#allocation7], 0
    %15 = vsyncpa [#allocation13], 0
    // Predicated region
    $region2: #{tpu_custom_call.1} parent=1 // pred_check
      _
    $region3: #{tpu_custom_call.1} parent=1 // pred_check_branch
      %17 = sbr.rel (0) target = $region5
    $region4: #{tpu_custom_call.1} parent=1 // pred_region
      %s19 = ssub.s32 512, 512
      %20 = vsyncadd [#allocation6], %s19
      %s21 = sshll.u32 [#allocation5], 4
      %s22 = int_to_ptr.vmem [resolvable:$true] %s21
      %27 = dma.hbm_to_vmem [thread:$0]  %s0, 512, %s22, [#allocation6], 64, 64, 4
    $region5: #{tpu_custom_call.1} parent=1 // pred_fallthru
      _
    // Predicated region
    $region6: #{tpu_custom_call.1} parent=1 // pred_check
      _
    $region7: #{tpu_custom_call.1} parent=1 // pred_check_branch
      %29 = sbr.rel (0) target = $region9
    $region8: #{tpu_custom_call.1} parent=1 // pred_region
      %s31 = ssub.s32 4096, 4096
      %32 = vsyncadd [#allocation9], %s31
      %s33 = sshll.u32 [#allocation8], 4
      %s34 = int_to_ptr.vmem [resolvable:$true] %s33
      %39 = dma.hbm_to_vmem [thread:$0]  %s1, 4096, %s34, [#allocation9], 256, 256, 16
    $region9: #{tpu_custom_call.1} parent=1 // pred_fallthru
      _
    // Predicated region
    $region10: #{tpu_custom_call.1} parent=1 // pred_check
      _
    $region11: #{tpu_custom_call.1} parent=1 // pred_check_branch
      %41 = sbr.rel (0) target = $region13
    $region12: #{tpu_custom_call.1} parent=1 // pred_region
      %s43 = ssub.s32 4096, 4096
      %44 = vsyncadd [#allocation9], %s43
      %s45 = sshll.u32 [#allocation10], 4
      %s46 = int_to_ptr.vmem [resolvable:$true] %s45
      %51 = dma.hbm_to_vmem [thread:$0]  %s2, 4096, %s46, [#allocation9], 256, 256, 16
    $region13: #{tpu_custom_call.1} parent=1 // pred_fallthru
      _
    // Predicated region
    $region14: #{tpu_custom_call.1} parent=1 // pred_check
      _
    $region15: #{tpu_custom_call.1} parent=1 // pred_check_branch
      %53 = sbr.rel (0) target = $region17
    $region16: #{tpu_custom_call.1} parent=1 // pred_region
      _
    $region17: #{tpu_custom_call.1} parent=1 // pred_fallthru
      _
    // Predicated region
    $region18: #{tpu_custom_call.1} parent=1 // pred_check
      _
    $region19: #{tpu_custom_call.1} parent=1 // pred_check_branch
      %55 = sbr.rel (0) target = $region21
    $region20: #{tpu_custom_call.1} parent=1 // pred_region
      %56 = dma.done [#allocation6], 512
    $region21: #{tpu_custom_call.1} parent=1 // pred_fallthru
      _
    // Predicated region
    $region22: #{tpu_custom_call.1} parent=1 // pred_check
      _
    $region23: #{tpu_custom_call.1} parent=1 // pred_check_branch
      %58 = sbr.rel (0) target = $region25
    $region24: #{tpu_custom_call.1} parent=1 // pred_region
      %59 = dma.done [#allocation9], 4096
    $region25: #{tpu_custom_call.1} parent=1 // pred_fallthru
      _
    // Predicated region
    $region26: #{tpu_custom_call.1} parent=1 // pred_check
      _
    $region27: #{tpu_custom_call.1} parent=1 // pred_check_branch
      %61 = sbr.rel (0) target = $region29
    $region28: #{tpu_custom_call.1} parent=1 // pred_region
      %62 = dma.done [#allocation9], 4096
    $region29: #{tpu_custom_call.1} parent=1 // pred_fallthru
      _
    %p64 = scmp.eq.s32.totalorder 0, 0
    // Predicated region
    $region30: #{tpu_custom_call.1} parent=1 // pred_check
      %p65 = pneg %p64
    $region31: #{tpu_custom_call.1} parent=1 // pred_check_branch
      %67 = sbr.rel (%p65) target = $region33
    $region32: #{tpu_custom_call.1} parent=1 // pred_region
      %68 = vst [vmem:[#allocation2] sm:$0xff] 0.0
      %69 = vst [vmem:[#allocation3] sm:$0xff] 0.0
    $region33: #{tpu_custom_call.1} parent=1 // pred_fallthru
      _
    %v70 = vld [vmem:[#allocation5] sm:$0xf]
    %v71 = vld [vmem:[#allocation5 + $0x4] sm:$0xf]
    %v72 = vld [vmem:[#allocation5 + $0x8] sm:$0xf]
    %v73 = vld [vmem:[#allocation5 + $0xc] sm:$0xf]
    %v74 = vld [vmem:[#allocation5 + $0x10] sm:$0xf]
    %v75 = vld [vmem:[#allocation5 + $0x14] sm:$0xf]
    %v76 = vld [vmem:[#allocation5 + $0x18] sm:$0xf]
    %v77 = vld [vmem:[#allocation5 + $0x1c] sm:$0xf]
    %v78 = vld [vmem:[#allocation8] sm:$0xff]
    %v79 = vld [vmem:[#allocation8 + $0x8] sm:$0xff]
    %v80 = vld [vmem:[#allocation8 + $0x10] sm:$0xff]
    %v81 = vld [vmem:[#allocation8 + $0x18] sm:$0xff]
    %v82 = vld [vmem:[#allocation8 + $0x20] sm:$0xff]
    %v83 = vld [vmem:[#allocation8 + $0x28] sm:$0xff]
    %v84 = vld [vmem:[#allocation8 + $0x30] sm:$0xff]
    %v85 = vld [vmem:[#allocation8 + $0x38] sm:$0xff]
    %v86 = vld [vmem:[#allocation8 + $0x40] sm:$0xff]
    %v87 = vld [vmem:[#allocation8 + $0x48] sm:$0xff]
    %v88 = vld [vmem:[#allocation8 + $0x50] sm:$0xff]
    %v89 = vld [vmem:[#allocation8 + $0x58] sm:$0xff]
    %v90 = vld [vmem:[#allocation8 + $0x60] sm:$0xff]
    %v91 = vld [vmem:[#allocation8 + $0x68] sm:$0xff]
    %v92 = vld [vmem:[#allocation8 + $0x70] sm:$0xff]
    %v93 = vld [vmem:[#allocation8 + $0x78] sm:$0xff]
    %v94 = vld [vmem:[#allocation8 + $0x80] sm:$0xff]
    %v95 = vld [vmem:[#allocation8 + $0x88] sm:$0xff]
    %v96 = vld [vmem:[#allocation8 + $0x90] sm:$0xff]
    %v97 = vld [vmem:[#allocation8 + $0x98] sm:$0xff]
    %v98 = vld [vmem:[#allocation8 + $0xa0] sm:$0xff]
    %v99 = vld [vmem:[#allocation8 + $0xa8] sm:$0xff]
    %v100 = vld [vmem:[#allocation8 + $0xb0] sm:$0xff]
    %v101 = vld [vmem:[#allocation8 + $0xb8] sm:$0xff]
    %v102 = vld [vmem:[#allocation8 + $0xc0] sm:$0xff]
    %v103 = vld [vmem:[#allocation8 + $0xc8] sm:$0xff]
    %v104 = vld [vmem:[#allocation8 + $0xd0] sm:$0xff]
    %v105 = vld [vmem:[#allocation8 + $0xd8] sm:$0xff]
    %v106 = vld [vmem:[#allocation8 + $0xe0] sm:$0xff]
    %v107 = vld [vmem:[#allocation8 + $0xe8] sm:$0xff]
    %v108 = vld [vmem:[#allocation8 + $0xf0] sm:$0xff]
    %v109 = vld [vmem:[#allocation8 + $0xf8] sm:$0xff]
    %v110 = vld [vmem:[%s3] sm:$0xf]
    %v112 = vlaneseq
    %v113 = vshrl.u32 %v112, 7
    %v114 = vsub.s32 0, %v113
    %v115 = vrot.slane %v110, %v114
    %v116 = vlaneseq
    %v117 = vshrl.u32 %v116, 7
    %v118 = vsub.s32 1, %v117
    %v119 = vrot.slane %v110, %v118
    %v120 = vlaneseq
    %v121 = vshrl.u32 %v120, 7
    %v122 = vsub.s32 2, %v121
    %v123 = vrot.slane %v110, %v122
    %v124 = vlaneseq
    %v125 = vshrl.u32 %v124, 7
    %v126 = vsub.s32 3, %v125
    %v127 = vrot.slane %v110, %v126
    %v140 = vunpack.c.l.b16 %v70
    %v141 = vunpack.c.l.b16 %v71
    %v142 = vunpack.c.l.b16 %v72
    %v143 = vunpack.c.l.b16 %v73
    %v144 = vunpack.c.l.b16 %v74
    %v145 = vunpack.c.l.b16 %v75
    %v146 = vunpack.c.l.b16 %v76
    %v147 = vunpack.c.l.b16 %v77
    %v148 = vpack.c.b16 %v141, %v140
    %v149 = vpack.c.b16 %v143, %v142
    %v150 = vpack.c.b16 %v145, %v144
    %v151 = vpack.c.b16 %v147, %v146
    %v188 = vunpack.c.l.b16 %v78
    %v189 = vunpack.c.h.b16 %v78
    %v190 = vunpack.c.l.b16 %v79
    %v191 = vunpack.c.h.b16 %v79
    %v192 = vunpack.c.l.b16 %v80
    %v193 = vunpack.c.h.b16 %v80
    %v194 = vunpack.c.l.b16 %v81
    %v195 = vunpack.c.h.b16 %v81
    %v196 = vunpack.c.l.b16 %v82
    %v197 = vunpack.c.h.b16 %v82
    %v198 = vunpack.c.l.b16 %v83
    %v199 = vunpack.c.h.b16 %v83
    %v200 = vunpack.c.l.b16 %v84
    %v201 = vunpack.c.h.b16 %v84
    %v202 = vunpack.c.l.b16 %v85
    %v203 = vunpack.c.h.b16 %v85
    %v204 = vunpack.c.l.b16 %v86
    %v205 = vunpack.c.h.b16 %v86
    %v206 = vunpack.c.l.b16 %v87
    %v207 = vunpack.c.h.b16 %v87
    %v208 = vunpack.c.l.b16 %v88
    %v209 = vunpack.c.h.b16 %v88
    %v210 = vunpack.c.l.b16 %v89
    %v211 = vunpack.c.h.b16 %v89
    %v212 = vunpack.c.l.b16 %v90
    %v213 = vunpack.c.h.b16 %v90
    %v214 = vunpack.c.l.b16 %v91
    %v215 = vunpack.c.h.b16 %v91
    %v216 = vunpack.c.l.b16 %v92
    %v217 = vunpack.c.h.b16 %v92
    %v218 = vunpack.c.l.b16 %v93
    %v219 = vunpack.c.h.b16 %v93
    %v220 = vunpack.c.l.b16 %v94
    %v221 = vunpack.c.h.b16 %v94
    %v222 = vunpack.c.l.b16 %v95
    %v223 = vunpack.c.h.b16 %v95
    %v224 = vunpack.c.l.b16 %v96
    %v225 = vunpack.c.h.b16 %v96
    %v226 = vunpack.c.l.b16 %v97
    %v227 = vunpack.c.h.b16 %v97
    %v228 = vunpack.c.l.b16 %v98
    %v229 = vunpack.c.h.b16 %v98
    %v230 = vunpack.c.l.b16 %v99
    %v231 = vunpack.c.h.b16 %v99
    %v232 = vunpack.c.l.b16 %v100
    %v233 = vunpack.c.h.b16 %v100
    %v234 = vunpack.c.l.b16 %v101
    %v235 = vunpack.c.h.b16 %v101
    %v236 = vunpack.c.l.b16 %v102
    %v237 = vunpack.c.h.b16 %v102
    %v238 = vunpack.c.l.b16 %v103
    %v239 = vunpack.c.h.b16 %v103
    %v240 = vunpack.c.l.b16 %v104
    %v241 = vunpack.c.h.b16 %v104
    %v242 = vunpack.c.l.b16 %v105
    %v243 = vunpack.c.h.b16 %v105
    %v244 = vunpack.c.l.b16 %v106
    %v245 = vunpack.c.h.b16 %v106
    %v246 = vunpack.c.l.b16 %v107
    %v247 = vunpack.c.h.b16 %v107
    %v248 = vunpack.c.l.b16 %v108
    %v249 = vunpack.c.h.b16 %v108
    %v250 = vunpack.c.l.b16 %v109
    %v251 = vunpack.c.h.b16 %v109
    %v252 = vpack.c.b16 %v192, %v188
    %v253 = vpack.c.b16 %v193, %v189
    %v254 = vpack.c.b16 %v194, %v190
    %v255 = vpack.c.b16 %v195, %v191
    %v256 = vpack.c.b16 %v200, %v196
    %v257 = vpack.c.b16 %v201, %v197
    %v258 = vpack.c.b16 %v202, %v198
    %v259 = vpack.c.b16 %v203, %v199
    %v260 = vpack.c.b16 %v208, %v204
    %v261 = vpack.c.b16 %v209, %v205
    %v262 = vpack.c.b16 %v210, %v206
    %v263 = vpack.c.b16 %v211, %v207
    %v264 = vpack.c.b16 %v216, %v212
    %v265 = vpack.c.b16 %v217, %v213
    %v266 = vpack.c.b16 %v218, %v214
    %v267 = vpack.c.b16 %v219, %v215
    %v268 = vpack.c.b16 %v224, %v220
    %v269 = vpack.c.b16 %v225, %v221
    %v270 = vpack.c.b16 %v226, %v222
    %v271 = vpack.c.b16 %v227, %v223
    %v272 = vpack.c.b16 %v232, %v228
    %v273 = vpack.c.b16 %v233, %v229
    %v274 = vpack.c.b16 %v234, %v230
    %v275 = vpack.c.b16 %v235, %v231
    %v276 = vpack.c.b16 %v240, %v236
    %v277 = vpack.c.b16 %v241, %v237
    %v278 = vpack.c.b16 %v242, %v238
    %v279 = vpack.c.b16 %v243, %v239
    %v280 = vpack.c.b16 %v248, %v244
    %v281 = vpack.c.b16 %v249, %v245
    %v282 = vpack.c.b16 %v250, %v246
    %v283 = vpack.c.b16 %v251, %v247
    %316 = vmatprep.subr.bf16.mxu0 %v253
    %317 = vmatpush1.bf16.msra.mxu0 %v252
    %318 = vmatprep.subr.bf16.mxu0 %v257
    %319 = vmatpush1.bf16.msra.mxu0 %v256
    %320 = vmatprep.subr.bf16.mxu0 %v261
    %321 = vmatpush1.bf16.msra.mxu0 %v260
    %322 = vmatprep.subr.bf16.mxu0 %v265
    %323 = vmatpush1.bf16.msra.mxu0 %v264
    %324 = vmatprep.subr.bf16.mxu0 %v269
    %325 = vmatpush1.bf16.msra.mxu0 %v268
    %326 = vmatprep.subr.bf16.mxu0 %v273
    %327 = vmatpush1.bf16.msra.mxu0 %v272
    %328 = vmatprep.subr.bf16.mxu0 %v277
    %329 = vmatpush1.bf16.msra.mxu0 %v276
    %330 = vmatprep.subr.bf16.mxu0 %v281
    %331 = vmatpush1.bf16.msra.mxu0 %v280
    %332 = vmatprep.subr.bf16.mxu0 0
    %333 = vmatpush1.bf16.msra.mxu0 0
    %334 = vmatprep.subr.bf16.mxu0 0
    %335 = vmatpush1.bf16.msra.mxu0 0
    %336 = vmatprep.subr.bf16.mxu0 0
    %337 = vmatpush1.bf16.msra.mxu0 0
    %338 = vmatprep.subr.bf16.mxu0 0
    %339 = vmatpush1.bf16.msra.mxu0 0
    %340 = vmatprep.subr.bf16.mxu0 0
    %341 = vmatpush1.bf16.msra.mxu0 0
    %342 = vmatprep.subr.bf16.mxu0 0
    %343 = vmatpush1.bf16.msra.mxu0 0
    %344 = vmatprep.subr.bf16.mxu0 0
    %345 = vmatpush1.bf16.msra.mxu0 0
    %346 = vmatprep.subr.bf16.mxu0 0
    %347 = vmatpush1.bf16.msra.mxu0 0
    %348 = vmatprep.mubr.bf16.mxu0 0
    %349 = vmatmul.mubr.bf16.gmra.mrb[0].mxu0 %v148
    %v350 = vpop.f32.mrb[0].mxu0
    %v351 = vadd.f32 %v115, %v350
    %v352 = vpop.f32.mrb[0].mxu0
    %v353 = vadd.f32 %v119, %v352
    %v354 = vpop.f32.mrb[0].mxu0
    %v355 = vadd.f32 %v115, %v354
    %v356 = vpop.f32.mrb[0].mxu0
    %v357 = vadd.f32 %v119, %v356
    %358 = vmatprep.mubr.bf16.mxu0 0
    %359 = vmatmul.mubr.bf16.gmra.mrb[0].mxu0 %v149
    %v360 = vpop.f32.mrb[0].mxu0
    %v361 = vadd.f32 %v115, %v360
    %v362 = vpop.f32.mrb[0].mxu0
    %v363 = vadd.f32 %v119, %v362
    %v364 = vpop.f32.mrb[0].mxu0
    %v365 = vadd.f32 %v115, %v364
    %v366 = vpop.f32.mrb[0].mxu0
    %v367 = vadd.f32 %v119, %v366
    %368 = vmatprep.mubr.bf16.mxu0 0
    %369 = vmatmul.mubr.bf16.gmra.mrb[0].mxu0 %v150
    %v370 = vpop.f32.mrb[0].mxu0
    %v371 = vadd.f32 %v115, %v370
    %v372 = vpop.f32.mrb[0].mxu0
    %v373 = vadd.f32 %v119, %v372
    %v374 = vpop.f32.mrb[0].mxu0
    %v375 = vadd.f32 %v115, %v374
    %v376 = vpop.f32.mrb[0].mxu0
    %v377 = vadd.f32 %v119, %v376
    %378 = vmatprep.mubr.bf16.mxu0 0
    %379 = vmatmul.mubr.bf16.gmra.mrb[0].mxu0 %v151
    %v380 = vpop.f32.mrb[0].mxu0
    %v381 = vadd.f32 %v115, %v380
    %v382 = vpop.f32.mrb[0].mxu0
    %v383 = vadd.f32 %v119, %v382
    %v384 = vpop.f32.mrb[0].mxu0
    %v385 = vadd.f32 %v115, %v384
    %v386 = vpop.f32.mrb[0].mxu0
    %v387 = vadd.f32 %v119, %v386
    %388 = vdwg.mxu0
    %389 = vmatprep.subr.bf16.mxu0 %v255
    %390 = vmatpush1.bf16.msra.mxu0 %v254
    %391 = vmatprep.subr.bf16.mxu0 %v259
    %392 = vmatpush1.bf16.msra.mxu0 %v258
    %393 = vmatprep.subr.bf16.mxu0 %v263
    %394 = vmatpush1.bf16.msra.mxu0 %v262
    %395 = vmatprep.subr.bf16.mxu0 %v267
    %396 = vmatpush1.bf16.msra.mxu0 %v266
    %397 = vmatprep.subr.bf16.mxu0 %v271
    %398 = vmatpush1.bf16.msra.mxu0 %v270
    %399 = vmatprep.subr.bf16.mxu0 %v275
    %400 = vmatpush1.bf16.msra.mxu0 %v274
    %401 = vmatprep.subr.bf16.mxu0 %v279
    %402 = vmatpush1.bf16.msra.mxu0 %v278
    %403 = vmatprep.subr.bf16.mxu0 %v283
    %404 = vmatpush1.bf16.msra.mxu0 %v282
    %405 = vmatprep.subr.bf16.mxu0 0
    %406 = vmatpush1.bf16.msra.mxu0 0
    %407 = vmatprep.subr.bf16.mxu0 0
    %408 = vmatpush1.bf16.msra.mxu0 0
    %409 = vmatprep.subr.bf16.mxu0 0
    %410 = vmatpush1.bf16.msra.mxu0 0
    %411 = vmatprep.subr.bf16.mxu0 0
    %412 = vmatpush1.bf16.msra.mxu0 0
    %413 = vmatprep.subr.bf16.mxu0 0
    %414 = vmatpush1.bf16.msra.mxu0 0
    %415 = vmatprep.subr.bf16.mxu0 0
    %416 = vmatpush1.bf16.msra.mxu0 0
    %417 = vmatprep.subr.bf16.mxu0 0
    %418 = vmatpush1.bf16.msra.mxu0 0
    %419 = vmatprep.subr.bf16.mxu0 0
    %420 = vmatpush1.bf16.msra.mxu0 0
    %421 = vmatprep.mubr.bf16.mxu0 0
    %422 = vmatmul.mubr.bf16.gmra.mrb[0].mxu0 %v148
    %v423 = vpop.f32.mrb[0].mxu0
    %v424 = vadd.f32 %v123, %v423
    %v425 = vpop.f32.mrb[0].mxu0
    %v426 = vadd.f32 %v127, %v425
    %v427 = vpop.f32.mrb[0].mxu0
    %v428 = vadd.f32 %v123, %v427
    %v429 = vpop.f32.mrb[0].mxu0
    %v430 = vadd.f32 %v127, %v429
    %431 = vmatprep.mubr.bf16.mxu0 0
    %432 = vmatmul.mubr.bf16.gmra.mrb[0].mxu0 %v149
    %v433 = vpop.f32.mrb[0].mxu0
    %v434 = vadd.f32 %v123, %v433
    %v435 = vpop.f32.mrb[0].mxu0
    %v436 = vadd.f32 %v127, %v435
    %v437 = vpop.f32.mrb[0].mxu0
    %v438 = vadd.f32 %v123, %v437
    %v439 = vpop.f32.mrb[0].mxu0
    %v440 = vadd.f32 %v127, %v439
    %441 = vmatprep.mubr.bf16.mxu0 0
    %442 = vmatmul.mubr.bf16.gmra.mrb[0].mxu0 %v150
    %v443 = vpop.f32.mrb[0].mxu0
    %v444 = vadd.f32 %v123, %v443
    %v445 = vpop.f32.mrb[0].mxu0
    %v446 = vadd.f32 %v127, %v445
    %v447 = vpop.f32.mrb[0].mxu0
    %v448 = vadd.f32 %v123, %v447
    %v449 = vpop.f32.mrb[0].mxu0
    %v450 = vadd.f32 %v127, %v449
    %451 = vmatprep.mubr.bf16.mxu0 0
    %452 = vmatmul.mubr.bf16.gmra.mrb[0].mxu0 %v151
    %v453 = vpop.f32.mrb[0].mxu0
    %v454 = vadd.f32 %v123, %v453
    %v455 = vpop.f32.mrb[0].mxu0
    %v456 = vadd.f32 %v127, %v455
    %v457 = vpop.f32.mrb[0].mxu0
    %v458 = vadd.f32 %v123, %v457
    %v459 = vpop.f32.mrb[0].mxu0
    %v460 = vadd.f32 %v127, %v459
    %461 = vdwg.mxu0
    %462 = vst [vmem:[#allocation4] sm:$0xff] %v351
    %463 = vst [vmem:[#allocation4 + $0x8] sm:$0xff] %v353
    %464 = vst [vmem:[#allocation4 + $0x10] sm:$0xff] %v424
    %465 = vst [vmem:[#allocation4 + $0x18] sm:$0xff] %v426
    %466 = vst [vmem:[#allocation4 + $0x20] sm:$0xff] %v355
    %467 = vst [vmem:[#allocation4 + $0x28] sm:$0xff] %v357
    %468 = vst [vmem:[#allocation4 + $0x30] sm:$0xff] %v428
    %469 = vst [vmem:[#allocation4 + $0x38] sm:$0xff] %v430
    %470 = vst [vmem:[#allocation4 + $0x40] sm:$0xff] %v361
    %471 = vst [vmem:[#allocation4 + $0x48] sm:$0xff] %v363
    %472 = vst [vmem:[#allocation4 + $0x50] sm:$0xff] %v434
    %473 = vst [vmem:[#allocation4 + $0x58] sm:$0xff] %v436
    %474 = vst [vmem:[#allocation4 + $0x60] sm:$0xff] %v365
    %475 = vst [vmem:[#allocation4 + $0x68] sm:$0xff] %v367
    %476 = vst [vmem:[#allocation4 + $0x70] sm:$0xff] %v438
    %477 = vst [vmem:[#allocation4 + $0x78] sm:$0xff] %v440
    %478 = vst [vmem:[#allocation4 + $0x80] sm:$0xff] %v371
    %479 = vst [vmem:[#allocation4 + $0x88] sm:$0xff] %v373
    %480 = vst [vmem:[#allocation4 + $0x90] sm:$0xff] %v444
    %481 = vst [vmem:[#allocation4 + $0x98] sm:$0xff] %v446
    %482 = vst [vmem:[#allocation4 + $0xa0] sm:$0xff] %v375
    %483 = vst [vmem:[#allocation4 + $0xa8] sm:$0xff] %v377
    %484 = vst [vmem:[#allocation4 + $0xb0] sm:$0xff] %v448
    %485 = vst [vmem:[#allocation4 + $0xb8] sm:$0xff] %v450
    %486 = vst [vmem:[#allocation4 + $0xc0] sm:$0xff] %v381
    %487 = vst [vmem:[#allocation4 + $0xc8] sm:$0xff] %v383
    %488 = vst [vmem:[#allocation4 + $0xd0] sm:$0xff] %v454
    %489 = vst [vmem:[#allocation4 + $0xd8] sm:$0xff] %v456
    %490 = vst [vmem:[#allocation4 + $0xe0] sm:$0xff] %v385
    %491 = vst [vmem:[#allocation4 + $0xe8] sm:$0xff] %v387
    %492 = vst [vmem:[#allocation4 + $0xf0] sm:$0xff] %v458
    %493 = vst [vmem:[#allocation4 + $0xf8] sm:$0xff] %v460
    %v494 = vld [vmem:[#allocation2] sm:$0xff]
    %v495 = vld [vmem:[#allocation3] sm:$0xff]
    %v496 = vld [vmem:[#allocation4] sm:$0xff]
    %v497 = vld [vmem:[#allocation4 + $0x8] sm:$0xff]
    %v498 = vld [vmem:[#allocation4 + $0x10] sm:$0xff]
    %v499 = vld [vmem:[#allocation4 + $0x18] sm:$0xff]
    %v500 = vpack.c.bf16 %v494, %v494
    %v501 = vld [vmem:[#allocation10] sm:$0xff]
    %v502 = vld [vmem:[#allocation10 + $0x8] sm:$0xff]
    %v503 = vld [vmem:[#allocation10 + $0x10] sm:$0xff]
    %v504 = vld [vmem:[#allocation10 + $0x18] sm:$0xff]
    %v505 = vld [vmem:[#allocation10 + $0x20] sm:$0xff]
    %v506 = vld [vmem:[#allocation10 + $0x28] sm:$0xff]
    %v507 = vld [vmem:[#allocation10 + $0x30] sm:$0xff]
    %v508 = vld [vmem:[#allocation10 + $0x38] sm:$0xff]
    %v509 = vld [vmem:[#allocation10 + $0x40] sm:$0xff]
    %v510 = vld [vmem:[#allocation10 + $0x48] sm:$0xff]
    %v511 = vld [vmem:[#allocation10 + $0x50] sm:$0xff]
    %v512 = vld [vmem:[#allocation10 + $0x58] sm:$0xff]
    %v513 = vld [vmem:[#allocation10 + $0x60] sm:$0xff]
    %v514 = vld [vmem:[#allocation10 + $0x68] sm:$0xff]
    %v515 = vld [vmem:[#allocation10 + $0x70] sm:$0xff]
    %v516 = vld [vmem:[#allocation10 + $0x78] sm:$0xff]
    %v517 = vld [vmem:[#allocation10 + $0x80] sm:$0xff]
    %v518 = vld [vmem:[#allocation10 + $0x88] sm:$0xff]
    %v519 = vld [vmem:[#allocation10 + $0x90] sm:$0xff]
    %v520 = vld [vmem:[#allocation10 + $0x98] sm:$0xff]
    %v521 = vld [vmem:[#allocation10 + $0xa0] sm:$0xff]
    %v522 = vld [vmem:[#allocation10 + $0xa8] sm:$0xff]
    %v523 = vld [vmem:[#allocation10 + $0xb0] sm:$0xff]
    %v524 = vld [vmem:[#allocation10 + $0xb8] sm:$0xff]
    %v525 = vld [vmem:[#allocation10 + $0xc0] sm:$0xff]
    %v526 = vld [vmem:[#allocation10 + $0xc8] sm:$0xff]
    %v527 = vld [vmem:[#allocation10 + $0xd0] sm:$0xff]
    %v528 = vld [vmem:[#allocation10 + $0xd8] sm:$0xff]
    %v529 = vld [vmem:[#allocation10 + $0xe0] sm:$0xff]
    %v530 = vld [vmem:[#allocation10 + $0xe8] sm:$0xff]
    %v531 = vld [vmem:[#allocation10 + $0xf0] sm:$0xff]
    %v532 = vld [vmem:[#allocation10 + $0xf8] sm:$0xff]
    %v565 = vunpack.c.l.b16 %v501
    %v566 = vunpack.c.h.b16 %v501
    %v567 = vunpack.c.l.b16 %v502
    %v568 = vunpack.c.h.b16 %v502
    %v569 = vunpack.c.l.b16 %v503
    %v570 = vunpack.c.h.b16 %v503
    %v571 = vunpack.c.l.b16 %v504
    %v572 = vunpack.c.h.b16 %v504
    %v573 = vunpack.c.l.b16 %v505
    %v574 = vunpack.c.h.b16 %v505
    %v575 = vunpack.c.l.b16 %v506
    %v576 = vunpack.c.h.b16 %v506
    %v577 = vunpack.c.l.b16 %v507
    %v578 = vunpack.c.h.b16 %v507
    %v579 = vunpack.c.l.b16 %v508
    %v580 = vunpack.c.h.b16 %v508
    %v581 = vunpack.c.l.b16 %v509
    %v582 = vunpack.c.h.b16 %v509
    %v583 = vunpack.c.l.b16 %v510
    %v584 = vunpack.c.h.b16 %v510
    %v585 = vunpack.c.l.b16 %v511
    %v586 = vunpack.c.h.b16 %v511
    %v587 = vunpack.c.l.b16 %v512
    %v588 = vunpack.c.h.b16 %v512
    %v589 = vunpack.c.l.b16 %v513
    %v590 = vunpack.c.h.b16 %v513
    %v591 = vunpack.c.l.b16 %v514
    %v592 = vunpack.c.h.b16 %v514
    %v593 = vunpack.c.l.b16 %v515
    %v594 = vunpack.c.h.b16 %v515
    %v595 = vunpack.c.l.b16 %v516
    %v596 = vunpack.c.h.b16 %v516
    %v597 = vunpack.c.l.b16 %v517
    %v598 = vunpack.c.h.b16 %v517
    %v599 = vunpack.c.l.b16 %v518
    %v600 = vunpack.c.h.b16 %v518
    %v601 = vunpack.c.l.b16 %v519
    %v602 = vunpack.c.h.b16 %v519
    %v603 = vunpack.c.l.b16 %v520
    %v604 = vunpack.c.h.b16 %v520
    %v605 = vunpack.c.l.b16 %v521
    %v606 = vunpack.c.h.b16 %v521
    %v607 = vunpack.c.l.b16 %v522
    %v608 = vunpack.c.h.b16 %v522
    %v609 = vunpack.c.l.b16 %v523
    %v610 = vunpack.c.h.b16 %v523
    %v611 = vunpack.c.l.b16 %v524
    %v612 = vunpack.c.h.b16 %v524
    %v613 = vunpack.c.l.b16 %v525
    %v614 = vunpack.c.h.b16 %v525
    %v615 = vunpack.c.l.b16 %v526
    %v616 = vunpack.c.h.b16 %v526
    %v617 = vunpack.c.l.b16 %v527
    %v618 = vunpack.c.h.b16 %v527
    %v619 = vunpack.c.l.b16 %v528
    %v620 = vunpack.c.h.b16 %v528
    %v621 = vunpack.c.l.b16 %v529
    %v622 = vunpack.c.h.b16 %v529
    %v623 = vunpack.c.l.b16 %v530
    %v624 = vunpack.c.h.b16 %v530
    %v625 = vunpack.c.l.b16 %v531
    %v626 = vunpack.c.h.b16 %v531
    %v627 = vunpack.c.l.b16 %v532
    %v628 = vunpack.c.h.b16 %v532
    %v629 = vpack.c.b16 %v569, %v565
    %v630 = vpack.c.b16 %v570, %v566
    %v631 = vpack.c.b16 %v571, %v567
    %v632 = vpack.c.b16 %v572, %v568
    %v633 = vpack.c.b16 %v577, %v573
    %v634 = vpack.c.b16 %v578, %v574
    %v635 = vpack.c.b16 %v579, %v575
    %v636 = vpack.c.b16 %v580, %v576
    %v637 = vpack.c.b16 %v585, %v581
    %v638 = vpack.c.b16 %v586, %v582
    %v639 = vpack.c.b16 %v587, %v583
    %v640 = vpack.c.b16 %v588, %v584
    %v641 = vpack.c.b16 %v593, %v589
    %v642 = vpack.c.b16 %v594, %v590
    %v643 = vpack.c.b16 %v595, %v591
    %v644 = vpack.c.b16 %v596, %v592
    %v645 = vpack.c.b16 %v601, %v597
    %v646 = vpack.c.b16 %v602, %v598
    %v647 = vpack.c.b16 %v603, %v599
    %v648 = vpack.c.b16 %v604, %v600
    %v649 = vpack.c.b16 %v609, %v605
    %v650 = vpack.c.b16 %v610, %v606
    %v651 = vpack.c.b16 %v611, %v607
    %v652 = vpack.c.b16 %v612, %v608
    %v653 = vpack.c.b16 %v617, %v613
    %v654 = vpack.c.b16 %v618, %v614
    %v655 = vpack.c.b16 %v619, %v615
    %v656 = vpack.c.b16 %v620, %v616
    %v657 = vpack.c.b16 %v625, %v621
    %v658 = vpack.c.b16 %v626, %v622
    %v659 = vpack.c.b16 %v627, %v623
    %v660 = vpack.c.b16 %v628, %v624
    %693 = vmatprep.subr.bf16.mxu0 %v630
    %694 = vmatpush1.bf16.msra.mxu0 %v629
    %695 = vmatprep.subr.bf16.mxu0 %v634
    %696 = vmatpush1.bf16.msra.mxu0 %v633
    %697 = vmatprep.subr.bf16.mxu0 %v638
    %698 = vmatpush1.bf16.msra.mxu0 %v637
    %699 = vmatprep.subr.bf16.mxu0 %v642
    %700 = vmatpush1.bf16.msra.mxu0 %v641
    %701 = vmatprep.subr.bf16.mxu0 %v646
    %702 = vmatpush1.bf16.msra.mxu0 %v645
    %703 = vmatprep.subr.bf16.mxu0 %v650
    %704 = vmatpush1.bf16.msra.mxu0 %v649
    %705 = vmatprep.subr.bf16.mxu0 %v654
    %706 = vmatpush1.bf16.msra.mxu0 %v653
    %707 = vmatprep.subr.bf16.mxu0 %v658
    %708 = vmatpush1.bf16.msra.mxu0 %v657
    %709 = vmatprep.subr.bf16.mxu0 0
    %710 = vmatpush1.bf16.msra.mxu0 0
    %711 = vmatprep.subr.bf16.mxu0 0
    %712 = vmatpush1.bf16.msra.mxu0 0
    %713 = vmatprep.subr.bf16.mxu0 0
    %714 = vmatpush1.bf16.msra.mxu0 0
    %715 = vmatprep.subr.bf16.mxu0 0
    %716 = vmatpush1.bf16.msra.mxu0 0
    %717 = vmatprep.subr.bf16.mxu0 0
    %718 = vmatpush1.bf16.msra.mxu0 0
    %719 = vmatprep.subr.bf16.mxu0 0
    %720 = vmatpush1.bf16.msra.mxu0 0
    %721 = vmatprep.subr.bf16.mxu0 0
    %722 = vmatpush1.bf16.msra.mxu0 0
    %723 = vmatprep.subr.bf16.mxu0 0
    %724 = vmatpush1.bf16.msra.mxu0 0
    %725 = vmatprep.mubr.bf16.mxu0 0
    %726 = vmatmul.mubr.bf16.gmra.mrb[0].mxu0 %v500
    %v727 = vpop.f32.mrb[0].mxu0
    %v728 = vadd.f32 0.0, %v727
    %v729 = vpop.f32.mrb[0].mxu0
    %v730 = vadd.f32 0.0, %v729
    %v731 = vpop.f32.mrb[0].mxu0
    %v732 = vpop.f32.mrb[0].mxu0
    %733 = vdwg.mxu0
    %734 = vmatprep.subr.bf16.mxu0 %v632
    %735 = vmatpush1.bf16.msra.mxu0 %v631
    %736 = vmatprep.subr.bf16.mxu0 %v636
    %737 = vmatpush1.bf16.msra.mxu0 %v635
    %738 = vmatprep.subr.bf16.mxu0 %v640
    %739 = vmatpush1.bf16.msra.mxu0 %v639
    %740 = vmatprep.subr.bf16.mxu0 %v644
    %741 = vmatpush1.bf16.msra.mxu0 %v643
    %742 = vmatprep.subr.bf16.mxu0 %v648
    %743 = vmatpush1.bf16.msra.mxu0 %v647
    %744 = vmatprep.subr.bf16.mxu0 %v652
    %745 = vmatpush1.bf16.msra.mxu0 %v651
    %746 = vmatprep.subr.bf16.mxu0 %v656
    %747 = vmatpush1.bf16.msra.mxu0 %v655
    %748 = vmatprep.subr.bf16.mxu0 %v660
    %749 = vmatpush1.bf16.msra.mxu0 %v659
    %750 = vmatprep.subr.bf16.mxu0 0
    %751 = vmatpush1.bf16.msra.mxu0 0
    %752 = vmatprep.subr.bf16.mxu0 0
    %753 = vmatpush1.bf16.msra.mxu0 0
    %754 = vmatprep.subr.bf16.mxu0 0
    %755 = vmatpush1.bf16.msra.mxu0 0
    %756 = vmatprep.subr.bf16.mxu0 0
    %757 = vmatpush1.bf16.msra.mxu0 0
    %758 = vmatprep.subr.bf16.mxu0 0
    %759 = vmatpush1.bf16.msra.mxu0 0
    %760 = vmatprep.subr.bf16.mxu0 0
    %761 = vmatpush1.bf16.msra.mxu0 0
    %762 = vmatprep.subr.bf16.mxu0 0
    %763 = vmatpush1.bf16.msra.mxu0 0
    %764 = vmatprep.subr.bf16.mxu0 0
    %765 = vmatpush1.bf16.msra.mxu0 0
    %766 = vmatprep.mubr.bf16.mxu0 0
    %767 = vmatmul.mubr.bf16.gmra.mrb[0].mxu0 %v500
    %v768 = vpop.f32.mrb[0].mxu0
    %v769 = vadd.f32 0.0, %v768
    %v770 = vpop.f32.mrb[0].mxu0
    %v771 = vadd.f32 0.0, %v770
    %v772 = vpop.f32.mrb[0].mxu0
    %v773 = vpop.f32.mrb[0].mxu0
    %774 = vdwg.mxu0
    %v775 = vadd.f32 %v496, %v728
    %v776 = vadd.f32 %v497, %v730
    %v777 = vadd.f32 %v498, %v769
    %v778 = vadd.f32 %v499, %v771
    %v779 = vsub.f32 0.0, %v775
    %v780 = vmul.f32 %v779, 1.442695
    %v781 = vpow.pop %v780
    %v782 = vadd.f32 %v781, 1.0
    %v783 = vrcp.pop %v782
    %v784 = vsub.f32 0.0, %v776
    %v785 = vmul.f32 %v784, 1.442695
    %v786 = vpow.pop %v785
    %v787 = vadd.f32 %v786, 1.0
    %v788 = vrcp.pop %v787
    %v789 = vtanh.pop %v777
    %v790 = vsub.f32 0.0, %v778
    %v791 = vmul.f32 %v790, 1.442695
    %v792 = vpow.pop %v791
    %v793 = vadd.f32 %v792, 1.0
    %v794 = vrcp.pop %v793
    %v795 = vmul.f32 %v788, %v495
    %v796 = vmul.f32 %v783, %v789
    %v797 = vadd.f32 %v795, %v796
    %v798 = vtanh.pop %v797
    %v799 = vmul.f32 %v794, %v798
    %v800 = vpack.c.bf16 %v799, %v799
    %801 = vst [vmem:[#allocation11] sm:$0xf] %v800
    %s802 = scalar_lea.vmem [#allocation4], 32
    %v803 = vld [vmem:[%s802] sm:$0xff]
    %v804 = vld [vmem:[%s802 + $0x8] sm:$0xff]
    %v805 = vld [vmem:[%s802 + $0x10] sm:$0xff]
    %v806 = vld [vmem:[%s802 + $0x18] sm:$0xff]
    %v807 = vld [vmem:[#allocation10] sm:$0xff]
    %v808 = vld [vmem:[#allocation10 + $0x8] sm:$0xff]
    %v809 = vld [vmem:[#allocation10 + $0x10] sm:$0xff]
    %v810 = vld [vmem:[#allocation10 + $0x18] sm:$0xff]
    %v811 = vld [vmem:[#allocation10 + $0x20] sm:$0xff]
    %v812 = vld [vmem:[#allocation10 + $0x28] sm:$0xff]
    %v813 = vld [vmem:[#allocation10 + $0x30] sm:$0xff]
    %v814 = vld [vmem:[#allocation10 + $0x38] sm:$0xff]
    %v815 = vld [vmem:[#allocation10 + $0x40] sm:$0xff]
    %v816 = vld [vmem:[#allocation10 + $0x48] sm:$0xff]
    %v817 = vld [vmem:[#allocation10 + $0x50] sm:$0xff]
    %v818 = vld [vmem:[#allocation10 + $0x58] sm:$0xff]
    %v819 = vld [vmem:[#allocation10 + $0x60] sm:$0xff]
    %v820 = vld [vmem:[#allocation10 + $0x68] sm:$0xff]
    %v821 = vld [vmem:[#allocation10 + $0x70] sm:$0xff]
    %v822 = vld [vmem:[#allocation10 + $0x78] sm:$0xff]
    %v823 = vld [vmem:[#allocation10 + $0x80] sm:$0xff]
    %v824 = vld [vmem:[#allocation10 + $0x88] sm:$0xff]
    %v825 = vld [vmem:[#allocation10 + $0x90] sm:$0xff]
    %v826 = vld [vmem:[#allocation10 + $0x98] sm:$0xff]
    %v827 = vld [vmem:[#allocation10 + $0xa0] sm:$0xff]
    %v828 = vld [vmem:[#allocation10 + $0xa8] sm:$0xff]
    %v829 = vld [vmem:[#allocation10 + $0xb0] sm:$0xff]
    %v830 = vld [vmem:[#allocation10 + $0xb8] sm:$0xff]
    %v831 = vld [vmem:[#allocation10 + $0xc0] sm:$0xff]
    %v832 = vld [vmem:[#allocation10 + $0xc8] sm:$0xff]
    %v833 = vld [vmem:[#allocation10 + $0xd0] sm:$0xff]
    %v834 = vld [vmem:[#allocation10 + $0xd8] sm:$0xff]
    %v835 = vld [vmem:[#allocation10 + $0xe0] sm:$0xff]
    %v836 = vld [vmem:[#allocation10 + $0xe8] sm:$0xff]
    %v837 = vld [vmem:[#allocation10 + $0xf0] sm:$0xff]
    %v838 = vld [vmem:[#allocation10 + $0xf8] sm:$0xff]
    %v871 = vunpack.c.l.b16 %v807
    %v872 = vunpack.c.h.b16 %v807
    %v873 = vunpack.c.l.b16 %v808
    %v874 = vunpack.c.h.b16 %v808
    %v875 = vunpack.c.l.b16 %v809
    %v876 = vunpack.c.h.b16 %v809
    %v877 = vunpack.c.l.b16 %v810
    %v878 = vunpack.c.h.b16 %v810
    %v879 = vunpack.c.l.b16 %v811
    %v880 = vunpack.c.h.b16 %v811
    %v881 = vunpack.c.l.b16 %v812
    %v882 = vunpack.c.h.b16 %v812
    %v883 = vunpack.c.l.b16 %v813
    %v884 = vunpack.c.h.b16 %v813
    %v885 = vunpack.c.l.b16 %v814
    %v886 = vunpack.c.h.b16 %v814
    %v887 = vunpack.c.l.b16 %v815
    %v888 = vunpack.c.h.b16 %v815
    %v889 = vunpack.c.l.b16 %v816
    %v890 = vunpack.c.h.b16 %v816
    %v891 = vunpack.c.l.b16 %v817
    %v892 = vunpack.c.h.b16 %v817
    %v893 = vunpack.c.l.b16 %v818
    %v894 = vunpack.c.h.b16 %v818
    %v895 = vunpack.c.l.b16 %v819
    %v896 = vunpack.c.h.b16 %v819
    %v897 = vunpack.c.l.b16 %v820
    %v898 = vunpack.c.h.b16 %v820
    %v899 = vunpack.c.l.b16 %v821
    %v900 = vunpack.c.h.b16 %v821
    %v901 = vunpack.c.l.b16 %v822
    %v902 = vunpack.c.h.b16 %v822
    %v903 = vunpack.c.l.b16 %v823
    %v904 = vunpack.c.h.b16 %v823
    %v905 = vunpack.c.l.b16 %v824
    %v906 = vunpack.c.h.b16 %v824
    %v907 = vunpack.c.l.b16 %v825
    %v908 = vunpack.c.h.b16 %v825
    %v909 = vunpack.c.l.b16 %v826
    %v910 = vunpack.c.h.b16 %v826
    %v911 = vunpack.c.l.b16 %v827
    %v912 = vunpack.c.h.b16 %v827
    %v913 = vunpack.c.l.b16 %v828
    %v914 = vunpack.c.h.b16 %v828
    %v915 = vunpack.c.l.b16 %v829
    %v916 = vunpack.c.h.b16 %v829
    %v917 = vunpack.c.l.b16 %v830
    %v918 = vunpack.c.h.b16 %v830
    %v919 = vunpack.c.l.b16 %v831
    %v920 = vunpack.c.h.b16 %v831
    %v921 = vunpack.c.l.b16 %v832
    %v922 = vunpack.c.h.b16 %v832
    %v923 = vunpack.c.l.b16 %v833
    %v924 = vunpack.c.h.b16 %v833
    %v925 = vunpack.c.l.b16 %v834
    %v926 = vunpack.c.h.b16 %v834
    %v927 = vunpack.c.l.b16 %v835
    %v928 = vunpack.c.h.b16 %v835
    %v929 = vunpack.c.l.b16 %v836
    %v930 = vunpack.c.h.b16 %v836
    %v931 = vunpack.c.l.b16 %v837
    %v932 = vunpack.c.h.b16 %v837
    %v933 = vunpack.c.l.b16 %v838
    %v934 = vunpack.c.h.b16 %v838
    %v935 = vpack.c.b16 %v875, %v871
    %v936 = vpack.c.b16 %v876, %v872
    %v937 = vpack.c.b16 %v877, %v873
    %v938 = vpack.c.b16 %v878, %v874
    %v939 = vpack.c.b16 %v883, %v879
    %v940 = vpack.c.b16 %v884, %v880
    %v941 = vpack.c.b16 %v885, %v881
    %v942 = vpack.c.b16 %v886, %v882
    %v943 = vpack.c.b16 %v891, %v887
    %v944 = vpack.c.b16 %v892, %v888
    %v945 = vpack.c.b16 %v893, %v889
    %v946 = vpack.c.b16 %v894, %v890
    %v947 = vpack.c.b16 %v899, %v895
    %v948 = vpack.c.b16 %v900, %v896
    %v949 = vpack.c.b16 %v901, %v897
    %v950 = vpack.c.b16 %v902, %v898
    %v951 = vpack.c.b16 %v907, %v903
    %v952 = vpack.c.b16 %v908, %v904
    %v953 = vpack.c.b16 %v909, %v905
    %v954 = vpack.c.b16 %v910, %v906
    %v955 = vpack.c.b16 %v915, %v911
    %v956 = vpack.c.b16 %v916, %v912
    %v957 = vpack.c.b16 %v917, %v913
    %v958 = vpack.c.b16 %v918, %v914
    %v959 = vpack.c.b16 %v923, %v919
    %v960 = vpack.c.b16 %v924, %v920
    %v961 = vpack.c.b16 %v925, %v921
    %v962 = vpack.c.b16 %v926, %v922
    %v963 = vpack.c.b16 %v931, %v927
    %v964 = vpack.c.b16 %v932, %v928
    %v965 = vpack.c.b16 %v933, %v929
    %v966 = vpack.c.b16 %v934, %v930
    %999 = vmatprep.subr.bf16.mxu0 %v936
    %1000 = vmatpush1.bf16.msra.mxu0 %v935
    %1001 = vmatprep.subr.bf16.mxu0 %v940
    %1002 = vmatpush1.bf16.msra.mxu0 %v939
    %1003 = vmatprep.subr.bf16.mxu0 %v944
    %1004 = vmatpush1.bf16.msra.mxu0 %v943
    %1005 = vmatprep.subr.bf16.mxu0 %v948
    %1006 = vmatpush1.bf16.msra.mxu0 %v947
    %1007 = vmatprep.subr.bf16.mxu0 %v952
    %1008 = vmatpush1.bf16.msra.mxu0 %v951
    %1009 = vmatprep.subr.bf16.mxu0 %v956
    %1010 = vmatpush1.bf16.msra.mxu0 %v955
    %1011 = vmatprep.subr.bf16.mxu0 %v960
    %1012 = vmatpush1.bf16.msra.mxu0 %v959
    %1013 = vmatprep.subr.bf16.mxu0 %v964
    %1014 = vmatpush1.bf16.msra.mxu0 %v963
    %1015 = vmatprep.subr.bf16.mxu0 0
    %1016 = vmatpush1.bf16.msra.mxu0 0
    %1017 = vmatprep.subr.bf16.mxu0 0
    %1018 = vmatpush1.bf16.msra.mxu0 0
    %1019 = vmatprep.subr.bf16.mxu0 0
    %1020 = vmatpush1.bf16.msra.mxu0 0
    %1021 = vmatprep.subr.bf16.mxu0 0
    %1022 = vmatpush1.bf16.msra.mxu0 0
    %1023 = vmatprep.subr.bf16.mxu0 0
    %1024 = vmatpush1.bf16.msra.mxu0 0
    %1025 = vmatprep.subr.bf16.mxu0 0
    %1026 = vmatpush1.bf16.msra.mxu0 0
    %1027 = vmatprep.subr.bf16.mxu0 0
    %1028 = vmatpush1.bf16.msra.mxu0 0
    %1029 = vmatprep.subr.bf16.mxu0 0
    %1030 = vmatpush1.bf16.msra.mxu0 0
    %1031 = vmatprep.mubr.bf16.mxu0 0
    %1032 = vmatmul.mubr.bf16.gmra.mrb[0].mxu0 %v800
    %v1033 = vpop.f32.mrb[0].mxu0
    %v1034 = vadd.f32 0.0, %v1033
    %v1035 = vpop.f32.mrb[0].mxu0
    %v1036 = vadd.f32 0.0, %v1035
    %v1037 = vpop.f32.mrb[0].mxu0
    %v1038 = vpop.f32.mrb[0].mxu0
    %1039 = vdwg.mxu0
    %1040 = vmatprep.subr.bf16.mxu0 %v938
    %1041 = vmatpush1.bf16.msra.mxu0 %v937
    %1042 = vmatprep.subr.bf16.mxu0 %v942
    %1043 = vmatpush1.bf16.msra.mxu0 %v941
    %1044 = vmatprep.subr.bf16.mxu0 %v946
    %1045 = vmatpush1.bf16.msra.mxu0 %v945
    %1046 = vmatprep.subr.bf16.mxu0 %v950
    %1047 = vmatpush1.bf16.msra.mxu0 %v949
    %1048 = vmatprep.subr.bf16.mxu0 %v954
    %1049 = vmatpush1.bf16.msra.mxu0 %v953
    %1050 = vmatprep.subr.bf16.mxu0 %v958
    %1051 = vmatpush1.bf16.msra.mxu0 %v957
    %1052 = vmatprep.subr.bf16.mxu0 %v962
    %1053 = vmatpush1.bf16.msra.mxu0 %v961
    %1054 = vmatprep.subr.bf16.mxu0 %v966
    %1055 = vmatpush1.bf16.msra.mxu0 %v965
    %1056 = vmatprep.subr.bf16.mxu0 0
    %1057 = vmatpush1.bf16.msra.mxu0 0
    %1058 = vmatprep.subr.bf16.mxu0 0
    %1059 = vmatpush1.bf16.msra.mxu0 0
    %1060 = vmatprep.subr.bf16.mxu0 0
    %1061 = vmatpush1.bf16.msra.mxu0 0
    %1062 = vmatprep.subr.bf16.mxu0 0
    %1063 = vmatpush1.bf16.msra.mxu0 0
    %1064 = vmatprep.subr.bf16.mxu0 0
    %1065 = vmatpush1.bf16.msra.mxu0 0
    %1066 = vmatprep.subr.bf16.mxu0 0
    %1067 = vmatpush1.bf16.msra.mxu0 0
    %1068 = vmatprep.subr.bf16.mxu0 0
    %1069 = vmatpush1.bf16.msra.mxu0 0
    %1070 = vmatprep.subr.bf16.mxu0 0
    %1071 = vmatpush1.bf16.msra.mxu0 0
    %1072 = vmatprep.mubr.bf16.mxu0 0
    %1073 = vmatmul.mubr.bf16.gmra.mrb[0].mxu0 %v800
    %v1074 = vpop.f32.mrb[0].mxu0
    %v1075 = vadd.f32 0.0, %v1074
    %v1076 = vpop.f32.mrb[0].mxu0
    %v1077 = vadd.f32 0.0, %v1076
    %v1078 = vpop.f32.mrb[0].mxu0
    %v1079 = vpop.f32.mrb[0].mxu0
    %1080 = vdwg.mxu0
    %v1081 = vadd.f32 %v803, %v1034
    %v1082 = vadd.f32 %v804, %v1036
    %v1083 = vadd.f32 %v805, %v1075
    %v1084 = vadd.f32 %v806, %v1077
    %v1085 = vsub.f32 0.0, %v1081
    %v1086 = vmul.f32 %v1085, 1.442695
    %v1087 = vpow.pop %v1086
    %v1088 = vadd.f32 %v1087, 1.0
    %v1089 = vrcp.pop %v1088
    %v1090 = vsub.f32 0.0, %v1082
    %v1091 = vmul.f32 %v1090, 1.442695
    %v1092 = vpow.pop %v1091
    %v1093 = vadd.f32 %v1092, 1.0
    %v1094 = vrcp.pop %v1093
    %v1095 = vtanh.pop %v1083
    %v1096 = vsub.f32 0.0, %v1084
    %v1097 = vmul.f32 %v1096, 1.442695
    %v1098 = vpow.pop %v1097
    %v1099 = vadd.f32 %v1098, 1.0
    %v1100 = vrcp.pop %v1099
    %v1101 = vmul.f32 %v1094, %v797
    %v1102 = vmul.f32 %v1089, %v1095
    %v1103 = vadd.f32 %v1101, %v1102
    %v1104 = vtanh.pop %v1103
    %v1105 = vmul.f32 %v1100, %v1104
    %v1106 = vpack.c.bf16 %v1105, %v1105
    %s1107 = scalar_lea.vmem [#allocation11], 4
    %1108 = vst [vmem:[%s1107] sm:$0xf] %v1106
    %s1109 = scalar_lea.vmem [#allocation4], 64
    %v1110 = vld [vmem:[%s1109] sm:$0xff]
    %v1111 = vld [vmem:[%s1109 + $0x8] sm:$0xff]
    %v1112 = vld [vmem:[%s1109 + $0x10] sm:$0xff]
    %v1113 = vld [vmem:[%s1109 + $0x18] sm:$0xff]
    %v1114 = vld [vmem:[#allocation10] sm:$0xff]
    %v1115 = vld [vmem:[#allocation10 + $0x8] sm:$0xff]
    %v1116 = vld [vmem:[#allocation10 + $0x10] sm:$0xff]
    %v1117 = vld [vmem:[#allocation10 + $0x18] sm:$0xff]
    %v1118 = vld [vmem:[#allocation10 + $0x20] sm:$0xff]
    %v1119 = vld [vmem:[#allocation10 + $0x28] sm:$0xff]
    %v1120 = vld [vmem:[#allocation10 + $0x30] sm:$0xff]
    %v1121 = vld [vmem:[#allocation10 + $0x38] sm:$0xff]
    %v1122 = vld [vmem:[#allocation10 + $0x40] sm:$0xff]
    %v1123 = vld [vmem:[#allocation10 + $0x48] sm:$0xff]
    %v1124 = vld [vmem:[#allocation10 + $0x50] sm:$0xff]
    %v1125 = vld [vmem:[#allocation10 + $0x58] sm:$0xff]
    %v1126 = vld [vmem:[#allocation10 + $0x60] sm:$0xff]
    %v1127 = vld [vmem:[#allocation10 + $0x68] sm:$0xff]
    %v1128 = vld [vmem:[#allocation10 + $0x70] sm:$0xff]
    %v1129 = vld [vmem:[#allocation10 + $0x78] sm:$0xff]
    %v1130 = vld [vmem:[#allocation10 + $0x80] sm:$0xff]
    %v1131 = vld [vmem:[#allocation10 + $0x88] sm:$0xff]
    %v1132 = vld [vmem:[#allocation10 + $0x90] sm:$0xff]
    %v1133 = vld [vmem:[#allocation10 + $0x98] sm:$0xff]
    %v1134 = vld [vmem:[#allocation10 + $0xa0] sm:$0xff]
    %v1135 = vld [vmem:[#allocation10 + $0xa8] sm:$0xff]
    %v1136 = vld [vmem:[#allocation10 + $0xb0] sm:$0xff]
    %v1137 = vld [vmem:[#allocation10 + $0xb8] sm:$0xff]
    %v1138 = vld [vmem:[#allocation10 + $0xc0] sm:$0xff]
    %v1139 = vld [vmem:[#allocation10 + $0xc8] sm:$0xff]
    %v1140 = vld [vmem:[#allocation10 + $0xd0] sm:$0xff]
    %v1141 = vld [vmem:[#allocation10 + $0xd8] sm:$0xff]
    %v1142 = vld [vmem:[#allocation10 + $0xe0] sm:$0xff]
    %v1143 = vld [vmem:[#allocation10 + $0xe8] sm:$0xff]
    %v1144 = vld [vmem:[#allocation10 + $0xf0] sm:$0xff]
    %v1145 = vld [vmem:[#allocation10 + $0xf8] sm:$0xff]
    %v1178 = vunpack.c.l.b16 %v1114
    %v1179 = vunpack.c.h.b16 %v1114
    %v1180 = vunpack.c.l.b16 %v1115
    %v1181 = vunpack.c.h.b16 %v1115
    %v1182 = vunpack.c.l.b16 %v1116
    %v1183 = vunpack.c.h.b16 %v1116
    %v1184 = vunpack.c.l.b16 %v1117
    %v1185 = vunpack.c.h.b16 %v1117
    %v1186 = vunpack.c.l.b16 %v1118
    %v1187 = vunpack.c.h.b16 %v1118
    %v1188 = vunpack.c.l.b16 %v1119
    %v1189 = vunpack.c.h.b16 %v1119
    %v1190 = vunpack.c.l.b16 %v1120
    %v1191 = vunpack.c.h.b16 %v1120
    %v1192 = vunpack.c.l.b16 %v1121
    %v1193 = vunpack.c.h.b16 %v1121
    %v1194 = vunpack.c.l.b16 %v1122
    %v1195 = vunpack.c.h.b16 %v1122
    %v1196 = vunpack.c.l.b16 %v1123
    %v1197 = vunpack.c.h.b16 %v1123
    %v1198 = vunpack.c.l.b16 %v1124
    %v1199 = vunpack.c.h.b16 %v1124
    %v1200 = vunpack.c.l.b16 %v1125
    %v1201 = vunpack.c.h.b16 %v1125
    %v1202 = vunpack.c.l.b16 %v1126
    %v1203 = vunpack.c.h.b16 %v1126
    %v1204 = vunpack.c.l.b16 %v1127
    %v1205 = vunpack.c.h.b16 %v1127
    %v1206 = vunpack.c.l.b16 %v1128
    %v1207 = vunpack.c.h.b16 %v1128
    %v1208 = vunpack.c.l.b16 %v1129
    %v1209 = vunpack.c.h.b16 %v1129
    %v1210 = vunpack.c.l.b16 %v1130
    %v1211 = vunpack.c.h.b16 %v1130
    %v1212 = vunpack.c.l.b16 %v1131
    %v1213 = vunpack.c.h.b16 %v1131
    %v1214 = vunpack.c.l.b16 %v1132
    %v1215 = vunpack.c.h.b16 %v1132
    %v1216 = vunpack.c.l.b16 %v1133
    %v1217 = vunpack.c.h.b16 %v1133
    %v1218 = vunpack.c.l.b16 %v1134
    %v1219 = vunpack.c.h.b16 %v1134
    %v1220 = vunpack.c.l.b16 %v1135
    %v1221 = vunpack.c.h.b16 %v1135
    %v1222 = vunpack.c.l.b16 %v1136
    %v1223 = vunpack.c.h.b16 %v1136
    %v1224 = vunpack.c.l.b16 %v1137
    %v1225 = vunpack.c.h.b16 %v1137
    %v1226 = vunpack.c.l.b16 %v1138
    %v1227 = vunpack.c.h.b16 %v1138
    %v1228 = vunpack.c.l.b16 %v1139
    %v1229 = vunpack.c.h.b16 %v1139
    %v1230 = vunpack.c.l.b16 %v1140
    %v1231 = vunpack.c.h.b16 %v1140
    %v1232 = vunpack.c.l.b16 %v1141
    %v1233 = vunpack.c.h.b16 %v1141
    %v1234 = vunpack.c.l.b16 %v1142
    %v1235 = vunpack.c.h.b16 %v1142
    %v1236 = vunpack.c.l.b16 %v1143
    %v1237 = vunpack.c.h.b16 %v1143
    %v1238 = vunpack.c.l.b16 %v1144
    %v1239 = vunpack.c.h.b16 %v1144
    %v1240 = vunpack.c.l.b16 %v1145
    %v1241 = vunpack.c.h.b16 %v1145
    %v1242 = vpack.c.b16 %v1182, %v1178
    %v1243 = vpack.c.b16 %v1183, %v1179
    %v1244 = vpack.c.b16 %v1184, %v1180
    %v1245 = vpack.c.b16 %v1185, %v1181
    %v1246 = vpack.c.b16 %v1190, %v1186
    %v1247 = vpack.c.b16 %v1191, %v1187
    %v1248 = vpack.c.b16 %v1192, %v1188
    %v1249 = vpack.c.b16 %v1193, %v1189
    %v1250 = vpack.c.b16 %v1198, %v1194
    %v1251 = vpack.c.b16 %v1199, %v1195
    %v1252 = vpack.c.b16 %v1200, %v1196
    %v1253 = vpack.c.b16 %v1201, %v1197
    %v1254 = vpack.c.b16 %v1206, %v1202
    %v1255 = vpack.c.b16 %v1207, %v1203
    %v1256 = vpack.c.b16 %v1208, %v1204
    %v1257 = vpack.c.b16 %v1209, %v1205
    %v1258 = vpack.c.b16 %v1214, %v1210
    %v1259 = vpack.c.b16 %v1215, %v1211
    %v1260 = vpack.c.b16 %v1216, %v1212
    %v1261 = vpack.c.b16 %v1217, %v1213
    %v1262 = vpack.c.b16 %v1222, %v1218
    %v1263 = vpack.c.b16 %v1223, %v1219
    %v1264 = vpack.c.b16 %v1224, %v1220
    %v1265 = vpack.c.b16 %v1225, %v1221
    %v1266 = vpack.c.b16 %v1230, %v1226
    %v1267 = vpack.c.b16 %v1231, %v1227
    %v1268 = vpack.c.b16 %v1232, %v1228
    %v1269 = vpack.c.b16 %v1233, %v1229
    %v1270 = vpack.c.b16 %v1238, %v1234
    %v1271 = vpack.c.b16 %v1239, %v1235
    %v1272 = vpack.c.b16 %v1240, %v1236
    %v1273 = vpack.c.b16 %v1241, %v1237
    %1306 = vmatprep.subr.bf16.mxu0 %v1243
    %1307 = vmatpush1.bf16.msra.mxu0 %v1242
    %1308 = vmatprep.subr.bf16.mxu0 %v1247
    %1309 = vmatpush1.bf16.msra.mxu0 %v1246
    %1310 = vmatprep.subr.bf16.mxu0 %v1251
    %1311 = vmatpush1.bf16.msra.mxu0 %v1250
    %1312 = vmatprep.subr.bf16.mxu0 %v1255
    %1313 = vmatpush1.bf16.msra.mxu0 %v1254
    %1314 = vmatprep.subr.bf16.mxu0 %v1259
    %1315 = vmatpush1.bf16.msra.mxu0 %v1258
    %1316 = vmatprep.subr.bf16.mxu0 %v1263
    %1317 = vmatpush1.bf16.msra.mxu0 %v1262
    %1318 = vmatprep.subr.bf16.mxu0 %v1267
    %1319 = vmatpush1.bf16.msra.mxu0 %v1266
    %1320 = vmatprep.subr.bf16.mxu0 %v1271
    %1321 = vmatpush1.bf16.msra.mxu0 %v1270
    %1322 = vmatprep.subr.bf16.mxu0 0
    %1323 = vmatpush1.bf16.msra.mxu0 0
    %1324 = vmatprep.subr.bf16.mxu0 0
    %1325 = vmatpush1.bf16.msra.mxu0 0
    %1326 = vmatprep.subr.bf16.mxu0 0
    %1327 = vmatpush1.bf16.msra.mxu0 0
    %1328 = vmatprep.subr.bf16.mxu0 0
    %1329 = vmatpush1.bf16.msra.mxu0 0
    %1330 = vmatprep.subr.bf16.mxu0 0
    %1331 = vmatpush1.bf16.msra.mxu0 0
    %1332 = vmatprep.subr.bf16.mxu0 0
    %1333 = vmatpush1.bf16.msra.mxu0 0
    %1334 = vmatprep.subr.bf16.mxu0 0
    %1335 = vmatpush1.bf16.msra.mxu0 0
    %1336 = vmatprep.subr.bf16.mxu0 0
    %1337 = vmatpush1.bf16.msra.mxu0 0
    %1338 = vmatprep.mubr.bf16.mxu0 0
    %1339 = vmatmul.mubr.bf16.gmra.mrb[0].mxu0 %v1106
    %v1340 = vpop.f32.mrb[0].mxu0
    %v1341 = vadd.f32 0.0, %v1340
    %v1342 = vpop.f32.mrb[0].mxu0
    %v1343 = vadd.f32 0.0, %v1342
    %v1344 = vpop.f32.mrb[0].mxu0
    %v1345 = vpop.f32.mrb[0].mxu0
    %1346 = vdwg.mxu0
    %1347 = vmatprep.subr.bf16.mxu0 %v1245
    %1348 = vmatpush1.bf16.msra.mxu0 %v1244
    %1349 = vmatprep.subr.bf16.mxu0 %v1249
    %1350 = vmatpush1.bf16.msra.mxu0 %v1248
    %1351 = vmatprep.subr.bf16.mxu0 %v1253
    %1352 = vmatpush1.bf16.msra.mxu0 %v1252
    %1353 = vmatprep.subr.bf16.mxu0 %v1257
    %1354 = vmatpush1.bf16.msra.mxu0 %v1256
    %1355 = vmatprep.subr.bf16.mxu0 %v1261
    %1356 = vmatpush1.bf16.msra.mxu0 %v1260
    %1357 = vmatprep.subr.bf16.mxu0 %v1265
    %1358 = vmatpush1.bf16.msra.mxu0 %v1264
    %1359 = vmatprep.subr.bf16.mxu0 %v1269
    %1360 = vmatpush1.bf16.msra.mxu0 %v1268
    %1361 = vmatprep.subr.bf16.mxu0 %v1273
    %1362 = vmatpush1.bf16.msra.mxu0 %v1272
    %1363 = vmatprep.subr.bf16.mxu0 0
    %1364 = vmatpush1.bf16.msra.mxu0 0
    %1365 = vmatprep.subr.bf16.mxu0 0
    %1366 = vmatpush1.bf16.msra.mxu0 0
    %1367 = vmatprep.subr.bf16.mxu0 0
    %1368 = vmatpush1.bf16.msra.mxu0 0
    %1369 = vmatprep.subr.bf16.mxu0 0
    %1370 = vmatpush1.bf16.msra.mxu0 0
    %1371 = vmatprep.subr.bf16.mxu0 0
    %1372 = vmatpush1.bf16.msra.mxu0 0
    %1373 = vmatprep.subr.bf16.mxu0 0
    %1374 = vmatpush1.bf16.msra.mxu0 0
    %1375 = vmatprep.subr.bf16.mxu0 0
    %1376 = vmatpush1.bf16.msra.mxu0 0
    %1377 = vmatprep.subr.bf16.mxu0 0
    %1378 = vmatpush1.bf16.msra.mxu0 0
    %1379 = vmatprep.mubr.bf16.mxu0 0
    %1380 = vmatmul.mubr.bf16.gmra.mrb[0].mxu0 %v1106
    %v1381 = vpop.f32.mrb[0].mxu0
    %v1382 = vadd.f32 0.0, %v1381
    %v1383 = vpop.f32.mrb[0].mxu0
    %v1384 = vadd.f32 0.0, %v1383
    %v1385 = vpop.f32.mrb[0].mxu0
    %v1386 = vpop.f32.mrb[0].mxu0
    %1387 = vdwg.mxu0
    %v1388 = vadd.f32 %v1110, %v1341
    %v1389 = vadd.f32 %v1111, %v1343
    %v1390 = vadd.f32 %v1112, %v1382
    %v1391 = vadd.f32 %v1113, %v1384
    %v1392 = vsub.f32 0.0, %v1388
    %v1393 = vmul.f32 %v1392, 1.442695
    %v1394 = vpow.pop %v1393
    %v1395 = vadd.f32 %v1394, 1.0
    %v1396 = vrcp.pop %v1395
    %v1397 = vsub.f32 0.0, %v1389
    %v1398 = vmul.f32 %v1397, 1.442695
    %v1399 = vpow.pop %v1398
    %v1400 = vadd.f32 %v1399, 1.0
    %v1401 = vrcp.pop %v1400
    %v1402 = vtanh.pop %v1390
    %v1403 = vsub.f32 0.0, %v1391
    %v1404 = vmul.f32 %v1403, 1.442695
    %v1405 = vpow.pop %v1404
    %v1406 = vadd.f32 %v1405, 1.0
    %v1407 = vrcp.pop %v1406
    %v1408 = vmul.f32 %v1401, %v1103
    %v1409 = vmul.f32 %v1396, %v1402
    %v1410 = vadd.f32 %v1408, %v1409
    %v1411 = vtanh.pop %v1410
    %v1412 = vmul.f32 %v1407, %v1411
    %v1413 = vpack.c.bf16 %v1412, %v1412
    %s1414 = scalar_lea.vmem [#allocation11], 8
    %1415 = vst [vmem:[%s1414] sm:$0xf] %v1413
    %s1416 = scalar_lea.vmem [#allocation4], 96
    %v1417 = vld [vmem:[%s1416] sm:$0xff]
    %v1418 = vld [vmem:[%s1416 + $0x8] sm:$0xff]
    %v1419 = vld [vmem:[%s1416 + $0x10] sm:$0xff]
    %v1420 = vld [vmem:[%s1416 + $0x18] sm:$0xff]
    %v1421 = vld [vmem:[#allocation10] sm:$0xff]
    %v1422 = vld [vmem:[#allocation10 + $0x8] sm:$0xff]
    %v1423 = vld [vmem:[#allocation10 + $0x10] sm:$0xff]
    %v1424 = vld [vmem:[#allocation10 + $0x18] sm:$0xff]
    %v1425 = vld [vmem:[#allocation10 + $0x20] sm:$0xff]
    %v1426 = vld [vmem:[#allocation10 + $0x28] sm:$0xff]
    %v1427 = vld [vmem:[#allocation10 + $0x30] sm:$0xff]
    %v1428 = vld [vmem:[#allocation10 + $0x38] sm:$0xff]
    %v1429 = vld [vmem:[#allocation10 + $0x40] sm:$0xff]
    %v1430 = vld [vmem:[#allocation10 + $0x48] sm:$0xff]
    %v1431 = vld [vmem:[#allocation10 + $0x50] sm:$0xff]
    %v1432 = vld [vmem:[#allocation10 + $0x58] sm:$0xff]
    %v1433 = vld [vmem:[#allocation10 + $0x60] sm:$0xff]
    %v1434 = vld [vmem:[#allocation10 + $0x68] sm:$0xff]
    %v1435 = vld [vmem:[#allocation10 + $0x70] sm:$0xff]
    %v1436 = vld [vmem:[#allocation10 + $0x78] sm:$0xff]
    %v1437 = vld [vmem:[#allocation10 + $0x80] sm:$0xff]
    %v1438 = vld [vmem:[#allocation10 + $0x88] sm:$0xff]
    %v1439 = vld [vmem:[#allocation10 + $0x90] sm:$0xff]
    %v1440 = vld [vmem:[#allocation10 + $0x98] sm:$0xff]
    %v1441 = vld [vmem:[#allocation10 + $0xa0] sm:$0xff]
    %v1442 = vld [vmem:[#allocation10 + $0xa8] sm:$0xff]
    %v1443 = vld [vmem:[#allocation10 + $0xb0] sm:$0xff]
    %v1444 = vld [vmem:[#allocation10 + $0xb8] sm:$0xff]
    %v1445 = vld [vmem:[#allocation10 + $0xc0] sm:$0xff]
    %v1446 = vld [vmem:[#allocation10 + $0xc8] sm:$0xff]
    %v1447 = vld [vmem:[#allocation10 + $0xd0] sm:$0xff]
    %v1448 = vld [vmem:[#allocation10 + $0xd8] sm:$0xff]
    %v1449 = vld [vmem:[#allocation10 + $0xe0] sm:$0xff]
    %v1450 = vld [vmem:[#allocation10 + $0xe8] sm:$0xff]
    %v1451 = vld [vmem:[#allocation10 + $0xf0] sm:$0xff]
    %v1452 = vld [vmem:[#allocation10 + $0xf8] sm:$0xff]
    %v1485 = vunpack.c.l.b16 %v1421
    %v1486 = vunpack.c.h.b16 %v1421
    %v1487 = vunpack.c.l.b16 %v1422
    %v1488 = vunpack.c.h.b16 %v1422
    %v1489 = vunpack.c.l.b16 %v1423
    %v1490 = vunpack.c.h.b16 %v1423
    %v1491 = vunpack.c.l.b16 %v1424
    %v1492 = vunpack.c.h.b16 %v1424
    %v1493 = vunpack.c.l.b16 %v1425
    %v1494 = vunpack.c.h.b16 %v1425
    %v1495 = vunpack.c.l.b16 %v1426
    %v1496 = vunpack.c.h.b16 %v1426
    %v1497 = vunpack.c.l.b16 %v1427
    %v1498 = vunpack.c.h.b16 %v1427
    %v1499 = vunpack.c.l.b16 %v1428
    %v1500 = vunpack.c.h.b16 %v1428
    %v1501 = vunpack.c.l.b16 %v1429
    %v1502 = vunpack.c.h.b16 %v1429
    %v1503 = vunpack.c.l.b16 %v1430
    %v1504 = vunpack.c.h.b16 %v1430
    %v1505 = vunpack.c.l.b16 %v1431
    %v1506 = vunpack.c.h.b16 %v1431
    %v1507 = vunpack.c.l.b16 %v1432
    %v1508 = vunpack.c.h.b16 %v1432
    %v1509 = vunpack.c.l.b16 %v1433
    %v1510 = vunpack.c.h.b16 %v1433
    %v1511 = vunpack.c.l.b16 %v1434
    %v1512 = vunpack.c.h.b16 %v1434
    %v1513 = vunpack.c.l.b16 %v1435
    %v1514 = vunpack.c.h.b16 %v1435
    %v1515 = vunpack.c.l.b16 %v1436
    %v1516 = vunpack.c.h.b16 %v1436
    %v1517 = vunpack.c.l.b16 %v1437
    %v1518 = vunpack.c.h.b16 %v1437
    %v1519 = vunpack.c.l.b16 %v1438
    %v1520 = vunpack.c.h.b16 %v1438
    %v1521 = vunpack.c.l.b16 %v1439
    %v1522 = vunpack.c.h.b16 %v1439
    %v1523 = vunpack.c.l.b16 %v1440
    %v1524 = vunpack.c.h.b16 %v1440
    %v1525 = vunpack.c.l.b16 %v1441
    %v1526 = vunpack.c.h.b16 %v1441
    %v1527 = vunpack.c.l.b16 %v1442
    %v1528 = vunpack.c.h.b16 %v1442
    %v1529 = vunpack.c.l.b16 %v1443
    %v1530 = vunpack.c.h.b16 %v1443
    %v1531 = vunpack.c.l.b16 %v1444
    %v1532 = vunpack.c.h.b16 %v1444
    %v1533 = vunpack.c.l.b16 %v1445
    %v1534 = vunpack.c.h.b16 %v1445
    %v1535 = vunpack.c.l.b16 %v1446
    %v1536 = vunpack.c.h.b16 %v1446
    %v1537 = vunpack.c.l.b16 %v1447
    %v1538 = vunpack.c.h.b16 %v1447
    %v1539 = vunpack.c.l.b16 %v1448
    %v1540 = vunpack.c.h.b16 %v1448
    %v1541 = vunpack.c.l.b16 %v1449
    %v1542 = vunpack.c.h.b16 %v1449
    %v1543 = vunpack.c.l.b16 %v1450
    %v1544 = vunpack.c.h.b16 %v1450
    %v1545 = vunpack.c.l.b16 %v1451
    %v1546 = vunpack.c.h.b16 %v1451
    %v1547 = vunpack.c.l.b16 %v1452
    %v1548 = vunpack.c.h.b16 %v1452
    %v1549 = vpack.c.b16 %v1489, %v1485
    %v1550 = vpack.c.b16 %v1490, %v1486
    %v1551 = vpack.c.b16 %v1491, %v1487
    %v1552 = vpack.c.b16 %v1492, %v1488
    %v1553 = vpack.c.b16 %v1497, %v1493
    %v1554 = vpack.c.b16 %v1498, %v1494
    %v1555 = vpack.c.b16 %v1499, %v1495
    %v1556 = vpack.c.b16 %v1500, %v1496
    %v1557 = vpack.c.b16 %v1505, %v1501
    %v1558 = vpack.c.b16 %v1506, %v1502
    %v1559 = vpack.c.b16 %v1507, %v1503
    %v1560 = vpack.c.b16 %v1508, %v1504
    %v1561 = vpack.c.b16 %v1513, %v1509
    %v1562 = vpack.c.b16 %v1514, %v1510
    %v1563 = vpack.c.b16 %v1515, %v1511
    %v1564 = vpack.c.b16 %v1516, %v1512
    %v1565 = vpack.c.b16 %v1521, %v1517
    %v1566 = vpack.c.b16 %v1522, %v1518
    %v1567 = vpack.c.b16 %v1523, %v1519
    %v1568 = vpack.c.b16 %v1524, %v1520
    %v1569 = vpack.c.b16 %v1529, %v1525
    %v1570 = vpack.c.b16 %v1530, %v1526
    %v1571 = vpack.c.b16 %v1531, %v1527
    %v1572 = vpack.c.b16 %v1532, %v1528
    %v1573 = vpack.c.b16 %v1537, %v1533
    %v1574 = vpack.c.b16 %v1538, %v1534
    %v1575 = vpack.c.b16 %v1539, %v1535
    %v1576 = vpack.c.b16 %v1540, %v1536
    %v1577 = vpack.c.b16 %v1545, %v1541
    %v1578 = vpack.c.b16 %v1546, %v1542
    %v1579 = vpack.c.b16 %v1547, %v1543
    %v1580 = vpack.c.b16 %v1548, %v1544
    %1613 = vmatprep.subr.bf16.mxu0 %v1550
    %1614 = vmatpush1.bf16.msra.mxu0 %v1549
    %1615 = vmatprep.subr.bf16.mxu0 %v1554
    %1616 = vmatpush1.bf16.msra.mxu0 %v1553
    %1617 = vmatprep.subr.bf16.mxu0 %v1558
    %1618 = vmatpush1.bf16.msra.mxu0 %v1557
    %1619 = vmatprep.subr.bf16.mxu0 %v1562
    %1620 = vmatpush1.bf16.msra.mxu0 %v1561
    %1621 = vmatprep.subr.bf16.mxu0 %v1566
    %1622 = vmatpush1.bf16.msra.mxu0 %v1565
    %1623 = vmatprep.subr.bf16.mxu0 %v1570
    %1624 = vmatpush1.bf16.msra.mxu0 %v1569
    %1625 = vmatprep.subr.bf16.mxu0 %v1574
    %1626 = vmatpush1.bf16.msra.mxu0 %v1573
    %1627 = vmatprep.subr.bf16.mxu0 %v1578
    %1628 = vmatpush1.bf16.msra.mxu0 %v1577
    %1629 = vmatprep.subr.bf16.mxu0 0
    %1630 = vmatpush1.bf16.msra.mxu0 0
    %1631 = vmatprep.subr.bf16.mxu0 0
    %1632 = vmatpush1.bf16.msra.mxu0 0
    %1633 = vmatprep.subr.bf16.mxu0 0
    %1634 = vmatpush1.bf16.msra.mxu0 0
    %1635 = vmatprep.subr.bf16.mxu0 0
    %1636 = vmatpush1.bf16.msra.mxu0 0
    %1637 = vmatprep.subr.bf16.mxu0 0
    %1638 = vmatpush1.bf16.msra.mxu0 0
    %1639 = vmatprep.subr.bf16.mxu0 0
    %1640 = vmatpush1.bf16.msra.mxu0 0
    %1641 = vmatprep.subr.bf16.mxu0 0
    %1642 = vmatpush1.bf16.msra.mxu0 0
    %1643 = vmatprep.subr.bf16.mxu0 0
    %1644 = vmatpush1.bf16.msra.mxu0 0
    %1645 = vmatprep.mubr.bf16.mxu0 0
    %1646 = vmatmul.mubr.bf16.gmra.mrb[0].mxu0 %v1413
    %v1647 = vpop.f32.mrb[0].mxu0
    %v1648 = vadd.f32 0.0, %v1647
    %v1649 = vpop.f32.mrb[0].mxu0
    %v1650 = vadd.f32 0.0, %v1649
    %v1651 = vpop.f32.mrb[0].mxu0
    %v1652 = vpop.f32.mrb[0].mxu0
    %1653 = vdwg.mxu0
    %1654 = vmatprep.subr.bf16.mxu0 %v1552
    %1655 = vmatpush1.bf16.msra.mxu0 %v1551
    %1656 = vmatprep.subr.bf16.mxu0 %v1556
    %1657 = vmatpush1.bf16.msra.mxu0 %v1555
    %1658 = vmatprep.subr.bf16.mxu0 %v1560
    %1659 = vmatpush1.bf16.msra.mxu0 %v1559
    %1660 = vmatprep.subr.bf16.mxu0 %v1564
    %1661 = vmatpush1.bf16.msra.mxu0 %v1563
    %1662 = vmatprep.subr.bf16.mxu0 %v1568
    %1663 = vmatpush1.bf16.msra.mxu0 %v1567
    %1664 = vmatprep.subr.bf16.mxu0 %v1572
    %1665 = vmatpush1.bf16.msra.mxu0 %v1571
    %1666 = vmatprep.subr.bf16.mxu0 %v1576
    %1667 = vmatpush1.bf16.msra.mxu0 %v1575
    %1668 = vmatprep.subr.bf16.mxu0 %v1580
    %1669 = vmatpush1.bf16.msra.mxu0 %v1579
    %1670 = vmatprep.subr.bf16.mxu0 0
    %1671 = vmatpush1.bf16.msra.mxu0 0
    %1672 = vmatprep.subr.bf16.mxu0 0
    %1673 = vmatpush1.bf16.msra.mxu0 0
    %1674 = vmatprep.subr.bf16.mxu0 0
    %1675 = vmatpush1.bf16.msra.mxu0 0
    %1676 = vmatprep.subr.bf16.mxu0 0
    %1677 = vmatpush1.bf16.msra.mxu0 0
    %1678 = vmatprep.subr.bf16.mxu0 0
    %1679 = vmatpush1.bf16.msra.mxu0 0
    %1680 = vmatprep.subr.bf16.mxu0 0
    %1681 = vmatpush1.bf16.msra.mxu0 0
    %1682 = vmatprep.subr.bf16.mxu0 0
    %1683 = vmatpush1.bf16.msra.mxu0 0
    %1684 = vmatprep.subr.bf16.mxu0 0
    %1685 = vmatpush1.bf16.msra.mxu0 0
    %1686 = vmatprep.mubr.bf16.mxu0 0
    %1687 = vmatmul.mubr.bf16.gmra.mrb[0].mxu0 %v1413
    %v1688 = vpop.f32.mrb[0].mxu0
    %v1689 = vadd.f32 0.0, %v1688
    %v1690 = vpop.f32.mrb[0].mxu0
    %v1691 = vadd.f32 0.0, %v1690
    %v1692 = vpop.f32.mrb[0].mxu0
    %v1693 = vpop.f32.mrb[0].mxu0
    %1694 = vdwg.mxu0
    %v1695 = vadd.f32 %v1417, %v1648
    %v1696 = vadd.f32 %v1418, %v1650
    %v1697 = vadd.f32 %v1419, %v1689
    %v1698 = vadd.f32 %v1420, %v1691
    %v1699 = vsub.f32 0.0, %v1695
    %v1700 = vmul.f32 %v1699, 1.442695
    %v1701 = vpow.pop %v1700
    %v1702 = vadd.f32 %v1701, 1.0
    %v1703 = vrcp.pop %v1702
    %v1704 = vsub.f32 0.0, %v1696
    %v1705 = vmul.f32 %v1704, 1.442695
    %v1706 = vpow.pop %v1705
    %v1707 = vadd.f32 %v1706, 1.0
    %v1708 = vrcp.pop %v1707
    %v1709 = vtanh.pop %v1697
    %v1710 = vsub.f32 0.0, %v1698
    %v1711 = vmul.f32 %v1710, 1.442695
    %v1712 = vpow.pop %v1711
    %v1713 = vadd.f32 %v1712, 1.0
    %v1714 = vrcp.pop %v1713
    %v1715 = vmul.f32 %v1708, %v1410
    %v1716 = vmul.f32 %v1703, %v1709
    %v1717 = vadd.f32 %v1715, %v1716
    %v1718 = vtanh.pop %v1717
    %v1719 = vmul.f32 %v1714, %v1718
    %v1720 = vpack.c.bf16 %v1719, %v1719
    %s1721 = scalar_lea.vmem [#allocation11], 12
    %1722 = vst [vmem:[%s1721] sm:$0xf] %v1720
    %s1723 = scalar_lea.vmem [#allocation4], 128
    %v1724 = vld [vmem:[%s1723] sm:$0xff]
    %v1725 = vld [vmem:[%s1723 + $0x8] sm:$0xff]
    %v1726 = vld [vmem:[%s1723 + $0x10] sm:$0xff]
    %v1727 = vld [vmem:[%s1723 + $0x18] sm:$0xff]
    %v1728 = vld [vmem:[#allocation10] sm:$0xff]
    %v1729 = vld [vmem:[#allocation10 + $0x8] sm:$0xff]
    %v1730 = vld [vmem:[#allocation10 + $0x10] sm:$0xff]
    %v1731 = vld [vmem:[#allocation10 + $0x18] sm:$0xff]
    %v1732 = vld [vmem:[#allocation10 + $0x20] sm:$0xff]
    %v1733 = vld [vmem:[#allocation10 + $0x28] sm:$0xff]
    %v1734 = vld [vmem:[#allocation10 + $0x30] sm:$0xff]
    %v1735 = vld [vmem:[#allocation10 + $0x38] sm:$0xff]
    %v1736 = vld [vmem:[#allocation10 + $0x40] sm:$0xff]
    %v1737 = vld [vmem:[#allocation10 + $0x48] sm:$0xff]
    %v1738 = vld [vmem:[#allocation10 + $0x50] sm:$0xff]
    %v1739 = vld [vmem:[#allocation10 + $0x58] sm:$0xff]
    %v1740 = vld [vmem:[#allocation10 + $0x60] sm:$0xff]
    %v1741 = vld [vmem:[#allocation10 + $0x68] sm:$0xff]
    %v1742 = vld [vmem:[#allocation10 + $0x70] sm:$0xff]
    %v1743 = vld [vmem:[#allocation10 + $0x78] sm:$0xff]
    %v1744 = vld [vmem:[#allocation10 + $0x80] sm:$0xff]
    %v1745 = vld [vmem:[#allocation10 + $0x88] sm:$0xff]
    %v1746 = vld [vmem:[#allocation10 + $0x90] sm:$0xff]
    %v1747 = vld [vmem:[#allocation10 + $0x98] sm:$0xff]
    %v1748 = vld [vmem:[#allocation10 + $0xa0] sm:$0xff]
    %v1749 = vld [vmem:[#allocation10 + $0xa8] sm:$0xff]
    %v1750 = vld [vmem:[#allocation10 + $0xb0] sm:$0xff]
    %v1751 = vld [vmem:[#allocation10 + $0xb8] sm:$0xff]
    %v1752 = vld [vmem:[#allocation10 + $0xc0] sm:$0xff]
    %v1753 = vld [vmem:[#allocation10 + $0xc8] sm:$0xff]
    %v1754 = vld [vmem:[#allocation10 + $0xd0] sm:$0xff]
    %v1755 = vld [vmem:[#allocation10 + $0xd8] sm:$0xff]
    %v1756 = vld [vmem:[#allocation10 + $0xe0] sm:$0xff]
    %v1757 = vld [vmem:[#allocation10 + $0xe8] sm:$0xff]
    %v1758 = vld [vmem:[#allocation10 + $0xf0] sm:$0xff]
    %v1759 = vld [vmem:[#allocation10 + $0xf8] sm:$0xff]
    %v1792 = vunpack.c.l.b16 %v1728
    %v1793 = vunpack.c.h.b16 %v1728
    %v1794 = vunpack.c.l.b16 %v1729
    %v1795 = vunpack.c.h.b16 %v1729
    %v1796 = vunpack.c.l.b16 %v1730
    %v1797 = vunpack.c.h.b16 %v1730
    %v1798 = vunpack.c.l.b16 %v1731
    %v1799 = vunpack.c.h.b16 %v1731
    %v1800 = vunpack.c.l.b16 %v1732
    %v1801 = vunpack.c.h.b16 %v1732
    %v1802 = vunpack.c.l.b16 %v1733
    %v1803 = vunpack.c.h.b16 %v1733
    %v1804 = vunpack.c.l.b16 %v1734
    %v1805 = vunpack.c.h.b16 %v1734
    %v1806 = vunpack.c.l.b16 %v1735
    %v1807 = vunpack.c.h.b16 %v1735
    %v1808 = vunpack.c.l.b16 %v1736
    %v1809 = vunpack.c.h.b16 %v1736
    %v1810 = vunpack.c.l.b16 %v1737
    %v1811 = vunpack.c.h.b16 %v1737
    %v1812 = vunpack.c.l.b16 %v1738
    %v1813 = vunpack.c.h.b16 %v1738
    %v1814 = vunpack.c.l.b16 %v1739
    %v1815 = vunpack.c.h.b16 %v1739
    %v1816 = vunpack.c.l.b16 %v1740
    %v1817 = vunpack.c.h.b16 %v1740
    %v1818 = vunpack.c.l.b16 %v1741
    %v1819 = vunpack.c.h.b16 %v1741
    %v1820 = vunpack.c.l.b16 %v1742
    %v1821 = vunpack.c.h.b16 %v1742
    %v1822 = vunpack.c.l.b16 %v1743
    %v1823 = vunpack.c.h.b16 %v1743
    %v1824 = vunpack.c.l.b16 %v1744
    %v1825 = vunpack.c.h.b16 %v1744
    %v1826 = vunpack.c.l.b16 %v1745
    %v1827 = vunpack.c.h.b16 %v1745
    %v1828 = vunpack.c.l.b16 %v1746
    %v1829 = vunpack.c.h.b16 %v1746
    %v1830 = vunpack.c.l.b16 %v1747
    %v1831 = vunpack.c.h.b16 %v1747
    %v1832 = vunpack.c.l.b16 %v1748
    %v1833 = vunpack.c.h.b16 %v1748
    %v1834 = vunpack.c.l.b16 %v1749
    %v1835 = vunpack.c.h.b16 %v1749
    %v1836 = vunpack.c.l.b16 %v1750
    %v1837 = vunpack.c.h.b16 %v1750
    %v1838 = vunpack.c.l.b16 %v1751
    %v1839 = vunpack.c.h.b16 %v1751
    %v1840 = vunpack.c.l.b16 %v1752
    %v1841 = vunpack.c.h.b16 %v1752
    %v1842 = vunpack.c.l.b16 %v1753
    %v1843 = vunpack.c.h.b16 %v1753
    %v1844 = vunpack.c.l.b16 %v1754
    %v1845 = vunpack.c.h.b16 %v1754
    %v1846 = vunpack.c.l.b16 %v1755
    %v1847 = vunpack.c.h.b16 %v1755
    %v1848 = vunpack.c.l.b16 %v1756
    %v1849 = vunpack.c.h.b16 %v1756
    %v1850 = vunpack.c.l.b16 %v1757
    %v1851 = vunpack.c.h.b16 %v1757
    %v1852 = vunpack.c.l.b16 %v1758
    %v1853 = vunpack.c.h.b16 %v1758
    %v1854 = vunpack.c.l.b16 %v1759
    %v1855 = vunpack.c.h.b16 %v1759
    %v1856 = vpack.c.b16 %v1796, %v1792
    %v1857 = vpack.c.b16 %v1797, %v1793
    %v1858 = vpack.c.b16 %v1798, %v1794
    %v1859 = vpack.c.b16 %v1799, %v1795
    %v1860 = vpack.c.b16 %v1804, %v1800
    %v1861 = vpack.c.b16 %v1805, %v1801
    %v1862 = vpack.c.b16 %v1806, %v1802
    %v1863 = vpack.c.b16 %v1807, %v1803
    %v1864 = vpack.c.b16 %v1812, %v1808
    %v1865 = vpack.c.b16 %v1813, %v1809
    %v1866 = vpack.c.b16 %v1814, %v1810
    %v1867 = vpack.c.b16 %v1815, %v1811
    %v1868 = vpack.c.b16 %v1820, %v1816
    %v1869 = vpack.c.b16 %v1821, %v1817
    %v1870 = vpack.c.b16 %v1822, %v1818
    %v1871 = vpack.c.b16 %v1823, %v1819
    %v1872 = vpack.c.b16 %v1828, %v1824
    %v1873 = vpack.c.b16 %v1829, %v1825
    %v1874 = vpack.c.b16 %v1830, %v1826
    %v1875 = vpack.c.b16 %v1831, %v1827
    %v1876 = vpack.c.b16 %v1836, %v1832
    %v1877 = vpack.c.b16 %v1837, %v1833
    %v1878 = vpack.c.b16 %v1838, %v1834
    %v1879 = vpack.c.b16 %v1839, %v1835
    %v1880 = vpack.c.b16 %v1844, %v1840
    %v1881 = vpack.c.b16 %v1845, %v1841
    %v1882 = vpack.c.b16 %v1846, %v1842
    %v1883 = vpack.c.b16 %v1847, %v1843
    %v1884 = vpack.c.b16 %v1852, %v1848
    %v1885 = vpack.c.b16 %v1853, %v1849
    %v1886 = vpack.c.b16 %v1854, %v1850
    %v1887 = vpack.c.b16 %v1855, %v1851
    %1920 = vmatprep.subr.bf16.mxu0 %v1857
    %1921 = vmatpush1.bf16.msra.mxu0 %v1856
    %1922 = vmatprep.subr.bf16.mxu0 %v1861
    %1923 = vmatpush1.bf16.msra.mxu0 %v1860
    %1924 = vmatprep.subr.bf16.mxu0 %v1865
    %1925 = vmatpush1.bf16.msra.mxu0 %v1864
    %1926 = vmatprep.subr.bf16.mxu0 %v1869
    %1927 = vmatpush1.bf16.msra.mxu0 %v1868
    %1928 = vmatprep.subr.bf16.mxu0 %v1873
    %1929 = vmatpush1.bf16.msra.mxu0 %v1872
    %1930 = vmatprep.subr.bf16.mxu0 %v1877
    %1931 = vmatpush1.bf16.msra.mxu0 %v1876
    %1932 = vmatprep.subr.bf16.mxu0 %v1881
    %1933 = vmatpush1.bf16.msra.mxu0 %v1880
    %1934 = vmatprep.subr.bf16.mxu0 %v1885
    %1935 = vmatpush1.bf16.msra.mxu0 %v1884
    %1936 = vmatprep.subr.bf16.mxu0 0
    %1937 = vmatpush1.bf16.msra.mxu0 0
    %1938 = vmatprep.subr.bf16.mxu0 0
    %1939 = vmatpush1.bf16.msra.mxu0 0
    %1940 = vmatprep.subr.bf16.mxu0 0
    %1941 = vmatpush1.bf16.msra.mxu0 0
    %1942 = vmatprep.subr.bf16.mxu0 0
    %1943 = vmatpush1.bf16.msra.mxu0 0
    %1944 = vmatprep.subr.bf16.mxu0 0
    %1945 = vmatpush1.bf16.msra.mxu0 0
    %1946 = vmatprep.subr.bf16.mxu0 0
    %1947 = vmatpush1.bf16.msra.mxu0 0
    %1948 = vmatprep.subr.bf16.mxu0 0
    %1949 = vmatpush1.bf16.msra.mxu0 0
    %1950 = vmatprep.subr.bf16.mxu0 0
    %1951 = vmatpush1.bf16.msra.mxu0 0
    %1952 = vmatprep.mubr.bf16.mxu0 0
    %1953 = vmatmul.mubr.bf16.gmra.mrb[0].mxu0 %v1720
    %v1954 = vpop.f32.mrb[0].mxu0
    %v1955 = vadd.f32 0.0, %v1954
    %v1956 = vpop.f32.mrb[0].mxu0
    %v1957 = vadd.f32 0.0, %v1956
    %v1958 = vpop.f32.mrb[0].mxu0
    %v1959 = vpop.f32.mrb[0].mxu0
    %1960 = vdwg.mxu0
    %1961 = vmatprep.subr.bf16.mxu0 %v1859
    %1962 = vmatpush1.bf16.msra.mxu0 %v1858
    %1963 = vmatprep.subr.bf16.mxu0 %v1863
    %1964 = vmatpush1.bf16.msra.mxu0 %v1862
    %1965 = vmatprep.subr.bf16.mxu0 %v1867
    %1966 = vmatpush1.bf16.msra.mxu0 %v1866
    %1967 = vmatprep.subr.bf16.mxu0 %v1871
    %1968 = vmatpush1.bf16.msra.mxu0 %v1870
    %1969 = vmatprep.subr.bf16.mxu0 %v1875
    %1970 = vmatpush1.bf16.msra.mxu0 %v1874
    %1971 = vmatprep.subr.bf16.mxu0 %v1879
    %1972 = vmatpush1.bf16.msra.mxu0 %v1878
    %1973 = vmatprep.subr.bf16.mxu0 %v1883
    %1974 = vmatpush1.bf16.msra.mxu0 %v1882
    %1975 = vmatprep.subr.bf16.mxu0 %v1887
    %1976 = vmatpush1.bf16.msra.mxu0 %v1886
    %1977 = vmatprep.subr.bf16.mxu0 0
    %1978 = vmatpush1.bf16.msra.mxu0 0
    %1979 = vmatprep.subr.bf16.mxu0 0
    %1980 = vmatpush1.bf16.msra.mxu0 0
    %1981 = vmatprep.subr.bf16.mxu0 0
    %1982 = vmatpush1.bf16.msra.mxu0 0
    %1983 = vmatprep.subr.bf16.mxu0 0
    %1984 = vmatpush1.bf16.msra.mxu0 0
    %1985 = vmatprep.subr.bf16.mxu0 0
    %1986 = vmatpush1.bf16.msra.mxu0 0
    %1987 = vmatprep.subr.bf16.mxu0 0
    %1988 = vmatpush1.bf16.msra.mxu0 0
    %1989 = vmatprep.subr.bf16.mxu0 0
    %1990 = vmatpush1.bf16.msra.mxu0 0
    %1991 = vmatprep.subr.bf16.mxu0 0
    %1992 = vmatpush1.bf16.msra.mxu0 0
    %1993 = vmatprep.mubr.bf16.mxu0 0
    %1994 = vmatmul.mubr.bf16.gmra.mrb[0].mxu0 %v1720
    %v1995 = vpop.f32.mrb[0].mxu0
    %v1996 = vadd.f32 0.0, %v1995
    %v1997 = vpop.f32.mrb[0].mxu0
    %v1998 = vadd.f32 0.0, %v1997
    %v1999 = vpop.f32.mrb[0].mxu0
    %v2000 = vpop.f32.mrb[0].mxu0
    %2001 = vdwg.mxu0
    %v2002 = vadd.f32 %v1724, %v1955
    %v2003 = vadd.f32 %v1725, %v1957
    %v2004 = vadd.f32 %v1726, %v1996
    %v2005 = vadd.f32 %v1727, %v1998
    %v2006 = vsub.f32 0.0, %v2002
    %v2007 = vmul.f32 %v2006, 1.442695
    %v2008 = vpow.pop %v2007
    %v2009 = vadd.f32 %v2008, 1.0
    %v2010 = vrcp.pop %v2009
    %v2011 = vsub.f32 0.0, %v2003
    %v2012 = vmul.f32 %v2011, 1.442695
    %v2013 = vpow.pop %v2012
    %v2014 = vadd.f32 %v2013, 1.0
    %v2015 = vrcp.pop %v2014
    %v2016 = vtanh.pop %v2004
    %v2017 = vsub.f32 0.0, %v2005
    %v2018 = vmul.f32 %v2017, 1.442695
    %v2019 = vpow.pop %v2018
    %v2020 = vadd.f32 %v2019, 1.0
    %v2021 = vrcp.pop %v2020
    %v2022 = vmul.f32 %v2015, %v1717
    %v2023 = vmul.f32 %v2010, %v2016
    %v2024 = vadd.f32 %v2022, %v2023
    %v2025 = vtanh.pop %v2024
    %v2026 = vmul.f32 %v2021, %v2025
    %v2027 = vpack.c.bf16 %v2026, %v2026
    %s2028 = scalar_lea.vmem [#allocation11], 16
    %2029 = vst [vmem:[%s2028] sm:$0xf] %v2027
    %s2030 = scalar_lea.vmem [#allocation4], 160
    %v2031 = vld [vmem:[%s2030] sm:$0xff]
    %v2032 = vld [vmem:[%s2030 + $0x8] sm:$0xff]
    %v2033 = vld [vmem:[%s2030 + $0x10] sm:$0xff]
    %v2034 = vld [vmem:[%s2030 + $0x18] sm:$0xff]
    %v2035 = vld [vmem:[#allocation10] sm:$0xff]
    %v2036 = vld [vmem:[#allocation10 + $0x8] sm:$0xff]
    %v2037 = vld [vmem:[#allocation10 + $0x10] sm:$0xff]
    %v2038 = vld [vmem:[#allocation10 + $0x18] sm:$0xff]
    %v2039 = vld [vmem:[#allocation10 + $0x20] sm:$0xff]
    %v2040 = vld [vmem:[#allocation10 + $0x28] sm:$0xff]
    %v2041 = vld [vmem:[#allocation10 + $0x30] sm:$0xff]
    %v2042 = vld [vmem:[#allocation10 + $0x38] sm:$0xff]
    %v2043 = vld [vmem:[#allocation10 + $0x40] sm:$0xff]
    %v2044 = vld [vmem:[#allocation10 + $0x48] sm:$0xff]
    %v2045 = vld [vmem:[#allocation10 + $0x50] sm:$0xff]
    %v2046 = vld [vmem:[#allocation10 + $0x58] sm:$0xff]
    %v2047 = vld [vmem:[#allocation10 + $0x60] sm:$0xff]
    %v2048 = vld [vmem:[#allocation10 + $0x68] sm:$0xff]
    %v2049 = vld [vmem:[#allocation10 + $0x70] sm:$0xff]
    %v2050 = vld [vmem:[#allocation10 + $0x78] sm:$0xff]
    %v2051 = vld [vmem:[#allocation10 + $0x80] sm:$0xff]
    %v2052 = vld [vmem:[#allocation10 + $0x88] sm:$0xff]
    %v2053 = vld [vmem:[#allocation10 + $0x90] sm:$0xff]
    %v2054 = vld [vmem:[#allocation10 + $0x98] sm:$0xff]
    %v2055 = vld [vmem:[#allocation10 + $0xa0] sm:$0xff]
    %v2056 = vld [vmem:[#allocation10 + $0xa8] sm:$0xff]
    %v2057 = vld [vmem:[#allocation10 + $0xb0] sm:$0xff]
    %v2058 = vld [vmem:[#allocation10 + $0xb8] sm:$0xff]
    %v2059 = vld [vmem:[#allocation10 + $0xc0] sm:$0xff]
    %v2060 = vld [vmem:[#allocation10 + $0xc8] sm:$0xff]
    %v2061 = vld [vmem:[#allocation10 + $0xd0] sm:$0xff]
    %v2062 = vld [vmem:[#allocation10 + $0xd8] sm:$0xff]
    %v2063 = vld [vmem:[#allocation10 + $0xe0] sm:$0xff]
    %v2064 = vld [vmem:[#allocation10 + $0xe8] sm:$0xff]
    %v2065 = vld [vmem:[#allocation10 + $0xf0] sm:$0xff]
    %v2066 = vld [vmem:[#allocation10 + $0xf8] sm:$0xff]
    %v2099 = vunpack.c.l.b16 %v2035
    %v2100 = vunpack.c.h.b16 %v2035
    %v2101 = vunpack.c.l.b16 %v2036
    %v2102 = vunpack.c.h.b16 %v2036
    %v2103 = vunpack.c.l.b16 %v2037
    %v2104 = vunpack.c.h.b16 %v2037
    %v2105 = vunpack.c.l.b16 %v2038
    %v2106 = vunpack.c.h.b16 %v2038
    %v2107 = vunpack.c.l.b16 %v2039
    %v2108 = vunpack.c.h.b16 %v2039
    %v2109 = vunpack.c.l.b16 %v2040
    %v2110 = vunpack.c.h.b16 %v2040
    %v2111 = vunpack.c.l.b16 %v2041
    %v2112 = vunpack.c.h.b16 %v2041
    %v2113 = vunpack.c.l.b16 %v2042
    %v2114 = vunpack.c.h.b16 %v2042
    %v2115 = vunpack.c.l.b16 %v2043
    %v2116 = vunpack.c.h.b16 %v2043
    %v2117 = vunpack.c.l.b16 %v2044
    %v2118 = vunpack.c.h.b16 %v2044
    %v2119 = vunpack.c.l.b16 %v2045
    %v2120 = vunpack.c.h.b16 %v2045
    %v2121 = vunpack.c.l.b16 %v2046
    %v2122 = vunpack.c.h.b16 %v2046
    %v2123 = vunpack.c.l.b16 %v2047
    %v2124 = vunpack.c.h.b16 %v2047
    %v2125 = vunpack.c.l.b16 %v2048
    %v2126 = vunpack.c.h.b16 %v2048
    %v2127 = vunpack.c.l.b16 %v2049
    %v2128 = vunpack.c.h.b16 %v2049
    %v2129 = vunpack.c.l.b16 %v2050
    %v2130 = vunpack.c.h.b16 %v2050
    %v2131 = vunpack.c.l.b16 %v2051
    %v2132 = vunpack.c.h.b16 %v2051
    %v2133 = vunpack.c.l.b16 %v2052
    %v2134 = vunpack.c.h.b16 %v2052
    %v2135 = vunpack.c.l.b16 %v2053
    %v2136 = vunpack.c.h.b16 %v2053
    %v2137 = vunpack.c.l.b16 %v2054
    %v2138 = vunpack.c.h.b16 %v2054
    %v2139 = vunpack.c.l.b16 %v2055
    %v2140 = vunpack.c.h.b16 %v2055
    %v2141 = vunpack.c.l.b16 %v2056
    %v2142 = vunpack.c.h.b16 %v2056
    %v2143 = vunpack.c.l.b16 %v2057
    %v2144 = vunpack.c.h.b16 %v2057
    %v2145 = vunpack.c.l.b16 %v2058
    %v2146 = vunpack.c.h.b16 %v2058
    %v2147 = vunpack.c.l.b16 %v2059
    %v2148 = vunpack.c.h.b16 %v2059
    %v2149 = vunpack.c.l.b16 %v2060
    %v2150 = vunpack.c.h.b16 %v2060
    %v2151 = vunpack.c.l.b16 %v2061
    %v2152 = vunpack.c.h.b16 %v2061
    %v2153 = vunpack.c.l.b16 %v2062
    %v2154 = vunpack.c.h.b16 %v2062
    %v2155 = vunpack.c.l.b16 %v2063
    %v2156 = vunpack.c.h.b16 %v2063
    %v2157 = vunpack.c.l.b16 %v2064
    %v2158 = vunpack.c.h.b16 %v2064
    %v2159 = vunpack.c.l.b16 %v2065
    %v2160 = vunpack.c.h.b16 %v2065
    %v2161 = vunpack.c.l.b16 %v2066
    %v2162 = vunpack.c.h.b16 %v2066
    %v2163 = vpack.c.b16 %v2103, %v2099
    %v2164 = vpack.c.b16 %v2104, %v2100
    %v2165 = vpack.c.b16 %v2105, %v2101
    %v2166 = vpack.c.b16 %v2106, %v2102
    %v2167 = vpack.c.b16 %v2111, %v2107
    %v2168 = vpack.c.b16 %v2112, %v2108
    %v2169 = vpack.c.b16 %v2113, %v2109
    %v2170 = vpack.c.b16 %v2114, %v2110
    %v2171 = vpack.c.b16 %v2119, %v2115
    %v2172 = vpack.c.b16 %v2120, %v2116
    %v2173 = vpack.c.b16 %v2121, %v2117
    %v2174 = vpack.c.b16 %v2122, %v2118
    %v2175 = vpack.c.b16 %v2127, %v2123
    %v2176 = vpack.c.b16 %v2128, %v2124
    %v2177 = vpack.c.b16 %v2129, %v2125
    %v2178 = vpack.c.b16 %v2130, %v2126
    %v2179 = vpack.c.b16 %v2135, %v2131
    %v2180 = vpack.c.b16 %v2136, %v2132
    %v2181 = vpack.c.b16 %v2137, %v2133
    %v2182 = vpack.c.b16 %v2138, %v2134
    %v2183 = vpack.c.b16 %v2143, %v2139
    %v2184 = vpack.c.b16 %v2144, %v2140
    %v2185 = vpack.c.b16 %v2145, %v2141
    %v2186 = vpack.c.b16 %v2146, %v2142
    %v2187 = vpack.c.b16 %v2151, %v2147
    %v2188 = vpack.c.b16 %v2152, %v2148
    %v2189 = vpack.c.b16 %v2153, %v2149
    %v2190 = vpack.c.b16 %v2154, %v2150
    %v2191 = vpack.c.b16 %v2159, %v2155
    %v2192 = vpack.c.b16 %v2160, %v2156
    %v2193 = vpack.c.b16 %v2161, %v2157
    %v2194 = vpack.c.b16 %v2162, %v2158
    %2227 = vmatprep.subr.bf16.mxu0 %v2164
    %2228 = vmatpush1.bf16.msra.mxu0 %v2163
    %2229 = vmatprep.subr.bf16.mxu0 %v2168
    %2230 = vmatpush1.bf16.msra.mxu0 %v2167
    %2231 = vmatprep.subr.bf16.mxu0 %v2172
    %2232 = vmatpush1.bf16.msra.mxu0 %v2171
    %2233 = vmatprep.subr.bf16.mxu0 %v2176
    %2234 = vmatpush1.bf16.msra.mxu0 %v2175
    %2235 = vmatprep.subr.bf16.mxu0 %v2180
    %2236 = vmatpush1.bf16.msra.mxu0 %v2179
    %2237 = vmatprep.subr.bf16.mxu0 %v2184
    %2238 = vmatpush1.bf16.msra.mxu0 %v2183
    %2239 = vmatprep.subr.bf16.mxu0 %v2188
    %2240 = vmatpush1.bf16.msra.mxu0 %v2187
    %2241 = vmatprep.subr.bf16.mxu0 %v2192
    %2242 = vmatpush1.bf16.msra.mxu0 %v2191
    %2243 = vmatprep.subr.bf16.mxu0 0
    %2244 = vmatpush1.bf16.msra.mxu0 0
    %2245 = vmatprep.subr.bf16.mxu0 0
    %2246 = vmatpush1.bf16.msra.mxu0 0
    %2247 = vmatprep.subr.bf16.mxu0 0
    %2248 = vmatpush1.bf16.msra.mxu0 0
    %2249 = vmatprep.subr.bf16.mxu0 0
    %2250 = vmatpush1.bf16.msra.mxu0 0
    %2251 = vmatprep.subr.bf16.mxu0 0
    %2252 = vmatpush1.bf16.msra.mxu0 0
    %2253 = vmatprep.subr.bf16.mxu0 0
    %2254 = vmatpush1.bf16.msra.mxu0 0
    %2255 = vmatprep.subr.bf16.mxu0 0
    %2256 = vmatpush1.bf16.msra.mxu0 0
    %2257 = vmatprep.subr.bf16.mxu0 0
    %2258 = vmatpush1.bf16.msra.mxu0 0
    %2259 = vmatprep.mubr.bf16.mxu0 0
    %2260 = vmatmul.mubr.bf16.gmra.mrb[0].mxu0 %v2027
    %v2261 = vpop.f32.mrb[0].mxu0
    %v2262 = vadd.f32 0.0, %v2261
    %v2263 = vpop.f32.mrb[0].mxu0
    %v2264 = vadd.f32 0.0, %v2263
    %v2265 = vpop.f32.mrb[0].mxu0
    %v2266 = vpop.f32.mrb[0].mxu0
    %2267 = vdwg.mxu0
    %2268 = vmatprep.subr.bf16.mxu0 %v2166
    %2269 = vmatpush1.bf16.msra.mxu0 %v2165
    %2270 = vmatprep.subr.bf16.mxu0 %v2170
    %2271 = vmatpush1.bf16.msra.mxu0 %v2169
    %2272 = vmatprep.subr.bf16.mxu0 %v2174
    %2273 = vmatpush1.bf16.msra.mxu0 %v2173
    %2274 = vmatprep.subr.bf16.mxu0 %v2178
    %2275 = vmatpush1.bf16.msra.mxu0 %v2177
    %2276 = vmatprep.subr.bf16.mxu0 %v2182
    %2277 = vmatpush1.bf16.msra.mxu0 %v2181
    %2278 = vmatprep.subr.bf16.mxu0 %v2186
    %2279 = vmatpush1.bf16.msra.mxu0 %v2185
    %2280 = vmatprep.subr.bf16.mxu0 %v2190
    %2281 = vmatpush1.bf16.msra.mxu0 %v2189
    %2282 = vmatprep.subr.bf16.mxu0 %v2194
    %2283 = vmatpush1.bf16.msra.mxu0 %v2193
    %2284 = vmatprep.subr.bf16.mxu0 0
    %2285 = vmatpush1.bf16.msra.mxu0 0
    %2286 = vmatprep.subr.bf16.mxu0 0
    %2287 = vmatpush1.bf16.msra.mxu0 0
    %2288 = vmatprep.subr.bf16.mxu0 0
    %2289 = vmatpush1.bf16.msra.mxu0 0
    %2290 = vmatprep.subr.bf16.mxu0 0
    %2291 = vmatpush1.bf16.msra.mxu0 0
    %2292 = vmatprep.subr.bf16.mxu0 0
    %2293 = vmatpush1.bf16.msra.mxu0 0
    %2294 = vmatprep.subr.bf16.mxu0 0
    %2295 = vmatpush1.bf16.msra.mxu0 0
    %2296 = vmatprep.subr.bf16.mxu0 0
    %2297 = vmatpush1.bf16.msra.mxu0 0
    %2298 = vmatprep.subr.bf16.mxu0 0
    %2299 = vmatpush1.bf16.msra.mxu0 0
    %2300 = vmatprep.mubr.bf16.mxu0 0
    %2301 = vmatmul.mubr.bf16.gmra.mrb[0].mxu0 %v2027
    %v2302 = vpop.f32.mrb[0].mxu0
    %v2303 = vadd.f32 0.0, %v2302
    %v2304 = vpop.f32.mrb[0].mxu0
    %v2305 = vadd.f32 0.0, %v2304
    %v2306 = vpop.f32.mrb[0].mxu0
    %v2307 = vpop.f32.mrb[0].mxu0
    %2308 = vdwg.mxu0
    %v2309 = vadd.f32 %v2031, %v2262
    %v2310 = vadd.f32 %v2032, %v2264
    %v2311 = vadd.f32 %v2033, %v2303
    %v2312 = vadd.f32 %v2034, %v2305
    %v2313 = vsub.f32 0.0, %v2309
    %v2314 = vmul.f32 %v2313, 1.442695
    %v2315 = vpow.pop %v2314
    %v2316 = vadd.f32 %v2315, 1.0
    %v2317 = vrcp.pop %v2316
    %v2318 = vsub.f32 0.0, %v2310
    %v2319 = vmul.f32 %v2318, 1.442695
    %v2320 = vpow.pop %v2319
    %v2321 = vadd.f32 %v2320, 1.0
    %v2322 = vrcp.pop %v2321
    %v2323 = vtanh.pop %v2311
    %v2324 = vsub.f32 0.0, %v2312
    %v2325 = vmul.f32 %v2324, 1.442695
    %v2326 = vpow.pop %v2325
    %v2327 = vadd.f32 %v2326, 1.0
    %v2328 = vrcp.pop %v2327
    %v2329 = vmul.f32 %v2322, %v2024
    %v2330 = vmul.f32 %v2317, %v2323
    %v2331 = vadd.f32 %v2329, %v2330
    %v2332 = vtanh.pop %v2331
    %v2333 = vmul.f32 %v2328, %v2332
    %v2334 = vpack.c.bf16 %v2333, %v2333
    %s2335 = scalar_lea.vmem [#allocation11], 20
    %2336 = vst [vmem:[%s2335] sm:$0xf] %v2334
    %s2337 = scalar_lea.vmem [#allocation4], 192
    %v2338 = vld [vmem:[%s2337] sm:$0xff]
    %v2339 = vld [vmem:[%s2337 + $0x8] sm:$0xff]
    %v2340 = vld [vmem:[%s2337 + $0x10] sm:$0xff]
    %v2341 = vld [vmem:[%s2337 + $0x18] sm:$0xff]
    %v2342 = vld [vmem:[#allocation10] sm:$0xff]
    %v2343 = vld [vmem:[#allocation10 + $0x8] sm:$0xff]
    %v2344 = vld [vmem:[#allocation10 + $0x10] sm:$0xff]
    %v2345 = vld [vmem:[#allocation10 + $0x18] sm:$0xff]
    %v2346 = vld [vmem:[#allocation10 + $0x20] sm:$0xff]
    %v2347 = vld [vmem:[#allocation10 + $0x28] sm:$0xff]
    %v2348 = vld [vmem:[#allocation10 + $0x30] sm:$0xff]
    %v2349 = vld [vmem:[#allocation10 + $0x38] sm:$0xff]
    %v2350 = vld [vmem:[#allocation10 + $0x40] sm:$0xff]
    %v2351 = vld [vmem:[#allocation10 + $0x48] sm:$0xff]
    %v2352 = vld [vmem:[#allocation10 + $0x50] sm:$0xff]
    %v2353 = vld [vmem:[#allocation10 + $0x58] sm:$0xff]
    %v2354 = vld [vmem:[#allocation10 + $0x60] sm:$0xff]
    %v2355 = vld [vmem:[#allocation10 + $0x68] sm:$0xff]
    %v2356 = vld [vmem:[#allocation10 + $0x70] sm:$0xff]
    %v2357 = vld [vmem:[#allocation10 + $0x78] sm:$0xff]
    %v2358 = vld [vmem:[#allocation10 + $0x80] sm:$0xff]
    %v2359 = vld [vmem:[#allocation10 + $0x88] sm:$0xff]
    %v2360 = vld [vmem:[#allocation10 + $0x90] sm:$0xff]
    %v2361 = vld [vmem:[#allocation10 + $0x98] sm:$0xff]
    %v2362 = vld [vmem:[#allocation10 + $0xa0] sm:$0xff]
    %v2363 = vld [vmem:[#allocation10 + $0xa8] sm:$0xff]
    %v2364 = vld [vmem:[#allocation10 + $0xb0] sm:$0xff]
    %v2365 = vld [vmem:[#allocation10 + $0xb8] sm:$0xff]
    %v2366 = vld [vmem:[#allocation10 + $0xc0] sm:$0xff]
    %v2367 = vld [vmem:[#allocation10 + $0xc8] sm:$0xff]
    %v2368 = vld [vmem:[#allocation10 + $0xd0] sm:$0xff]
    %v2369 = vld [vmem:[#allocation10 + $0xd8] sm:$0xff]
    %v2370 = vld [vmem:[#allocation10 + $0xe0] sm:$0xff]
    %v2371 = vld [vmem:[#allocation10 + $0xe8] sm:$0xff]
    %v2372 = vld [vmem:[#allocation10 + $0xf0] sm:$0xff]
    %v2373 = vld [vmem:[#allocation10 + $0xf8] sm:$0xff]
    %v2406 = vunpack.c.l.b16 %v2342
    %v2407 = vunpack.c.h.b16 %v2342
    %v2408 = vunpack.c.l.b16 %v2343
    %v2409 = vunpack.c.h.b16 %v2343
    %v2410 = vunpack.c.l.b16 %v2344
    %v2411 = vunpack.c.h.b16 %v2344
    %v2412 = vunpack.c.l.b16 %v2345
    %v2413 = vunpack.c.h.b16 %v2345
    %v2414 = vunpack.c.l.b16 %v2346
    %v2415 = vunpack.c.h.b16 %v2346
    %v2416 = vunpack.c.l.b16 %v2347
    %v2417 = vunpack.c.h.b16 %v2347
    %v2418 = vunpack.c.l.b16 %v2348
    %v2419 = vunpack.c.h.b16 %v2348
    %v2420 = vunpack.c.l.b16 %v2349
    %v2421 = vunpack.c.h.b16 %v2349
    %v2422 = vunpack.c.l.b16 %v2350
    %v2423 = vunpack.c.h.b16 %v2350
    %v2424 = vunpack.c.l.b16 %v2351
    %v2425 = vunpack.c.h.b16 %v2351
    %v2426 = vunpack.c.l.b16 %v2352
    %v2427 = vunpack.c.h.b16 %v2352
    %v2428 = vunpack.c.l.b16 %v2353
    %v2429 = vunpack.c.h.b16 %v2353
    %v2430 = vunpack.c.l.b16 %v2354
    %v2431 = vunpack.c.h.b16 %v2354
    %v2432 = vunpack.c.l.b16 %v2355
    %v2433 = vunpack.c.h.b16 %v2355
    %v2434 = vunpack.c.l.b16 %v2356
    %v2435 = vunpack.c.h.b16 %v2356
    %v2436 = vunpack.c.l.b16 %v2357
    %v2437 = vunpack.c.h.b16 %v2357
    %v2438 = vunpack.c.l.b16 %v2358
    %v2439 = vunpack.c.h.b16 %v2358
    %v2440 = vunpack.c.l.b16 %v2359
    %v2441 = vunpack.c.h.b16 %v2359
    %v2442 = vunpack.c.l.b16 %v2360
    %v2443 = vunpack.c.h.b16 %v2360
    %v2444 = vunpack.c.l.b16 %v2361
    %v2445 = vunpack.c.h.b16 %v2361
    %v2446 = vunpack.c.l.b16 %v2362
    %v2447 = vunpack.c.h.b16 %v2362
    %v2448 = vunpack.c.l.b16 %v2363
    %v2449 = vunpack.c.h.b16 %v2363
    %v2450 = vunpack.c.l.b16 %v2364
    %v2451 = vunpack.c.h.b16 %v2364
    %v2452 = vunpack.c.l.b16 %v2365
    %v2453 = vunpack.c.h.b16 %v2365
    %v2454 = vunpack.c.l.b16 %v2366
    %v2455 = vunpack.c.h.b16 %v2366
    %v2456 = vunpack.c.l.b16 %v2367
    %v2457 = vunpack.c.h.b16 %v2367
    %v2458 = vunpack.c.l.b16 %v2368
    %v2459 = vunpack.c.h.b16 %v2368
    %v2460 = vunpack.c.l.b16 %v2369
    %v2461 = vunpack.c.h.b16 %v2369
    %v2462 = vunpack.c.l.b16 %v2370
    %v2463 = vunpack.c.h.b16 %v2370
    %v2464 = vunpack.c.l.b16 %v2371
    %v2465 = vunpack.c.h.b16 %v2371
    %v2466 = vunpack.c.l.b16 %v2372
    %v2467 = vunpack.c.h.b16 %v2372
    %v2468 = vunpack.c.l.b16 %v2373
    %v2469 = vunpack.c.h.b16 %v2373
    %v2470 = vpack.c.b16 %v2410, %v2406
    %v2471 = vpack.c.b16 %v2411, %v2407
    %v2472 = vpack.c.b16 %v2412, %v2408
    %v2473 = vpack.c.b16 %v2413, %v2409
    %v2474 = vpack.c.b16 %v2418, %v2414
    %v2475 = vpack.c.b16 %v2419, %v2415
    %v2476 = vpack.c.b16 %v2420, %v2416
    %v2477 = vpack.c.b16 %v2421, %v2417
    %v2478 = vpack.c.b16 %v2426, %v2422
    %v2479 = vpack.c.b16 %v2427, %v2423
    %v2480 = vpack.c.b16 %v2428, %v2424
    %v2481 = vpack.c.b16 %v2429, %v2425
    %v2482 = vpack.c.b16 %v2434, %v2430
    %v2483 = vpack.c.b16 %v2435, %v2431
    %v2484 = vpack.c.b16 %v2436, %v2432
    %v2485 = vpack.c.b16 %v2437, %v2433
    %v2486 = vpack.c.b16 %v2442, %v2438
    %v2487 = vpack.c.b16 %v2443, %v2439
    %v2488 = vpack.c.b16 %v2444, %v2440
    %v2489 = vpack.c.b16 %v2445, %v2441
    %v2490 = vpack.c.b16 %v2450, %v2446
    %v2491 = vpack.c.b16 %v2451, %v2447
    %v2492 = vpack.c.b16 %v2452, %v2448
    %v2493 = vpack.c.b16 %v2453, %v2449
    %v2494 = vpack.c.b16 %v2458, %v2454
    %v2495 = vpack.c.b16 %v2459, %v2455
    %v2496 = vpack.c.b16 %v2460, %v2456
    %v2497 = vpack.c.b16 %v2461, %v2457
    %v2498 = vpack.c.b16 %v2466, %v2462
    %v2499 = vpack.c.b16 %v2467, %v2463
    %v2500 = vpack.c.b16 %v2468, %v2464
    %v2501 = vpack.c.b16 %v2469, %v2465
    %2534 = vmatprep.subr.bf16.mxu0 %v2471
    %2535 = vmatpush1.bf16.msra.mxu0 %v2470
    %2536 = vmatprep.subr.bf16.mxu0 %v2475
    %2537 = vmatpush1.bf16.msra.mxu0 %v2474
    %2538 = vmatprep.subr.bf16.mxu0 %v2479
    %2539 = vmatpush1.bf16.msra.mxu0 %v2478
    %2540 = vmatprep.subr.bf16.mxu0 %v2483
    %2541 = vmatpush1.bf16.msra.mxu0 %v2482
    %2542 = vmatprep.subr.bf16.mxu0 %v2487
    %2543 = vmatpush1.bf16.msra.mxu0 %v2486
    %2544 = vmatprep.subr.bf16.mxu0 %v2491
    %2545 = vmatpush1.bf16.msra.mxu0 %v2490
    %2546 = vmatprep.subr.bf16.mxu0 %v2495
    %2547 = vmatpush1.bf16.msra.mxu0 %v2494
    %2548 = vmatprep.subr.bf16.mxu0 %v2499
    %2549 = vmatpush1.bf16.msra.mxu0 %v2498
    %2550 = vmatprep.subr.bf16.mxu0 0
    %2551 = vmatpush1.bf16.msra.mxu0 0
    %2552 = vmatprep.subr.bf16.mxu0 0
    %2553 = vmatpush1.bf16.msra.mxu0 0
    %2554 = vmatprep.subr.bf16.mxu0 0
    %2555 = vmatpush1.bf16.msra.mxu0 0
    %2556 = vmatprep.subr.bf16.mxu0 0
    %2557 = vmatpush1.bf16.msra.mxu0 0
    %2558 = vmatprep.subr.bf16.mxu0 0
    %2559 = vmatpush1.bf16.msra.mxu0 0
    %2560 = vmatprep.subr.bf16.mxu0 0
    %2561 = vmatpush1.bf16.msra.mxu0 0
    %2562 = vmatprep.subr.bf16.mxu0 0
    %2563 = vmatpush1.bf16.msra.mxu0 0
    %2564 = vmatprep.subr.bf16.mxu0 0
    %2565 = vmatpush1.bf16.msra.mxu0 0
    %2566 = vmatprep.mubr.bf16.mxu0 0
    %2567 = vmatmul.mubr.bf16.gmra.mrb[0].mxu0 %v2334
    %v2568 = vpop.f32.mrb[0].mxu0
    %v2569 = vadd.f32 0.0, %v2568
    %v2570 = vpop.f32.mrb[0].mxu0
    %v2571 = vadd.f32 0.0, %v2570
    %v2572 = vpop.f32.mrb[0].mxu0
    %v2573 = vpop.f32.mrb[0].mxu0
    %2574 = vdwg.mxu0
    %2575 = vmatprep.subr.bf16.mxu0 %v2473
    %2576 = vmatpush1.bf16.msra.mxu0 %v2472
    %2577 = vmatprep.subr.bf16.mxu0 %v2477
    %2578 = vmatpush1.bf16.msra.mxu0 %v2476
    %2579 = vmatprep.subr.bf16.mxu0 %v2481
    %2580 = vmatpush1.bf16.msra.mxu0 %v2480
    %2581 = vmatprep.subr.bf16.mxu0 %v2485
    %2582 = vmatpush1.bf16.msra.mxu0 %v2484
    %2583 = vmatprep.subr.bf16.mxu0 %v2489
    %2584 = vmatpush1.bf16.msra.mxu0 %v2488
    %2585 = vmatprep.subr.bf16.mxu0 %v2493
    %2586 = vmatpush1.bf16.msra.mxu0 %v2492
    %2587 = vmatprep.subr.bf16.mxu0 %v2497
    %2588 = vmatpush1.bf16.msra.mxu0 %v2496
    %2589 = vmatprep.subr.bf16.mxu0 %v2501
    %2590 = vmatpush1.bf16.msra.mxu0 %v2500
    %2591 = vmatprep.subr.bf16.mxu0 0
    %2592 = vmatpush1.bf16.msra.mxu0 0
    %2593 = vmatprep.subr.bf16.mxu0 0
    %2594 = vmatpush1.bf16.msra.mxu0 0
    %2595 = vmatprep.subr.bf16.mxu0 0
    %2596 = vmatpush1.bf16.msra.mxu0 0
    %2597 = vmatprep.subr.bf16.mxu0 0
    %2598 = vmatpush1.bf16.msra.mxu0 0
    %2599 = vmatprep.subr.bf16.mxu0 0
    %2600 = vmatpush1.bf16.msra.mxu0 0
    %2601 = vmatprep.subr.bf16.mxu0 0
    %2602 = vmatpush1.bf16.msra.mxu0 0
    %2603 = vmatprep.subr.bf16.mxu0 0
    %2604 = vmatpush1.bf16.msra.mxu0 0
    %2605 = vmatprep.subr.bf16.mxu0 0
    %2606 = vmatpush1.bf16.msra.mxu0 0
    %2607 = vmatprep.mubr.bf16.mxu0 0
    %2608 = vmatmul.mubr.bf16.gmra.mrb[0].mxu0 %v2334
    %v2609 = vpop.f32.mrb[0].mxu0
    %v2610 = vadd.f32 0.0, %v2609
    %v2611 = vpop.f32.mrb[0].mxu0
    %v2612 = vadd.f32 0.0, %v2611
    %v2613 = vpop.f32.mrb[0].mxu0
    %v2614 = vpop.f32.mrb[0].mxu0
    %2615 = vdwg.mxu0
    %v2616 = vadd.f32 %v2338, %v2569
    %v2617 = vadd.f32 %v2339, %v2571
    %v2618 = vadd.f32 %v2340, %v2610
    %v2619 = vadd.f32 %v2341, %v2612
    %v2620 = vsub.f32 0.0, %v2616
    %v2621 = vmul.f32 %v2620, 1.442695
    %v2622 = vpow.pop %v2621
    %v2623 = vadd.f32 %v2622, 1.0
    %v2624 = vrcp.pop %v2623
    %v2625 = vsub.f32 0.0, %v2617
    %v2626 = vmul.f32 %v2625, 1.442695
    %v2627 = vpow.pop %v2626
    %v2628 = vadd.f32 %v2627, 1.0
    %v2629 = vrcp.pop %v2628
    %v2630 = vtanh.pop %v2618
    %v2631 = vsub.f32 0.0, %v2619
    %v2632 = vmul.f32 %v2631, 1.442695
    %v2633 = vpow.pop %v2632
    %v2634 = vadd.f32 %v2633, 1.0
    %v2635 = vrcp.pop %v2634
    %v2636 = vmul.f32 %v2629, %v2331
    %v2637 = vmul.f32 %v2624, %v2630
    %v2638 = vadd.f32 %v2636, %v2637
    %v2639 = vtanh.pop %v2638
    %v2640 = vmul.f32 %v2635, %v2639
    %v2641 = vpack.c.bf16 %v2640, %v2640
    %s2642 = scalar_lea.vmem [#allocation11], 24
    %2643 = vst [vmem:[%s2642] sm:$0xf] %v2641
    %s2644 = scalar_lea.vmem [#allocation4], 224
    %v2645 = vld [vmem:[%s2644] sm:$0xff]
    %v2646 = vld [vmem:[%s2644 + $0x8] sm:$0xff]
    %v2647 = vld [vmem:[%s2644 + $0x10] sm:$0xff]
    %v2648 = vld [vmem:[%s2644 + $0x18] sm:$0xff]
    %v2649 = vld [vmem:[#allocation10] sm:$0xff]
    %v2650 = vld [vmem:[#allocation10 + $0x8] sm:$0xff]
    %v2651 = vld [vmem:[#allocation10 + $0x10] sm:$0xff]
    %v2652 = vld [vmem:[#allocation10 + $0x18] sm:$0xff]
    %v2653 = vld [vmem:[#allocation10 + $0x20] sm:$0xff]
    %v2654 = vld [vmem:[#allocation10 + $0x28] sm:$0xff]
    %v2655 = vld [vmem:[#allocation10 + $0x30] sm:$0xff]
    %v2656 = vld [vmem:[#allocation10 + $0x38] sm:$0xff]
    %v2657 = vld [vmem:[#allocation10 + $0x40] sm:$0xff]
    %v2658 = vld [vmem:[#allocation10 + $0x48] sm:$0xff]
    %v2659 = vld [vmem:[#allocation10 + $0x50] sm:$0xff]
    %v2660 = vld [vmem:[#allocation10 + $0x58] sm:$0xff]
    %v2661 = vld [vmem:[#allocation10 + $0x60] sm:$0xff]
    %v2662 = vld [vmem:[#allocation10 + $0x68] sm:$0xff]
    %v2663 = vld [vmem:[#allocation10 + $0x70] sm:$0xff]
    %v2664 = vld [vmem:[#allocation10 + $0x78] sm:$0xff]
    %v2665 = vld [vmem:[#allocation10 + $0x80] sm:$0xff]
    %v2666 = vld [vmem:[#allocation10 + $0x88] sm:$0xff]
    %v2667 = vld [vmem:[#allocation10 + $0x90] sm:$0xff]
    %v2668 = vld [vmem:[#allocation10 + $0x98] sm:$0xff]
    %v2669 = vld [vmem:[#allocation10 + $0xa0] sm:$0xff]
    %v2670 = vld [vmem:[#allocation10 + $0xa8] sm:$0xff]
    %v2671 = vld [vmem:[#allocation10 + $0xb0] sm:$0xff]
    %v2672 = vld [vmem:[#allocation10 + $0xb8] sm:$0xff]
    %v2673 = vld [vmem:[#allocation10 + $0xc0] sm:$0xff]
    %v2674 = vld [vmem:[#allocation10 + $0xc8] sm:$0xff]
    %v2675 = vld [vmem:[#allocation10 + $0xd0] sm:$0xff]
    %v2676 = vld [vmem:[#allocation10 + $0xd8] sm:$0xff]
    %v2677 = vld [vmem:[#allocation10 + $0xe0] sm:$0xff]
    %v2678 = vld [vmem:[#allocation10 + $0xe8] sm:$0xff]
    %v2679 = vld [vmem:[#allocation10 + $0xf0] sm:$0xff]
    %v2680 = vld [vmem:[#allocation10 + $0xf8] sm:$0xff]
    %v2713 = vunpack.c.l.b16 %v2649
    %v2714 = vunpack.c.h.b16 %v2649
    %v2715 = vunpack.c.l.b16 %v2650
    %v2716 = vunpack.c.h.b16 %v2650
    %v2717 = vunpack.c.l.b16 %v2651
    %v2718 = vunpack.c.h.b16 %v2651
    %v2719 = vunpack.c.l.b16 %v2652
    %v2720 = vunpack.c.h.b16 %v2652
    %v2721 = vunpack.c.l.b16 %v2653
    %v2722 = vunpack.c.h.b16 %v2653
    %v2723 = vunpack.c.l.b16 %v2654
    %v2724 = vunpack.c.h.b16 %v2654
    %v2725 = vunpack.c.l.b16 %v2655
    %v2726 = vunpack.c.h.b16 %v2655
    %v2727 = vunpack.c.l.b16 %v2656
    %v2728 = vunpack.c.h.b16 %v2656
    %v2729 = vunpack.c.l.b16 %v2657
    %v2730 = vunpack.c.h.b16 %v2657
    %v2731 = vunpack.c.l.b16 %v2658
    %v2732 = vunpack.c.h.b16 %v2658
    %v2733 = vunpack.c.l.b16 %v2659
    %v2734 = vunpack.c.h.b16 %v2659
    %v2735 = vunpack.c.l.b16 %v2660
    %v2736 = vunpack.c.h.b16 %v2660
    %v2737 = vunpack.c.l.b16 %v2661
    %v2738 = vunpack.c.h.b16 %v2661
    %v2739 = vunpack.c.l.b16 %v2662
    %v2740 = vunpack.c.h.b16 %v2662
    %v2741 = vunpack.c.l.b16 %v2663
    %v2742 = vunpack.c.h.b16 %v2663
    %v2743 = vunpack.c.l.b16 %v2664
    %v2744 = vunpack.c.h.b16 %v2664
    %v2745 = vunpack.c.l.b16 %v2665
    %v2746 = vunpack.c.h.b16 %v2665
    %v2747 = vunpack.c.l.b16 %v2666
    %v2748 = vunpack.c.h.b16 %v2666
    %v2749 = vunpack.c.l.b16 %v2667
    %v2750 = vunpack.c.h.b16 %v2667
    %v2751 = vunpack.c.l.b16 %v2668
    %v2752 = vunpack.c.h.b16 %v2668
    %v2753 = vunpack.c.l.b16 %v2669
    %v2754 = vunpack.c.h.b16 %v2669
    %v2755 = vunpack.c.l.b16 %v2670
    %v2756 = vunpack.c.h.b16 %v2670
    %v2757 = vunpack.c.l.b16 %v2671
    %v2758 = vunpack.c.h.b16 %v2671
    %v2759 = vunpack.c.l.b16 %v2672
    %v2760 = vunpack.c.h.b16 %v2672
    %v2761 = vunpack.c.l.b16 %v2673
    %v2762 = vunpack.c.h.b16 %v2673
    %v2763 = vunpack.c.l.b16 %v2674
    %v2764 = vunpack.c.h.b16 %v2674
    %v2765 = vunpack.c.l.b16 %v2675
    %v2766 = vunpack.c.h.b16 %v2675
    %v2767 = vunpack.c.l.b16 %v2676
    %v2768 = vunpack.c.h.b16 %v2676
    %v2769 = vunpack.c.l.b16 %v2677
    %v2770 = vunpack.c.h.b16 %v2677
    %v2771 = vunpack.c.l.b16 %v2678
    %v2772 = vunpack.c.h.b16 %v2678
    %v2773 = vunpack.c.l.b16 %v2679
    %v2774 = vunpack.c.h.b16 %v2679
    %v2775 = vunpack.c.l.b16 %v2680
    %v2776 = vunpack.c.h.b16 %v2680
    %v2777 = vpack.c.b16 %v2717, %v2713
    %v2778 = vpack.c.b16 %v2718, %v2714
    %v2779 = vpack.c.b16 %v2719, %v2715
    %v2780 = vpack.c.b16 %v2720, %v2716
    %v2781 = vpack.c.b16 %v2725, %v2721
    %v2782 = vpack.c.b16 %v2726, %v2722
    %v2783 = vpack.c.b16 %v2727, %v2723
    %v2784 = vpack.c.b16 %v2728, %v2724
    %v2785 = vpack.c.b16 %v2733, %v2729
    %v2786 = vpack.c.b16 %v2734, %v2730
    %v2787 = vpack.c.b16 %v2735, %v2731
    %v2788 = vpack.c.b16 %v2736, %v2732
    %v2789 = vpack.c.b16 %v2741, %v2737
    %v2790 = vpack.c.b16 %v2742, %v2738
    %v2791 = vpack.c.b16 %v2743, %v2739
    %v2792 = vpack.c.b16 %v2744, %v2740
    %v2793 = vpack.c.b16 %v2749, %v2745
    %v2794 = vpack.c.b16 %v2750, %v2746
    %v2795 = vpack.c.b16 %v2751, %v2747
    %v2796 = vpack.c.b16 %v2752, %v2748
    %v2797 = vpack.c.b16 %v2757, %v2753
    %v2798 = vpack.c.b16 %v2758, %v2754
    %v2799 = vpack.c.b16 %v2759, %v2755
    %v2800 = vpack.c.b16 %v2760, %v2756
    %v2801 = vpack.c.b16 %v2765, %v2761
    %v2802 = vpack.c.b16 %v2766, %v2762
    %v2803 = vpack.c.b16 %v2767, %v2763
    %v2804 = vpack.c.b16 %v2768, %v2764
    %v2805 = vpack.c.b16 %v2773, %v2769
    %v2806 = vpack.c.b16 %v2774, %v2770
    %v2807 = vpack.c.b16 %v2775, %v2771
    %v2808 = vpack.c.b16 %v2776, %v2772
    %2841 = vmatprep.subr.bf16.mxu0 %v2778
    %2842 = vmatpush1.bf16.msra.mxu0 %v2777
    %2843 = vmatprep.subr.bf16.mxu0 %v2782
    %2844 = vmatpush1.bf16.msra.mxu0 %v2781
    %2845 = vmatprep.subr.bf16.mxu0 %v2786
    %2846 = vmatpush1.bf16.msra.mxu0 %v2785
    %2847 = vmatprep.subr.bf16.mxu0 %v2790
    %2848 = vmatpush1.bf16.msra.mxu0 %v2789
    %2849 = vmatprep.subr.bf16.mxu0 %v2794
    %2850 = vmatpush1.bf16.msra.mxu0 %v2793
    %2851 = vmatprep.subr.bf16.mxu0 %v2798
    %2852 = vmatpush1.bf16.msra.mxu0 %v2797
    %2853 = vmatprep.subr.bf16.mxu0 %v2802
    %2854 = vmatpush1.bf16.msra.mxu0 %v2801
    %2855 = vmatprep.subr.bf16.mxu0 %v2806
    %2856 = vmatpush1.bf16.msra.mxu0 %v2805
    %2857 = vmatprep.subr.bf16.mxu0 0
    %2858 = vmatpush1.bf16.msra.mxu0 0
    %2859 = vmatprep.subr.bf16.mxu0 0
    %2860 = vmatpush1.bf16.msra.mxu0 0
    %2861 = vmatprep.subr.bf16.mxu0 0
    %2862 = vmatpush1.bf16.msra.mxu0 0
    %2863 = vmatprep.subr.bf16.mxu0 0
    %2864 = vmatpush1.bf16.msra.mxu0 0
    %2865 = vmatprep.subr.bf16.mxu0 0
    %2866 = vmatpush1.bf16.msra.mxu0 0
    %2867 = vmatprep.subr.bf16.mxu0 0
    %2868 = vmatpush1.bf16.msra.mxu0 0
    %2869 = vmatprep.subr.bf16.mxu0 0
    %2870 = vmatpush1.bf16.msra.mxu0 0
    %2871 = vmatprep.subr.bf16.mxu0 0
    %2872 = vmatpush1.bf16.msra.mxu0 0
    %2873 = vmatprep.mubr.bf16.mxu0 0
    %2874 = vmatmul.mubr.bf16.gmra.mrb[0].mxu0 %v2641
    %v2875 = vpop.f32.mrb[0].mxu0
    %v2876 = vadd.f32 0.0, %v2875
    %v2877 = vpop.f32.mrb[0].mxu0
    %v2878 = vadd.f32 0.0, %v2877
    %v2879 = vpop.f32.mrb[0].mxu0
    %v2880 = vpop.f32.mrb[0].mxu0
    %2881 = vdwg.mxu0
    %2882 = vmatprep.subr.bf16.mxu0 %v2780
    %2883 = vmatpush1.bf16.msra.mxu0 %v2779
    %2884 = vmatprep.subr.bf16.mxu0 %v2784
    %2885 = vmatpush1.bf16.msra.mxu0 %v2783
    %2886 = vmatprep.subr.bf16.mxu0 %v2788
    %2887 = vmatpush1.bf16.msra.mxu0 %v2787
    %2888 = vmatprep.subr.bf16.mxu0 %v2792
    %2889 = vmatpush1.bf16.msra.mxu0 %v2791
    %2890 = vmatprep.subr.bf16.mxu0 %v2796
    %2891 = vmatpush1.bf16.msra.mxu0 %v2795
    %2892 = vmatprep.subr.bf16.mxu0 %v2800
    %2893 = vmatpush1.bf16.msra.mxu0 %v2799
    %2894 = vmatprep.subr.bf16.mxu0 %v2804
    %2895 = vmatpush1.bf16.msra.mxu0 %v2803
    %2896 = vmatprep.subr.bf16.mxu0 %v2808
    %2897 = vmatpush1.bf16.msra.mxu0 %v2807
    %2898 = vmatprep.subr.bf16.mxu0 0
    %2899 = vmatpush1.bf16.msra.mxu0 0
    %2900 = vmatprep.subr.bf16.mxu0 0
    %2901 = vmatpush1.bf16.msra.mxu0 0
    %2902 = vmatprep.subr.bf16.mxu0 0
    %2903 = vmatpush1.bf16.msra.mxu0 0
    %2904 = vmatprep.subr.bf16.mxu0 0
    %2905 = vmatpush1.bf16.msra.mxu0 0
    %2906 = vmatprep.subr.bf16.mxu0 0
    %2907 = vmatpush1.bf16.msra.mxu0 0
    %2908 = vmatprep.subr.bf16.mxu0 0
    %2909 = vmatpush1.bf16.msra.mxu0 0
    %2910 = vmatprep.subr.bf16.mxu0 0
    %2911 = vmatpush1.bf16.msra.mxu0 0
    %2912 = vmatprep.subr.bf16.mxu0 0
    %2913 = vmatpush1.bf16.msra.mxu0 0
    %2914 = vmatprep.mubr.bf16.mxu0 0
    %2915 = vmatmul.mubr.bf16.gmra.mrb[0].mxu0 %v2641
    %v2916 = vpop.f32.mrb[0].mxu0
    %v2917 = vadd.f32 0.0, %v2916
    %v2918 = vpop.f32.mrb[0].mxu0
    %v2919 = vadd.f32 0.0, %v2918
    %v2920 = vpop.f32.mrb[0].mxu0
    %v2921 = vpop.f32.mrb[0].mxu0
    %2922 = vdwg.mxu0
    %v2923 = vadd.f32 %v2645, %v2876
    %v2924 = vadd.f32 %v2646, %v2878
    %v2925 = vadd.f32 %v2647, %v2917
    %v2926 = vadd.f32 %v2648, %v2919
    %v2927 = vsub.f32 0.0, %v2923
    %v2928 = vmul.f32 %v2927, 1.442695
    %v2929 = vpow.pop %v2928
    %v2930 = vadd.f32 %v2929, 1.0
    %v2931 = vrcp.pop %v2930
    %v2932 = vsub.f32 0.0, %v2924
    %v2933 = vmul.f32 %v2932, 1.442695
    %v2934 = vpow.pop %v2933
    %v2935 = vadd.f32 %v2934, 1.0
    %v2936 = vrcp.pop %v2935
    %v2937 = vtanh.pop %v2925
    %v2938 = vsub.f32 0.0, %v2926
    %v2939 = vmul.f32 %v2938, 1.442695
    %v2940 = vpow.pop %v2939
    %v2941 = vadd.f32 %v2940, 1.0
    %v2942 = vrcp.pop %v2941
    %v2943 = vmul.f32 %v2936, %v2638
    %v2944 = vmul.f32 %v2931, %v2937
    %v2945 = vadd.f32 %v2943, %v2944
    %v2946 = vtanh.pop %v2945
    %v2947 = vmul.f32 %v2942, %v2946
    %v2948 = vpack.c.bf16 %v2947, %v2947
    %s2949 = scalar_lea.vmem [#allocation11], 28
    %2950 = vst [vmem:[%s2949] sm:$0xf] %v2948
    %2951 = vst [vmem:[#allocation2] sm:$0xff] %v2947
    %2952 = vst [vmem:[#allocation3] sm:$0xff] %v2945
    // Predicated region
    $region34: #{tpu_custom_call.1} parent=1 // pred_check
      %p2953 = pneg %p64
    $region35: #{tpu_custom_call.1} parent=1 // pred_check_branch
      %2955 = sbr.rel (%p2953) target = $region37
    $region36: #{tpu_custom_call.1} parent=1 // pred_region
      %2956 = vst [vmem:[#allocation12] sm:$0xff] %v2947
      %2957 = vst [vmem:[#allocation14] sm:$0xff] %v2945
    $region37: #{tpu_custom_call.1} parent=1 // pred_fallthru
      _
    // Predicated region
    $region38: #{tpu_custom_call.1} parent=1 // pred_check
      _
    $region39: #{tpu_custom_call.1} parent=1 // pred_check_branch
      %2959 = sbr.rel (0) target = $region41
    $region40: #{tpu_custom_call.1} parent=1 // pred_region
      %s2961 = ssub.s32 512, 512
      %2962 = vsyncadd [#allocation7], %s2961
      %s2963 = sshll.u32 [#allocation11], 4
      %s2964 = int_to_ptr.vmem [resolvable:$true] %s2963
      %2969 = dma.vmem_to_hbm [thread:$0]  %s2964, 512, %s4, [#allocation7], 64, 64, 4
    $region41: #{tpu_custom_call.1} parent=1 // pred_fallthru
      _
    // Predicated region
    $region42: #{tpu_custom_call.1} parent=1 // pred_check
      _
    $region43: #{tpu_custom_call.1} parent=1 // pred_check_branch
      %2971 = sbr.rel (0) target = $region45
    $region44: #{tpu_custom_call.1} parent=1 // pred_region
      %s2973 = ssub.s32 128, 128
      %2974 = vsyncadd [#allocation13], %s2973
      %s2976 = sshll.u32 [#allocation12], 4
      %s2977 = int_to_ptr.vmem [resolvable:$true] %s2976
      %2979 = dma.vmem_to_hbm [thread:$0]  %s2977, 128, %s5, [#allocation13]
    $region45: #{tpu_custom_call.1} parent=1 // pred_fallthru
      _
    // Predicated region
    $region46: #{tpu_custom_call.1} parent=1 // pred_check
      _
    $region47: #{tpu_custom_call.1} parent=1 // pred_check_branch
      %2981 = sbr.rel (0) target = $region49
    $region48: #{tpu_custom_call.1} parent=1 // pred_region
      %s2983 = ssub.s32 128, 128
      %2984 = vsyncadd [#allocation13], %s2983
      %s2986 = sshll.u32 [#allocation14], 4
      %s2987 = int_to_ptr.vmem [resolvable:$true] %s2986
      %2989 = dma.vmem_to_hbm [thread:$0]  %s2987, 128, %s6, [#allocation13]
    $region49: #{tpu_custom_call.1} parent=1 // pred_fallthru
      _
    // Predicated region
    $region50: #{tpu_custom_call.1} parent=1 // pred_check
      _
    $region51: #{tpu_custom_call.1} parent=1 // pred_check_branch
      %2991 = sbr.rel (0) target = $region53
    $region52: #{tpu_custom_call.1} parent=1 // pred_region
      %2992 = dma.done [#allocation7], 512
    $region53: #{tpu_custom_call.1} parent=1 // pred_fallthru
      _
    // Predicated region
    $region54: #{tpu_custom_call.1} parent=1 // pred_check
      _
    $region55: #{tpu_custom_call.1} parent=1 // pred_check_branch
      %2994 = sbr.rel (0) target = $region57
    $region56: #{tpu_custom_call.1} parent=1 // pred_region
      %2995 = dma.done [#allocation13], 128
    $region57: #{tpu_custom_call.1} parent=1 // pred_fallthru
      _
    // Predicated region
    $region58: #{tpu_custom_call.1} parent=1 // pred_check
      _
    $region59: #{tpu_custom_call.1} parent=1 // pred_check_branch
      %2997 = sbr.rel (0) target = $region61
    $region60: #{tpu_custom_call.1} parent=1 // pred_region
      %2998 = dma.done [#allocation13], 128
    $region61: #{tpu_custom_call.1} parent=1 // pred_fallthru
      _
    %2999 = vsyncpa [#allocation6], 1
    %3000 = vsyncpa [#allocation9], 1
    %3001 = vsyncpa [#allocation7], 1
    %3002 = vsyncpa [#allocation13], 1

</llo_original>
